<compile_context>
chip_gen: v6e
topology: v6e:2x2x1
jax: 0.10.0
libtpu: 0.0.40
codegen_flags: <defaults>
</compile_context>

<pallas_src>
import functools
import math

import jax
import jax.numpy as jnp
from jax.experimental import pallas as pl
from jax.experimental.pallas import tpu as pltpu

N_FREQS = 10
LOC_DIM = 3 * 2 * N_FREQS      # 60
LOC_PAD = 128                  # padded positional-encoding width (lane axis)
COORD_W = 8                    # narrow (x, y, z, 0, ...) input width
HID = 256
OUT_W = 8                      # narrow rgba output width (cols 0..3 valid)


def _nerf_kernel(coords_ref, pe_ref, w0s_ref, wh_ref, wout_ref, bh_ref,
                 bout_ref, out_ref, *, bf16_tail):
    f32 = jnp.float32
    bf16 = jnp.bfloat16
    act_dt = bf16 if bf16_tail else f32

    dot = functools.partial(jnp.dot, preferred_element_type=f32)

    # ---- positional encoding on the VPU (full f32 phase precision) ----------
    # pe rows 0..2: per-coordinate frequency selectors (2**i in the lanes that
    # belong to that coordinate, 0 elsewhere); row 3: +pi/2 phase for the cos
    # columns.  Pad lanes (>= 60) are all zero -> sin(0) == 0 exactly, and the
    # corresponding weight rows are zero-padded too.
    pe = pe_ref[...]                                   # (4, 128) f32
    c = coords_ref[...]                                # (tile_m, 8) f32
    arg = (c[:, 0:1] * pe[0:1, :]
           + c[:, 1:2] * pe[1:2, :]
           + c[:, 2:3] * pe[2:3, :]
           + pe[3:4, :])                               # (tile_m, 128) f32
    loc = jnp.sin(arg).astype(bf16)                    # matmul operand

    biases = bh_ref[...].astype(act_dt)                # (8, 1, 256)

    def act(pre_f32, b):
        # bias add + ReLU in act_dt (bf16 on v6e/v7x, f32 on v5e)
        return jnp.maximum(pre_f32.astype(act_dt) + b, 0.0)

    # ---- layer 0 + skip pre-activation in one matmul -------------------------
    h = dot(loc, w0s_ref[...])                         # (tile_m, 512) f32
    skip = h[:, HID:].astype(act_dt)                   # held until layer 4
    t = act(h[:, :HID], biases[0])

    # ---- MLP trunk: bf16 operands, f32 accumulation ---------------------------
    t = act(dot(t.astype(bf16), wh_ref[0]), biases[1])
    t = act(dot(t.astype(bf16), wh_ref[1]), biases[2])
    t = act(dot(t.astype(bf16), wh_ref[2]), biases[3])
    # skip connection cat([t, location], -1) @ W4 expressed as a split matmul
    t = jnp.maximum(
        dot(t.astype(bf16), wh_ref[3]).astype(act_dt) + skip + biases[4], 0.0)
    t = act(dot(t.astype(bf16), wh_ref[4]), biases[5])
    t = act(dot(t.astype(bf16), wh_ref[5]), biases[6])
    t = act(dot(t.astype(bf16), wh_ref[6]), biases[7])
    t = dot(t.astype(bf16), wout_ref[...]) + bout_ref[...]   # (tile_m, 8) f32

    # ---- heads: one exp shared by sigmoid (cols 0..2) and softplus (col 3) ---
    ko = jax.lax.broadcasted_iota(jnp.int32, (1, OUT_W), 1)
    e = jnp.exp(-jnp.abs(t))
    inv = pl.reciprocal(1.0 + e, approx=True)
    sig = jnp.where(t >= 0.0, inv, e * inv)
    softplus = jnp.maximum(t, 0.0) + jnp.log(1.0 + e)
    out_ref[...] = jnp.where(ko < 3, sig, jnp.where(ko == 3, softplus, 0.0))


def _pad_to(a, shape):
    out = jnp.zeros(shape, a.dtype)
    return out.at[tuple(slice(0, s) for s in a.shape)].set(a)


def init_params(key):
    """Deterministic Linear params stored as [in, out]  (y = x @ W + b)."""
    def linear(k, fan_in, fan_out):
        kw, kb = jax.random.split(k)
        bound = 1.0 / float(fan_in) ** 0.5
        w = jax.random.uniform(kw, (fan_in, fan_out), jnp.float32, -bound, bound)
        b = jax.random.uniform(kb, (fan_out,), jnp.float32, -bound, bound)
        return w, b

    keys = jax.random.split(key, 9)
    raw = {}
    raw["w0"], raw["b0"] = linear(keys[0], LOC_DIM, HID)
    raw["w1"], raw["b1"] = linear(keys[1], HID, HID)
    raw["w2"], raw["b2"] = linear(keys[2], HID, HID)
    raw["w3"], raw["b3"] = linear(keys[3], HID, HID)
    raw["w4"], raw["b4"] = linear(keys[4], HID + LOC_DIM, HID)
    raw["w5"], raw["b5"] = linear(keys[5], HID, HID)
    raw["w6"], raw["b6"] = linear(keys[6], HID, HID)
    raw["w7"], raw["b7"] = linear(keys[7], HID, HID)
    raw["wout"], raw["bout"] = linear(keys[8], HID, 4)

    # ---- hoisted positional-encoding constants (freq folded into selectors) --
    # column k of the encoding: k = 20*j + 2*i + p  (j=coord, i=freq, p=sin/cos)
    k = jnp.arange(LOC_PAD)
    valid = k < LOC_DIM
    j = k // (2 * N_FREQS)
    i = (k % (2 * N_FREQS)) // 2
    p = k % 2
    freq = jnp.where(valid, jnp.exp2(i.astype(jnp.float32)), 0.0)
    phase = jnp.where(valid, p.astype(jnp.float32) * (math.pi / 2.0), 0.0)
    pe = jnp.stack([jnp.where(valid & (j == c), freq, 0.0) for c in range(3)]
                   + [phase], axis=0).astype(jnp.float32)          # (4, 128)

    # ---- kernel-ordered weights: bf16 storage, f32 biases --------------------
    bf16 = jnp.bfloat16
    w0 = _pad_to(raw["w0"], (LOC_PAD, HID))
    w4b = _pad_to(raw["w4"][HID:], (LOC_PAD, HID))     # location part of skip
    w0s = jnp.concatenate([w0, w4b], axis=1).astype(bf16)          # (128, 512)
    wh = jnp.stack([raw["w1"], raw["w2"], raw["w3"], raw["w4"][:HID],
                    raw["w5"], raw["w6"], raw["w7"]], 0).astype(bf16)  # (7,256,256)
    wout = _pad_to(raw["wout"], (HID, OUT_W)).astype(bf16)             # (256,8)
    bh = jnp.stack([raw["b0"], raw["b1"], raw["b2"], raw["b3"], raw["b4"],
                    raw["b5"], raw["b6"], raw["b7"]], 0)[:, None, :]   # (8,1,256)
    bout = _pad_to(raw["bout"], (OUT_W,))[None, :]                     # (1,8)

    kparams = [pe, w0s, wh, wout, bh, bout]
    return raw, kparams


def _const_spec(arr):
    # Full-array block with a constant index map -> fetched once, kept resident.
    return pl.BlockSpec(arr.shape, lambda i, _nd=arr.ndim: (0,) * _nd)


def _tpu_generation():
    try:
        kind = jax.devices()[0].device_kind.lower()
    except Exception:
        return 6
    for g in (7, 6, 5, 4, 3, 2):
        if ("v%d" % g) in kind:
            return g
    return 6


def _round_up(a, m):
    return (a + m - 1) // m * m


@functools.partial(jax.jit, static_argnames=("tile_m",))
def nerf_forward(kparams, x, y, z, phi, theta, *, tile_m=2048):
    del phi, theta  # unused by the reference forward, kept for signature parity
    n = x.shape[0]
    gen = _tpu_generation()
    bf16_tail = gen >= 6   # v5e and older: no bf16 VALU -> keep f32 tail

    n8 = _round_up(n, 8)
    tm = max(8, min(tile_m, 4096, n8))
    tm = (tm // 8) * 8
    if gen >= 7:
        # dual-TensorCore chip: many grid steps so both cores pipeline/balance.
        # TODO(synk): try pltpu.CORE_PARALLEL dimension semantics on v7x.
        while n8 // tm < 16 and tm >= 512:
            tm //= 2
    n_pad = _round_up(n8, tm)

    coords = jnp.zeros((n_pad, COORD_W), jnp.float32)
    coords = coords.at[:n, 0].set(x).at[:n, 1].set(y).at[:n, 2].set(z)

    vmem_limit = (32 if tm <= 2048 else 48) * 1024 * 1024

    out = pl.pallas_call(
        functools.partial(_nerf_kernel, bf16_tail=bf16_tail),
        out_shape=jax.ShapeDtypeStruct((n_pad, OUT_W), jnp.float32),
        grid=(n_pad // tm,),
        in_specs=[pl.BlockSpec((tm, COORD_W), lambda i: (i, 0))]
                 + [_const_spec(p) for p in kparams],
        out_specs=pl.BlockSpec((tm, OUT_W), lambda i: (i, 0)),
        compiler_params=pltpu.CompilerParams(
            dimension_semantics=("parallel",),
            vmem_limit_bytes=vmem_limit),
    )(coords, *kparams)
    return out[:n, :4]


def nerf_reference(raw, x, y, z):
    """Pure-JAX replica of the PyTorch forward (high-precision matmuls)."""
    hdot = functools.partial(jnp.dot, precision=jax.lax.Precision.HIGHEST)

    def pe(v):
        enc = []
        for i in range(N_FREQS):
            f = 2.0 ** i
            enc.append(jnp.sin(f * v))
            enc.append(jnp.cos(f * v))
        return jnp.stack(enc, -1)

    loc = jnp.concatenate([pe(x), pe(y), pe(z)], -1)
    relu = lambda v: jnp.maximum(v, 0.0)
    t = relu(hdot(loc, raw["w0"]) + raw["b0"])
    t = relu(hdot(t, raw["w1"]) + raw["b1"])
    t = relu(hdot(t, raw["w2"]) + raw["b2"])
    t = relu(hdot(t, raw["w3"]) + raw["b3"])
    t = relu(hdot(jnp.concatenate([t, loc], -1), raw["w4"]) + raw["b4"])
    t = relu(hdot(t, raw["w5"]) + raw["b5"])
    t = relu(hdot(t, raw["w6"]) + raw["b6"])
    t = relu(hdot(t, raw["w7"]) + raw["b7"])
    t = hdot(t, raw["wout"]) + raw["bout"]
    rgb = jax.nn.sigmoid(t[..., :3])
    a = jax.nn.softplus(t[..., 3])
    return jnp.concatenate([rgb, a[..., None]], -1)


if __name__ == "__main__":
    key = jax.random.PRNGKey(0)
    kp, kx, ky, kz, kphi, ktheta = jax.random.split(key, 6)
    raw, kparams = init_params(kp)

    N = 256  # number of sample points
    x = jax.random.uniform(kx, (N,), jnp.float32, -1.0, 1.0)
    y = jax.random.uniform(ky, (N,), jnp.float32, -1.0, 1.0)
    z = jax.random.uniform(kz, (N,), jnp.float32, -1.0, 1.0)
    phi = jax.random.uniform(kphi, (N,), jnp.float32, -1.0, 1.0)
    theta = jax.random.uniform(ktheta, (N,), jnp.float32, -1.0, 1.0)

    rgba = jax.block_until_ready(nerf_forward(kparams, x, y, z, phi, theta))
    assert rgba.shape == (N, 4)
    assert bool(jnp.all(jnp.isfinite(rgba)))

    ref = nerf_reference(raw, x, y, z)
    max_err = float(jnp.max(jnp.abs(rgba - ref)))
    assert max_err < 2e-2, f"max abs error vs reference: {max_err}"

    print("KERNEL_OK")
</pallas_src>

<mosaic_0001>
module attributes {stable_mosaic.version = 11 : i64} {
  func.func @_nerf_kernel(%arg0: i32, %arg1: memref<256x8xf32, #tpu.memory_space<vmem>>, %arg2: memref<4x128xf32, #tpu.memory_space<vmem>>, %arg3: memref<128x512xbf16, #tpu.memory_space<vmem>>, %arg4: memref<7x256x256xbf16, #tpu.memory_space<vmem>>, %arg5: memref<256x8xbf16, #tpu.memory_space<vmem>>, %arg6: memref<8x1x256xf32, #tpu.memory_space<vmem>>, %arg7: memref<1x8xf32, #tpu.memory_space<vmem>>, %arg8: memref<256x8xf32, #tpu.memory_space<vmem>>) attributes {dimension_semantics = [#tpu.dimension_semantics<parallel>], iteration_bounds = array<i64: 1>, scalar_prefetch = 0 : i64, scratch_operands = 0 : i64, tpu.core_type = #tpu.core_type<tc>, window_params = [{transform_indices = @transform_0, window_bounds = array<i64: 256, 8>}, {pipeline_mode = #tpu.pipeline_mode<synchronous>, transform_indices = @transform_1, window_bounds = array<i64: 4, 128>}, {pipeline_mode = #tpu.pipeline_mode<synchronous>, transform_indices = @transform_2, window_bounds = array<i64: 128, 512>}, {pipeline_mode = #tpu.pipeline_mode<synchronous>, transform_indices = @transform_3, window_bounds = array<i64: 7, 256, 256>}, {pipeline_mode = #tpu.pipeline_mode<synchronous>, transform_indices = @transform_4, window_bounds = array<i64: 256, 8>}, {pipeline_mode = #tpu.pipeline_mode<synchronous>, transform_indices = @transform_5, window_bounds = array<i64: 8, 1, 256>}, {pipeline_mode = #tpu.pipeline_mode<synchronous>, transform_indices = @transform_6, window_bounds = array<i64: 1, 8>}, {transform_indices = @transform_7, window_bounds = array<i64: 256, 8>}]} {
    %c0 = arith.constant 0 : index
    %c0_0 = arith.constant 0 : index
    %0 = vector.load %arg2[%c0, %c0_0] : memref<4x128xf32, #tpu.memory_space<vmem>>, vector<4x128xf32>
    %c0_1 = arith.constant 0 : index
    %c0_2 = arith.constant 0 : index
    %1 = vector.load %arg1[%c0_1, %c0_2] : memref<256x8xf32, #tpu.memory_space<vmem>>, vector<256x8xf32>
    %2 = vector.extract_strided_slice %1 {offsets = [0, 0], sizes = [256, 1], strides = [1, 1]} : vector<256x8xf32> to vector<256x1xf32>
    %3 = vector.extract_strided_slice %0 {offsets = [0, 0], sizes = [1, 128], strides = [1, 1]} : vector<4x128xf32> to vector<1x128xf32>
    %4 = vector.broadcast %2 : vector<256x1xf32> to vector<256x128xf32>
    %5 = vector.broadcast %3 : vector<1x128xf32> to vector<256x128xf32>
    %6 = arith.mulf %4, %5 : vector<256x128xf32>
    %7 = vector.extract_strided_slice %1 {offsets = [0, 1], sizes = [256, 1], strides = [1, 1]} : vector<256x8xf32> to vector<256x1xf32>
    %8 = vector.extract_strided_slice %0 {offsets = [1, 0], sizes = [1, 128], strides = [1, 1]} : vector<4x128xf32> to vector<1x128xf32>
    %9 = vector.broadcast %7 : vector<256x1xf32> to vector<256x128xf32>
    %10 = vector.broadcast %8 : vector<1x128xf32> to vector<256x128xf32>
    %11 = arith.mulf %9, %10 : vector<256x128xf32>
    %12 = arith.addf %6, %11 : vector<256x128xf32>
    %13 = vector.extract_strided_slice %1 {offsets = [0, 2], sizes = [256, 1], strides = [1, 1]} : vector<256x8xf32> to vector<256x1xf32>
    %14 = vector.extract_strided_slice %0 {offsets = [2, 0], sizes = [1, 128], strides = [1, 1]} : vector<4x128xf32> to vector<1x128xf32>
    %15 = vector.broadcast %13 : vector<256x1xf32> to vector<256x128xf32>
    %16 = vector.broadcast %14 : vector<1x128xf32> to vector<256x128xf32>
    %17 = arith.mulf %15, %16 : vector<256x128xf32>
    %18 = arith.addf %12, %17 : vector<256x128xf32>
    %19 = vector.extract_strided_slice %0 {offsets = [3, 0], sizes = [1, 128], strides = [1, 1]} : vector<4x128xf32> to vector<1x128xf32>
    %20 = vector.broadcast %19 : vector<1x128xf32> to vector<256x128xf32>
    %21 = arith.addf %18, %20 : vector<256x128xf32>
    %22 = math.sin %21 : vector<256x128xf32>
    %23 = arith.truncf %22 : vector<256x128xf32> to vector<256x128xbf16>
    %c0_3 = arith.constant 0 : index
    %c0_4 = arith.constant 0 : index
    %c0_5 = arith.constant 0 : index
    %24 = vector.load %arg6[%c0_3, %c0_4, %c0_5] : memref<8x1x256xf32, #tpu.memory_space<vmem>>, vector<8x1x256xf32>
    %25 = arith.truncf %24 : vector<8x1x256xf32> to vector<8x1x256xbf16>
    %c0_6 = arith.constant 0 : index
    %c0_7 = arith.constant 0 : index
    %26 = vector.load %arg3[%c0_6, %c0_7] : memref<128x512xbf16, #tpu.memory_space<vmem>>, vector<128x512xbf16>
    %cst = arith.constant dense<0.000000e+00> : vector<256x512xf32>
    %27 = tpu.matmul %23, %26, %cst {dimension_numbers = #tpu.dot_dimension_numbers<[1], [0], [0], [1], [0, 0, 1, 1], [], []>} : vector<256x128xbf16>, vector<128x512xbf16>, vector<256x512xf32> -> vector<256x512xf32>
    %28 = vector.extract_strided_slice %27 {offsets = [0, 256], sizes = [256, 256], strides = [1, 1]} : vector<256x512xf32> to vector<256x256xf32>
    %29 = arith.truncf %28 : vector<256x256xf32> to vector<256x256xbf16>
    %30 = vector.extract_strided_slice %27 {offsets = [0, 0], sizes = [256, 256], strides = [1, 1]} : vector<256x512xf32> to vector<256x256xf32>
    %31 = vector.extract_strided_slice %25 {offsets = [0, 0, 0], sizes = [1, 1, 256], strides = [1, 1, 1]} : vector<8x1x256xbf16> to vector<1x1x256xbf16>
    %32 = vector.shape_cast %31 : vector<1x1x256xbf16> to vector<1x256xbf16>
    %33 = arith.truncf %30 : vector<256x256xf32> to vector<256x256xbf16>
    %34 = vector.broadcast %32 : vector<1x256xbf16> to vector<256x256xbf16>
    %35 = arith.addf %33, %34 : vector<256x256xbf16>
    %cst_8 = arith.constant 0.000000e+00 : bf16
    %36 = vector.broadcast %cst_8 : bf16 to vector<256x256xbf16>
    %37 = arith.maximumf %35, %36 : vector<256x256xbf16>
    %c0_9 = arith.constant 0 : index
    %c0_10 = arith.constant 0 : index
    %c0_11 = arith.constant 0 : index
    %38 = vector.load %arg4[%c0_9, %c0_10, %c0_11] : memref<7x256x256xbf16, #tpu.memory_space<vmem>>, vector<1x256x256xbf16>
    %39 = vector.shape_cast %38 : vector<1x256x256xbf16> to vector<256x256xbf16>
    %cst_12 = arith.constant dense<0.000000e+00> : vector<256x256xf32>
    %40 = tpu.matmul %37, %39, %cst_12 {dimension_numbers = #tpu.dot_dimension_numbers<[1], [0], [0], [1], [0, 0, 1, 1], [], []>} : vector<256x256xbf16>, vector<256x256xbf16>, vector<256x256xf32> -> vector<256x256xf32>
    %41 = vector.extract_strided_slice %25 {offsets = [1, 0, 0], sizes = [1, 1, 256], strides = [1, 1, 1]} : vector<8x1x256xbf16> to vector<1x1x256xbf16>
    %42 = vector.shape_cast %41 : vector<1x1x256xbf16> to vector<1x256xbf16>
    %43 = arith.truncf %40 : vector<256x256xf32> to vector<256x256xbf16>
    %44 = vector.broadcast %42 : vector<1x256xbf16> to vector<256x256xbf16>
    %45 = arith.addf %43, %44 : vector<256x256xbf16>
    %cst_13 = arith.constant 0.000000e+00 : bf16
    %46 = vector.broadcast %cst_13 : bf16 to vector<256x256xbf16>
    %47 = arith.maximumf %45, %46 : vector<256x256xbf16>
    %c1 = arith.constant 1 : index
    %c0_14 = arith.constant 0 : index
    %c0_15 = arith.constant 0 : index
    %48 = vector.load %arg4[%c1, %c0_14, %c0_15] : memref<7x256x256xbf16, #tpu.memory_space<vmem>>, vector<1x256x256xbf16>
    %49 = vector.shape_cast %48 : vector<1x256x256xbf16> to vector<256x256xbf16>
    %cst_16 = arith.constant dense<0.000000e+00> : vector<256x256xf32>
    %50 = tpu.matmul %47, %49, %cst_16 {dimension_numbers = #tpu.dot_dimension_numbers<[1], [0], [0], [1], [0, 0, 1, 1], [], []>} : vector<256x256xbf16>, vector<256x256xbf16>, vector<256x256xf32> -> vector<256x256xf32>
    %51 = vector.extract_strided_slice %25 {offsets = [2, 0, 0], sizes = [1, 1, 256], strides = [1, 1, 1]} : vector<8x1x256xbf16> to vector<1x1x256xbf16>
    %52 = vector.shape_cast %51 : vector<1x1x256xbf16> to vector<1x256xbf16>
    %53 = arith.truncf %50 : vector<256x256xf32> to vector<256x256xbf16>
    %54 = vector.broadcast %52 : vector<1x256xbf16> to vector<256x256xbf16>
    %55 = arith.addf %53, %54 : vector<256x256xbf16>
    %cst_17 = arith.constant 0.000000e+00 : bf16
    %56 = vector.broadcast %cst_17 : bf16 to vector<256x256xbf16>
    %57 = arith.maximumf %55, %56 : vector<256x256xbf16>
    %c2 = arith.constant 2 : index
    %c0_18 = arith.constant 0 : index
    %c0_19 = arith.constant 0 : index
    %58 = vector.load %arg4[%c2, %c0_18, %c0_19] : memref<7x256x256xbf16, #tpu.memory_space<vmem>>, vector<1x256x256xbf16>
    %59 = vector.shape_cast %58 : vector<1x256x256xbf16> to vector<256x256xbf16>
    %cst_20 = arith.constant dense<0.000000e+00> : vector<256x256xf32>
    %60 = tpu.matmul %57, %59, %cst_20 {dimension_numbers = #tpu.dot_dimension_numbers<[1], [0], [0], [1], [0, 0, 1, 1], [], []>} : vector<256x256xbf16>, vector<256x256xbf16>, vector<256x256xf32> -> vector<256x256xf32>
    %61 = vector.extract_strided_slice %25 {offsets = [3, 0, 0], sizes = [1, 1, 256], strides = [1, 1, 1]} : vector<8x1x256xbf16> to vector<1x1x256xbf16>
    %62 = vector.shape_cast %61 : vector<1x1x256xbf16> to vector<1x256xbf16>
    %63 = arith.truncf %60 : vector<256x256xf32> to vector<256x256xbf16>
    %64 = vector.broadcast %62 : vector<1x256xbf16> to vector<256x256xbf16>
    %65 = arith.addf %63, %64 : vector<256x256xbf16>
    %cst_21 = arith.constant 0.000000e+00 : bf16
    %66 = vector.broadcast %cst_21 : bf16 to vector<256x256xbf16>
    %67 = arith.maximumf %65, %66 : vector<256x256xbf16>
    %c3 = arith.constant 3 : index
    %c0_22 = arith.constant 0 : index
    %c0_23 = arith.constant 0 : index
    %68 = vector.load %arg4[%c3, %c0_22, %c0_23] : memref<7x256x256xbf16, #tpu.memory_space<vmem>>, vector<1x256x256xbf16>
    %69 = vector.shape_cast %68 : vector<1x256x256xbf16> to vector<256x256xbf16>
    %cst_24 = arith.constant dense<0.000000e+00> : vector<256x256xf32>
    %70 = tpu.matmul %67, %69, %cst_24 {dimension_numbers = #tpu.dot_dimension_numbers<[1], [0], [0], [1], [0, 0, 1, 1], [], []>} : vector<256x256xbf16>, vector<256x256xbf16>, vector<256x256xf32> -> vector<256x256xf32>
    %71 = arith.truncf %70 : vector<256x256xf32> to vector<256x256xbf16>
    %72 = arith.addf %71, %29 : vector<256x256xbf16>
    %73 = vector.extract_strided_slice %25 {offsets = [4, 0, 0], sizes = [1, 1, 256], strides = [1, 1, 1]} : vector<8x1x256xbf16> to vector<1x1x256xbf16>
    %74 = vector.shape_cast %73 : vector<1x1x256xbf16> to vector<1x256xbf16>
    %75 = vector.broadcast %74 : vector<1x256xbf16> to vector<256x256xbf16>
    %76 = arith.addf %72, %75 : vector<256x256xbf16>
    %cst_25 = arith.constant 0.000000e+00 : bf16
    %77 = vector.broadcast %cst_25 : bf16 to vector<256x256xbf16>
    %78 = arith.maximumf %76, %77 : vector<256x256xbf16>
    %c4 = arith.constant 4 : index
    %c0_26 = arith.constant 0 : index
    %c0_27 = arith.constant 0 : index
    %79 = vector.load %arg4[%c4, %c0_26, %c0_27] : memref<7x256x256xbf16, #tpu.memory_space<vmem>>, vector<1x256x256xbf16>
    %80 = vector.shape_cast %79 : vector<1x256x256xbf16> to vector<256x256xbf16>
    %cst_28 = arith.constant dense<0.000000e+00> : vector<256x256xf32>
    %81 = tpu.matmul %78, %80, %cst_28 {dimension_numbers = #tpu.dot_dimension_numbers<[1], [0], [0], [1], [0, 0, 1, 1], [], []>} : vector<256x256xbf16>, vector<256x256xbf16>, vector<256x256xf32> -> vector<256x256xf32>
    %82 = vector.extract_strided_slice %25 {offsets = [5, 0, 0], sizes = [1, 1, 256], strides = [1, 1, 1]} : vector<8x1x256xbf16> to vector<1x1x256xbf16>
    %83 = vector.shape_cast %82 : vector<1x1x256xbf16> to vector<1x256xbf16>
    %84 = arith.truncf %81 : vector<256x256xf32> to vector<256x256xbf16>
    %85 = vector.broadcast %83 : vector<1x256xbf16> to vector<256x256xbf16>
    %86 = arith.addf %84, %85 : vector<256x256xbf16>
    %cst_29 = arith.constant 0.000000e+00 : bf16
    %87 = vector.broadcast %cst_29 : bf16 to vector<256x256xbf16>
    %88 = arith.maximumf %86, %87 : vector<256x256xbf16>
    %c5 = arith.constant 5 : index
    %c0_30 = arith.constant 0 : index
    %c0_31 = arith.constant 0 : index
    %89 = vector.load %arg4[%c5, %c0_30, %c0_31] : memref<7x256x256xbf16, #tpu.memory_space<vmem>>, vector<1x256x256xbf16>
    %90 = vector.shape_cast %89 : vector<1x256x256xbf16> to vector<256x256xbf16>
    %cst_32 = arith.constant dense<0.000000e+00> : vector<256x256xf32>
    %91 = tpu.matmul %88, %90, %cst_32 {dimension_numbers = #tpu.dot_dimension_numbers<[1], [0], [0], [1], [0, 0, 1, 1], [], []>} : vector<256x256xbf16>, vector<256x256xbf16>, vector<256x256xf32> -> vector<256x256xf32>
    %92 = vector.extract_strided_slice %25 {offsets = [6, 0, 0], sizes = [1, 1, 256], strides = [1, 1, 1]} : vector<8x1x256xbf16> to vector<1x1x256xbf16>
    %93 = vector.shape_cast %92 : vector<1x1x256xbf16> to vector<1x256xbf16>
    %94 = arith.truncf %91 : vector<256x256xf32> to vector<256x256xbf16>
    %95 = vector.broadcast %93 : vector<1x256xbf16> to vector<256x256xbf16>
    %96 = arith.addf %94, %95 : vector<256x256xbf16>
    %cst_33 = arith.constant 0.000000e+00 : bf16
    %97 = vector.broadcast %cst_33 : bf16 to vector<256x256xbf16>
    %98 = arith.maximumf %96, %97 : vector<256x256xbf16>
    %c6 = arith.constant 6 : index
    %c0_34 = arith.constant 0 : index
    %c0_35 = arith.constant 0 : index
    %99 = vector.load %arg4[%c6, %c0_34, %c0_35] : memref<7x256x256xbf16, #tpu.memory_space<vmem>>, vector<1x256x256xbf16>
    %100 = vector.shape_cast %99 : vector<1x256x256xbf16> to vector<256x256xbf16>
    %cst_36 = arith.constant dense<0.000000e+00> : vector<256x256xf32>
    %101 = tpu.matmul %98, %100, %cst_36 {dimension_numbers = #tpu.dot_dimension_numbers<[1], [0], [0], [1], [0, 0, 1, 1], [], []>} : vector<256x256xbf16>, vector<256x256xbf16>, vector<256x256xf32> -> vector<256x256xf32>
    %102 = vector.extract_strided_slice %25 {offsets = [7, 0, 0], sizes = [1, 1, 256], strides = [1, 1, 1]} : vector<8x1x256xbf16> to vector<1x1x256xbf16>
    %103 = vector.shape_cast %102 : vector<1x1x256xbf16> to vector<1x256xbf16>
    %104 = arith.truncf %101 : vector<256x256xf32> to vector<256x256xbf16>
    %105 = vector.broadcast %103 : vector<1x256xbf16> to vector<256x256xbf16>
    %106 = arith.addf %104, %105 : vector<256x256xbf16>
    %cst_37 = arith.constant 0.000000e+00 : bf16
    %107 = vector.broadcast %cst_37 : bf16 to vector<256x256xbf16>
    %108 = arith.maximumf %106, %107 : vector<256x256xbf16>
    %c0_38 = arith.constant 0 : index
    %c0_39 = arith.constant 0 : index
    %109 = vector.load %arg5[%c0_38, %c0_39] : memref<256x8xbf16, #tpu.memory_space<vmem>>, vector<256x8xbf16>
    %cst_40 = arith.constant dense<0.000000e+00> : vector<256x8xf32>
    %110 = tpu.matmul %108, %109, %cst_40 {dimension_numbers = #tpu.dot_dimension_numbers<[1], [0], [0], [1], [0, 0, 1, 1], [], []>} : vector<256x256xbf16>, vector<256x8xbf16>, vector<256x8xf32> -> vector<256x8xf32>
    %c0_41 = arith.constant 0 : index
    %c0_42 = arith.constant 0 : index
    %111 = vector.load %arg7[%c0_41, %c0_42] : memref<1x8xf32, #tpu.memory_space<vmem>>, vector<1x8xf32>
    %112 = vector.broadcast %111 : vector<1x8xf32> to vector<256x8xf32>
    %113 = arith.addf %110, %112 : vector<256x8xf32>
    %114 = tpu.iota {dimensions = array<i32: 1>} : vector<1x8xi32>
    %115 = math.absf %113 : vector<256x8xf32>
    %cst_43 = arith.constant 0.000000e+00 : f32
    %116 = vector.broadcast %cst_43 : f32 to vector<256x8xf32>
    %117 = arith.subf %116, %115 : vector<256x8xf32>
    %118 = math.exp %117 : vector<256x8xf32>
    %cst_44 = arith.constant 1.000000e+00 : f32
    %119 = vector.broadcast %cst_44 : f32 to vector<256x8xf32>
    %120 = arith.addf %119, %118 : vector<256x8xf32>
    %121 = tpu.reciprocal %120 {approx = true} : vector<256x8xf32> -> vector<256x8xf32>
    %cst_45 = arith.constant 0.000000e+00 : f32
    %122 = vector.broadcast %cst_45 : f32 to vector<256x8xf32>
    %123 = arith.cmpf oge, %113, %122 : vector<256x8xf32>
    %124 = arith.mulf %118, %121 : vector<256x8xf32>
    %125 = arith.select %123, %121, %124 : vector<256x8xi1>, vector<256x8xf32>
    %cst_46 = arith.constant 0.000000e+00 : f32
    %126 = vector.broadcast %cst_46 : f32 to vector<256x8xf32>
    %127 = arith.maximumf %113, %126 : vector<256x8xf32>
    %cst_47 = arith.constant 1.000000e+00 : f32
    %128 = vector.broadcast %cst_47 : f32 to vector<256x8xf32>
    %129 = arith.addf %128, %118 : vector<256x8xf32>
    %130 = math.log %129 : vector<256x8xf32>
    %131 = arith.addf %127, %130 : vector<256x8xf32>
    %c3_i32 = arith.constant 3 : i32
    %132 = vector.broadcast %c3_i32 : i32 to vector<1x8xi32>
    %133 = arith.cmpi slt, %114, %132 : vector<1x8xi32>
    %c3_i32_48 = arith.constant 3 : i32
    %134 = vector.broadcast %c3_i32_48 : i32 to vector<1x8xi32>
    %135 = arith.cmpi eq, %114, %134 : vector<1x8xi32>
    %cst_49 = arith.constant 0.000000e+00 : f32
    %136 = vector.shape_cast %135 : vector<1x8xi1> to vector<1x8xi1>
    %137 = vector.broadcast %136 : vector<1x8xi1> to vector<256x8xi1>
    %138 = vector.broadcast %cst_49 : f32 to vector<256x8xf32>
    %139 = arith.select %137, %131, %138 : vector<256x8xi1>, vector<256x8xf32>
    %140 = vector.shape_cast %133 : vector<1x8xi1> to vector<1x8xi1>
    %141 = vector.broadcast %140 : vector<1x8xi1> to vector<256x8xi1>
    %142 = arith.select %141, %125, %139 : vector<256x8xi1>, vector<256x8xf32>
    %c0_50 = arith.constant 0 : index
    %c0_51 = arith.constant 0 : index
    %143 = vector.load %arg8[%c0_50, %c0_51] : memref<256x8xf32, #tpu.memory_space<vmem>>, vector<256x8xf32>
    tpu.vector_store %arg8[%c0_50, %c0_51], %142 {strides = array<i32>} : memref<256x8xf32, #tpu.memory_space<vmem>>, vector<256x8xf32>,
    return
  }
  func.func @transform_0(%arg0: i32) -> (i32, i32) {
    %c0_i32 = arith.constant 0 : i32
    %c0_i32_0 = arith.constant 0 : i32
    return %arg0, %c0_i32 : i32, i32
  }
  func.func @transform_1(%arg0: i32) -> (i32, i32) {
    %c0_i32 = arith.constant 0 : i32
    %c0_i32_0 = arith.constant 0 : i32
    %c0_i32_1 = arith.constant 0 : i32
    return %c0_i32, %c0_i32_0 : i32, i32
  }
  func.func @transform_2(%arg0: i32) -> (i32, i32) {
    %c0_i32 = arith.constant 0 : i32
    %c0_i32_0 = arith.constant 0 : i32
    %c0_i32_1 = arith.constant 0 : i32
    return %c0_i32, %c0_i32_0 : i32, i32
  }
  func.func @transform_3(%arg0: i32) -> (i32, i32, i32) {
    %c0_i32 = arith.constant 0 : i32
    %c0_i32_0 = arith.constant 0 : i32
    %c0_i32_1 = arith.constant 0 : i32
    %c0_i32_2 = arith.constant 0 : i32
    return %c0_i32, %c0_i32_0, %c0_i32_1 : i32, i32, i32
  }
  func.func @transform_4(%arg0: i32) -> (i32, i32) {
    %c0_i32 = arith.constant 0 : i32
    %c0_i32_0 = arith.constant 0 : i32
    %c0_i32_1 = arith.constant 0 : i32
    return %c0_i32, %c0_i32_0 : i32, i32
  }
  func.func @transform_5(%arg0: i32) -> (i32, i32, i32) {
    %c0_i32 = arith.constant 0 : i32
    %c0_i32_0 = arith.constant 0 : i32
    %c0_i32_1 = arith.constant 0 : i32
    %c0_i32_2 = arith.constant 0 : i32
    return %c0_i32, %c0_i32_0, %c0_i32_1 : i32, i32, i32
  }
  func.func @transform_6(%arg0: i32) -> (i32, i32) {
    %c0_i32 = arith.constant 0 : i32
    %c0_i32_0 = arith.constant 0 : i32
    %c0_i32_1 = arith.constant 0 : i32
    return %c0_i32, %c0_i32_0 : i32, i32
  }
  func.func @transform_7(%arg0: i32) -> (i32, i32) {
    %c0_i32 = arith.constant 0 : i32
    %c0_i32_0 = arith.constant 0 : i32
    return %arg0, %c0_i32 : i32, i32
  }
}

</mosaic_0001>

<llo_original>
// kernel: nerf_forward.1
$region0: #{nerf_forward.1}
  #allocation0 [shape = 'u32[]', space=smem, size = 0x4, offset = 0x4, fixed_abs, tag = 'smem constant byte address 0x4 - core index']
  #allocation1 [shape = 'u32[144,128]{1,0:T(1,128)}', space=vmem, size = 0x12000, scoped, tag = 'internal scratch']
  %s0 = inlined_call_operand.vmem [shape: f32[256,8], index: 0, kind: input, shape index: {}]
  %s1 = inlined_call_operand.vmem [shape: f32[4,128], index: 1, kind: input, shape index: {}]
  %s2 = inlined_call_operand.vmem [shape: bf16[128,512], index: 2, kind: input, shape index: {}]
  %s3 = inlined_call_operand.vmem [shape: bf16[7,256,256], index: 3, kind: input, shape index: {}]
  %s4 = inlined_call_operand.vmem [shape: bf16[256,8], index: 4, kind: input, shape index: {}]
  %s5 = inlined_call_operand.vmem [shape: f32[8,1,256], index: 5, kind: input, shape index: {}]
  %s6 = inlined_call_operand.vmem [shape: f32[1,8], index: 6, kind: input, shape index: {}]
  %s7 = inlined_call_operand.vmem [shape: f32[256,8], index: 7, kind: output, shape index: {}]
  %s8 = sld [smem:[#allocation0]]
  $region38: #{nerf_forward.1} parent=0
    _
  %s10 = ssub.s32 1, %s8
  %s11 = scalar_select 0, %s10, %s8
  // Predicated region
  $region2: #{nerf_forward.1} parent=0 // pred_check
    _
  $region3: #{nerf_forward.1} parent=0 // pred_check_branch
    %13 = sbr.rel (0) target = $region5
  $region4: #{nerf_forward.1} parent=0 // pred_region
    _
  $region5: #{nerf_forward.1} parent=0 // pred_fallthru
    _
  // Predicated region
  $region6: #{nerf_forward.1} parent=0 // pred_check
    _
  $region7: #{nerf_forward.1} parent=0 // pred_check_branch
    %15 = sbr.rel (0) target = $region9
  $region8: #{nerf_forward.1} parent=0 // pred_region
    _
  $region9: #{nerf_forward.1} parent=0 // pred_fallthru
    _
  // Predicated region
  $region10: #{nerf_forward.1} parent=0 // pred_check
    _
  $region11: #{nerf_forward.1} parent=0 // pred_check_branch
    %17 = sbr.rel (0) target = $region13
  $region12: #{nerf_forward.1} parent=0 // pred_region
    _
  $region13: #{nerf_forward.1} parent=0 // pred_fallthru
    _
  // Predicated region
  $region14: #{nerf_forward.1} parent=0 // pred_check
    _
  $region15: #{nerf_forward.1} parent=0 // pred_check_branch
    %19 = sbr.rel (0) target = $region17
  $region16: #{nerf_forward.1} parent=0 // pred_region
    _
  $region17: #{nerf_forward.1} parent=0 // pred_fallthru
    _
  // Predicated region
  $region18: #{nerf_forward.1} parent=0 // pred_check
    _
  $region19: #{nerf_forward.1} parent=0 // pred_check_branch
    %21 = sbr.rel (0) target = $region21
  $region20: #{nerf_forward.1} parent=0 // pred_region
    _
  $region21: #{nerf_forward.1} parent=0 // pred_fallthru
    _
  // Predicated region
  $region22: #{nerf_forward.1} parent=0 // pred_check
    _
  $region23: #{nerf_forward.1} parent=0 // pred_check_branch
    %23 = sbr.rel (0) target = $region25
  $region24: #{nerf_forward.1} parent=0 // pred_region
    _
  $region25: #{nerf_forward.1} parent=0 // pred_fallthru
    _
  // Predicated region
  $region26: #{nerf_forward.1} parent=0 // pred_check
    _
  $region27: #{nerf_forward.1} parent=0 // pred_check_branch
    %25 = sbr.rel (0) target = $region29
  $region28: #{nerf_forward.1} parent=0 // pred_region
    _
  $region29: #{nerf_forward.1} parent=0 // pred_fallthru
    _
  %v27 = vld [vmem:[%s1] sm:$0xf]
  %v28 = vld [vmem:[%s0] sm:$0xff]
  %v29 = vld [vmem:[%s0 + $0x8] sm:$0xff]
  %v30 = vld [vmem:[%s0 + $0x10] sm:$0xff]
  %v31 = vld [vmem:[%s0 + $0x18] sm:$0xff]
  %v32 = vld [vmem:[%s0 + $0x20] sm:$0xff]
  %v33 = vld [vmem:[%s0 + $0x28] sm:$0xff]
  %v34 = vld [vmem:[%s0 + $0x30] sm:$0xff]
  %v35 = vld [vmem:[%s0 + $0x38] sm:$0xff]
  %v36 = vld [vmem:[%s0 + $0x40] sm:$0xff]
  %v37 = vld [vmem:[%s0 + $0x48] sm:$0xff]
  %v38 = vld [vmem:[%s0 + $0x50] sm:$0xff]
  %v39 = vld [vmem:[%s0 + $0x58] sm:$0xff]
  %v40 = vld [vmem:[%s0 + $0x60] sm:$0xff]
  %v41 = vld [vmem:[%s0 + $0x68] sm:$0xff]
  %v42 = vld [vmem:[%s0 + $0x70] sm:$0xff]
  %v43 = vld [vmem:[%s0 + $0x78] sm:$0xff]
  %v44 = vld [vmem:[%s0 + $0x80] sm:$0xff]
  %v45 = vld [vmem:[%s0 + $0x88] sm:$0xff]
  %v46 = vld [vmem:[%s0 + $0x90] sm:$0xff]
  %v47 = vld [vmem:[%s0 + $0x98] sm:$0xff]
  %v48 = vld [vmem:[%s0 + $0xa0] sm:$0xff]
  %v49 = vld [vmem:[%s0 + $0xa8] sm:$0xff]
  %v50 = vld [vmem:[%s0 + $0xb0] sm:$0xff]
  %v51 = vld [vmem:[%s0 + $0xb8] sm:$0xff]
  %v52 = vld [vmem:[%s0 + $0xc0] sm:$0xff]
  %v53 = vld [vmem:[%s0 + $0xc8] sm:$0xff]
  %v54 = vld [vmem:[%s0 + $0xd0] sm:$0xff]
  %v55 = vld [vmem:[%s0 + $0xd8] sm:$0xff]
  %v56 = vld [vmem:[%s0 + $0xe0] sm:$0xff]
  %v57 = vld [vmem:[%s0 + $0xe8] sm:$0xff]
  %v58 = vld [vmem:[%s0 + $0xf0] sm:$0xff]
  %v59 = vld [vmem:[%s0 + $0xf8] sm:$0xff]
  %61 = vset.pattern.permute.xlu0 0
  %62 = vperm.xlu0 %61, %v28
  %v63 = vpop.permute.xlu0 %62
  %66 = vset.pattern.permute.xlu0 0
  %67 = vperm.xlu0 %66, %v29
  %v68 = vpop.permute.xlu0 %67
  %71 = vset.pattern.permute.xlu0 0
  %72 = vperm.xlu0 %71, %v30
  %v73 = vpop.permute.xlu0 %72
  %76 = vset.pattern.permute.xlu0 0
  %77 = vperm.xlu0 %76, %v31
  %v78 = vpop.permute.xlu0 %77
  %81 = vset.pattern.permute.xlu0 0
  %82 = vperm.xlu0 %81, %v32
  %v83 = vpop.permute.xlu0 %82
  %86 = vset.pattern.permute.xlu0 0
  %87 = vperm.xlu0 %86, %v33
  %v88 = vpop.permute.xlu0 %87
  %91 = vset.pattern.permute.xlu0 0
  %92 = vperm.xlu0 %91, %v34
  %v93 = vpop.permute.xlu0 %92
  %96 = vset.pattern.permute.xlu0 0
  %97 = vperm.xlu0 %96, %v35
  %v98 = vpop.permute.xlu0 %97
  %101 = vset.pattern.permute.xlu0 0
  %102 = vperm.xlu0 %101, %v36
  %v103 = vpop.permute.xlu0 %102
  %106 = vset.pattern.permute.xlu0 0
  %107 = vperm.xlu0 %106, %v37
  %v108 = vpop.permute.xlu0 %107
  %111 = vset.pattern.permute.xlu0 0
  %112 = vperm.xlu0 %111, %v38
  %v113 = vpop.permute.xlu0 %112
  %116 = vset.pattern.permute.xlu0 0
  %117 = vperm.xlu0 %116, %v39
  %v118 = vpop.permute.xlu0 %117
  %121 = vset.pattern.permute.xlu0 0
  %122 = vperm.xlu0 %121, %v40
  %v123 = vpop.permute.xlu0 %122
  %126 = vset.pattern.permute.xlu0 0
  %127 = vperm.xlu0 %126, %v41
  %v128 = vpop.permute.xlu0 %127
  %131 = vset.pattern.permute.xlu0 0
  %132 = vperm.xlu0 %131, %v42
  %v133 = vpop.permute.xlu0 %132
  %136 = vset.pattern.permute.xlu0 0
  %137 = vperm.xlu0 %136, %v43
  %v138 = vpop.permute.xlu0 %137
  %141 = vset.pattern.permute.xlu0 0
  %142 = vperm.xlu0 %141, %v44
  %v143 = vpop.permute.xlu0 %142
  %146 = vset.pattern.permute.xlu0 0
  %147 = vperm.xlu0 %146, %v45
  %v148 = vpop.permute.xlu0 %147
  %151 = vset.pattern.permute.xlu0 0
  %152 = vperm.xlu0 %151, %v46
  %v153 = vpop.permute.xlu0 %152
  %156 = vset.pattern.permute.xlu0 0
  %157 = vperm.xlu0 %156, %v47
  %v158 = vpop.permute.xlu0 %157
  %161 = vset.pattern.permute.xlu0 0
  %162 = vperm.xlu0 %161, %v48
  %v163 = vpop.permute.xlu0 %162
  %166 = vset.pattern.permute.xlu0 0
  %167 = vperm.xlu0 %166, %v49
  %v168 = vpop.permute.xlu0 %167
  %171 = vset.pattern.permute.xlu0 0
  %172 = vperm.xlu0 %171, %v50
  %v173 = vpop.permute.xlu0 %172
  %176 = vset.pattern.permute.xlu0 0
  %177 = vperm.xlu0 %176, %v51
  %v178 = vpop.permute.xlu0 %177
  %181 = vset.pattern.permute.xlu0 0
  %182 = vperm.xlu0 %181, %v52
  %v183 = vpop.permute.xlu0 %182
  %186 = vset.pattern.permute.xlu0 0
  %187 = vperm.xlu0 %186, %v53
  %v188 = vpop.permute.xlu0 %187
  %191 = vset.pattern.permute.xlu0 0
  %192 = vperm.xlu0 %191, %v54
  %v193 = vpop.permute.xlu0 %192
  %196 = vset.pattern.permute.xlu0 0
  %197 = vperm.xlu0 %196, %v55
  %v198 = vpop.permute.xlu0 %197
  %201 = vset.pattern.permute.xlu0 0
  %202 = vperm.xlu0 %201, %v56
  %v203 = vpop.permute.xlu0 %202
  %206 = vset.pattern.permute.xlu0 0
  %207 = vperm.xlu0 %206, %v57
  %v208 = vpop.permute.xlu0 %207
  %211 = vset.pattern.permute.xlu0 0
  %212 = vperm.xlu0 %211, %v58
  %v213 = vpop.permute.xlu0 %212
  %216 = vset.pattern.permute.xlu0 0
  %217 = vperm.xlu0 %216, %v59
  %v218 = vpop.permute.xlu0 %217
  %v220 = vlaneseq
  %v221 = vshrl.u32 %v220, 7
  %v222 = vsub.s32 0, %v221
  %v223 = vrot.slane %v27, %v222
  %v224 = vmul.f32 %v63, %v223
  %v225 = vmul.f32 %v68, %v223
  %v226 = vmul.f32 %v73, %v223
  %v227 = vmul.f32 %v78, %v223
  %v228 = vmul.f32 %v83, %v223
  %v229 = vmul.f32 %v88, %v223
  %v230 = vmul.f32 %v93, %v223
  %v231 = vmul.f32 %v98, %v223
  %v232 = vmul.f32 %v103, %v223
  %v233 = vmul.f32 %v108, %v223
  %v234 = vmul.f32 %v113, %v223
  %v235 = vmul.f32 %v118, %v223
  %v236 = vmul.f32 %v123, %v223
  %v237 = vmul.f32 %v128, %v223
  %v238 = vmul.f32 %v133, %v223
  %v239 = vmul.f32 %v138, %v223
  %v240 = vmul.f32 %v143, %v223
  %v241 = vmul.f32 %v148, %v223
  %v242 = vmul.f32 %v153, %v223
  %v243 = vmul.f32 %v158, %v223
  %v244 = vmul.f32 %v163, %v223
  %v245 = vmul.f32 %v168, %v223
  %v246 = vmul.f32 %v173, %v223
  %v247 = vmul.f32 %v178, %v223
  %v248 = vmul.f32 %v183, %v223
  %v249 = vmul.f32 %v188, %v223
  %v250 = vmul.f32 %v193, %v223
  %v251 = vmul.f32 %v198, %v223
  %v252 = vmul.f32 %v203, %v223
  %v253 = vmul.f32 %v208, %v223
  %v254 = vmul.f32 %v213, %v223
  %v255 = vmul.f32 %v218, %v223
  %256 = vset.pattern.permute.xlu0 1
  %257 = vperm.xlu0 %256, %v28
  %v258 = vpop.permute.xlu0 %257
  %260 = vset.pattern.permute.xlu0 1
  %261 = vperm.xlu0 %260, %v29
  %v262 = vpop.permute.xlu0 %261
  %264 = vset.pattern.permute.xlu0 1
  %265 = vperm.xlu0 %264, %v30
  %v266 = vpop.permute.xlu0 %265
  %268 = vset.pattern.permute.xlu0 1
  %269 = vperm.xlu0 %268, %v31
  %v270 = vpop.permute.xlu0 %269
  %272 = vset.pattern.permute.xlu0 1
  %273 = vperm.xlu0 %272, %v32
  %v274 = vpop.permute.xlu0 %273
  %276 = vset.pattern.permute.xlu0 1
  %277 = vperm.xlu0 %276, %v33
  %v278 = vpop.permute.xlu0 %277
  %280 = vset.pattern.permute.xlu0 1
  %281 = vperm.xlu0 %280, %v34
  %v282 = vpop.permute.xlu0 %281
  %284 = vset.pattern.permute.xlu0 1
  %285 = vperm.xlu0 %284, %v35
  %v286 = vpop.permute.xlu0 %285
  %288 = vset.pattern.permute.xlu0 1
  %289 = vperm.xlu0 %288, %v36
  %v290 = vpop.permute.xlu0 %289
  %292 = vset.pattern.permute.xlu0 1
  %293 = vperm.xlu0 %292, %v37
  %v294 = vpop.permute.xlu0 %293
  %296 = vset.pattern.permute.xlu0 1
  %297 = vperm.xlu0 %296, %v38
  %v298 = vpop.permute.xlu0 %297
  %300 = vset.pattern.permute.xlu0 1
  %301 = vperm.xlu0 %300, %v39
  %v302 = vpop.permute.xlu0 %301
  %304 = vset.pattern.permute.xlu0 1
  %305 = vperm.xlu0 %304, %v40
  %v306 = vpop.permute.xlu0 %305
  %308 = vset.pattern.permute.xlu0 1
  %309 = vperm.xlu0 %308, %v41
  %v310 = vpop.permute.xlu0 %309
  %312 = vset.pattern.permute.xlu0 1
  %313 = vperm.xlu0 %312, %v42
  %v314 = vpop.permute.xlu0 %313
  %316 = vset.pattern.permute.xlu0 1
  %317 = vperm.xlu0 %316, %v43
  %v318 = vpop.permute.xlu0 %317
  %320 = vset.pattern.permute.xlu0 1
  %321 = vperm.xlu0 %320, %v44
  %v322 = vpop.permute.xlu0 %321
  %324 = vset.pattern.permute.xlu0 1
  %325 = vperm.xlu0 %324, %v45
  %v326 = vpop.permute.xlu0 %325
  %328 = vset.pattern.permute.xlu0 1
  %329 = vperm.xlu0 %328, %v46
  %v330 = vpop.permute.xlu0 %329
  %332 = vset.pattern.permute.xlu0 1
  %333 = vperm.xlu0 %332, %v47
  %v334 = vpop.permute.xlu0 %333
  %336 = vset.pattern.permute.xlu0 1
  %337 = vperm.xlu0 %336, %v48
  %v338 = vpop.permute.xlu0 %337
  %340 = vset.pattern.permute.xlu0 1
  %341 = vperm.xlu0 %340, %v49
  %v342 = vpop.permute.xlu0 %341
  %344 = vset.pattern.permute.xlu0 1
  %345 = vperm.xlu0 %344, %v50
  %v346 = vpop.permute.xlu0 %345
  %348 = vset.pattern.permute.xlu0 1
  %349 = vperm.xlu0 %348, %v51
  %v350 = vpop.permute.xlu0 %349
  %352 = vset.pattern.permute.xlu0 1
  %353 = vperm.xlu0 %352, %v52
  %v354 = vpop.permute.xlu0 %353
  %356 = vset.pattern.permute.xlu0 1
  %357 = vperm.xlu0 %356, %v53
  %v358 = vpop.permute.xlu0 %357
  %360 = vset.pattern.permute.xlu0 1
  %361 = vperm.xlu0 %360, %v54
  %v362 = vpop.permute.xlu0 %361
  %364 = vset.pattern.permute.xlu0 1
  %365 = vperm.xlu0 %364, %v55
  %v366 = vpop.permute.xlu0 %365
  %368 = vset.pattern.permute.xlu0 1
  %369 = vperm.xlu0 %368, %v56
  %v370 = vpop.permute.xlu0 %369
  %372 = vset.pattern.permute.xlu0 1
  %373 = vperm.xlu0 %372, %v57
  %v374 = vpop.permute.xlu0 %373
  %376 = vset.pattern.permute.xlu0 1
  %377 = vperm.xlu0 %376, %v58
  %v378 = vpop.permute.xlu0 %377
  %380 = vset.pattern.permute.xlu0 1
  %381 = vperm.xlu0 %380, %v59
  %v382 = vpop.permute.xlu0 %381
  %v384 = vlaneseq
  %v385 = vshrl.u32 %v384, 7
  %v386 = vsub.s32 1, %v385
  %v387 = vrot.slane %v27, %v386
  %v388 = vmul.f32 %v258, %v387
  %v389 = vmul.f32 %v262, %v387
  %v390 = vmul.f32 %v266, %v387
  %v391 = vmul.f32 %v270, %v387
  %v392 = vmul.f32 %v274, %v387
  %v393 = vmul.f32 %v278, %v387
  %v394 = vmul.f32 %v282, %v387
  %v395 = vmul.f32 %v286, %v387
  %v396 = vmul.f32 %v290, %v387
  %v397 = vmul.f32 %v294, %v387
  %v398 = vmul.f32 %v298, %v387
  %v399 = vmul.f32 %v302, %v387
  %v400 = vmul.f32 %v306, %v387
  %v401 = vmul.f32 %v310, %v387
  %v402 = vmul.f32 %v314, %v387
  %v403 = vmul.f32 %v318, %v387
  %v404 = vmul.f32 %v322, %v387
  %v405 = vmul.f32 %v326, %v387
  %v406 = vmul.f32 %v330, %v387
  %v407 = vmul.f32 %v334, %v387
  %v408 = vmul.f32 %v338, %v387
  %v409 = vmul.f32 %v342, %v387
  %v410 = vmul.f32 %v346, %v387
  %v411 = vmul.f32 %v350, %v387
  %v412 = vmul.f32 %v354, %v387
  %v413 = vmul.f32 %v358, %v387
  %v414 = vmul.f32 %v362, %v387
  %v415 = vmul.f32 %v366, %v387
  %v416 = vmul.f32 %v370, %v387
  %v417 = vmul.f32 %v374, %v387
  %v418 = vmul.f32 %v378, %v387
  %v419 = vmul.f32 %v382, %v387
  %v420 = vadd.f32 %v224, %v388
  %v421 = vadd.f32 %v225, %v389
  %v422 = vadd.f32 %v226, %v390
  %v423 = vadd.f32 %v227, %v391
  %v424 = vadd.f32 %v228, %v392
  %v425 = vadd.f32 %v229, %v393
  %v426 = vadd.f32 %v230, %v394
  %v427 = vadd.f32 %v231, %v395
  %v428 = vadd.f32 %v232, %v396
  %v429 = vadd.f32 %v233, %v397
  %v430 = vadd.f32 %v234, %v398
  %v431 = vadd.f32 %v235, %v399
  %v432 = vadd.f32 %v236, %v400
  %v433 = vadd.f32 %v237, %v401
  %v434 = vadd.f32 %v238, %v402
  %v435 = vadd.f32 %v239, %v403
  %v436 = vadd.f32 %v240, %v404
  %v437 = vadd.f32 %v241, %v405
  %v438 = vadd.f32 %v242, %v406
  %v439 = vadd.f32 %v243, %v407
  %v440 = vadd.f32 %v244, %v408
  %v441 = vadd.f32 %v245, %v409
  %v442 = vadd.f32 %v246, %v410
  %v443 = vadd.f32 %v247, %v411
  %v444 = vadd.f32 %v248, %v412
  %v445 = vadd.f32 %v249, %v413
  %v446 = vadd.f32 %v250, %v414
  %v447 = vadd.f32 %v251, %v415
  %v448 = vadd.f32 %v252, %v416
  %v449 = vadd.f32 %v253, %v417
  %v450 = vadd.f32 %v254, %v418
  %v451 = vadd.f32 %v255, %v419
  %452 = vset.pattern.permute.xlu0 2
  %453 = vperm.xlu0 %452, %v28
  %v454 = vpop.permute.xlu0 %453
  %456 = vset.pattern.permute.xlu0 2
  %457 = vperm.xlu0 %456, %v29
  %v458 = vpop.permute.xlu0 %457
  %460 = vset.pattern.permute.xlu0 2
  %461 = vperm.xlu0 %460, %v30
  %v462 = vpop.permute.xlu0 %461
  %464 = vset.pattern.permute.xlu0 2
  %465 = vperm.xlu0 %464, %v31
  %v466 = vpop.permute.xlu0 %465
  %468 = vset.pattern.permute.xlu0 2
  %469 = vperm.xlu0 %468, %v32
  %v470 = vpop.permute.xlu0 %469
  %472 = vset.pattern.permute.xlu0 2
  %473 = vperm.xlu0 %472, %v33
  %v474 = vpop.permute.xlu0 %473
  %476 = vset.pattern.permute.xlu0 2
  %477 = vperm.xlu0 %476, %v34
  %v478 = vpop.permute.xlu0 %477
  %480 = vset.pattern.permute.xlu0 2
  %481 = vperm.xlu0 %480, %v35
  %v482 = vpop.permute.xlu0 %481
  %484 = vset.pattern.permute.xlu0 2
  %485 = vperm.xlu0 %484, %v36
  %v486 = vpop.permute.xlu0 %485
  %488 = vset.pattern.permute.xlu0 2
  %489 = vperm.xlu0 %488, %v37
  %v490 = vpop.permute.xlu0 %489
  %492 = vset.pattern.permute.xlu0 2
  %493 = vperm.xlu0 %492, %v38
  %v494 = vpop.permute.xlu0 %493
  %496 = vset.pattern.permute.xlu0 2
  %497 = vperm.xlu0 %496, %v39
  %v498 = vpop.permute.xlu0 %497
  %500 = vset.pattern.permute.xlu0 2
  %501 = vperm.xlu0 %500, %v40
  %v502 = vpop.permute.xlu0 %501
  %504 = vset.pattern.permute.xlu0 2
  %505 = vperm.xlu0 %504, %v41
  %v506 = vpop.permute.xlu0 %505
  %508 = vset.pattern.permute.xlu0 2
  %509 = vperm.xlu0 %508, %v42
  %v510 = vpop.permute.xlu0 %509
  %512 = vset.pattern.permute.xlu0 2
  %513 = vperm.xlu0 %512, %v43
  %v514 = vpop.permute.xlu0 %513
  %516 = vset.pattern.permute.xlu0 2
  %517 = vperm.xlu0 %516, %v44
  %v518 = vpop.permute.xlu0 %517
  %520 = vset.pattern.permute.xlu0 2
  %521 = vperm.xlu0 %520, %v45
  %v522 = vpop.permute.xlu0 %521
  %524 = vset.pattern.permute.xlu0 2
  %525 = vperm.xlu0 %524, %v46
  %v526 = vpop.permute.xlu0 %525
  %528 = vset.pattern.permute.xlu0 2
  %529 = vperm.xlu0 %528, %v47
  %v530 = vpop.permute.xlu0 %529
  %532 = vset.pattern.permute.xlu0 2
  %533 = vperm.xlu0 %532, %v48
  %v534 = vpop.permute.xlu0 %533
  %536 = vset.pattern.permute.xlu0 2
  %537 = vperm.xlu0 %536, %v49
  %v538 = vpop.permute.xlu0 %537
  %540 = vset.pattern.permute.xlu0 2
  %541 = vperm.xlu0 %540, %v50
  %v542 = vpop.permute.xlu0 %541
  %544 = vset.pattern.permute.xlu0 2
  %545 = vperm.xlu0 %544, %v51
  %v546 = vpop.permute.xlu0 %545
  %548 = vset.pattern.permute.xlu0 2
  %549 = vperm.xlu0 %548, %v52
  %v550 = vpop.permute.xlu0 %549
  %552 = vset.pattern.permute.xlu0 2
  %553 = vperm.xlu0 %552, %v53
  %v554 = vpop.permute.xlu0 %553
  %556 = vset.pattern.permute.xlu0 2
  %557 = vperm.xlu0 %556, %v54
  %v558 = vpop.permute.xlu0 %557
  %560 = vset.pattern.permute.xlu0 2
  %561 = vperm.xlu0 %560, %v55
  %v562 = vpop.permute.xlu0 %561
  %564 = vset.pattern.permute.xlu0 2
  %565 = vperm.xlu0 %564, %v56
  %v566 = vpop.permute.xlu0 %565
  %568 = vset.pattern.permute.xlu0 2
  %569 = vperm.xlu0 %568, %v57
  %v570 = vpop.permute.xlu0 %569
  %572 = vset.pattern.permute.xlu0 2
  %573 = vperm.xlu0 %572, %v58
  %v574 = vpop.permute.xlu0 %573
  %576 = vset.pattern.permute.xlu0 2
  %577 = vperm.xlu0 %576, %v59
  %v578 = vpop.permute.xlu0 %577
  %v580 = vlaneseq
  %v581 = vshrl.u32 %v580, 7
  %v582 = vsub.s32 2, %v581
  %v583 = vrot.slane %v27, %v582
  %v584 = vmul.f32 %v454, %v583
  %v585 = vmul.f32 %v458, %v583
  %v586 = vmul.f32 %v462, %v583
  %v587 = vmul.f32 %v466, %v583
  %v588 = vmul.f32 %v470, %v583
  %v589 = vmul.f32 %v474, %v583
  %v590 = vmul.f32 %v478, %v583
  %v591 = vmul.f32 %v482, %v583
  %v592 = vmul.f32 %v486, %v583
  %v593 = vmul.f32 %v490, %v583
  %v594 = vmul.f32 %v494, %v583
  %v595 = vmul.f32 %v498, %v583
  %v596 = vmul.f32 %v502, %v583
  %v597 = vmul.f32 %v506, %v583
  %v598 = vmul.f32 %v510, %v583
  %v599 = vmul.f32 %v514, %v583
  %v600 = vmul.f32 %v518, %v583
  %v601 = vmul.f32 %v522, %v583
  %v602 = vmul.f32 %v526, %v583
  %v603 = vmul.f32 %v530, %v583
  %v604 = vmul.f32 %v534, %v583
  %v605 = vmul.f32 %v538, %v583
  %v606 = vmul.f32 %v542, %v583
  %v607 = vmul.f32 %v546, %v583
  %v608 = vmul.f32 %v550, %v583
  %v609 = vmul.f32 %v554, %v583
  %v610 = vmul.f32 %v558, %v583
  %v611 = vmul.f32 %v562, %v583
  %v612 = vmul.f32 %v566, %v583
  %v613 = vmul.f32 %v570, %v583
  %v614 = vmul.f32 %v574, %v583
  %v615 = vmul.f32 %v578, %v583
  %v616 = vadd.f32 %v420, %v584
  %v617 = vadd.f32 %v421, %v585
  %v618 = vadd.f32 %v422, %v586
  %v619 = vadd.f32 %v423, %v587
  %v620 = vadd.f32 %v424, %v588
  %v621 = vadd.f32 %v425, %v589
  %v622 = vadd.f32 %v426, %v590
  %v623 = vadd.f32 %v427, %v591
  %v624 = vadd.f32 %v428, %v592
  %v625 = vadd.f32 %v429, %v593
  %v626 = vadd.f32 %v430, %v594
  %v627 = vadd.f32 %v431, %v595
  %v628 = vadd.f32 %v432, %v596
  %v629 = vadd.f32 %v433, %v597
  %v630 = vadd.f32 %v434, %v598
  %v631 = vadd.f32 %v435, %v599
  %v632 = vadd.f32 %v436, %v600
  %v633 = vadd.f32 %v437, %v601
  %v634 = vadd.f32 %v438, %v602
  %v635 = vadd.f32 %v439, %v603
  %v636 = vadd.f32 %v440, %v604
  %v637 = vadd.f32 %v441, %v605
  %v638 = vadd.f32 %v442, %v606
  %v639 = vadd.f32 %v443, %v607
  %v640 = vadd.f32 %v444, %v608
  %v641 = vadd.f32 %v445, %v609
  %v642 = vadd.f32 %v446, %v610
  %v643 = vadd.f32 %v447, %v611
  %v644 = vadd.f32 %v448, %v612
  %v645 = vadd.f32 %v449, %v613
  %v646 = vadd.f32 %v450, %v614
  %v647 = vadd.f32 %v451, %v615
  %v648 = vlaneseq
  %v649 = vshrl.u32 %v648, 7
  %v650 = vsub.s32 3, %v649
  %v651 = vrot.slane %v27, %v650
  %v652 = vadd.f32 %v616, %v651
  %v653 = vadd.f32 %v617, %v651
  %v654 = vadd.f32 %v618, %v651
  %v655 = vadd.f32 %v619, %v651
  %v656 = vadd.f32 %v620, %v651
  %v657 = vadd.f32 %v621, %v651
  %v658 = vadd.f32 %v622, %v651
  %v659 = vadd.f32 %v623, %v651
  %v660 = vadd.f32 %v624, %v651
  %v661 = vadd.f32 %v625, %v651
  %v662 = vadd.f32 %v626, %v651
  %v663 = vadd.f32 %v627, %v651
  %v664 = vadd.f32 %v628, %v651
  %v665 = vadd.f32 %v629, %v651
  %v666 = vadd.f32 %v630, %v651
  %v667 = vadd.f32 %v631, %v651
  %v668 = vadd.f32 %v632, %v651
  %v669 = vadd.f32 %v633, %v651
  %v670 = vadd.f32 %v634, %v651
  %v671 = vadd.f32 %v635, %v651
  %v672 = vadd.f32 %v636, %v651
  %v673 = vadd.f32 %v637, %v651
  %v674 = vadd.f32 %v638, %v651
  %v675 = vadd.f32 %v639, %v651
  %v676 = vadd.f32 %v640, %v651
  %v677 = vadd.f32 %v641, %v651
  %v678 = vadd.f32 %v642, %v651
  %v679 = vadd.f32 %v643, %v651
  %v680 = vadd.f32 %v644, %v651
  %v681 = vadd.f32 %v645, %v651
  %v682 = vadd.f32 %v646, %v651
  %v683 = vadd.f32 %v647, %v651
  %v684 = vand.u32 2147483647, %v652
  %vm685 = vcmp.le.f32.partialorder %v684, 0.7853982
  %vm686 = vcmp.lt.s32.totalorder %v652, 0
  %v687 = vand.u32 %v652, 2139095040
  %v688 = vshrl.u32 %v687, 23
  %v689 = vsub.s32 %v688, 127
  %v690 = vand.u32 2147483647, %v652
  %v691 = vand.u32 %v690, 8388607
  %v692 = vor.u32 %v691, 8388608
  %v693 = vsub.s32 0, %v692
  %v694 = vadd.s32 %v689, 1
  %vm695 = vcmp.gt.s32.totalorder %v694, 0
  %v696 = vsel %vm695, %v694, 0
  %v697 = vshrl.u32 %v696, 5
  %v698 = vand.u32 %v696, 31
  %v699 = vsub.s32 32, %v698
  %v700 = vshrl.u32 683565275, %v699
  %v701 = vshll.u32 683565275, %v698
  %v702 = vshrl.u32 2475754826, %v699
  %v703 = vor.u32 %v701, %v702
  %v704 = vshll.u32 2475754826, %v698
  %v705 = vshrl.u32 2131351028, %v699
  %v706 = vor.u32 %v704, %v705
  %v707 = vshll.u32 2131351028, %v698
  %v708 = vshrl.u32 2102212464, %v699
  %v709 = vor.u32 %v707, %v708
  %v710 = vshll.u32 2102212464, %v698
  %v711 = vshrl.u32 920167782, %v699
  %v712 = vor.u32 %v710, %v711
  %v713 = vshll.u32 920167782, %v698
  %v714 = vshrl.u32 1326507024, %v699
  %v715 = vor.u32 %v713, %v714
  %vm716 = vcmp.lt.s32.totalorder %v697, 1
  %vm717 = vcmp.lt.s32.totalorder %v697, 2
  %vm718 = vcmp.lt.s32.totalorder %v697, 3
  %vm719 = vcmp.lt.s32.totalorder %v697, 4
  %v720 = vsel %vm716, %v700, %v703
  %v721 = vsel %vm719, %v709, 2102212464
  %v722 = vsel %vm718, %v706, %v721
  %v723 = vsel %vm717, %v720, %v722
  %v724 = vsel %vm716, %v703, %v706
  %v725 = vsel %vm719, %v712, 920167782
  %v726 = vsel %vm718, %v709, %v725
  %v727 = vsel %vm717, %v724, %v726
  %v728 = vsel %vm716, %v706, %v709
  %v729 = vsel %vm719, %v715, 1326507024
  %v730 = vsel %vm718, %v712, %v729
  %v731 = vsel %vm717, %v728, %v730
  %v732 = vshll.u32 %v692, 8
  %v733 = vmul.u32.u64.compose %v732, %v731
  %v734 = vextract.low.u32 %v733
  %v735 = vextract.high.u32 %v733
  %v736 = vmul.u32.u64.compose %v732, %v727
  %v737 = vextract.low.u32 %v736
  %v738 = vextract.high.u32 %v736
  %v739 = vmul.u32 %v732, %v723
  %v740 = vadd.s32 %v735, %v737
  %vm741 = vc.u32 %v735, %v737
  %v742 = vadd.s32 %v738, 1
  %v743 = vsel %vm741, %v742, %v738
  %v744 = vadd.s32 %v739, %v743
  %v745 = vadd.s32 %v744, 536870912
  %v746 = vshrl.u32 %v745, 30
  %v747 = vshll.u32 %v746, 30
  %v748 = vsub.s32 %v744, %v747
  %vm749 = vcmp.lt.s32.totalorder %v748, 0
  %v750 = vsub.s32 0, %v748
  %v751 = vsel %vm749, %v750, %v748
  %v752 = vclz %v751
  %v753 = vsub.s32 %v752, 2
  %vm754 = vcmp.gt.s32.totalorder 0, %v753
  %v755 = vsel %vm754, 0, %v753
  %v756 = vsub.s32 32, %v755
  %v757 = vshll.u32 %v748, %v755
  %v758 = vshrl.u32 %v740, %v756
  %v759 = vor.u32 %v757, %v758
  %v760 = vsub.s32 4294967266, %v755
  %v761 = vadd.s32 %v760, 127
  %v762 = vshll.u32 %v761, 23
  %v763 = vor.u32 4788187, %v762
  %v764 = vand.u32 2147483647, %v763
  %v766 = vcvt.s32.f32 %v759
  %v767 = vmul.f32 %v766, %v764
  %v768 = vxor.u32 %v767, 2147483648
  %v769 = vsel %vm686, %v768, %v767
  %v770 = vsub.s32 4, %v746
  %v771 = vsel %vm686, %v770, %v746
  %v772 = vsel %vm685, %v652, %v769
  %v773 = vsel %vm685, 0, %v771
  %v774 = vcosq.f32.pop %v772
  %v775 = vsinq.f32.pop %v772
  %vm776 = vweird.f32 %v652
  %v777 = vadd.s32 %v773, 3
  %v778 = vand.u32 %v777, 3
  %vm779 = vcmp.lt.s32.totalorder %v778, 2
  %vm780 = vcmp.eq.s32.totalorder %v778, 0
  %v781 = vxor.u32 %v775, 2147483648
  %v782 = vsel %vm780, %v774, %v781
  %vm783 = vcmp.eq.s32.totalorder %v778, 2
  %v784 = vxor.u32 %v774, 2147483648
  %v785 = vsel %vm783, %v784, %v775
  %v786 = vsel %vm779, %v782, %v785
  %v787 = vsel %vm776, nan, %v786
  %v788 = vand.u32 2147483647, %v653
  %vm789 = vcmp.le.f32.partialorder %v788, 0.7853982
  %vm790 = vcmp.lt.s32.totalorder %v653, 0
  %v791 = vand.u32 %v653, 2139095040
  %v792 = vshrl.u32 %v791, 23
  %v793 = vsub.s32 %v792, 127
  %v794 = vand.u32 2147483647, %v653
  %v795 = vand.u32 %v794, 8388607
  %v796 = vor.u32 %v795, 8388608
  %v797 = vsub.s32 0, %v796
  %v798 = vadd.s32 %v793, 1
  %vm799 = vcmp.gt.s32.totalorder %v798, 0
  %v800 = vsel %vm799, %v798, 0
  %v801 = vshrl.u32 %v800, 5
  %v802 = vand.u32 %v800, 31
  %v803 = vsub.s32 32, %v802
  %v804 = vshrl.u32 683565275, %v803
  %v805 = vshll.u32 683565275, %v802
  %v806 = vshrl.u32 2475754826, %v803
  %v807 = vor.u32 %v805, %v806
  %v808 = vshll.u32 2475754826, %v802
  %v809 = vshrl.u32 2131351028, %v803
  %v810 = vor.u32 %v808, %v809
  %v811 = vshll.u32 2131351028, %v802
  %v812 = vshrl.u32 2102212464, %v803
  %v813 = vor.u32 %v811, %v812
  %v814 = vshll.u32 2102212464, %v802
  %v815 = vshrl.u32 920167782, %v803
  %v816 = vor.u32 %v814, %v815
  %v817 = vshll.u32 920167782, %v802
  %v818 = vshrl.u32 1326507024, %v803
  %v819 = vor.u32 %v817, %v818
  %vm820 = vcmp.lt.s32.totalorder %v801, 1
  %vm821 = vcmp.lt.s32.totalorder %v801, 2
  %vm822 = vcmp.lt.s32.totalorder %v801, 3
  %vm823 = vcmp.lt.s32.totalorder %v801, 4
  %v824 = vsel %vm820, %v804, %v807
  %v825 = vsel %vm823, %v813, 2102212464
  %v826 = vsel %vm822, %v810, %v825
  %v827 = vsel %vm821, %v824, %v826
  %v828 = vsel %vm820, %v807, %v810
  %v829 = vsel %vm823, %v816, 920167782
  %v830 = vsel %vm822, %v813, %v829
  %v831 = vsel %vm821, %v828, %v830
  %v832 = vsel %vm820, %v810, %v813
  %v833 = vsel %vm823, %v819, 1326507024
  %v834 = vsel %vm822, %v816, %v833
  %v835 = vsel %vm821, %v832, %v834
  %v836 = vshll.u32 %v796, 8
  %v837 = vmul.u32.u64.compose %v836, %v835
  %v838 = vextract.low.u32 %v837
  %v839 = vextract.high.u32 %v837
  %v840 = vmul.u32.u64.compose %v836, %v831
  %v841 = vextract.low.u32 %v840
  %v842 = vextract.high.u32 %v840
  %v843 = vmul.u32 %v836, %v827
  %v844 = vadd.s32 %v839, %v841
  %vm845 = vc.u32 %v839, %v841
  %v846 = vadd.s32 %v842, 1
  %v847 = vsel %vm845, %v846, %v842
  %v848 = vadd.s32 %v843, %v847
  %v849 = vadd.s32 %v848, 536870912
  %v850 = vshrl.u32 %v849, 30
  %v851 = vshll.u32 %v850, 30
  %v852 = vsub.s32 %v848, %v851
  %vm853 = vcmp.lt.s32.totalorder %v852, 0
  %v854 = vsub.s32 0, %v852
  %v855 = vsel %vm853, %v854, %v852
  %v856 = vclz %v855
  %v857 = vsub.s32 %v856, 2
  %vm858 = vcmp.gt.s32.totalorder 0, %v857
  %v859 = vsel %vm858, 0, %v857
  %v860 = vsub.s32 32, %v859
  %v861 = vshll.u32 %v852, %v859
  %v862 = vshrl.u32 %v844, %v860
  %v863 = vor.u32 %v861, %v862
  %v864 = vsub.s32 4294967266, %v859
  %v865 = vadd.s32 %v864, 127
  %v866 = vshll.u32 %v865, 23
  %v867 = vor.u32 4788187, %v866
  %v868 = vand.u32 2147483647, %v867
  %v870 = vcvt.s32.f32 %v863
  %v871 = vmul.f32 %v870, %v868
  %v872 = vxor.u32 %v871, 2147483648
  %v873 = vsel %vm790, %v872, %v871
  %v874 = vsub.s32 4, %v850
  %v875 = vsel %vm790, %v874, %v850
  %v876 = vsel %vm789, %v653, %v873
  %v877 = vsel %vm789, 0, %v875
  %v878 = vcosq.f32.pop %v876
  %v879 = vsinq.f32.pop %v876
  %vm880 = vweird.f32 %v653
  %v881 = vadd.s32 %v877, 3
  %v882 = vand.u32 %v881, 3
  %vm883 = vcmp.lt.s32.totalorder %v882, 2
  %vm884 = vcmp.eq.s32.totalorder %v882, 0
  %v885 = vxor.u32 %v879, 2147483648
  %v886 = vsel %vm884, %v878, %v885
  %vm887 = vcmp.eq.s32.totalorder %v882, 2
  %v888 = vxor.u32 %v878, 2147483648
  %v889 = vsel %vm887, %v888, %v879
  %v890 = vsel %vm883, %v886, %v889
  %v891 = vsel %vm880, nan, %v890
  %v892 = vand.u32 2147483647, %v654
  %vm893 = vcmp.le.f32.partialorder %v892, 0.7853982
  %vm894 = vcmp.lt.s32.totalorder %v654, 0
  %v895 = vand.u32 %v654, 2139095040
  %v896 = vshrl.u32 %v895, 23
  %v897 = vsub.s32 %v896, 127
  %v898 = vand.u32 2147483647, %v654
  %v899 = vand.u32 %v898, 8388607
  %v900 = vor.u32 %v899, 8388608
  %v901 = vsub.s32 0, %v900
  %v902 = vadd.s32 %v897, 1
  %vm903 = vcmp.gt.s32.totalorder %v902, 0
  %v904 = vsel %vm903, %v902, 0
  %v905 = vshrl.u32 %v904, 5
  %v906 = vand.u32 %v904, 31
  %v907 = vsub.s32 32, %v906
  %v908 = vshrl.u32 683565275, %v907
  %v909 = vshll.u32 683565275, %v906
  %v910 = vshrl.u32 2475754826, %v907
  %v911 = vor.u32 %v909, %v910
  %v912 = vshll.u32 2475754826, %v906
  %v913 = vshrl.u32 2131351028, %v907
  %v914 = vor.u32 %v912, %v913
  %v915 = vshll.u32 2131351028, %v906
  %v916 = vshrl.u32 2102212464, %v907
  %v917 = vor.u32 %v915, %v916
  %v918 = vshll.u32 2102212464, %v906
  %v919 = vshrl.u32 920167782, %v907
  %v920 = vor.u32 %v918, %v919
  %v921 = vshll.u32 920167782, %v906
  %v922 = vshrl.u32 1326507024, %v907
  %v923 = vor.u32 %v921, %v922
  %vm924 = vcmp.lt.s32.totalorder %v905, 1
  %vm925 = vcmp.lt.s32.totalorder %v905, 2
  %vm926 = vcmp.lt.s32.totalorder %v905, 3
  %vm927 = vcmp.lt.s32.totalorder %v905, 4
  %v928 = vsel %vm924, %v908, %v911
  %v929 = vsel %vm927, %v917, 2102212464
  %v930 = vsel %vm926, %v914, %v929
  %v931 = vsel %vm925, %v928, %v930
  %v932 = vsel %vm924, %v911, %v914
  %v933 = vsel %vm927, %v920, 920167782
  %v934 = vsel %vm926, %v917, %v933
  %v935 = vsel %vm925, %v932, %v934
  %v936 = vsel %vm924, %v914, %v917
  %v937 = vsel %vm927, %v923, 1326507024
  %v938 = vsel %vm926, %v920, %v937
  %v939 = vsel %vm925, %v936, %v938
  %v940 = vshll.u32 %v900, 8
  %v941 = vmul.u32.u64.compose %v940, %v939
  %v942 = vextract.low.u32 %v941
  %v943 = vextract.high.u32 %v941
  %v944 = vmul.u32.u64.compose %v940, %v935
  %v945 = vextract.low.u32 %v944
  %v946 = vextract.high.u32 %v944
  %v947 = vmul.u32 %v940, %v931
  %v948 = vadd.s32 %v943, %v945
  %vm949 = vc.u32 %v943, %v945
  %v950 = vadd.s32 %v946, 1
  %v951 = vsel %vm949, %v950, %v946
  %v952 = vadd.s32 %v947, %v951
  %v953 = vadd.s32 %v952, 536870912
  %v954 = vshrl.u32 %v953, 30
  %v955 = vshll.u32 %v954, 30
  %v956 = vsub.s32 %v952, %v955
  %vm957 = vcmp.lt.s32.totalorder %v956, 0
  %v958 = vsub.s32 0, %v956
  %v959 = vsel %vm957, %v958, %v956
  %v960 = vclz %v959
  %v961 = vsub.s32 %v960, 2
  %vm962 = vcmp.gt.s32.totalorder 0, %v961
  %v963 = vsel %vm962, 0, %v961
  %v964 = vsub.s32 32, %v963
  %v965 = vshll.u32 %v956, %v963
  %v966 = vshrl.u32 %v948, %v964
  %v967 = vor.u32 %v965, %v966
  %v968 = vsub.s32 4294967266, %v963
  %v969 = vadd.s32 %v968, 127
  %v970 = vshll.u32 %v969, 23
  %v971 = vor.u32 4788187, %v970
  %v972 = vand.u32 2147483647, %v971
  %v974 = vcvt.s32.f32 %v967
  %v975 = vmul.f32 %v974, %v972
  %v976 = vxor.u32 %v975, 2147483648
  %v977 = vsel %vm894, %v976, %v975
  %v978 = vsub.s32 4, %v954
  %v979 = vsel %vm894, %v978, %v954
  %v980 = vsel %vm893, %v654, %v977
  %v981 = vsel %vm893, 0, %v979
  %v982 = vcosq.f32.pop %v980
  %v983 = vsinq.f32.pop %v980
  %vm984 = vweird.f32 %v654
  %v985 = vadd.s32 %v981, 3
  %v986 = vand.u32 %v985, 3
  %vm987 = vcmp.lt.s32.totalorder %v986, 2
  %vm988 = vcmp.eq.s32.totalorder %v986, 0
  %v989 = vxor.u32 %v983, 2147483648
  %v990 = vsel %vm988, %v982, %v989
  %vm991 = vcmp.eq.s32.totalorder %v986, 2
  %v992 = vxor.u32 %v982, 2147483648
  %v993 = vsel %vm991, %v992, %v983
  %v994 = vsel %vm987, %v990, %v993
  %v995 = vsel %vm984, nan, %v994
  %v996 = vand.u32 2147483647, %v655
  %vm997 = vcmp.le.f32.partialorder %v996, 0.7853982
  %vm998 = vcmp.lt.s32.totalorder %v655, 0
  %v999 = vand.u32 %v655, 2139095040
  %v1000 = vshrl.u32 %v999, 23
  %v1001 = vsub.s32 %v1000, 127
  %v1002 = vand.u32 2147483647, %v655
  %v1003 = vand.u32 %v1002, 8388607
  %v1004 = vor.u32 %v1003, 8388608
  %v1005 = vsub.s32 0, %v1004
  %v1006 = vadd.s32 %v1001, 1
  %vm1007 = vcmp.gt.s32.totalorder %v1006, 0
  %v1008 = vsel %vm1007, %v1006, 0
  %v1009 = vshrl.u32 %v1008, 5
  %v1010 = vand.u32 %v1008, 31
  %v1011 = vsub.s32 32, %v1010
  %v1012 = vshrl.u32 683565275, %v1011
  %v1013 = vshll.u32 683565275, %v1010
  %v1014 = vshrl.u32 2475754826, %v1011
  %v1015 = vor.u32 %v1013, %v1014
  %v1016 = vshll.u32 2475754826, %v1010
  %v1017 = vshrl.u32 2131351028, %v1011
  %v1018 = vor.u32 %v1016, %v1017
  %v1019 = vshll.u32 2131351028, %v1010
  %v1020 = vshrl.u32 2102212464, %v1011
  %v1021 = vor.u32 %v1019, %v1020
  %v1022 = vshll.u32 2102212464, %v1010
  %v1023 = vshrl.u32 920167782, %v1011
  %v1024 = vor.u32 %v1022, %v1023
  %v1025 = vshll.u32 920167782, %v1010
  %v1026 = vshrl.u32 1326507024, %v1011
  %v1027 = vor.u32 %v1025, %v1026
  %vm1028 = vcmp.lt.s32.totalorder %v1009, 1
  %vm1029 = vcmp.lt.s32.totalorder %v1009, 2
  %vm1030 = vcmp.lt.s32.totalorder %v1009, 3
  %vm1031 = vcmp.lt.s32.totalorder %v1009, 4
  %v1032 = vsel %vm1028, %v1012, %v1015
  %v1033 = vsel %vm1031, %v1021, 2102212464
  %v1034 = vsel %vm1030, %v1018, %v1033
  %v1035 = vsel %vm1029, %v1032, %v1034
  %v1036 = vsel %vm1028, %v1015, %v1018
  %v1037 = vsel %vm1031, %v1024, 920167782
  %v1038 = vsel %vm1030, %v1021, %v1037
  %v1039 = vsel %vm1029, %v1036, %v1038
  %v1040 = vsel %vm1028, %v1018, %v1021
  %v1041 = vsel %vm1031, %v1027, 1326507024
  %v1042 = vsel %vm1030, %v1024, %v1041
  %v1043 = vsel %vm1029, %v1040, %v1042
  %v1044 = vshll.u32 %v1004, 8
  %v1045 = vmul.u32.u64.compose %v1044, %v1043
  %v1046 = vextract.low.u32 %v1045
  %v1047 = vextract.high.u32 %v1045
  %v1048 = vmul.u32.u64.compose %v1044, %v1039
  %v1049 = vextract.low.u32 %v1048
  %v1050 = vextract.high.u32 %v1048
  %v1051 = vmul.u32 %v1044, %v1035
  %v1052 = vadd.s32 %v1047, %v1049
  %vm1053 = vc.u32 %v1047, %v1049
  %v1054 = vadd.s32 %v1050, 1
  %v1055 = vsel %vm1053, %v1054, %v1050
  %v1056 = vadd.s32 %v1051, %v1055
  %v1057 = vadd.s32 %v1056, 536870912
  %v1058 = vshrl.u32 %v1057, 30
  %v1059 = vshll.u32 %v1058, 30
  %v1060 = vsub.s32 %v1056, %v1059
  %vm1061 = vcmp.lt.s32.totalorder %v1060, 0
  %v1062 = vsub.s32 0, %v1060
  %v1063 = vsel %vm1061, %v1062, %v1060
  %v1064 = vclz %v1063
  %v1065 = vsub.s32 %v1064, 2
  %vm1066 = vcmp.gt.s32.totalorder 0, %v1065
  %v1067 = vsel %vm1066, 0, %v1065
  %v1068 = vsub.s32 32, %v1067
  %v1069 = vshll.u32 %v1060, %v1067
  %v1070 = vshrl.u32 %v1052, %v1068
  %v1071 = vor.u32 %v1069, %v1070
  %v1072 = vsub.s32 4294967266, %v1067
  %v1073 = vadd.s32 %v1072, 127
  %v1074 = vshll.u32 %v1073, 23
  %v1075 = vor.u32 4788187, %v1074
  %v1076 = vand.u32 2147483647, %v1075
  %v1078 = vcvt.s32.f32 %v1071
  %v1079 = vmul.f32 %v1078, %v1076
  %v1080 = vxor.u32 %v1079, 2147483648
  %v1081 = vsel %vm998, %v1080, %v1079
  %v1082 = vsub.s32 4, %v1058
  %v1083 = vsel %vm998, %v1082, %v1058
  %v1084 = vsel %vm997, %v655, %v1081
  %v1085 = vsel %vm997, 0, %v1083
  %v1086 = vcosq.f32.pop %v1084
  %v1087 = vsinq.f32.pop %v1084
  %vm1088 = vweird.f32 %v655
  %v1089 = vadd.s32 %v1085, 3
  %v1090 = vand.u32 %v1089, 3
  %vm1091 = vcmp.lt.s32.totalorder %v1090, 2
  %vm1092 = vcmp.eq.s32.totalorder %v1090, 0
  %v1093 = vxor.u32 %v1087, 2147483648
  %v1094 = vsel %vm1092, %v1086, %v1093
  %vm1095 = vcmp.eq.s32.totalorder %v1090, 2
  %v1096 = vxor.u32 %v1086, 2147483648
  %v1097 = vsel %vm1095, %v1096, %v1087
  %v1098 = vsel %vm1091, %v1094, %v1097
  %v1099 = vsel %vm1088, nan, %v1098
  %v1100 = vand.u32 2147483647, %v656
  %vm1101 = vcmp.le.f32.partialorder %v1100, 0.7853982
  %vm1102 = vcmp.lt.s32.totalorder %v656, 0
  %v1103 = vand.u32 %v656, 2139095040
  %v1104 = vshrl.u32 %v1103, 23
  %v1105 = vsub.s32 %v1104, 127
  %v1106 = vand.u32 2147483647, %v656
  %v1107 = vand.u32 %v1106, 8388607
  %v1108 = vor.u32 %v1107, 8388608
  %v1109 = vsub.s32 0, %v1108
  %v1110 = vadd.s32 %v1105, 1
  %vm1111 = vcmp.gt.s32.totalorder %v1110, 0
  %v1112 = vsel %vm1111, %v1110, 0
  %v1113 = vshrl.u32 %v1112, 5
  %v1114 = vand.u32 %v1112, 31
  %v1115 = vsub.s32 32, %v1114
  %v1116 = vshrl.u32 683565275, %v1115
  %v1117 = vshll.u32 683565275, %v1114
  %v1118 = vshrl.u32 2475754826, %v1115
  %v1119 = vor.u32 %v1117, %v1118
  %v1120 = vshll.u32 2475754826, %v1114
  %v1121 = vshrl.u32 2131351028, %v1115
  %v1122 = vor.u32 %v1120, %v1121
  %v1123 = vshll.u32 2131351028, %v1114
  %v1124 = vshrl.u32 2102212464, %v1115
  %v1125 = vor.u32 %v1123, %v1124
  %v1126 = vshll.u32 2102212464, %v1114
  %v1127 = vshrl.u32 920167782, %v1115
  %v1128 = vor.u32 %v1126, %v1127
  %v1129 = vshll.u32 920167782, %v1114
  %v1130 = vshrl.u32 1326507024, %v1115
  %v1131 = vor.u32 %v1129, %v1130
  %vm1132 = vcmp.lt.s32.totalorder %v1113, 1
  %vm1133 = vcmp.lt.s32.totalorder %v1113, 2
  %vm1134 = vcmp.lt.s32.totalorder %v1113, 3
  %vm1135 = vcmp.lt.s32.totalorder %v1113, 4
  %v1136 = vsel %vm1132, %v1116, %v1119
  %v1137 = vsel %vm1135, %v1125, 2102212464
  %v1138 = vsel %vm1134, %v1122, %v1137
  %v1139 = vsel %vm1133, %v1136, %v1138
  %v1140 = vsel %vm1132, %v1119, %v1122
  %v1141 = vsel %vm1135, %v1128, 920167782
  %v1142 = vsel %vm1134, %v1125, %v1141
  %v1143 = vsel %vm1133, %v1140, %v1142
  %v1144 = vsel %vm1132, %v1122, %v1125
  %v1145 = vsel %vm1135, %v1131, 1326507024
  %v1146 = vsel %vm1134, %v1128, %v1145
  %v1147 = vsel %vm1133, %v1144, %v1146
  %v1148 = vshll.u32 %v1108, 8
  %v1149 = vmul.u32.u64.compose %v1148, %v1147
  %v1150 = vextract.low.u32 %v1149
  %v1151 = vextract.high.u32 %v1149
  %v1152 = vmul.u32.u64.compose %v1148, %v1143
  %v1153 = vextract.low.u32 %v1152
  %v1154 = vextract.high.u32 %v1152
  %v1155 = vmul.u32 %v1148, %v1139
  %v1156 = vadd.s32 %v1151, %v1153
  %vm1157 = vc.u32 %v1151, %v1153
  %v1158 = vadd.s32 %v1154, 1
  %v1159 = vsel %vm1157, %v1158, %v1154
  %v1160 = vadd.s32 %v1155, %v1159
  %v1161 = vadd.s32 %v1160, 536870912
  %v1162 = vshrl.u32 %v1161, 30
  %v1163 = vshll.u32 %v1162, 30
  %v1164 = vsub.s32 %v1160, %v1163
  %vm1165 = vcmp.lt.s32.totalorder %v1164, 0
  %v1166 = vsub.s32 0, %v1164
  %v1167 = vsel %vm1165, %v1166, %v1164
  %v1168 = vclz %v1167
  %v1169 = vsub.s32 %v1168, 2
  %vm1170 = vcmp.gt.s32.totalorder 0, %v1169
  %v1171 = vsel %vm1170, 0, %v1169
  %v1172 = vsub.s32 32, %v1171
  %v1173 = vshll.u32 %v1164, %v1171
  %v1174 = vshrl.u32 %v1156, %v1172
  %v1175 = vor.u32 %v1173, %v1174
  %v1176 = vsub.s32 4294967266, %v1171
  %v1177 = vadd.s32 %v1176, 127
  %v1178 = vshll.u32 %v1177, 23
  %v1179 = vor.u32 4788187, %v1178
  %v1180 = vand.u32 2147483647, %v1179
  %v1182 = vcvt.s32.f32 %v1175
  %v1183 = vmul.f32 %v1182, %v1180
  %v1184 = vxor.u32 %v1183, 2147483648
  %v1185 = vsel %vm1102, %v1184, %v1183
  %v1186 = vsub.s32 4, %v1162
  %v1187 = vsel %vm1102, %v1186, %v1162
  %v1188 = vsel %vm1101, %v656, %v1185
  %v1189 = vsel %vm1101, 0, %v1187
  %v1190 = vcosq.f32.pop %v1188
  %v1191 = vsinq.f32.pop %v1188
  %vm1192 = vweird.f32 %v656
  %v1193 = vadd.s32 %v1189, 3
  %v1194 = vand.u32 %v1193, 3
  %vm1195 = vcmp.lt.s32.totalorder %v1194, 2
  %vm1196 = vcmp.eq.s32.totalorder %v1194, 0
  %v1197 = vxor.u32 %v1191, 2147483648
  %v1198 = vsel %vm1196, %v1190, %v1197
  %vm1199 = vcmp.eq.s32.totalorder %v1194, 2
  %v1200 = vxor.u32 %v1190, 2147483648
  %v1201 = vsel %vm1199, %v1200, %v1191
  %v1202 = vsel %vm1195, %v1198, %v1201
  %v1203 = vsel %vm1192, nan, %v1202
  %v1204 = vand.u32 2147483647, %v657
  %vm1205 = vcmp.le.f32.partialorder %v1204, 0.7853982
  %vm1206 = vcmp.lt.s32.totalorder %v657, 0
  %v1207 = vand.u32 %v657, 2139095040
  %v1208 = vshrl.u32 %v1207, 23
  %v1209 = vsub.s32 %v1208, 127
  %v1210 = vand.u32 2147483647, %v657
  %v1211 = vand.u32 %v1210, 8388607
  %v1212 = vor.u32 %v1211, 8388608
  %v1213 = vsub.s32 0, %v1212
  %v1214 = vadd.s32 %v1209, 1
  %vm1215 = vcmp.gt.s32.totalorder %v1214, 0
  %v1216 = vsel %vm1215, %v1214, 0
  %v1217 = vshrl.u32 %v1216, 5
  %v1218 = vand.u32 %v1216, 31
  %v1219 = vsub.s32 32, %v1218
  %v1220 = vshrl.u32 683565275, %v1219
  %v1221 = vshll.u32 683565275, %v1218
  %v1222 = vshrl.u32 2475754826, %v1219
  %v1223 = vor.u32 %v1221, %v1222
  %v1224 = vshll.u32 2475754826, %v1218
  %v1225 = vshrl.u32 2131351028, %v1219
  %v1226 = vor.u32 %v1224, %v1225
  %v1227 = vshll.u32 2131351028, %v1218
  %v1228 = vshrl.u32 2102212464, %v1219
  %v1229 = vor.u32 %v1227, %v1228
  %v1230 = vshll.u32 2102212464, %v1218
  %v1231 = vshrl.u32 920167782, %v1219
  %v1232 = vor.u32 %v1230, %v1231
  %v1233 = vshll.u32 920167782, %v1218
  %v1234 = vshrl.u32 1326507024, %v1219
  %v1235 = vor.u32 %v1233, %v1234
  %vm1236 = vcmp.lt.s32.totalorder %v1217, 1
  %vm1237 = vcmp.lt.s32.totalorder %v1217, 2
  %vm1238 = vcmp.lt.s32.totalorder %v1217, 3
  %vm1239 = vcmp.lt.s32.totalorder %v1217, 4
  %v1240 = vsel %vm1236, %v1220, %v1223
  %v1241 = vsel %vm1239, %v1229, 2102212464
  %v1242 = vsel %vm1238, %v1226, %v1241
  %v1243 = vsel %vm1237, %v1240, %v1242
  %v1244 = vsel %vm1236, %v1223, %v1226
  %v1245 = vsel %vm1239, %v1232, 920167782
  %v1246 = vsel %vm1238, %v1229, %v1245
  %v1247 = vsel %vm1237, %v1244, %v1246
  %v1248 = vsel %vm1236, %v1226, %v1229
  %v1249 = vsel %vm1239, %v1235, 1326507024
  %v1250 = vsel %vm1238, %v1232, %v1249
  %v1251 = vsel %vm1237, %v1248, %v1250
  %v1252 = vshll.u32 %v1212, 8
  %v1253 = vmul.u32.u64.compose %v1252, %v1251
  %v1254 = vextract.low.u32 %v1253
  %v1255 = vextract.high.u32 %v1253
  %v1256 = vmul.u32.u64.compose %v1252, %v1247
  %v1257 = vextract.low.u32 %v1256
  %v1258 = vextract.high.u32 %v1256
  %v1259 = vmul.u32 %v1252, %v1243
  %v1260 = vadd.s32 %v1255, %v1257
  %vm1261 = vc.u32 %v1255, %v1257
  %v1262 = vadd.s32 %v1258, 1
  %v1263 = vsel %vm1261, %v1262, %v1258
  %v1264 = vadd.s32 %v1259, %v1263
  %v1265 = vadd.s32 %v1264, 536870912
  %v1266 = vshrl.u32 %v1265, 30
  %v1267 = vshll.u32 %v1266, 30
  %v1268 = vsub.s32 %v1264, %v1267
  %vm1269 = vcmp.lt.s32.totalorder %v1268, 0
  %v1270 = vsub.s32 0, %v1268
  %v1271 = vsel %vm1269, %v1270, %v1268
  %v1272 = vclz %v1271
  %v1273 = vsub.s32 %v1272, 2
  %vm1274 = vcmp.gt.s32.totalorder 0, %v1273
  %v1275 = vsel %vm1274, 0, %v1273
  %v1276 = vsub.s32 32, %v1275
  %v1277 = vshll.u32 %v1268, %v1275
  %v1278 = vshrl.u32 %v1260, %v1276
  %v1279 = vor.u32 %v1277, %v1278
  %v1280 = vsub.s32 4294967266, %v1275
  %v1281 = vadd.s32 %v1280, 127
  %v1282 = vshll.u32 %v1281, 23
  %v1283 = vor.u32 4788187, %v1282
  %v1284 = vand.u32 2147483647, %v1283
  %v1286 = vcvt.s32.f32 %v1279
  %v1287 = vmul.f32 %v1286, %v1284
  %v1288 = vxor.u32 %v1287, 2147483648
  %v1289 = vsel %vm1206, %v1288, %v1287
  %v1290 = vsub.s32 4, %v1266
  %v1291 = vsel %vm1206, %v1290, %v1266
  %v1292 = vsel %vm1205, %v657, %v1289
  %v1293 = vsel %vm1205, 0, %v1291
  %v1294 = vcosq.f32.pop %v1292
  %v1295 = vsinq.f32.pop %v1292
  %vm1296 = vweird.f32 %v657
  %v1297 = vadd.s32 %v1293, 3
  %v1298 = vand.u32 %v1297, 3
  %vm1299 = vcmp.lt.s32.totalorder %v1298, 2
  %vm1300 = vcmp.eq.s32.totalorder %v1298, 0
  %v1301 = vxor.u32 %v1295, 2147483648
  %v1302 = vsel %vm1300, %v1294, %v1301
  %vm1303 = vcmp.eq.s32.totalorder %v1298, 2
  %v1304 = vxor.u32 %v1294, 2147483648
  %v1305 = vsel %vm1303, %v1304, %v1295
  %v1306 = vsel %vm1299, %v1302, %v1305
  %v1307 = vsel %vm1296, nan, %v1306
  %v1308 = vand.u32 2147483647, %v658
  %vm1309 = vcmp.le.f32.partialorder %v1308, 0.7853982
  %vm1310 = vcmp.lt.s32.totalorder %v658, 0
  %v1311 = vand.u32 %v658, 2139095040
  %v1312 = vshrl.u32 %v1311, 23
  %v1313 = vsub.s32 %v1312, 127
  %v1314 = vand.u32 2147483647, %v658
  %v1315 = vand.u32 %v1314, 8388607
  %v1316 = vor.u32 %v1315, 8388608
  %v1317 = vsub.s32 0, %v1316
  %v1318 = vadd.s32 %v1313, 1
  %vm1319 = vcmp.gt.s32.totalorder %v1318, 0
  %v1320 = vsel %vm1319, %v1318, 0
  %v1321 = vshrl.u32 %v1320, 5
  %v1322 = vand.u32 %v1320, 31
  %v1323 = vsub.s32 32, %v1322
  %v1324 = vshrl.u32 683565275, %v1323
  %v1325 = vshll.u32 683565275, %v1322
  %v1326 = vshrl.u32 2475754826, %v1323
  %v1327 = vor.u32 %v1325, %v1326
  %v1328 = vshll.u32 2475754826, %v1322
  %v1329 = vshrl.u32 2131351028, %v1323
  %v1330 = vor.u32 %v1328, %v1329
  %v1331 = vshll.u32 2131351028, %v1322
  %v1332 = vshrl.u32 2102212464, %v1323
  %v1333 = vor.u32 %v1331, %v1332
  %v1334 = vshll.u32 2102212464, %v1322
  %v1335 = vshrl.u32 920167782, %v1323
  %v1336 = vor.u32 %v1334, %v1335
  %v1337 = vshll.u32 920167782, %v1322
  %v1338 = vshrl.u32 1326507024, %v1323
  %v1339 = vor.u32 %v1337, %v1338
  %vm1340 = vcmp.lt.s32.totalorder %v1321, 1
  %vm1341 = vcmp.lt.s32.totalorder %v1321, 2
  %vm1342 = vcmp.lt.s32.totalorder %v1321, 3
  %vm1343 = vcmp.lt.s32.totalorder %v1321, 4
  %v1344 = vsel %vm1340, %v1324, %v1327
  %v1345 = vsel %vm1343, %v1333, 2102212464
  %v1346 = vsel %vm1342, %v1330, %v1345
  %v1347 = vsel %vm1341, %v1344, %v1346
  %v1348 = vsel %vm1340, %v1327, %v1330
  %v1349 = vsel %vm1343, %v1336, 920167782
  %v1350 = vsel %vm1342, %v1333, %v1349
  %v1351 = vsel %vm1341, %v1348, %v1350
  %v1352 = vsel %vm1340, %v1330, %v1333
  %v1353 = vsel %vm1343, %v1339, 1326507024
  %v1354 = vsel %vm1342, %v1336, %v1353
  %v1355 = vsel %vm1341, %v1352, %v1354
  %v1356 = vshll.u32 %v1316, 8
  %v1357 = vmul.u32.u64.compose %v1356, %v1355
  %v1358 = vextract.low.u32 %v1357
  %v1359 = vextract.high.u32 %v1357
  %v1360 = vmul.u32.u64.compose %v1356, %v1351
  %v1361 = vextract.low.u32 %v1360
  %v1362 = vextract.high.u32 %v1360
  %v1363 = vmul.u32 %v1356, %v1347
  %v1364 = vadd.s32 %v1359, %v1361
  %vm1365 = vc.u32 %v1359, %v1361
  %v1366 = vadd.s32 %v1362, 1
  %v1367 = vsel %vm1365, %v1366, %v1362
  %v1368 = vadd.s32 %v1363, %v1367
  %v1369 = vadd.s32 %v1368, 536870912
  %v1370 = vshrl.u32 %v1369, 30
  %v1371 = vshll.u32 %v1370, 30
  %v1372 = vsub.s32 %v1368, %v1371
  %vm1373 = vcmp.lt.s32.totalorder %v1372, 0
  %v1374 = vsub.s32 0, %v1372
  %v1375 = vsel %vm1373, %v1374, %v1372
  %v1376 = vclz %v1375
  %v1377 = vsub.s32 %v1376, 2
  %vm1378 = vcmp.gt.s32.totalorder 0, %v1377
  %v1379 = vsel %vm1378, 0, %v1377
  %v1380 = vsub.s32 32, %v1379
  %v1381 = vshll.u32 %v1372, %v1379
  %v1382 = vshrl.u32 %v1364, %v1380
  %v1383 = vor.u32 %v1381, %v1382
  %v1384 = vsub.s32 4294967266, %v1379
  %v1385 = vadd.s32 %v1384, 127
  %v1386 = vshll.u32 %v1385, 23
  %v1387 = vor.u32 4788187, %v1386
  %v1388 = vand.u32 2147483647, %v1387
  %v1390 = vcvt.s32.f32 %v1383
  %v1391 = vmul.f32 %v1390, %v1388
  %v1392 = vxor.u32 %v1391, 2147483648
  %v1393 = vsel %vm1310, %v1392, %v1391
  %v1394 = vsub.s32 4, %v1370
  %v1395 = vsel %vm1310, %v1394, %v1370
  %v1396 = vsel %vm1309, %v658, %v1393
  %v1397 = vsel %vm1309, 0, %v1395
  %v1398 = vcosq.f32.pop %v1396
  %v1399 = vsinq.f32.pop %v1396
  %vm1400 = vweird.f32 %v658
  %v1401 = vadd.s32 %v1397, 3
  %v1402 = vand.u32 %v1401, 3
  %vm1403 = vcmp.lt.s32.totalorder %v1402, 2
  %vm1404 = vcmp.eq.s32.totalorder %v1402, 0
  %v1405 = vxor.u32 %v1399, 2147483648
  %v1406 = vsel %vm1404, %v1398, %v1405
  %vm1407 = vcmp.eq.s32.totalorder %v1402, 2
  %v1408 = vxor.u32 %v1398, 2147483648
  %v1409 = vsel %vm1407, %v1408, %v1399
  %v1410 = vsel %vm1403, %v1406, %v1409
  %v1411 = vsel %vm1400, nan, %v1410
  %v1412 = vand.u32 2147483647, %v659
  %vm1413 = vcmp.le.f32.partialorder %v1412, 0.7853982
  %vm1414 = vcmp.lt.s32.totalorder %v659, 0
  %v1415 = vand.u32 %v659, 2139095040
  %v1416 = vshrl.u32 %v1415, 23
  %v1417 = vsub.s32 %v1416, 127
  %v1418 = vand.u32 2147483647, %v659
  %v1419 = vand.u32 %v1418, 8388607
  %v1420 = vor.u32 %v1419, 8388608
  %v1421 = vsub.s32 0, %v1420
  %v1422 = vadd.s32 %v1417, 1
  %vm1423 = vcmp.gt.s32.totalorder %v1422, 0
  %v1424 = vsel %vm1423, %v1422, 0
  %v1425 = vshrl.u32 %v1424, 5
  %v1426 = vand.u32 %v1424, 31
  %v1427 = vsub.s32 32, %v1426
  %v1428 = vshrl.u32 683565275, %v1427
  %v1429 = vshll.u32 683565275, %v1426
  %v1430 = vshrl.u32 2475754826, %v1427
  %v1431 = vor.u32 %v1429, %v1430
  %v1432 = vshll.u32 2475754826, %v1426
  %v1433 = vshrl.u32 2131351028, %v1427
  %v1434 = vor.u32 %v1432, %v1433
  %v1435 = vshll.u32 2131351028, %v1426
  %v1436 = vshrl.u32 2102212464, %v1427
  %v1437 = vor.u32 %v1435, %v1436
  %v1438 = vshll.u32 2102212464, %v1426
  %v1439 = vshrl.u32 920167782, %v1427
  %v1440 = vor.u32 %v1438, %v1439
  %v1441 = vshll.u32 920167782, %v1426
  %v1442 = vshrl.u32 1326507024, %v1427
  %v1443 = vor.u32 %v1441, %v1442
  %vm1444 = vcmp.lt.s32.totalorder %v1425, 1
  %vm1445 = vcmp.lt.s32.totalorder %v1425, 2
  %vm1446 = vcmp.lt.s32.totalorder %v1425, 3
  %vm1447 = vcmp.lt.s32.totalorder %v1425, 4
  %v1448 = vsel %vm1444, %v1428, %v1431
  %v1449 = vsel %vm1447, %v1437, 2102212464
  %v1450 = vsel %vm1446, %v1434, %v1449
  %v1451 = vsel %vm1445, %v1448, %v1450
  %v1452 = vsel %vm1444, %v1431, %v1434
  %v1453 = vsel %vm1447, %v1440, 920167782
  %v1454 = vsel %vm1446, %v1437, %v1453
  %v1455 = vsel %vm1445, %v1452, %v1454
  %v1456 = vsel %vm1444, %v1434, %v1437
  %v1457 = vsel %vm1447, %v1443, 1326507024
  %v1458 = vsel %vm1446, %v1440, %v1457
  %v1459 = vsel %vm1445, %v1456, %v1458
  %v1460 = vshll.u32 %v1420, 8
  %v1461 = vmul.u32.u64.compose %v1460, %v1459
  %v1462 = vextract.low.u32 %v1461
  %v1463 = vextract.high.u32 %v1461
  %v1464 = vmul.u32.u64.compose %v1460, %v1455
  %v1465 = vextract.low.u32 %v1464
  %v1466 = vextract.high.u32 %v1464
  %v1467 = vmul.u32 %v1460, %v1451
  %v1468 = vadd.s32 %v1463, %v1465
  %vm1469 = vc.u32 %v1463, %v1465
  %v1470 = vadd.s32 %v1466, 1
  %v1471 = vsel %vm1469, %v1470, %v1466
  %v1472 = vadd.s32 %v1467, %v1471
  %v1473 = vadd.s32 %v1472, 536870912
  %v1474 = vshrl.u32 %v1473, 30
  %v1475 = vshll.u32 %v1474, 30
  %v1476 = vsub.s32 %v1472, %v1475
  %vm1477 = vcmp.lt.s32.totalorder %v1476, 0
  %v1478 = vsub.s32 0, %v1476
  %v1479 = vsel %vm1477, %v1478, %v1476
  %v1480 = vclz %v1479
  %v1481 = vsub.s32 %v1480, 2
  %vm1482 = vcmp.gt.s32.totalorder 0, %v1481
  %v1483 = vsel %vm1482, 0, %v1481
  %v1484 = vsub.s32 32, %v1483
  %v1485 = vshll.u32 %v1476, %v1483
  %v1486 = vshrl.u32 %v1468, %v1484
  %v1487 = vor.u32 %v1485, %v1486
  %v1488 = vsub.s32 4294967266, %v1483
  %v1489 = vadd.s32 %v1488, 127
  %v1490 = vshll.u32 %v1489, 23
  %v1491 = vor.u32 4788187, %v1490
  %v1492 = vand.u32 2147483647, %v1491
  %v1494 = vcvt.s32.f32 %v1487
  %v1495 = vmul.f32 %v1494, %v1492
  %v1496 = vxor.u32 %v1495, 2147483648
  %v1497 = vsel %vm1414, %v1496, %v1495
  %v1498 = vsub.s32 4, %v1474
  %v1499 = vsel %vm1414, %v1498, %v1474
  %v1500 = vsel %vm1413, %v659, %v1497
  %v1501 = vsel %vm1413, 0, %v1499
  %v1502 = vcosq.f32.pop %v1500
  %v1503 = vsinq.f32.pop %v1500
  %vm1504 = vweird.f32 %v659
  %v1505 = vadd.s32 %v1501, 3
  %v1506 = vand.u32 %v1505, 3
  %vm1507 = vcmp.lt.s32.totalorder %v1506, 2
  %vm1508 = vcmp.eq.s32.totalorder %v1506, 0
  %v1509 = vxor.u32 %v1503, 2147483648
  %v1510 = vsel %vm1508, %v1502, %v1509
  %vm1511 = vcmp.eq.s32.totalorder %v1506, 2
  %v1512 = vxor.u32 %v1502, 2147483648
  %v1513 = vsel %vm1511, %v1512, %v1503
  %v1514 = vsel %vm1507, %v1510, %v1513
  %v1515 = vsel %vm1504, nan, %v1514
  %v1516 = vand.u32 2147483647, %v660
  %vm1517 = vcmp.le.f32.partialorder %v1516, 0.7853982
  %vm1518 = vcmp.lt.s32.totalorder %v660, 0
  %v1519 = vand.u32 %v660, 2139095040
  %v1520 = vshrl.u32 %v1519, 23
  %v1521 = vsub.s32 %v1520, 127
  %v1522 = vand.u32 2147483647, %v660
  %v1523 = vand.u32 %v1522, 8388607
  %v1524 = vor.u32 %v1523, 8388608
  %v1525 = vsub.s32 0, %v1524
  %v1526 = vadd.s32 %v1521, 1
  %vm1527 = vcmp.gt.s32.totalorder %v1526, 0
  %v1528 = vsel %vm1527, %v1526, 0
  %v1529 = vshrl.u32 %v1528, 5
  %v1530 = vand.u32 %v1528, 31
  %v1531 = vsub.s32 32, %v1530
  %v1532 = vshrl.u32 683565275, %v1531
  %v1533 = vshll.u32 683565275, %v1530
  %v1534 = vshrl.u32 2475754826, %v1531
  %v1535 = vor.u32 %v1533, %v1534
  %v1536 = vshll.u32 2475754826, %v1530
  %v1537 = vshrl.u32 2131351028, %v1531
  %v1538 = vor.u32 %v1536, %v1537
  %v1539 = vshll.u32 2131351028, %v1530
  %v1540 = vshrl.u32 2102212464, %v1531
  %v1541 = vor.u32 %v1539, %v1540
  %v1542 = vshll.u32 2102212464, %v1530
  %v1543 = vshrl.u32 920167782, %v1531
  %v1544 = vor.u32 %v1542, %v1543
  %v1545 = vshll.u32 920167782, %v1530
  %v1546 = vshrl.u32 1326507024, %v1531
  %v1547 = vor.u32 %v1545, %v1546
  %vm1548 = vcmp.lt.s32.totalorder %v1529, 1
  %vm1549 = vcmp.lt.s32.totalorder %v1529, 2
  %vm1550 = vcmp.lt.s32.totalorder %v1529, 3
  %vm1551 = vcmp.lt.s32.totalorder %v1529, 4
  %v1552 = vsel %vm1548, %v1532, %v1535
  %v1553 = vsel %vm1551, %v1541, 2102212464
  %v1554 = vsel %vm1550, %v1538, %v1553
  %v1555 = vsel %vm1549, %v1552, %v1554
  %v1556 = vsel %vm1548, %v1535, %v1538
  %v1557 = vsel %vm1551, %v1544, 920167782
  %v1558 = vsel %vm1550, %v1541, %v1557
  %v1559 = vsel %vm1549, %v1556, %v1558
  %v1560 = vsel %vm1548, %v1538, %v1541
  %v1561 = vsel %vm1551, %v1547, 1326507024
  %v1562 = vsel %vm1550, %v1544, %v1561
  %v1563 = vsel %vm1549, %v1560, %v1562
  %v1564 = vshll.u32 %v1524, 8
  %v1565 = vmul.u32.u64.compose %v1564, %v1563
  %v1566 = vextract.low.u32 %v1565
  %v1567 = vextract.high.u32 %v1565
  %v1568 = vmul.u32.u64.compose %v1564, %v1559
  %v1569 = vextract.low.u32 %v1568
  %v1570 = vextract.high.u32 %v1568
  %v1571 = vmul.u32 %v1564, %v1555
  %v1572 = vadd.s32 %v1567, %v1569
  %vm1573 = vc.u32 %v1567, %v1569
  %v1574 = vadd.s32 %v1570, 1
  %v1575 = vsel %vm1573, %v1574, %v1570
  %v1576 = vadd.s32 %v1571, %v1575
  %v1577 = vadd.s32 %v1576, 536870912
  %v1578 = vshrl.u32 %v1577, 30
  %v1579 = vshll.u32 %v1578, 30
  %v1580 = vsub.s32 %v1576, %v1579
  %vm1581 = vcmp.lt.s32.totalorder %v1580, 0
  %v1582 = vsub.s32 0, %v1580
  %v1583 = vsel %vm1581, %v1582, %v1580
  %v1584 = vclz %v1583
  %v1585 = vsub.s32 %v1584, 2
  %vm1586 = vcmp.gt.s32.totalorder 0, %v1585
  %v1587 = vsel %vm1586, 0, %v1585
  %v1588 = vsub.s32 32, %v1587
  %v1589 = vshll.u32 %v1580, %v1587
  %v1590 = vshrl.u32 %v1572, %v1588
  %v1591 = vor.u32 %v1589, %v1590
  %v1592 = vsub.s32 4294967266, %v1587
  %v1593 = vadd.s32 %v1592, 127
  %v1594 = vshll.u32 %v1593, 23
  %v1595 = vor.u32 4788187, %v1594
  %v1596 = vand.u32 2147483647, %v1595
  %v1598 = vcvt.s32.f32 %v1591
  %v1599 = vmul.f32 %v1598, %v1596
  %v1600 = vxor.u32 %v1599, 2147483648
  %v1601 = vsel %vm1518, %v1600, %v1599
  %v1602 = vsub.s32 4, %v1578
  %v1603 = vsel %vm1518, %v1602, %v1578
  %v1604 = vsel %vm1517, %v660, %v1601
  %v1605 = vsel %vm1517, 0, %v1603
  %v1606 = vcosq.f32.pop %v1604
  %v1607 = vsinq.f32.pop %v1604
  %vm1608 = vweird.f32 %v660
  %v1609 = vadd.s32 %v1605, 3
  %v1610 = vand.u32 %v1609, 3
  %vm1611 = vcmp.lt.s32.totalorder %v1610, 2
  %vm1612 = vcmp.eq.s32.totalorder %v1610, 0
  %v1613 = vxor.u32 %v1607, 2147483648
  %v1614 = vsel %vm1612, %v1606, %v1613
  %vm1615 = vcmp.eq.s32.totalorder %v1610, 2
  %v1616 = vxor.u32 %v1606, 2147483648
  %v1617 = vsel %vm1615, %v1616, %v1607
  %v1618 = vsel %vm1611, %v1614, %v1617
  %v1619 = vsel %vm1608, nan, %v1618
  %v1620 = vand.u32 2147483647, %v661
  %vm1621 = vcmp.le.f32.partialorder %v1620, 0.7853982
  %vm1622 = vcmp.lt.s32.totalorder %v661, 0
  %v1623 = vand.u32 %v661, 2139095040
  %v1624 = vshrl.u32 %v1623, 23
  %v1625 = vsub.s32 %v1624, 127
  %v1626 = vand.u32 2147483647, %v661
  %v1627 = vand.u32 %v1626, 8388607
  %v1628 = vor.u32 %v1627, 8388608
  %v1629 = vsub.s32 0, %v1628
  %v1630 = vadd.s32 %v1625, 1
  %vm1631 = vcmp.gt.s32.totalorder %v1630, 0
  %v1632 = vsel %vm1631, %v1630, 0
  %v1633 = vshrl.u32 %v1632, 5
  %v1634 = vand.u32 %v1632, 31
  %v1635 = vsub.s32 32, %v1634
  %v1636 = vshrl.u32 683565275, %v1635
  %v1637 = vshll.u32 683565275, %v1634
  %v1638 = vshrl.u32 2475754826, %v1635
  %v1639 = vor.u32 %v1637, %v1638
  %v1640 = vshll.u32 2475754826, %v1634
  %v1641 = vshrl.u32 2131351028, %v1635
  %v1642 = vor.u32 %v1640, %v1641
  %v1643 = vshll.u32 2131351028, %v1634
  %v1644 = vshrl.u32 2102212464, %v1635
  %v1645 = vor.u32 %v1643, %v1644
  %v1646 = vshll.u32 2102212464, %v1634
  %v1647 = vshrl.u32 920167782, %v1635
  %v1648 = vor.u32 %v1646, %v1647
  %v1649 = vshll.u32 920167782, %v1634
  %v1650 = vshrl.u32 1326507024, %v1635
  %v1651 = vor.u32 %v1649, %v1650
  %vm1652 = vcmp.lt.s32.totalorder %v1633, 1
  %vm1653 = vcmp.lt.s32.totalorder %v1633, 2
  %vm1654 = vcmp.lt.s32.totalorder %v1633, 3
  %vm1655 = vcmp.lt.s32.totalorder %v1633, 4
  %v1656 = vsel %vm1652, %v1636, %v1639
  %v1657 = vsel %vm1655, %v1645, 2102212464
  %v1658 = vsel %vm1654, %v1642, %v1657
  %v1659 = vsel %vm1653, %v1656, %v1658
  %v1660 = vsel %vm1652, %v1639, %v1642
  %v1661 = vsel %vm1655, %v1648, 920167782
  %v1662 = vsel %vm1654, %v1645, %v1661
  %v1663 = vsel %vm1653, %v1660, %v1662
  %v1664 = vsel %vm1652, %v1642, %v1645
  %v1665 = vsel %vm1655, %v1651, 1326507024
  %v1666 = vsel %vm1654, %v1648, %v1665
  %v1667 = vsel %vm1653, %v1664, %v1666
  %v1668 = vshll.u32 %v1628, 8
  %v1669 = vmul.u32.u64.compose %v1668, %v1667
  %v1670 = vextract.low.u32 %v1669
  %v1671 = vextract.high.u32 %v1669
  %v1672 = vmul.u32.u64.compose %v1668, %v1663
  %v1673 = vextract.low.u32 %v1672
  %v1674 = vextract.high.u32 %v1672
  %v1675 = vmul.u32 %v1668, %v1659
  %v1676 = vadd.s32 %v1671, %v1673
  %vm1677 = vc.u32 %v1671, %v1673
  %v1678 = vadd.s32 %v1674, 1
  %v1679 = vsel %vm1677, %v1678, %v1674
  %v1680 = vadd.s32 %v1675, %v1679
  %v1681 = vadd.s32 %v1680, 536870912
  %v1682 = vshrl.u32 %v1681, 30
  %v1683 = vshll.u32 %v1682, 30
  %v1684 = vsub.s32 %v1680, %v1683
  %vm1685 = vcmp.lt.s32.totalorder %v1684, 0
  %v1686 = vsub.s32 0, %v1684
  %v1687 = vsel %vm1685, %v1686, %v1684
  %v1688 = vclz %v1687
  %v1689 = vsub.s32 %v1688, 2
  %vm1690 = vcmp.gt.s32.totalorder 0, %v1689
  %v1691 = vsel %vm1690, 0, %v1689
  %v1692 = vsub.s32 32, %v1691
  %v1693 = vshll.u32 %v1684, %v1691
  %v1694 = vshrl.u32 %v1676, %v1692
  %v1695 = vor.u32 %v1693, %v1694
  %v1696 = vsub.s32 4294967266, %v1691
  %v1697 = vadd.s32 %v1696, 127
  %v1698 = vshll.u32 %v1697, 23
  %v1699 = vor.u32 4788187, %v1698
  %v1700 = vand.u32 2147483647, %v1699
  %v1702 = vcvt.s32.f32 %v1695
  %v1703 = vmul.f32 %v1702, %v1700
  %v1704 = vxor.u32 %v1703, 2147483648
  %v1705 = vsel %vm1622, %v1704, %v1703
  %v1706 = vsub.s32 4, %v1682
  %v1707 = vsel %vm1622, %v1706, %v1682
  %v1708 = vsel %vm1621, %v661, %v1705
  %v1709 = vsel %vm1621, 0, %v1707
  %v1710 = vcosq.f32.pop %v1708
  %v1711 = vsinq.f32.pop %v1708
  %vm1712 = vweird.f32 %v661
  %v1713 = vadd.s32 %v1709, 3
  %v1714 = vand.u32 %v1713, 3
  %vm1715 = vcmp.lt.s32.totalorder %v1714, 2
  %vm1716 = vcmp.eq.s32.totalorder %v1714, 0
  %v1717 = vxor.u32 %v1711, 2147483648
  %v1718 = vsel %vm1716, %v1710, %v1717
  %vm1719 = vcmp.eq.s32.totalorder %v1714, 2
  %v1720 = vxor.u32 %v1710, 2147483648
  %v1721 = vsel %vm1719, %v1720, %v1711
  %v1722 = vsel %vm1715, %v1718, %v1721
  %v1723 = vsel %vm1712, nan, %v1722
  %v1724 = vand.u32 2147483647, %v662
  %vm1725 = vcmp.le.f32.partialorder %v1724, 0.7853982
  %vm1726 = vcmp.lt.s32.totalorder %v662, 0
  %v1727 = vand.u32 %v662, 2139095040
  %v1728 = vshrl.u32 %v1727, 23
  %v1729 = vsub.s32 %v1728, 127
  %v1730 = vand.u32 2147483647, %v662
  %v1731 = vand.u32 %v1730, 8388607
  %v1732 = vor.u32 %v1731, 8388608
  %v1733 = vsub.s32 0, %v1732
  %v1734 = vadd.s32 %v1729, 1
  %vm1735 = vcmp.gt.s32.totalorder %v1734, 0
  %v1736 = vsel %vm1735, %v1734, 0
  %v1737 = vshrl.u32 %v1736, 5
  %v1738 = vand.u32 %v1736, 31
  %v1739 = vsub.s32 32, %v1738
  %v1740 = vshrl.u32 683565275, %v1739
  %v1741 = vshll.u32 683565275, %v1738
  %v1742 = vshrl.u32 2475754826, %v1739
  %v1743 = vor.u32 %v1741, %v1742
  %v1744 = vshll.u32 2475754826, %v1738
  %v1745 = vshrl.u32 2131351028, %v1739
  %v1746 = vor.u32 %v1744, %v1745
  %v1747 = vshll.u32 2131351028, %v1738
  %v1748 = vshrl.u32 2102212464, %v1739
  %v1749 = vor.u32 %v1747, %v1748
  %v1750 = vshll.u32 2102212464, %v1738
  %v1751 = vshrl.u32 920167782, %v1739
  %v1752 = vor.u32 %v1750, %v1751
  %v1753 = vshll.u32 920167782, %v1738
  %v1754 = vshrl.u32 1326507024, %v1739
  %v1755 = vor.u32 %v1753, %v1754
  %vm1756 = vcmp.lt.s32.totalorder %v1737, 1
  %vm1757 = vcmp.lt.s32.totalorder %v1737, 2
  %vm1758 = vcmp.lt.s32.totalorder %v1737, 3
  %vm1759 = vcmp.lt.s32.totalorder %v1737, 4
  %v1760 = vsel %vm1756, %v1740, %v1743
  %v1761 = vsel %vm1759, %v1749, 2102212464
  %v1762 = vsel %vm1758, %v1746, %v1761
  %v1763 = vsel %vm1757, %v1760, %v1762
  %v1764 = vsel %vm1756, %v1743, %v1746
  %v1765 = vsel %vm1759, %v1752, 920167782
  %v1766 = vsel %vm1758, %v1749, %v1765
  %v1767 = vsel %vm1757, %v1764, %v1766
  %v1768 = vsel %vm1756, %v1746, %v1749
  %v1769 = vsel %vm1759, %v1755, 1326507024
  %v1770 = vsel %vm1758, %v1752, %v1769
  %v1771 = vsel %vm1757, %v1768, %v1770
  %v1772 = vshll.u32 %v1732, 8
  %v1773 = vmul.u32.u64.compose %v1772, %v1771
  %v1774 = vextract.low.u32 %v1773
  %v1775 = vextract.high.u32 %v1773
  %v1776 = vmul.u32.u64.compose %v1772, %v1767
  %v1777 = vextract.low.u32 %v1776
  %v1778 = vextract.high.u32 %v1776
  %v1779 = vmul.u32 %v1772, %v1763
  %v1780 = vadd.s32 %v1775, %v1777
  %vm1781 = vc.u32 %v1775, %v1777
  %v1782 = vadd.s32 %v1778, 1
  %v1783 = vsel %vm1781, %v1782, %v1778
  %v1784 = vadd.s32 %v1779, %v1783
  %v1785 = vadd.s32 %v1784, 536870912
  %v1786 = vshrl.u32 %v1785, 30
  %v1787 = vshll.u32 %v1786, 30
  %v1788 = vsub.s32 %v1784, %v1787
  %vm1789 = vcmp.lt.s32.totalorder %v1788, 0
  %v1790 = vsub.s32 0, %v1788
  %v1791 = vsel %vm1789, %v1790, %v1788
  %v1792 = vclz %v1791
  %v1793 = vsub.s32 %v1792, 2
  %vm1794 = vcmp.gt.s32.totalorder 0, %v1793
  %v1795 = vsel %vm1794, 0, %v1793
  %v1796 = vsub.s32 32, %v1795
  %v1797 = vshll.u32 %v1788, %v1795
  %v1798 = vshrl.u32 %v1780, %v1796
  %v1799 = vor.u32 %v1797, %v1798
  %v1800 = vsub.s32 4294967266, %v1795
  %v1801 = vadd.s32 %v1800, 127
  %v1802 = vshll.u32 %v1801, 23
  %v1803 = vor.u32 4788187, %v1802
  %v1804 = vand.u32 2147483647, %v1803
  %v1806 = vcvt.s32.f32 %v1799
  %v1807 = vmul.f32 %v1806, %v1804
  %v1808 = vxor.u32 %v1807, 2147483648
  %v1809 = vsel %vm1726, %v1808, %v1807
  %v1810 = vsub.s32 4, %v1786
  %v1811 = vsel %vm1726, %v1810, %v1786
  %v1812 = vsel %vm1725, %v662, %v1809
  %v1813 = vsel %vm1725, 0, %v1811
  %v1814 = vcosq.f32.pop %v1812
  %v1815 = vsinq.f32.pop %v1812
  %vm1816 = vweird.f32 %v662
  %v1817 = vadd.s32 %v1813, 3
  %v1818 = vand.u32 %v1817, 3
  %vm1819 = vcmp.lt.s32.totalorder %v1818, 2
  %vm1820 = vcmp.eq.s32.totalorder %v1818, 0
  %v1821 = vxor.u32 %v1815, 2147483648
  %v1822 = vsel %vm1820, %v1814, %v1821
  %vm1823 = vcmp.eq.s32.totalorder %v1818, 2
  %v1824 = vxor.u32 %v1814, 2147483648
  %v1825 = vsel %vm1823, %v1824, %v1815
  %v1826 = vsel %vm1819, %v1822, %v1825
  %v1827 = vsel %vm1816, nan, %v1826
  %v1828 = vand.u32 2147483647, %v663
  %vm1829 = vcmp.le.f32.partialorder %v1828, 0.7853982
  %vm1830 = vcmp.lt.s32.totalorder %v663, 0
  %v1831 = vand.u32 %v663, 2139095040
  %v1832 = vshrl.u32 %v1831, 23
  %v1833 = vsub.s32 %v1832, 127
  %v1834 = vand.u32 2147483647, %v663
  %v1835 = vand.u32 %v1834, 8388607
  %v1836 = vor.u32 %v1835, 8388608
  %v1837 = vsub.s32 0, %v1836
  %v1838 = vadd.s32 %v1833, 1
  %vm1839 = vcmp.gt.s32.totalorder %v1838, 0
  %v1840 = vsel %vm1839, %v1838, 0
  %v1841 = vshrl.u32 %v1840, 5
  %v1842 = vand.u32 %v1840, 31
  %v1843 = vsub.s32 32, %v1842
  %v1844 = vshrl.u32 683565275, %v1843
  %v1845 = vshll.u32 683565275, %v1842
  %v1846 = vshrl.u32 2475754826, %v1843
  %v1847 = vor.u32 %v1845, %v1846
  %v1848 = vshll.u32 2475754826, %v1842
  %v1849 = vshrl.u32 2131351028, %v1843
  %v1850 = vor.u32 %v1848, %v1849
  %v1851 = vshll.u32 2131351028, %v1842
  %v1852 = vshrl.u32 2102212464, %v1843
  %v1853 = vor.u32 %v1851, %v1852
  %v1854 = vshll.u32 2102212464, %v1842
  %v1855 = vshrl.u32 920167782, %v1843
  %v1856 = vor.u32 %v1854, %v1855
  %v1857 = vshll.u32 920167782, %v1842
  %v1858 = vshrl.u32 1326507024, %v1843
  %v1859 = vor.u32 %v1857, %v1858
  %vm1860 = vcmp.lt.s32.totalorder %v1841, 1
  %vm1861 = vcmp.lt.s32.totalorder %v1841, 2
  %vm1862 = vcmp.lt.s32.totalorder %v1841, 3
  %vm1863 = vcmp.lt.s32.totalorder %v1841, 4
  %v1864 = vsel %vm1860, %v1844, %v1847
  %v1865 = vsel %vm1863, %v1853, 2102212464
  %v1866 = vsel %vm1862, %v1850, %v1865
  %v1867 = vsel %vm1861, %v1864, %v1866
  %v1868 = vsel %vm1860, %v1847, %v1850
  %v1869 = vsel %vm1863, %v1856, 920167782
  %v1870 = vsel %vm1862, %v1853, %v1869
  %v1871 = vsel %vm1861, %v1868, %v1870
  %v1872 = vsel %vm1860, %v1850, %v1853
  %v1873 = vsel %vm1863, %v1859, 1326507024
  %v1874 = vsel %vm1862, %v1856, %v1873
  %v1875 = vsel %vm1861, %v1872, %v1874
  %v1876 = vshll.u32 %v1836, 8
  %v1877 = vmul.u32.u64.compose %v1876, %v1875
  %v1878 = vextract.low.u32 %v1877
  %v1879 = vextract.high.u32 %v1877
  %v1880 = vmul.u32.u64.compose %v1876, %v1871
  %v1881 = vextract.low.u32 %v1880
  %v1882 = vextract.high.u32 %v1880
  %v1883 = vmul.u32 %v1876, %v1867
  %v1884 = vadd.s32 %v1879, %v1881
  %vm1885 = vc.u32 %v1879, %v1881
  %v1886 = vadd.s32 %v1882, 1
  %v1887 = vsel %vm1885, %v1886, %v1882
  %v1888 = vadd.s32 %v1883, %v1887
  %v1889 = vadd.s32 %v1888, 536870912
  %v1890 = vshrl.u32 %v1889, 30
  %v1891 = vshll.u32 %v1890, 30
  %v1892 = vsub.s32 %v1888, %v1891
  %vm1893 = vcmp.lt.s32.totalorder %v1892, 0
  %v1894 = vsub.s32 0, %v1892
  %v1895 = vsel %vm1893, %v1894, %v1892
  %v1896 = vclz %v1895
  %v1897 = vsub.s32 %v1896, 2
  %vm1898 = vcmp.gt.s32.totalorder 0, %v1897
  %v1899 = vsel %vm1898, 0, %v1897
  %v1900 = vsub.s32 32, %v1899
  %v1901 = vshll.u32 %v1892, %v1899
  %v1902 = vshrl.u32 %v1884, %v1900
  %v1903 = vor.u32 %v1901, %v1902
  %v1904 = vsub.s32 4294967266, %v1899
  %v1905 = vadd.s32 %v1904, 127
  %v1906 = vshll.u32 %v1905, 23
  %v1907 = vor.u32 4788187, %v1906
  %v1908 = vand.u32 2147483647, %v1907
  %v1910 = vcvt.s32.f32 %v1903
  %v1911 = vmul.f32 %v1910, %v1908
  %v1912 = vxor.u32 %v1911, 2147483648
  %v1913 = vsel %vm1830, %v1912, %v1911
  %v1914 = vsub.s32 4, %v1890
  %v1915 = vsel %vm1830, %v1914, %v1890
  %v1916 = vsel %vm1829, %v663, %v1913
  %v1917 = vsel %vm1829, 0, %v1915
  %v1918 = vcosq.f32.pop %v1916
  %v1919 = vsinq.f32.pop %v1916
  %vm1920 = vweird.f32 %v663
  %v1921 = vadd.s32 %v1917, 3
  %v1922 = vand.u32 %v1921, 3
  %vm1923 = vcmp.lt.s32.totalorder %v1922, 2
  %vm1924 = vcmp.eq.s32.totalorder %v1922, 0
  %v1925 = vxor.u32 %v1919, 2147483648
  %v1926 = vsel %vm1924, %v1918, %v1925
  %vm1927 = vcmp.eq.s32.totalorder %v1922, 2
  %v1928 = vxor.u32 %v1918, 2147483648
  %v1929 = vsel %vm1927, %v1928, %v1919
  %v1930 = vsel %vm1923, %v1926, %v1929
  %v1931 = vsel %vm1920, nan, %v1930
  %v1932 = vand.u32 2147483647, %v664
  %vm1933 = vcmp.le.f32.partialorder %v1932, 0.7853982
  %vm1934 = vcmp.lt.s32.totalorder %v664, 0
  %v1935 = vand.u32 %v664, 2139095040
  %v1936 = vshrl.u32 %v1935, 23
  %v1937 = vsub.s32 %v1936, 127
  %v1938 = vand.u32 2147483647, %v664
  %v1939 = vand.u32 %v1938, 8388607
  %v1940 = vor.u32 %v1939, 8388608
  %v1941 = vsub.s32 0, %v1940
  %v1942 = vadd.s32 %v1937, 1
  %vm1943 = vcmp.gt.s32.totalorder %v1942, 0
  %v1944 = vsel %vm1943, %v1942, 0
  %v1945 = vshrl.u32 %v1944, 5
  %v1946 = vand.u32 %v1944, 31
  %v1947 = vsub.s32 32, %v1946
  %v1948 = vshrl.u32 683565275, %v1947
  %v1949 = vshll.u32 683565275, %v1946
  %v1950 = vshrl.u32 2475754826, %v1947
  %v1951 = vor.u32 %v1949, %v1950
  %v1952 = vshll.u32 2475754826, %v1946
  %v1953 = vshrl.u32 2131351028, %v1947
  %v1954 = vor.u32 %v1952, %v1953
  %v1955 = vshll.u32 2131351028, %v1946
  %v1956 = vshrl.u32 2102212464, %v1947
  %v1957 = vor.u32 %v1955, %v1956
  %v1958 = vshll.u32 2102212464, %v1946
  %v1959 = vshrl.u32 920167782, %v1947
  %v1960 = vor.u32 %v1958, %v1959
  %v1961 = vshll.u32 920167782, %v1946
  %v1962 = vshrl.u32 1326507024, %v1947
  %v1963 = vor.u32 %v1961, %v1962
  %vm1964 = vcmp.lt.s32.totalorder %v1945, 1
  %vm1965 = vcmp.lt.s32.totalorder %v1945, 2
  %vm1966 = vcmp.lt.s32.totalorder %v1945, 3
  %vm1967 = vcmp.lt.s32.totalorder %v1945, 4
  %v1968 = vsel %vm1964, %v1948, %v1951
  %v1969 = vsel %vm1967, %v1957, 2102212464
  %v1970 = vsel %vm1966, %v1954, %v1969
  %v1971 = vsel %vm1965, %v1968, %v1970
  %v1972 = vsel %vm1964, %v1951, %v1954
  %v1973 = vsel %vm1967, %v1960, 920167782
  %v1974 = vsel %vm1966, %v1957, %v1973
  %v1975 = vsel %vm1965, %v1972, %v1974
  %v1976 = vsel %vm1964, %v1954, %v1957
  %v1977 = vsel %vm1967, %v1963, 1326507024
  %v1978 = vsel %vm1966, %v1960, %v1977
  %v1979 = vsel %vm1965, %v1976, %v1978
  %v1980 = vshll.u32 %v1940, 8
  %v1981 = vmul.u32.u64.compose %v1980, %v1979
  %v1982 = vextract.low.u32 %v1981
  %v1983 = vextract.high.u32 %v1981
  %v1984 = vmul.u32.u64.compose %v1980, %v1975
  %v1985 = vextract.low.u32 %v1984
  %v1986 = vextract.high.u32 %v1984
  %v1987 = vmul.u32 %v1980, %v1971
  %v1988 = vadd.s32 %v1983, %v1985
  %vm1989 = vc.u32 %v1983, %v1985
  %v1990 = vadd.s32 %v1986, 1
  %v1991 = vsel %vm1989, %v1990, %v1986
  %v1992 = vadd.s32 %v1987, %v1991
  %v1993 = vadd.s32 %v1992, 536870912
  %v1994 = vshrl.u32 %v1993, 30
  %v1995 = vshll.u32 %v1994, 30
  %v1996 = vsub.s32 %v1992, %v1995
  %vm1997 = vcmp.lt.s32.totalorder %v1996, 0
  %v1998 = vsub.s32 0, %v1996
  %v1999 = vsel %vm1997, %v1998, %v1996
  %v2000 = vclz %v1999
  %v2001 = vsub.s32 %v2000, 2
  %vm2002 = vcmp.gt.s32.totalorder 0, %v2001
  %v2003 = vsel %vm2002, 0, %v2001
  %v2004 = vsub.s32 32, %v2003
  %v2005 = vshll.u32 %v1996, %v2003
  %v2006 = vshrl.u32 %v1988, %v2004
  %v2007 = vor.u32 %v2005, %v2006
  %v2008 = vsub.s32 4294967266, %v2003
  %v2009 = vadd.s32 %v2008, 127
  %v2010 = vshll.u32 %v2009, 23
  %v2011 = vor.u32 4788187, %v2010
  %v2012 = vand.u32 2147483647, %v2011
  %v2014 = vcvt.s32.f32 %v2007
  %v2015 = vmul.f32 %v2014, %v2012
  %v2016 = vxor.u32 %v2015, 2147483648
  %v2017 = vsel %vm1934, %v2016, %v2015
  %v2018 = vsub.s32 4, %v1994
  %v2019 = vsel %vm1934, %v2018, %v1994
  %v2020 = vsel %vm1933, %v664, %v2017
  %v2021 = vsel %vm1933, 0, %v2019
  %v2022 = vcosq.f32.pop %v2020
  %v2023 = vsinq.f32.pop %v2020
  %vm2024 = vweird.f32 %v664
  %v2025 = vadd.s32 %v2021, 3
  %v2026 = vand.u32 %v2025, 3
  %vm2027 = vcmp.lt.s32.totalorder %v2026, 2
  %vm2028 = vcmp.eq.s32.totalorder %v2026, 0
  %v2029 = vxor.u32 %v2023, 2147483648
  %v2030 = vsel %vm2028, %v2022, %v2029
  %vm2031 = vcmp.eq.s32.totalorder %v2026, 2
  %v2032 = vxor.u32 %v2022, 2147483648
  %v2033 = vsel %vm2031, %v2032, %v2023
  %v2034 = vsel %vm2027, %v2030, %v2033
  %v2035 = vsel %vm2024, nan, %v2034
  %v2036 = vand.u32 2147483647, %v665
  %vm2037 = vcmp.le.f32.partialorder %v2036, 0.7853982
  %vm2038 = vcmp.lt.s32.totalorder %v665, 0
  %v2039 = vand.u32 %v665, 2139095040
  %v2040 = vshrl.u32 %v2039, 23
  %v2041 = vsub.s32 %v2040, 127
  %v2042 = vand.u32 2147483647, %v665
  %v2043 = vand.u32 %v2042, 8388607
  %v2044 = vor.u32 %v2043, 8388608
  %v2045 = vsub.s32 0, %v2044
  %v2046 = vadd.s32 %v2041, 1
  %vm2047 = vcmp.gt.s32.totalorder %v2046, 0
  %v2048 = vsel %vm2047, %v2046, 0
  %v2049 = vshrl.u32 %v2048, 5
  %v2050 = vand.u32 %v2048, 31
  %v2051 = vsub.s32 32, %v2050
  %v2052 = vshrl.u32 683565275, %v2051
  %v2053 = vshll.u32 683565275, %v2050
  %v2054 = vshrl.u32 2475754826, %v2051
  %v2055 = vor.u32 %v2053, %v2054
  %v2056 = vshll.u32 2475754826, %v2050
  %v2057 = vshrl.u32 2131351028, %v2051
  %v2058 = vor.u32 %v2056, %v2057
  %v2059 = vshll.u32 2131351028, %v2050
  %v2060 = vshrl.u32 2102212464, %v2051
  %v2061 = vor.u32 %v2059, %v2060
  %v2062 = vshll.u32 2102212464, %v2050
  %v2063 = vshrl.u32 920167782, %v2051
  %v2064 = vor.u32 %v2062, %v2063
  %v2065 = vshll.u32 920167782, %v2050
  %v2066 = vshrl.u32 1326507024, %v2051
  %v2067 = vor.u32 %v2065, %v2066
  %vm2068 = vcmp.lt.s32.totalorder %v2049, 1
  %vm2069 = vcmp.lt.s32.totalorder %v2049, 2
  %vm2070 = vcmp.lt.s32.totalorder %v2049, 3
  %vm2071 = vcmp.lt.s32.totalorder %v2049, 4
  %v2072 = vsel %vm2068, %v2052, %v2055
  %v2073 = vsel %vm2071, %v2061, 2102212464
  %v2074 = vsel %vm2070, %v2058, %v2073
  %v2075 = vsel %vm2069, %v2072, %v2074
  %v2076 = vsel %vm2068, %v2055, %v2058
  %v2077 = vsel %vm2071, %v2064, 920167782
  %v2078 = vsel %vm2070, %v2061, %v2077
  %v2079 = vsel %vm2069, %v2076, %v2078
  %v2080 = vsel %vm2068, %v2058, %v2061
  %v2081 = vsel %vm2071, %v2067, 1326507024
  %v2082 = vsel %vm2070, %v2064, %v2081
  %v2083 = vsel %vm2069, %v2080, %v2082
  %v2084 = vshll.u32 %v2044, 8
  %v2085 = vmul.u32.u64.compose %v2084, %v2083
  %v2086 = vextract.low.u32 %v2085
  %v2087 = vextract.high.u32 %v2085
  %v2088 = vmul.u32.u64.compose %v2084, %v2079
  %v2089 = vextract.low.u32 %v2088
  %v2090 = vextract.high.u32 %v2088
  %v2091 = vmul.u32 %v2084, %v2075
  %v2092 = vadd.s32 %v2087, %v2089
  %vm2093 = vc.u32 %v2087, %v2089
  %v2094 = vadd.s32 %v2090, 1
  %v2095 = vsel %vm2093, %v2094, %v2090
  %v2096 = vadd.s32 %v2091, %v2095
  %v2097 = vadd.s32 %v2096, 536870912
  %v2098 = vshrl.u32 %v2097, 30
  %v2099 = vshll.u32 %v2098, 30
  %v2100 = vsub.s32 %v2096, %v2099
  %vm2101 = vcmp.lt.s32.totalorder %v2100, 0
  %v2102 = vsub.s32 0, %v2100
  %v2103 = vsel %vm2101, %v2102, %v2100
  %v2104 = vclz %v2103
  %v2105 = vsub.s32 %v2104, 2
  %vm2106 = vcmp.gt.s32.totalorder 0, %v2105
  %v2107 = vsel %vm2106, 0, %v2105
  %v2108 = vsub.s32 32, %v2107
  %v2109 = vshll.u32 %v2100, %v2107
  %v2110 = vshrl.u32 %v2092, %v2108
  %v2111 = vor.u32 %v2109, %v2110
  %v2112 = vsub.s32 4294967266, %v2107
  %v2113 = vadd.s32 %v2112, 127
  %v2114 = vshll.u32 %v2113, 23
  %v2115 = vor.u32 4788187, %v2114
  %v2116 = vand.u32 2147483647, %v2115
  %v2118 = vcvt.s32.f32 %v2111
  %v2119 = vmul.f32 %v2118, %v2116
  %v2120 = vxor.u32 %v2119, 2147483648
  %v2121 = vsel %vm2038, %v2120, %v2119
  %v2122 = vsub.s32 4, %v2098
  %v2123 = vsel %vm2038, %v2122, %v2098
  %v2124 = vsel %vm2037, %v665, %v2121
  %v2125 = vsel %vm2037, 0, %v2123
  %v2126 = vcosq.f32.pop %v2124
  %v2127 = vsinq.f32.pop %v2124
  %vm2128 = vweird.f32 %v665
  %v2129 = vadd.s32 %v2125, 3
  %v2130 = vand.u32 %v2129, 3
  %vm2131 = vcmp.lt.s32.totalorder %v2130, 2
  %vm2132 = vcmp.eq.s32.totalorder %v2130, 0
  %v2133 = vxor.u32 %v2127, 2147483648
  %v2134 = vsel %vm2132, %v2126, %v2133
  %vm2135 = vcmp.eq.s32.totalorder %v2130, 2
  %v2136 = vxor.u32 %v2126, 2147483648
  %v2137 = vsel %vm2135, %v2136, %v2127
  %v2138 = vsel %vm2131, %v2134, %v2137
  %v2139 = vsel %vm2128, nan, %v2138
  %v2140 = vand.u32 2147483647, %v666
  %vm2141 = vcmp.le.f32.partialorder %v2140, 0.7853982
  %vm2142 = vcmp.lt.s32.totalorder %v666, 0
  %v2143 = vand.u32 %v666, 2139095040
  %v2144 = vshrl.u32 %v2143, 23
  %v2145 = vsub.s32 %v2144, 127
  %v2146 = vand.u32 2147483647, %v666
  %v2147 = vand.u32 %v2146, 8388607
  %v2148 = vor.u32 %v2147, 8388608
  %v2149 = vsub.s32 0, %v2148
  %v2150 = vadd.s32 %v2145, 1
  %vm2151 = vcmp.gt.s32.totalorder %v2150, 0
  %v2152 = vsel %vm2151, %v2150, 0
  %v2153 = vshrl.u32 %v2152, 5
  %v2154 = vand.u32 %v2152, 31
  %v2155 = vsub.s32 32, %v2154
  %v2156 = vshrl.u32 683565275, %v2155
  %v2157 = vshll.u32 683565275, %v2154
  %v2158 = vshrl.u32 2475754826, %v2155
  %v2159 = vor.u32 %v2157, %v2158
  %v2160 = vshll.u32 2475754826, %v2154
  %v2161 = vshrl.u32 2131351028, %v2155
  %v2162 = vor.u32 %v2160, %v2161
  %v2163 = vshll.u32 2131351028, %v2154
  %v2164 = vshrl.u32 2102212464, %v2155
  %v2165 = vor.u32 %v2163, %v2164
  %v2166 = vshll.u32 2102212464, %v2154
  %v2167 = vshrl.u32 920167782, %v2155
  %v2168 = vor.u32 %v2166, %v2167
  %v2169 = vshll.u32 920167782, %v2154
  %v2170 = vshrl.u32 1326507024, %v2155
  %v2171 = vor.u32 %v2169, %v2170
  %vm2172 = vcmp.lt.s32.totalorder %v2153, 1
  %vm2173 = vcmp.lt.s32.totalorder %v2153, 2
  %vm2174 = vcmp.lt.s32.totalorder %v2153, 3
  %vm2175 = vcmp.lt.s32.totalorder %v2153, 4
  %v2176 = vsel %vm2172, %v2156, %v2159
  %v2177 = vsel %vm2175, %v2165, 2102212464
  %v2178 = vsel %vm2174, %v2162, %v2177
  %v2179 = vsel %vm2173, %v2176, %v2178
  %v2180 = vsel %vm2172, %v2159, %v2162
  %v2181 = vsel %vm2175, %v2168, 920167782
  %v2182 = vsel %vm2174, %v2165, %v2181
  %v2183 = vsel %vm2173, %v2180, %v2182
  %v2184 = vsel %vm2172, %v2162, %v2165
  %v2185 = vsel %vm2175, %v2171, 1326507024
  %v2186 = vsel %vm2174, %v2168, %v2185
  %v2187 = vsel %vm2173, %v2184, %v2186
  %v2188 = vshll.u32 %v2148, 8
  %v2189 = vmul.u32.u64.compose %v2188, %v2187
  %v2190 = vextract.low.u32 %v2189
  %v2191 = vextract.high.u32 %v2189
  %v2192 = vmul.u32.u64.compose %v2188, %v2183
  %v2193 = vextract.low.u32 %v2192
  %v2194 = vextract.high.u32 %v2192
  %v2195 = vmul.u32 %v2188, %v2179
  %v2196 = vadd.s32 %v2191, %v2193
  %vm2197 = vc.u32 %v2191, %v2193
  %v2198 = vadd.s32 %v2194, 1
  %v2199 = vsel %vm2197, %v2198, %v2194
  %v2200 = vadd.s32 %v2195, %v2199
  %v2201 = vadd.s32 %v2200, 536870912
  %v2202 = vshrl.u32 %v2201, 30
  %v2203 = vshll.u32 %v2202, 30
  %v2204 = vsub.s32 %v2200, %v2203
  %vm2205 = vcmp.lt.s32.totalorder %v2204, 0
  %v2206 = vsub.s32 0, %v2204
  %v2207 = vsel %vm2205, %v2206, %v2204
  %v2208 = vclz %v2207
  %v2209 = vsub.s32 %v2208, 2
  %vm2210 = vcmp.gt.s32.totalorder 0, %v2209
  %v2211 = vsel %vm2210, 0, %v2209
  %v2212 = vsub.s32 32, %v2211
  %v2213 = vshll.u32 %v2204, %v2211
  %v2214 = vshrl.u32 %v2196, %v2212
  %v2215 = vor.u32 %v2213, %v2214
  %v2216 = vsub.s32 4294967266, %v2211
  %v2217 = vadd.s32 %v2216, 127
  %v2218 = vshll.u32 %v2217, 23
  %v2219 = vor.u32 4788187, %v2218
  %v2220 = vand.u32 2147483647, %v2219
  %v2222 = vcvt.s32.f32 %v2215
  %v2223 = vmul.f32 %v2222, %v2220
  %v2224 = vxor.u32 %v2223, 2147483648
  %v2225 = vsel %vm2142, %v2224, %v2223
  %v2226 = vsub.s32 4, %v2202
  %v2227 = vsel %vm2142, %v2226, %v2202
  %v2228 = vsel %vm2141, %v666, %v2225
  %v2229 = vsel %vm2141, 0, %v2227
  %v2230 = vcosq.f32.pop %v2228
  %v2231 = vsinq.f32.pop %v2228
  %vm2232 = vweird.f32 %v666
  %v2233 = vadd.s32 %v2229, 3
  %v2234 = vand.u32 %v2233, 3
  %vm2235 = vcmp.lt.s32.totalorder %v2234, 2
  %vm2236 = vcmp.eq.s32.totalorder %v2234, 0
  %v2237 = vxor.u32 %v2231, 2147483648
  %v2238 = vsel %vm2236, %v2230, %v2237
  %vm2239 = vcmp.eq.s32.totalorder %v2234, 2
  %v2240 = vxor.u32 %v2230, 2147483648
  %v2241 = vsel %vm2239, %v2240, %v2231
  %v2242 = vsel %vm2235, %v2238, %v2241
  %v2243 = vsel %vm2232, nan, %v2242
  %v2244 = vand.u32 2147483647, %v667
  %vm2245 = vcmp.le.f32.partialorder %v2244, 0.7853982
  %vm2246 = vcmp.lt.s32.totalorder %v667, 0
  %v2247 = vand.u32 %v667, 2139095040
  %v2248 = vshrl.u32 %v2247, 23
  %v2249 = vsub.s32 %v2248, 127
  %v2250 = vand.u32 2147483647, %v667
  %v2251 = vand.u32 %v2250, 8388607
  %v2252 = vor.u32 %v2251, 8388608
  %v2253 = vsub.s32 0, %v2252
  %v2254 = vadd.s32 %v2249, 1
  %vm2255 = vcmp.gt.s32.totalorder %v2254, 0
  %v2256 = vsel %vm2255, %v2254, 0
  %v2257 = vshrl.u32 %v2256, 5
  %v2258 = vand.u32 %v2256, 31
  %v2259 = vsub.s32 32, %v2258
  %v2260 = vshrl.u32 683565275, %v2259
  %v2261 = vshll.u32 683565275, %v2258
  %v2262 = vshrl.u32 2475754826, %v2259
  %v2263 = vor.u32 %v2261, %v2262
  %v2264 = vshll.u32 2475754826, %v2258
  %v2265 = vshrl.u32 2131351028, %v2259
  %v2266 = vor.u32 %v2264, %v2265
  %v2267 = vshll.u32 2131351028, %v2258
  %v2268 = vshrl.u32 2102212464, %v2259
  %v2269 = vor.u32 %v2267, %v2268
  %v2270 = vshll.u32 2102212464, %v2258
  %v2271 = vshrl.u32 920167782, %v2259
  %v2272 = vor.u32 %v2270, %v2271
  %v2273 = vshll.u32 920167782, %v2258
  %v2274 = vshrl.u32 1326507024, %v2259
  %v2275 = vor.u32 %v2273, %v2274
  %vm2276 = vcmp.lt.s32.totalorder %v2257, 1
  %vm2277 = vcmp.lt.s32.totalorder %v2257, 2
  %vm2278 = vcmp.lt.s32.totalorder %v2257, 3
  %vm2279 = vcmp.lt.s32.totalorder %v2257, 4
  %v2280 = vsel %vm2276, %v2260, %v2263
  %v2281 = vsel %vm2279, %v2269, 2102212464
  %v2282 = vsel %vm2278, %v2266, %v2281
  %v2283 = vsel %vm2277, %v2280, %v2282
  %v2284 = vsel %vm2276, %v2263, %v2266
  %v2285 = vsel %vm2279, %v2272, 920167782
  %v2286 = vsel %vm2278, %v2269, %v2285
  %v2287 = vsel %vm2277, %v2284, %v2286
  %v2288 = vsel %vm2276, %v2266, %v2269
  %v2289 = vsel %vm2279, %v2275, 1326507024
  %v2290 = vsel %vm2278, %v2272, %v2289
  %v2291 = vsel %vm2277, %v2288, %v2290
  %v2292 = vshll.u32 %v2252, 8
  %v2293 = vmul.u32.u64.compose %v2292, %v2291
  %v2294 = vextract.low.u32 %v2293
  %v2295 = vextract.high.u32 %v2293
  %v2296 = vmul.u32.u64.compose %v2292, %v2287
  %v2297 = vextract.low.u32 %v2296
  %v2298 = vextract.high.u32 %v2296
  %v2299 = vmul.u32 %v2292, %v2283
  %v2300 = vadd.s32 %v2295, %v2297
  %vm2301 = vc.u32 %v2295, %v2297
  %v2302 = vadd.s32 %v2298, 1
  %v2303 = vsel %vm2301, %v2302, %v2298
  %v2304 = vadd.s32 %v2299, %v2303
  %v2305 = vadd.s32 %v2304, 536870912
  %v2306 = vshrl.u32 %v2305, 30
  %v2307 = vshll.u32 %v2306, 30
  %v2308 = vsub.s32 %v2304, %v2307
  %vm2309 = vcmp.lt.s32.totalorder %v2308, 0
  %v2310 = vsub.s32 0, %v2308
  %v2311 = vsel %vm2309, %v2310, %v2308
  %v2312 = vclz %v2311
  %v2313 = vsub.s32 %v2312, 2
  %vm2314 = vcmp.gt.s32.totalorder 0, %v2313
  %v2315 = vsel %vm2314, 0, %v2313
  %v2316 = vsub.s32 32, %v2315
  %v2317 = vshll.u32 %v2308, %v2315
  %v2318 = vshrl.u32 %v2300, %v2316
  %v2319 = vor.u32 %v2317, %v2318
  %v2320 = vsub.s32 4294967266, %v2315
  %v2321 = vadd.s32 %v2320, 127
  %v2322 = vshll.u32 %v2321, 23
  %v2323 = vor.u32 4788187, %v2322
  %v2324 = vand.u32 2147483647, %v2323
  %v2326 = vcvt.s32.f32 %v2319
  %v2327 = vmul.f32 %v2326, %v2324
  %v2328 = vxor.u32 %v2327, 2147483648
  %v2329 = vsel %vm2246, %v2328, %v2327
  %v2330 = vsub.s32 4, %v2306
  %v2331 = vsel %vm2246, %v2330, %v2306
  %v2332 = vsel %vm2245, %v667, %v2329
  %v2333 = vsel %vm2245, 0, %v2331
  %v2334 = vcosq.f32.pop %v2332
  %v2335 = vsinq.f32.pop %v2332
  %vm2336 = vweird.f32 %v667
  %v2337 = vadd.s32 %v2333, 3
  %v2338 = vand.u32 %v2337, 3
  %vm2339 = vcmp.lt.s32.totalorder %v2338, 2
  %vm2340 = vcmp.eq.s32.totalorder %v2338, 0
  %v2341 = vxor.u32 %v2335, 2147483648
  %v2342 = vsel %vm2340, %v2334, %v2341
  %vm2343 = vcmp.eq.s32.totalorder %v2338, 2
  %v2344 = vxor.u32 %v2334, 2147483648
  %v2345 = vsel %vm2343, %v2344, %v2335
  %v2346 = vsel %vm2339, %v2342, %v2345
  %v2347 = vsel %vm2336, nan, %v2346
  %v2348 = vand.u32 2147483647, %v668
  %vm2349 = vcmp.le.f32.partialorder %v2348, 0.7853982
  %vm2350 = vcmp.lt.s32.totalorder %v668, 0
  %v2351 = vand.u32 %v668, 2139095040
  %v2352 = vshrl.u32 %v2351, 23
  %v2353 = vsub.s32 %v2352, 127
  %v2354 = vand.u32 2147483647, %v668
  %v2355 = vand.u32 %v2354, 8388607
  %v2356 = vor.u32 %v2355, 8388608
  %v2357 = vsub.s32 0, %v2356
  %v2358 = vadd.s32 %v2353, 1
  %vm2359 = vcmp.gt.s32.totalorder %v2358, 0
  %v2360 = vsel %vm2359, %v2358, 0
  %v2361 = vshrl.u32 %v2360, 5
  %v2362 = vand.u32 %v2360, 31
  %v2363 = vsub.s32 32, %v2362
  %v2364 = vshrl.u32 683565275, %v2363
  %v2365 = vshll.u32 683565275, %v2362
  %v2366 = vshrl.u32 2475754826, %v2363
  %v2367 = vor.u32 %v2365, %v2366
  %v2368 = vshll.u32 2475754826, %v2362
  %v2369 = vshrl.u32 2131351028, %v2363
  %v2370 = vor.u32 %v2368, %v2369
  %v2371 = vshll.u32 2131351028, %v2362
  %v2372 = vshrl.u32 2102212464, %v2363
  %v2373 = vor.u32 %v2371, %v2372
  %v2374 = vshll.u32 2102212464, %v2362
  %v2375 = vshrl.u32 920167782, %v2363
  %v2376 = vor.u32 %v2374, %v2375
  %v2377 = vshll.u32 920167782, %v2362
  %v2378 = vshrl.u32 1326507024, %v2363
  %v2379 = vor.u32 %v2377, %v2378
  %vm2380 = vcmp.lt.s32.totalorder %v2361, 1
  %vm2381 = vcmp.lt.s32.totalorder %v2361, 2
  %vm2382 = vcmp.lt.s32.totalorder %v2361, 3
  %vm2383 = vcmp.lt.s32.totalorder %v2361, 4
  %v2384 = vsel %vm2380, %v2364, %v2367
  %v2385 = vsel %vm2383, %v2373, 2102212464
  %v2386 = vsel %vm2382, %v2370, %v2385
  %v2387 = vsel %vm2381, %v2384, %v2386
  %v2388 = vsel %vm2380, %v2367, %v2370
  %v2389 = vsel %vm2383, %v2376, 920167782
  %v2390 = vsel %vm2382, %v2373, %v2389
  %v2391 = vsel %vm2381, %v2388, %v2390
  %v2392 = vsel %vm2380, %v2370, %v2373
  %v2393 = vsel %vm2383, %v2379, 1326507024
  %v2394 = vsel %vm2382, %v2376, %v2393
  %v2395 = vsel %vm2381, %v2392, %v2394
  %v2396 = vshll.u32 %v2356, 8
  %v2397 = vmul.u32.u64.compose %v2396, %v2395
  %v2398 = vextract.low.u32 %v2397
  %v2399 = vextract.high.u32 %v2397
  %v2400 = vmul.u32.u64.compose %v2396, %v2391
  %v2401 = vextract.low.u32 %v2400
  %v2402 = vextract.high.u32 %v2400
  %v2403 = vmul.u32 %v2396, %v2387
  %v2404 = vadd.s32 %v2399, %v2401
  %vm2405 = vc.u32 %v2399, %v2401
  %v2406 = vadd.s32 %v2402, 1
  %v2407 = vsel %vm2405, %v2406, %v2402
  %v2408 = vadd.s32 %v2403, %v2407
  %v2409 = vadd.s32 %v2408, 536870912
  %v2410 = vshrl.u32 %v2409, 30
  %v2411 = vshll.u32 %v2410, 30
  %v2412 = vsub.s32 %v2408, %v2411
  %vm2413 = vcmp.lt.s32.totalorder %v2412, 0
  %v2414 = vsub.s32 0, %v2412
  %v2415 = vsel %vm2413, %v2414, %v2412
  %v2416 = vclz %v2415
  %v2417 = vsub.s32 %v2416, 2
  %vm2418 = vcmp.gt.s32.totalorder 0, %v2417
  %v2419 = vsel %vm2418, 0, %v2417
  %v2420 = vsub.s32 32, %v2419
  %v2421 = vshll.u32 %v2412, %v2419
  %v2422 = vshrl.u32 %v2404, %v2420
  %v2423 = vor.u32 %v2421, %v2422
  %v2424 = vsub.s32 4294967266, %v2419
  %v2425 = vadd.s32 %v2424, 127
  %v2426 = vshll.u32 %v2425, 23
  %v2427 = vor.u32 4788187, %v2426
  %v2428 = vand.u32 2147483647, %v2427
  %v2430 = vcvt.s32.f32 %v2423
  %v2431 = vmul.f32 %v2430, %v2428
  %v2432 = vxor.u32 %v2431, 2147483648
  %v2433 = vsel %vm2350, %v2432, %v2431
  %v2434 = vsub.s32 4, %v2410
  %v2435 = vsel %vm2350, %v2434, %v2410
  %v2436 = vsel %vm2349, %v668, %v2433
  %v2437 = vsel %vm2349, 0, %v2435
  %v2438 = vcosq.f32.pop %v2436
  %v2439 = vsinq.f32.pop %v2436
  %vm2440 = vweird.f32 %v668
  %v2441 = vadd.s32 %v2437, 3
  %v2442 = vand.u32 %v2441, 3
  %vm2443 = vcmp.lt.s32.totalorder %v2442, 2
  %vm2444 = vcmp.eq.s32.totalorder %v2442, 0
  %v2445 = vxor.u32 %v2439, 2147483648
  %v2446 = vsel %vm2444, %v2438, %v2445
  %vm2447 = vcmp.eq.s32.totalorder %v2442, 2
  %v2448 = vxor.u32 %v2438, 2147483648
  %v2449 = vsel %vm2447, %v2448, %v2439
  %v2450 = vsel %vm2443, %v2446, %v2449
  %v2451 = vsel %vm2440, nan, %v2450
  %v2452 = vand.u32 2147483647, %v669
  %vm2453 = vcmp.le.f32.partialorder %v2452, 0.7853982
  %vm2454 = vcmp.lt.s32.totalorder %v669, 0
  %v2455 = vand.u32 %v669, 2139095040
  %v2456 = vshrl.u32 %v2455, 23
  %v2457 = vsub.s32 %v2456, 127
  %v2458 = vand.u32 2147483647, %v669
  %v2459 = vand.u32 %v2458, 8388607
  %v2460 = vor.u32 %v2459, 8388608
  %v2461 = vsub.s32 0, %v2460
  %v2462 = vadd.s32 %v2457, 1
  %vm2463 = vcmp.gt.s32.totalorder %v2462, 0
  %v2464 = vsel %vm2463, %v2462, 0
  %v2465 = vshrl.u32 %v2464, 5
  %v2466 = vand.u32 %v2464, 31
  %v2467 = vsub.s32 32, %v2466
  %v2468 = vshrl.u32 683565275, %v2467
  %v2469 = vshll.u32 683565275, %v2466
  %v2470 = vshrl.u32 2475754826, %v2467
  %v2471 = vor.u32 %v2469, %v2470
  %v2472 = vshll.u32 2475754826, %v2466
  %v2473 = vshrl.u32 2131351028, %v2467
  %v2474 = vor.u32 %v2472, %v2473
  %v2475 = vshll.u32 2131351028, %v2466
  %v2476 = vshrl.u32 2102212464, %v2467
  %v2477 = vor.u32 %v2475, %v2476
  %v2478 = vshll.u32 2102212464, %v2466
  %v2479 = vshrl.u32 920167782, %v2467
  %v2480 = vor.u32 %v2478, %v2479
  %v2481 = vshll.u32 920167782, %v2466
  %v2482 = vshrl.u32 1326507024, %v2467
  %v2483 = vor.u32 %v2481, %v2482
  %vm2484 = vcmp.lt.s32.totalorder %v2465, 1
  %vm2485 = vcmp.lt.s32.totalorder %v2465, 2
  %vm2486 = vcmp.lt.s32.totalorder %v2465, 3
  %vm2487 = vcmp.lt.s32.totalorder %v2465, 4
  %v2488 = vsel %vm2484, %v2468, %v2471
  %v2489 = vsel %vm2487, %v2477, 2102212464
  %v2490 = vsel %vm2486, %v2474, %v2489
  %v2491 = vsel %vm2485, %v2488, %v2490
  %v2492 = vsel %vm2484, %v2471, %v2474
  %v2493 = vsel %vm2487, %v2480, 920167782
  %v2494 = vsel %vm2486, %v2477, %v2493
  %v2495 = vsel %vm2485, %v2492, %v2494
  %v2496 = vsel %vm2484, %v2474, %v2477
  %v2497 = vsel %vm2487, %v2483, 1326507024
  %v2498 = vsel %vm2486, %v2480, %v2497
  %v2499 = vsel %vm2485, %v2496, %v2498
  %v2500 = vshll.u32 %v2460, 8
  %v2501 = vmul.u32.u64.compose %v2500, %v2499
  %v2502 = vextract.low.u32 %v2501
  %v2503 = vextract.high.u32 %v2501
  %v2504 = vmul.u32.u64.compose %v2500, %v2495
  %v2505 = vextract.low.u32 %v2504
  %v2506 = vextract.high.u32 %v2504
  %v2507 = vmul.u32 %v2500, %v2491
  %v2508 = vadd.s32 %v2503, %v2505
  %vm2509 = vc.u32 %v2503, %v2505
  %v2510 = vadd.s32 %v2506, 1
  %v2511 = vsel %vm2509, %v2510, %v2506
  %v2512 = vadd.s32 %v2507, %v2511
  %v2513 = vadd.s32 %v2512, 536870912
  %v2514 = vshrl.u32 %v2513, 30
  %v2515 = vshll.u32 %v2514, 30
  %v2516 = vsub.s32 %v2512, %v2515
  %vm2517 = vcmp.lt.s32.totalorder %v2516, 0
  %v2518 = vsub.s32 0, %v2516
  %v2519 = vsel %vm2517, %v2518, %v2516
  %v2520 = vclz %v2519
  %v2521 = vsub.s32 %v2520, 2
  %vm2522 = vcmp.gt.s32.totalorder 0, %v2521
  %v2523 = vsel %vm2522, 0, %v2521
  %v2524 = vsub.s32 32, %v2523
  %v2525 = vshll.u32 %v2516, %v2523
  %v2526 = vshrl.u32 %v2508, %v2524
  %v2527 = vor.u32 %v2525, %v2526
  %v2528 = vsub.s32 4294967266, %v2523
  %v2529 = vadd.s32 %v2528, 127
  %v2530 = vshll.u32 %v2529, 23
  %v2531 = vor.u32 4788187, %v2530
  %v2532 = vand.u32 2147483647, %v2531
  %v2534 = vcvt.s32.f32 %v2527
  %v2535 = vmul.f32 %v2534, %v2532
  %v2536 = vxor.u32 %v2535, 2147483648
  %v2537 = vsel %vm2454, %v2536, %v2535
  %v2538 = vsub.s32 4, %v2514
  %v2539 = vsel %vm2454, %v2538, %v2514
  %v2540 = vsel %vm2453, %v669, %v2537
  %v2541 = vsel %vm2453, 0, %v2539
  %v2542 = vcosq.f32.pop %v2540
  %v2543 = vsinq.f32.pop %v2540
  %vm2544 = vweird.f32 %v669
  %v2545 = vadd.s32 %v2541, 3
  %v2546 = vand.u32 %v2545, 3
  %vm2547 = vcmp.lt.s32.totalorder %v2546, 2
  %vm2548 = vcmp.eq.s32.totalorder %v2546, 0
  %v2549 = vxor.u32 %v2543, 2147483648
  %v2550 = vsel %vm2548, %v2542, %v2549
  %vm2551 = vcmp.eq.s32.totalorder %v2546, 2
  %v2552 = vxor.u32 %v2542, 2147483648
  %v2553 = vsel %vm2551, %v2552, %v2543
  %v2554 = vsel %vm2547, %v2550, %v2553
  %v2555 = vsel %vm2544, nan, %v2554
  %v2556 = vand.u32 2147483647, %v670
  %vm2557 = vcmp.le.f32.partialorder %v2556, 0.7853982
  %vm2558 = vcmp.lt.s32.totalorder %v670, 0
  %v2559 = vand.u32 %v670, 2139095040
  %v2560 = vshrl.u32 %v2559, 23
  %v2561 = vsub.s32 %v2560, 127
  %v2562 = vand.u32 2147483647, %v670
  %v2563 = vand.u32 %v2562, 8388607
  %v2564 = vor.u32 %v2563, 8388608
  %v2565 = vsub.s32 0, %v2564
  %v2566 = vadd.s32 %v2561, 1
  %vm2567 = vcmp.gt.s32.totalorder %v2566, 0
  %v2568 = vsel %vm2567, %v2566, 0
  %v2569 = vshrl.u32 %v2568, 5
  %v2570 = vand.u32 %v2568, 31
  %v2571 = vsub.s32 32, %v2570
  %v2572 = vshrl.u32 683565275, %v2571
  %v2573 = vshll.u32 683565275, %v2570
  %v2574 = vshrl.u32 2475754826, %v2571
  %v2575 = vor.u32 %v2573, %v2574
  %v2576 = vshll.u32 2475754826, %v2570
  %v2577 = vshrl.u32 2131351028, %v2571
  %v2578 = vor.u32 %v2576, %v2577
  %v2579 = vshll.u32 2131351028, %v2570
  %v2580 = vshrl.u32 2102212464, %v2571
  %v2581 = vor.u32 %v2579, %v2580
  %v2582 = vshll.u32 2102212464, %v2570
  %v2583 = vshrl.u32 920167782, %v2571
  %v2584 = vor.u32 %v2582, %v2583
  %v2585 = vshll.u32 920167782, %v2570
  %v2586 = vshrl.u32 1326507024, %v2571
  %v2587 = vor.u32 %v2585, %v2586
  %vm2588 = vcmp.lt.s32.totalorder %v2569, 1
  %vm2589 = vcmp.lt.s32.totalorder %v2569, 2
  %vm2590 = vcmp.lt.s32.totalorder %v2569, 3
  %vm2591 = vcmp.lt.s32.totalorder %v2569, 4
  %v2592 = vsel %vm2588, %v2572, %v2575
  %v2593 = vsel %vm2591, %v2581, 2102212464
  %v2594 = vsel %vm2590, %v2578, %v2593
  %v2595 = vsel %vm2589, %v2592, %v2594
  %v2596 = vsel %vm2588, %v2575, %v2578
  %v2597 = vsel %vm2591, %v2584, 920167782
  %v2598 = vsel %vm2590, %v2581, %v2597
  %v2599 = vsel %vm2589, %v2596, %v2598
  %v2600 = vsel %vm2588, %v2578, %v2581
  %v2601 = vsel %vm2591, %v2587, 1326507024
  %v2602 = vsel %vm2590, %v2584, %v2601
  %v2603 = vsel %vm2589, %v2600, %v2602
  %v2604 = vshll.u32 %v2564, 8
  %v2605 = vmul.u32.u64.compose %v2604, %v2603
  %v2606 = vextract.low.u32 %v2605
  %v2607 = vextract.high.u32 %v2605
  %v2608 = vmul.u32.u64.compose %v2604, %v2599
  %v2609 = vextract.low.u32 %v2608
  %v2610 = vextract.high.u32 %v2608
  %v2611 = vmul.u32 %v2604, %v2595
  %v2612 = vadd.s32 %v2607, %v2609
  %vm2613 = vc.u32 %v2607, %v2609
  %v2614 = vadd.s32 %v2610, 1
  %v2615 = vsel %vm2613, %v2614, %v2610
  %v2616 = vadd.s32 %v2611, %v2615
  %v2617 = vadd.s32 %v2616, 536870912
  %v2618 = vshrl.u32 %v2617, 30
  %v2619 = vshll.u32 %v2618, 30
  %v2620 = vsub.s32 %v2616, %v2619
  %vm2621 = vcmp.lt.s32.totalorder %v2620, 0
  %v2622 = vsub.s32 0, %v2620
  %v2623 = vsel %vm2621, %v2622, %v2620
  %v2624 = vclz %v2623
  %v2625 = vsub.s32 %v2624, 2
  %vm2626 = vcmp.gt.s32.totalorder 0, %v2625
  %v2627 = vsel %vm2626, 0, %v2625
  %v2628 = vsub.s32 32, %v2627
  %v2629 = vshll.u32 %v2620, %v2627
  %v2630 = vshrl.u32 %v2612, %v2628
  %v2631 = vor.u32 %v2629, %v2630
  %v2632 = vsub.s32 4294967266, %v2627
  %v2633 = vadd.s32 %v2632, 127
  %v2634 = vshll.u32 %v2633, 23
  %v2635 = vor.u32 4788187, %v2634
  %v2636 = vand.u32 2147483647, %v2635
  %v2638 = vcvt.s32.f32 %v2631
  %v2639 = vmul.f32 %v2638, %v2636
  %v2640 = vxor.u32 %v2639, 2147483648
  %v2641 = vsel %vm2558, %v2640, %v2639
  %v2642 = vsub.s32 4, %v2618
  %v2643 = vsel %vm2558, %v2642, %v2618
  %v2644 = vsel %vm2557, %v670, %v2641
  %v2645 = vsel %vm2557, 0, %v2643
  %v2646 = vcosq.f32.pop %v2644
  %v2647 = vsinq.f32.pop %v2644
  %vm2648 = vweird.f32 %v670
  %v2649 = vadd.s32 %v2645, 3
  %v2650 = vand.u32 %v2649, 3
  %vm2651 = vcmp.lt.s32.totalorder %v2650, 2
  %vm2652 = vcmp.eq.s32.totalorder %v2650, 0
  %v2653 = vxor.u32 %v2647, 2147483648
  %v2654 = vsel %vm2652, %v2646, %v2653
  %vm2655 = vcmp.eq.s32.totalorder %v2650, 2
  %v2656 = vxor.u32 %v2646, 2147483648
  %v2657 = vsel %vm2655, %v2656, %v2647
  %v2658 = vsel %vm2651, %v2654, %v2657
  %v2659 = vsel %vm2648, nan, %v2658
  %v2660 = vand.u32 2147483647, %v671
  %vm2661 = vcmp.le.f32.partialorder %v2660, 0.7853982
  %vm2662 = vcmp.lt.s32.totalorder %v671, 0
  %v2663 = vand.u32 %v671, 2139095040
  %v2664 = vshrl.u32 %v2663, 23
  %v2665 = vsub.s32 %v2664, 127
  %v2666 = vand.u32 2147483647, %v671
  %v2667 = vand.u32 %v2666, 8388607
  %v2668 = vor.u32 %v2667, 8388608
  %v2669 = vsub.s32 0, %v2668
  %v2670 = vadd.s32 %v2665, 1
  %vm2671 = vcmp.gt.s32.totalorder %v2670, 0
  %v2672 = vsel %vm2671, %v2670, 0
  %v2673 = vshrl.u32 %v2672, 5
  %v2674 = vand.u32 %v2672, 31
  %v2675 = vsub.s32 32, %v2674
  %v2676 = vshrl.u32 683565275, %v2675
  %v2677 = vshll.u32 683565275, %v2674
  %v2678 = vshrl.u32 2475754826, %v2675
  %v2679 = vor.u32 %v2677, %v2678
  %v2680 = vshll.u32 2475754826, %v2674
  %v2681 = vshrl.u32 2131351028, %v2675
  %v2682 = vor.u32 %v2680, %v2681
  %v2683 = vshll.u32 2131351028, %v2674
  %v2684 = vshrl.u32 2102212464, %v2675
  %v2685 = vor.u32 %v2683, %v2684
  %v2686 = vshll.u32 2102212464, %v2674
  %v2687 = vshrl.u32 920167782, %v2675
  %v2688 = vor.u32 %v2686, %v2687
  %v2689 = vshll.u32 920167782, %v2674
  %v2690 = vshrl.u32 1326507024, %v2675
  %v2691 = vor.u32 %v2689, %v2690
  %vm2692 = vcmp.lt.s32.totalorder %v2673, 1
  %vm2693 = vcmp.lt.s32.totalorder %v2673, 2
  %vm2694 = vcmp.lt.s32.totalorder %v2673, 3
  %vm2695 = vcmp.lt.s32.totalorder %v2673, 4
  %v2696 = vsel %vm2692, %v2676, %v2679
  %v2697 = vsel %vm2695, %v2685, 2102212464
  %v2698 = vsel %vm2694, %v2682, %v2697
  %v2699 = vsel %vm2693, %v2696, %v2698
  %v2700 = vsel %vm2692, %v2679, %v2682
  %v2701 = vsel %vm2695, %v2688, 920167782
  %v2702 = vsel %vm2694, %v2685, %v2701
  %v2703 = vsel %vm2693, %v2700, %v2702
  %v2704 = vsel %vm2692, %v2682, %v2685
  %v2705 = vsel %vm2695, %v2691, 1326507024
  %v2706 = vsel %vm2694, %v2688, %v2705
  %v2707 = vsel %vm2693, %v2704, %v2706
  %v2708 = vshll.u32 %v2668, 8
  %v2709 = vmul.u32.u64.compose %v2708, %v2707
  %v2710 = vextract.low.u32 %v2709
  %v2711 = vextract.high.u32 %v2709
  %v2712 = vmul.u32.u64.compose %v2708, %v2703
  %v2713 = vextract.low.u32 %v2712
  %v2714 = vextract.high.u32 %v2712
  %v2715 = vmul.u32 %v2708, %v2699
  %v2716 = vadd.s32 %v2711, %v2713
  %vm2717 = vc.u32 %v2711, %v2713
  %v2718 = vadd.s32 %v2714, 1
  %v2719 = vsel %vm2717, %v2718, %v2714
  %v2720 = vadd.s32 %v2715, %v2719
  %v2721 = vadd.s32 %v2720, 536870912
  %v2722 = vshrl.u32 %v2721, 30
  %v2723 = vshll.u32 %v2722, 30
  %v2724 = vsub.s32 %v2720, %v2723
  %vm2725 = vcmp.lt.s32.totalorder %v2724, 0
  %v2726 = vsub.s32 0, %v2724
  %v2727 = vsel %vm2725, %v2726, %v2724
  %v2728 = vclz %v2727
  %v2729 = vsub.s32 %v2728, 2
  %vm2730 = vcmp.gt.s32.totalorder 0, %v2729
  %v2731 = vsel %vm2730, 0, %v2729
  %v2732 = vsub.s32 32, %v2731
  %v2733 = vshll.u32 %v2724, %v2731
  %v2734 = vshrl.u32 %v2716, %v2732
  %v2735 = vor.u32 %v2733, %v2734
  %v2736 = vsub.s32 4294967266, %v2731
  %v2737 = vadd.s32 %v2736, 127
  %v2738 = vshll.u32 %v2737, 23
  %v2739 = vor.u32 4788187, %v2738
  %v2740 = vand.u32 2147483647, %v2739
  %v2742 = vcvt.s32.f32 %v2735
  %v2743 = vmul.f32 %v2742, %v2740
  %v2744 = vxor.u32 %v2743, 2147483648
  %v2745 = vsel %vm2662, %v2744, %v2743
  %v2746 = vsub.s32 4, %v2722
  %v2747 = vsel %vm2662, %v2746, %v2722
  %v2748 = vsel %vm2661, %v671, %v2745
  %v2749 = vsel %vm2661, 0, %v2747
  %v2750 = vcosq.f32.pop %v2748
  %v2751 = vsinq.f32.pop %v2748
  %vm2752 = vweird.f32 %v671
  %v2753 = vadd.s32 %v2749, 3
  %v2754 = vand.u32 %v2753, 3
  %vm2755 = vcmp.lt.s32.totalorder %v2754, 2
  %vm2756 = vcmp.eq.s32.totalorder %v2754, 0
  %v2757 = vxor.u32 %v2751, 2147483648
  %v2758 = vsel %vm2756, %v2750, %v2757
  %vm2759 = vcmp.eq.s32.totalorder %v2754, 2
  %v2760 = vxor.u32 %v2750, 2147483648
  %v2761 = vsel %vm2759, %v2760, %v2751
  %v2762 = vsel %vm2755, %v2758, %v2761
  %v2763 = vsel %vm2752, nan, %v2762
  %v2764 = vand.u32 2147483647, %v672
  %vm2765 = vcmp.le.f32.partialorder %v2764, 0.7853982
  %vm2766 = vcmp.lt.s32.totalorder %v672, 0
  %v2767 = vand.u32 %v672, 2139095040
  %v2768 = vshrl.u32 %v2767, 23
  %v2769 = vsub.s32 %v2768, 127
  %v2770 = vand.u32 2147483647, %v672
  %v2771 = vand.u32 %v2770, 8388607
  %v2772 = vor.u32 %v2771, 8388608
  %v2773 = vsub.s32 0, %v2772
  %v2774 = vadd.s32 %v2769, 1
  %vm2775 = vcmp.gt.s32.totalorder %v2774, 0
  %v2776 = vsel %vm2775, %v2774, 0
  %v2777 = vshrl.u32 %v2776, 5
  %v2778 = vand.u32 %v2776, 31
  %v2779 = vsub.s32 32, %v2778
  %v2780 = vshrl.u32 683565275, %v2779
  %v2781 = vshll.u32 683565275, %v2778
  %v2782 = vshrl.u32 2475754826, %v2779
  %v2783 = vor.u32 %v2781, %v2782
  %v2784 = vshll.u32 2475754826, %v2778
  %v2785 = vshrl.u32 2131351028, %v2779
  %v2786 = vor.u32 %v2784, %v2785
  %v2787 = vshll.u32 2131351028, %v2778
  %v2788 = vshrl.u32 2102212464, %v2779
  %v2789 = vor.u32 %v2787, %v2788
  %v2790 = vshll.u32 2102212464, %v2778
  %v2791 = vshrl.u32 920167782, %v2779
  %v2792 = vor.u32 %v2790, %v2791
  %v2793 = vshll.u32 920167782, %v2778
  %v2794 = vshrl.u32 1326507024, %v2779
  %v2795 = vor.u32 %v2793, %v2794
  %vm2796 = vcmp.lt.s32.totalorder %v2777, 1
  %vm2797 = vcmp.lt.s32.totalorder %v2777, 2
  %vm2798 = vcmp.lt.s32.totalorder %v2777, 3
  %vm2799 = vcmp.lt.s32.totalorder %v2777, 4
  %v2800 = vsel %vm2796, %v2780, %v2783
  %v2801 = vsel %vm2799, %v2789, 2102212464
  %v2802 = vsel %vm2798, %v2786, %v2801
  %v2803 = vsel %vm2797, %v2800, %v2802
  %v2804 = vsel %vm2796, %v2783, %v2786
  %v2805 = vsel %vm2799, %v2792, 920167782
  %v2806 = vsel %vm2798, %v2789, %v2805
  %v2807 = vsel %vm2797, %v2804, %v2806
  %v2808 = vsel %vm2796, %v2786, %v2789
  %v2809 = vsel %vm2799, %v2795, 1326507024
  %v2810 = vsel %vm2798, %v2792, %v2809
  %v2811 = vsel %vm2797, %v2808, %v2810
  %v2812 = vshll.u32 %v2772, 8
  %v2813 = vmul.u32.u64.compose %v2812, %v2811
  %v2814 = vextract.low.u32 %v2813
  %v2815 = vextract.high.u32 %v2813
  %v2816 = vmul.u32.u64.compose %v2812, %v2807
  %v2817 = vextract.low.u32 %v2816
  %v2818 = vextract.high.u32 %v2816
  %v2819 = vmul.u32 %v2812, %v2803
  %v2820 = vadd.s32 %v2815, %v2817
  %vm2821 = vc.u32 %v2815, %v2817
  %v2822 = vadd.s32 %v2818, 1
  %v2823 = vsel %vm2821, %v2822, %v2818
  %v2824 = vadd.s32 %v2819, %v2823
  %v2825 = vadd.s32 %v2824, 536870912
  %v2826 = vshrl.u32 %v2825, 30
  %v2827 = vshll.u32 %v2826, 30
  %v2828 = vsub.s32 %v2824, %v2827
  %vm2829 = vcmp.lt.s32.totalorder %v2828, 0
  %v2830 = vsub.s32 0, %v2828
  %v2831 = vsel %vm2829, %v2830, %v2828
  %v2832 = vclz %v2831
  %v2833 = vsub.s32 %v2832, 2
  %vm2834 = vcmp.gt.s32.totalorder 0, %v2833
  %v2835 = vsel %vm2834, 0, %v2833
  %v2836 = vsub.s32 32, %v2835
  %v2837 = vshll.u32 %v2828, %v2835
  %v2838 = vshrl.u32 %v2820, %v2836
  %v2839 = vor.u32 %v2837, %v2838
  %v2840 = vsub.s32 4294967266, %v2835
  %v2841 = vadd.s32 %v2840, 127
  %v2842 = vshll.u32 %v2841, 23
  %v2843 = vor.u32 4788187, %v2842
  %v2844 = vand.u32 2147483647, %v2843
  %v2846 = vcvt.s32.f32 %v2839
  %v2847 = vmul.f32 %v2846, %v2844
  %v2848 = vxor.u32 %v2847, 2147483648
  %v2849 = vsel %vm2766, %v2848, %v2847
  %v2850 = vsub.s32 4, %v2826
  %v2851 = vsel %vm2766, %v2850, %v2826
  %v2852 = vsel %vm2765, %v672, %v2849
  %v2853 = vsel %vm2765, 0, %v2851
  %v2854 = vcosq.f32.pop %v2852
  %v2855 = vsinq.f32.pop %v2852
  %vm2856 = vweird.f32 %v672
  %v2857 = vadd.s32 %v2853, 3
  %v2858 = vand.u32 %v2857, 3
  %vm2859 = vcmp.lt.s32.totalorder %v2858, 2
  %vm2860 = vcmp.eq.s32.totalorder %v2858, 0
  %v2861 = vxor.u32 %v2855, 2147483648
  %v2862 = vsel %vm2860, %v2854, %v2861
  %vm2863 = vcmp.eq.s32.totalorder %v2858, 2
  %v2864 = vxor.u32 %v2854, 2147483648
  %v2865 = vsel %vm2863, %v2864, %v2855
  %v2866 = vsel %vm2859, %v2862, %v2865
  %v2867 = vsel %vm2856, nan, %v2866
  %v2868 = vand.u32 2147483647, %v673
  %vm2869 = vcmp.le.f32.partialorder %v2868, 0.7853982
  %vm2870 = vcmp.lt.s32.totalorder %v673, 0
  %v2871 = vand.u32 %v673, 2139095040
  %v2872 = vshrl.u32 %v2871, 23
  %v2873 = vsub.s32 %v2872, 127
  %v2874 = vand.u32 2147483647, %v673
  %v2875 = vand.u32 %v2874, 8388607
  %v2876 = vor.u32 %v2875, 8388608
  %v2877 = vsub.s32 0, %v2876
  %v2878 = vadd.s32 %v2873, 1
  %vm2879 = vcmp.gt.s32.totalorder %v2878, 0
  %v2880 = vsel %vm2879, %v2878, 0
  %v2881 = vshrl.u32 %v2880, 5
  %v2882 = vand.u32 %v2880, 31
  %v2883 = vsub.s32 32, %v2882
  %v2884 = vshrl.u32 683565275, %v2883
  %v2885 = vshll.u32 683565275, %v2882
  %v2886 = vshrl.u32 2475754826, %v2883
  %v2887 = vor.u32 %v2885, %v2886
  %v2888 = vshll.u32 2475754826, %v2882
  %v2889 = vshrl.u32 2131351028, %v2883
  %v2890 = vor.u32 %v2888, %v2889
  %v2891 = vshll.u32 2131351028, %v2882
  %v2892 = vshrl.u32 2102212464, %v2883
  %v2893 = vor.u32 %v2891, %v2892
  %v2894 = vshll.u32 2102212464, %v2882
  %v2895 = vshrl.u32 920167782, %v2883
  %v2896 = vor.u32 %v2894, %v2895
  %v2897 = vshll.u32 920167782, %v2882
  %v2898 = vshrl.u32 1326507024, %v2883
  %v2899 = vor.u32 %v2897, %v2898
  %vm2900 = vcmp.lt.s32.totalorder %v2881, 1
  %vm2901 = vcmp.lt.s32.totalorder %v2881, 2
  %vm2902 = vcmp.lt.s32.totalorder %v2881, 3
  %vm2903 = vcmp.lt.s32.totalorder %v2881, 4
  %v2904 = vsel %vm2900, %v2884, %v2887
  %v2905 = vsel %vm2903, %v2893, 2102212464
  %v2906 = vsel %vm2902, %v2890, %v2905
  %v2907 = vsel %vm2901, %v2904, %v2906
  %v2908 = vsel %vm2900, %v2887, %v2890
  %v2909 = vsel %vm2903, %v2896, 920167782
  %v2910 = vsel %vm2902, %v2893, %v2909
  %v2911 = vsel %vm2901, %v2908, %v2910
  %v2912 = vsel %vm2900, %v2890, %v2893
  %v2913 = vsel %vm2903, %v2899, 1326507024
  %v2914 = vsel %vm2902, %v2896, %v2913
  %v2915 = vsel %vm2901, %v2912, %v2914
  %v2916 = vshll.u32 %v2876, 8
  %v2917 = vmul.u32.u64.compose %v2916, %v2915
  %v2918 = vextract.low.u32 %v2917
  %v2919 = vextract.high.u32 %v2917
  %v2920 = vmul.u32.u64.compose %v2916, %v2911
  %v2921 = vextract.low.u32 %v2920
  %v2922 = vextract.high.u32 %v2920
  %v2923 = vmul.u32 %v2916, %v2907
  %v2924 = vadd.s32 %v2919, %v2921
  %vm2925 = vc.u32 %v2919, %v2921
  %v2926 = vadd.s32 %v2922, 1
  %v2927 = vsel %vm2925, %v2926, %v2922
  %v2928 = vadd.s32 %v2923, %v2927
  %v2929 = vadd.s32 %v2928, 536870912
  %v2930 = vshrl.u32 %v2929, 30
  %v2931 = vshll.u32 %v2930, 30
  %v2932 = vsub.s32 %v2928, %v2931
  %vm2933 = vcmp.lt.s32.totalorder %v2932, 0
  %v2934 = vsub.s32 0, %v2932
  %v2935 = vsel %vm2933, %v2934, %v2932
  %v2936 = vclz %v2935
  %v2937 = vsub.s32 %v2936, 2
  %vm2938 = vcmp.gt.s32.totalorder 0, %v2937
  %v2939 = vsel %vm2938, 0, %v2937
  %v2940 = vsub.s32 32, %v2939
  %v2941 = vshll.u32 %v2932, %v2939
  %v2942 = vshrl.u32 %v2924, %v2940
  %v2943 = vor.u32 %v2941, %v2942
  %v2944 = vsub.s32 4294967266, %v2939
  %v2945 = vadd.s32 %v2944, 127
  %v2946 = vshll.u32 %v2945, 23
  %v2947 = vor.u32 4788187, %v2946
  %v2948 = vand.u32 2147483647, %v2947
  %v2950 = vcvt.s32.f32 %v2943
  %v2951 = vmul.f32 %v2950, %v2948
  %v2952 = vxor.u32 %v2951, 2147483648
  %v2953 = vsel %vm2870, %v2952, %v2951
  %v2954 = vsub.s32 4, %v2930
  %v2955 = vsel %vm2870, %v2954, %v2930
  %v2956 = vsel %vm2869, %v673, %v2953
  %v2957 = vsel %vm2869, 0, %v2955
  %v2958 = vcosq.f32.pop %v2956
  %v2959 = vsinq.f32.pop %v2956
  %vm2960 = vweird.f32 %v673
  %v2961 = vadd.s32 %v2957, 3
  %v2962 = vand.u32 %v2961, 3
  %vm2963 = vcmp.lt.s32.totalorder %v2962, 2
  %vm2964 = vcmp.eq.s32.totalorder %v2962, 0
  %v2965 = vxor.u32 %v2959, 2147483648
  %v2966 = vsel %vm2964, %v2958, %v2965
  %vm2967 = vcmp.eq.s32.totalorder %v2962, 2
  %v2968 = vxor.u32 %v2958, 2147483648
  %v2969 = vsel %vm2967, %v2968, %v2959
  %v2970 = vsel %vm2963, %v2966, %v2969
  %v2971 = vsel %vm2960, nan, %v2970
  %v2972 = vand.u32 2147483647, %v674
  %vm2973 = vcmp.le.f32.partialorder %v2972, 0.7853982
  %vm2974 = vcmp.lt.s32.totalorder %v674, 0
  %v2975 = vand.u32 %v674, 2139095040
  %v2976 = vshrl.u32 %v2975, 23
  %v2977 = vsub.s32 %v2976, 127
  %v2978 = vand.u32 2147483647, %v674
  %v2979 = vand.u32 %v2978, 8388607
  %v2980 = vor.u32 %v2979, 8388608
  %v2981 = vsub.s32 0, %v2980
  %v2982 = vadd.s32 %v2977, 1
  %vm2983 = vcmp.gt.s32.totalorder %v2982, 0
  %v2984 = vsel %vm2983, %v2982, 0
  %v2985 = vshrl.u32 %v2984, 5
  %v2986 = vand.u32 %v2984, 31
  %v2987 = vsub.s32 32, %v2986
  %v2988 = vshrl.u32 683565275, %v2987
  %v2989 = vshll.u32 683565275, %v2986
  %v2990 = vshrl.u32 2475754826, %v2987
  %v2991 = vor.u32 %v2989, %v2990
  %v2992 = vshll.u32 2475754826, %v2986
  %v2993 = vshrl.u32 2131351028, %v2987
  %v2994 = vor.u32 %v2992, %v2993
  %v2995 = vshll.u32 2131351028, %v2986
  %v2996 = vshrl.u32 2102212464, %v2987
  %v2997 = vor.u32 %v2995, %v2996
  %v2998 = vshll.u32 2102212464, %v2986
  %v2999 = vshrl.u32 920167782, %v2987
  %v3000 = vor.u32 %v2998, %v2999
  %v3001 = vshll.u32 920167782, %v2986
  %v3002 = vshrl.u32 1326507024, %v2987
  %v3003 = vor.u32 %v3001, %v3002
  %vm3004 = vcmp.lt.s32.totalorder %v2985, 1
  %vm3005 = vcmp.lt.s32.totalorder %v2985, 2
  %vm3006 = vcmp.lt.s32.totalorder %v2985, 3
  %vm3007 = vcmp.lt.s32.totalorder %v2985, 4
  %v3008 = vsel %vm3004, %v2988, %v2991
  %v3009 = vsel %vm3007, %v2997, 2102212464
  %v3010 = vsel %vm3006, %v2994, %v3009
  %v3011 = vsel %vm3005, %v3008, %v3010
  %v3012 = vsel %vm3004, %v2991, %v2994
  %v3013 = vsel %vm3007, %v3000, 920167782
  %v3014 = vsel %vm3006, %v2997, %v3013
  %v3015 = vsel %vm3005, %v3012, %v3014
  %v3016 = vsel %vm3004, %v2994, %v2997
  %v3017 = vsel %vm3007, %v3003, 1326507024
  %v3018 = vsel %vm3006, %v3000, %v3017
  %v3019 = vsel %vm3005, %v3016, %v3018
  %v3020 = vshll.u32 %v2980, 8
  %v3021 = vmul.u32.u64.compose %v3020, %v3019
  %v3022 = vextract.low.u32 %v3021
  %v3023 = vextract.high.u32 %v3021
  %v3024 = vmul.u32.u64.compose %v3020, %v3015
  %v3025 = vextract.low.u32 %v3024
  %v3026 = vextract.high.u32 %v3024
  %v3027 = vmul.u32 %v3020, %v3011
  %v3028 = vadd.s32 %v3023, %v3025
  %vm3029 = vc.u32 %v3023, %v3025
  %v3030 = vadd.s32 %v3026, 1
  %v3031 = vsel %vm3029, %v3030, %v3026
  %v3032 = vadd.s32 %v3027, %v3031
  %v3033 = vadd.s32 %v3032, 536870912
  %v3034 = vshrl.u32 %v3033, 30
  %v3035 = vshll.u32 %v3034, 30
  %v3036 = vsub.s32 %v3032, %v3035
  %vm3037 = vcmp.lt.s32.totalorder %v3036, 0
  %v3038 = vsub.s32 0, %v3036
  %v3039 = vsel %vm3037, %v3038, %v3036
  %v3040 = vclz %v3039
  %v3041 = vsub.s32 %v3040, 2
  %vm3042 = vcmp.gt.s32.totalorder 0, %v3041
  %v3043 = vsel %vm3042, 0, %v3041
  %v3044 = vsub.s32 32, %v3043
  %v3045 = vshll.u32 %v3036, %v3043
  %v3046 = vshrl.u32 %v3028, %v3044
  %v3047 = vor.u32 %v3045, %v3046
  %v3048 = vsub.s32 4294967266, %v3043
  %v3049 = vadd.s32 %v3048, 127
  %v3050 = vshll.u32 %v3049, 23
  %v3051 = vor.u32 4788187, %v3050
  %v3052 = vand.u32 2147483647, %v3051
  %v3054 = vcvt.s32.f32 %v3047
  %v3055 = vmul.f32 %v3054, %v3052
  %v3056 = vxor.u32 %v3055, 2147483648
  %v3057 = vsel %vm2974, %v3056, %v3055
  %v3058 = vsub.s32 4, %v3034
  %v3059 = vsel %vm2974, %v3058, %v3034
  %v3060 = vsel %vm2973, %v674, %v3057
  %v3061 = vsel %vm2973, 0, %v3059
  %v3062 = vcosq.f32.pop %v3060
  %v3063 = vsinq.f32.pop %v3060
  %vm3064 = vweird.f32 %v674
  %v3065 = vadd.s32 %v3061, 3
  %v3066 = vand.u32 %v3065, 3
  %vm3067 = vcmp.lt.s32.totalorder %v3066, 2
  %vm3068 = vcmp.eq.s32.totalorder %v3066, 0
  %v3069 = vxor.u32 %v3063, 2147483648
  %v3070 = vsel %vm3068, %v3062, %v3069
  %vm3071 = vcmp.eq.s32.totalorder %v3066, 2
  %v3072 = vxor.u32 %v3062, 2147483648
  %v3073 = vsel %vm3071, %v3072, %v3063
  %v3074 = vsel %vm3067, %v3070, %v3073
  %v3075 = vsel %vm3064, nan, %v3074
  %v3076 = vand.u32 2147483647, %v675
  %vm3077 = vcmp.le.f32.partialorder %v3076, 0.7853982
  %vm3078 = vcmp.lt.s32.totalorder %v675, 0
  %v3079 = vand.u32 %v675, 2139095040
  %v3080 = vshrl.u32 %v3079, 23
  %v3081 = vsub.s32 %v3080, 127
  %v3082 = vand.u32 2147483647, %v675
  %v3083 = vand.u32 %v3082, 8388607
  %v3084 = vor.u32 %v3083, 8388608
  %v3085 = vsub.s32 0, %v3084
  %v3086 = vadd.s32 %v3081, 1
  %vm3087 = vcmp.gt.s32.totalorder %v3086, 0
  %v3088 = vsel %vm3087, %v3086, 0
  %v3089 = vshrl.u32 %v3088, 5
  %v3090 = vand.u32 %v3088, 31
  %v3091 = vsub.s32 32, %v3090
  %v3092 = vshrl.u32 683565275, %v3091
  %v3093 = vshll.u32 683565275, %v3090
  %v3094 = vshrl.u32 2475754826, %v3091
  %v3095 = vor.u32 %v3093, %v3094
  %v3096 = vshll.u32 2475754826, %v3090
  %v3097 = vshrl.u32 2131351028, %v3091
  %v3098 = vor.u32 %v3096, %v3097
  %v3099 = vshll.u32 2131351028, %v3090
  %v3100 = vshrl.u32 2102212464, %v3091
  %v3101 = vor.u32 %v3099, %v3100
  %v3102 = vshll.u32 2102212464, %v3090
  %v3103 = vshrl.u32 920167782, %v3091
  %v3104 = vor.u32 %v3102, %v3103
  %v3105 = vshll.u32 920167782, %v3090
  %v3106 = vshrl.u32 1326507024, %v3091
  %v3107 = vor.u32 %v3105, %v3106
  %vm3108 = vcmp.lt.s32.totalorder %v3089, 1
  %vm3109 = vcmp.lt.s32.totalorder %v3089, 2
  %vm3110 = vcmp.lt.s32.totalorder %v3089, 3
  %vm3111 = vcmp.lt.s32.totalorder %v3089, 4
  %v3112 = vsel %vm3108, %v3092, %v3095
  %v3113 = vsel %vm3111, %v3101, 2102212464
  %v3114 = vsel %vm3110, %v3098, %v3113
  %v3115 = vsel %vm3109, %v3112, %v3114
  %v3116 = vsel %vm3108, %v3095, %v3098
  %v3117 = vsel %vm3111, %v3104, 920167782
  %v3118 = vsel %vm3110, %v3101, %v3117
  %v3119 = vsel %vm3109, %v3116, %v3118
  %v3120 = vsel %vm3108, %v3098, %v3101
  %v3121 = vsel %vm3111, %v3107, 1326507024
  %v3122 = vsel %vm3110, %v3104, %v3121
  %v3123 = vsel %vm3109, %v3120, %v3122
  %v3124 = vshll.u32 %v3084, 8
  %v3125 = vmul.u32.u64.compose %v3124, %v3123
  %v3126 = vextract.low.u32 %v3125
  %v3127 = vextract.high.u32 %v3125
  %v3128 = vmul.u32.u64.compose %v3124, %v3119
  %v3129 = vextract.low.u32 %v3128
  %v3130 = vextract.high.u32 %v3128
  %v3131 = vmul.u32 %v3124, %v3115
  %v3132 = vadd.s32 %v3127, %v3129
  %vm3133 = vc.u32 %v3127, %v3129
  %v3134 = vadd.s32 %v3130, 1
  %v3135 = vsel %vm3133, %v3134, %v3130
  %v3136 = vadd.s32 %v3131, %v3135
  %v3137 = vadd.s32 %v3136, 536870912
  %v3138 = vshrl.u32 %v3137, 30
  %v3139 = vshll.u32 %v3138, 30
  %v3140 = vsub.s32 %v3136, %v3139
  %vm3141 = vcmp.lt.s32.totalorder %v3140, 0
  %v3142 = vsub.s32 0, %v3140
  %v3143 = vsel %vm3141, %v3142, %v3140
  %v3144 = vclz %v3143
  %v3145 = vsub.s32 %v3144, 2
  %vm3146 = vcmp.gt.s32.totalorder 0, %v3145
  %v3147 = vsel %vm3146, 0, %v3145
  %v3148 = vsub.s32 32, %v3147
  %v3149 = vshll.u32 %v3140, %v3147
  %v3150 = vshrl.u32 %v3132, %v3148
  %v3151 = vor.u32 %v3149, %v3150
  %v3152 = vsub.s32 4294967266, %v3147
  %v3153 = vadd.s32 %v3152, 127
  %v3154 = vshll.u32 %v3153, 23
  %v3155 = vor.u32 4788187, %v3154
  %v3156 = vand.u32 2147483647, %v3155
  %v3158 = vcvt.s32.f32 %v3151
  %v3159 = vmul.f32 %v3158, %v3156
  %v3160 = vxor.u32 %v3159, 2147483648
  %v3161 = vsel %vm3078, %v3160, %v3159
  %v3162 = vsub.s32 4, %v3138
  %v3163 = vsel %vm3078, %v3162, %v3138
  %v3164 = vsel %vm3077, %v675, %v3161
  %v3165 = vsel %vm3077, 0, %v3163
  %v3166 = vcosq.f32.pop %v3164
  %v3167 = vsinq.f32.pop %v3164
  %vm3168 = vweird.f32 %v675
  %v3169 = vadd.s32 %v3165, 3
  %v3170 = vand.u32 %v3169, 3
  %vm3171 = vcmp.lt.s32.totalorder %v3170, 2
  %vm3172 = vcmp.eq.s32.totalorder %v3170, 0
  %v3173 = vxor.u32 %v3167, 2147483648
  %v3174 = vsel %vm3172, %v3166, %v3173
  %vm3175 = vcmp.eq.s32.totalorder %v3170, 2
  %v3176 = vxor.u32 %v3166, 2147483648
  %v3177 = vsel %vm3175, %v3176, %v3167
  %v3178 = vsel %vm3171, %v3174, %v3177
  %v3179 = vsel %vm3168, nan, %v3178
  %v3180 = vand.u32 2147483647, %v676
  %vm3181 = vcmp.le.f32.partialorder %v3180, 0.7853982
  %vm3182 = vcmp.lt.s32.totalorder %v676, 0
  %v3183 = vand.u32 %v676, 2139095040
  %v3184 = vshrl.u32 %v3183, 23
  %v3185 = vsub.s32 %v3184, 127
  %v3186 = vand.u32 2147483647, %v676
  %v3187 = vand.u32 %v3186, 8388607
  %v3188 = vor.u32 %v3187, 8388608
  %v3189 = vsub.s32 0, %v3188
  %v3190 = vadd.s32 %v3185, 1
  %vm3191 = vcmp.gt.s32.totalorder %v3190, 0
  %v3192 = vsel %vm3191, %v3190, 0
  %v3193 = vshrl.u32 %v3192, 5
  %v3194 = vand.u32 %v3192, 31
  %v3195 = vsub.s32 32, %v3194
  %v3196 = vshrl.u32 683565275, %v3195
  %v3197 = vshll.u32 683565275, %v3194
  %v3198 = vshrl.u32 2475754826, %v3195
  %v3199 = vor.u32 %v3197, %v3198
  %v3200 = vshll.u32 2475754826, %v3194
  %v3201 = vshrl.u32 2131351028, %v3195
  %v3202 = vor.u32 %v3200, %v3201
  %v3203 = vshll.u32 2131351028, %v3194
  %v3204 = vshrl.u32 2102212464, %v3195
  %v3205 = vor.u32 %v3203, %v3204
  %v3206 = vshll.u32 2102212464, %v3194
  %v3207 = vshrl.u32 920167782, %v3195
  %v3208 = vor.u32 %v3206, %v3207
  %v3209 = vshll.u32 920167782, %v3194
  %v3210 = vshrl.u32 1326507024, %v3195
  %v3211 = vor.u32 %v3209, %v3210
  %vm3212 = vcmp.lt.s32.totalorder %v3193, 1
  %vm3213 = vcmp.lt.s32.totalorder %v3193, 2
  %vm3214 = vcmp.lt.s32.totalorder %v3193, 3
  %vm3215 = vcmp.lt.s32.totalorder %v3193, 4
  %v3216 = vsel %vm3212, %v3196, %v3199
  %v3217 = vsel %vm3215, %v3205, 2102212464
  %v3218 = vsel %vm3214, %v3202, %v3217
  %v3219 = vsel %vm3213, %v3216, %v3218
  %v3220 = vsel %vm3212, %v3199, %v3202
  %v3221 = vsel %vm3215, %v3208, 920167782
  %v3222 = vsel %vm3214, %v3205, %v3221
  %v3223 = vsel %vm3213, %v3220, %v3222
  %v3224 = vsel %vm3212, %v3202, %v3205
  %v3225 = vsel %vm3215, %v3211, 1326507024
  %v3226 = vsel %vm3214, %v3208, %v3225
  %v3227 = vsel %vm3213, %v3224, %v3226
  %v3228 = vshll.u32 %v3188, 8
  %v3229 = vmul.u32.u64.compose %v3228, %v3227
  %v3230 = vextract.low.u32 %v3229
  %v3231 = vextract.high.u32 %v3229
  %v3232 = vmul.u32.u64.compose %v3228, %v3223
  %v3233 = vextract.low.u32 %v3232
  %v3234 = vextract.high.u32 %v3232
  %v3235 = vmul.u32 %v3228, %v3219
  %v3236 = vadd.s32 %v3231, %v3233
  %vm3237 = vc.u32 %v3231, %v3233
  %v3238 = vadd.s32 %v3234, 1
  %v3239 = vsel %vm3237, %v3238, %v3234
  %v3240 = vadd.s32 %v3235, %v3239
  %v3241 = vadd.s32 %v3240, 536870912
  %v3242 = vshrl.u32 %v3241, 30
  %v3243 = vshll.u32 %v3242, 30
  %v3244 = vsub.s32 %v3240, %v3243
  %vm3245 = vcmp.lt.s32.totalorder %v3244, 0
  %v3246 = vsub.s32 0, %v3244
  %v3247 = vsel %vm3245, %v3246, %v3244
  %v3248 = vclz %v3247
  %v3249 = vsub.s32 %v3248, 2
  %vm3250 = vcmp.gt.s32.totalorder 0, %v3249
  %v3251 = vsel %vm3250, 0, %v3249
  %v3252 = vsub.s32 32, %v3251
  %v3253 = vshll.u32 %v3244, %v3251
  %v3254 = vshrl.u32 %v3236, %v3252
  %v3255 = vor.u32 %v3253, %v3254
  %v3256 = vsub.s32 4294967266, %v3251
  %v3257 = vadd.s32 %v3256, 127
  %v3258 = vshll.u32 %v3257, 23
  %v3259 = vor.u32 4788187, %v3258
  %v3260 = vand.u32 2147483647, %v3259
  %v3262 = vcvt.s32.f32 %v3255
  %v3263 = vmul.f32 %v3262, %v3260
  %v3264 = vxor.u32 %v3263, 2147483648
  %v3265 = vsel %vm3182, %v3264, %v3263
  %v3266 = vsub.s32 4, %v3242
  %v3267 = vsel %vm3182, %v3266, %v3242
  %v3268 = vsel %vm3181, %v676, %v3265
  %v3269 = vsel %vm3181, 0, %v3267
  %v3270 = vcosq.f32.pop %v3268
  %v3271 = vsinq.f32.pop %v3268
  %vm3272 = vweird.f32 %v676
  %v3273 = vadd.s32 %v3269, 3
  %v3274 = vand.u32 %v3273, 3
  %vm3275 = vcmp.lt.s32.totalorder %v3274, 2
  %vm3276 = vcmp.eq.s32.totalorder %v3274, 0
  %v3277 = vxor.u32 %v3271, 2147483648
  %v3278 = vsel %vm3276, %v3270, %v3277
  %vm3279 = vcmp.eq.s32.totalorder %v3274, 2
  %v3280 = vxor.u32 %v3270, 2147483648
  %v3281 = vsel %vm3279, %v3280, %v3271
  %v3282 = vsel %vm3275, %v3278, %v3281
  %v3283 = vsel %vm3272, nan, %v3282
  %v3284 = vand.u32 2147483647, %v677
  %vm3285 = vcmp.le.f32.partialorder %v3284, 0.7853982
  %vm3286 = vcmp.lt.s32.totalorder %v677, 0
  %v3287 = vand.u32 %v677, 2139095040
  %v3288 = vshrl.u32 %v3287, 23
  %v3289 = vsub.s32 %v3288, 127
  %v3290 = vand.u32 2147483647, %v677
  %v3291 = vand.u32 %v3290, 8388607
  %v3292 = vor.u32 %v3291, 8388608
  %v3293 = vsub.s32 0, %v3292
  %v3294 = vadd.s32 %v3289, 1
  %vm3295 = vcmp.gt.s32.totalorder %v3294, 0
  %v3296 = vsel %vm3295, %v3294, 0
  %v3297 = vshrl.u32 %v3296, 5
  %v3298 = vand.u32 %v3296, 31
  %v3299 = vsub.s32 32, %v3298
  %v3300 = vshrl.u32 683565275, %v3299
  %v3301 = vshll.u32 683565275, %v3298
  %v3302 = vshrl.u32 2475754826, %v3299
  %v3303 = vor.u32 %v3301, %v3302
  %v3304 = vshll.u32 2475754826, %v3298
  %v3305 = vshrl.u32 2131351028, %v3299
  %v3306 = vor.u32 %v3304, %v3305
  %v3307 = vshll.u32 2131351028, %v3298
  %v3308 = vshrl.u32 2102212464, %v3299
  %v3309 = vor.u32 %v3307, %v3308
  %v3310 = vshll.u32 2102212464, %v3298
  %v3311 = vshrl.u32 920167782, %v3299
  %v3312 = vor.u32 %v3310, %v3311
  %v3313 = vshll.u32 920167782, %v3298
  %v3314 = vshrl.u32 1326507024, %v3299
  %v3315 = vor.u32 %v3313, %v3314
  %vm3316 = vcmp.lt.s32.totalorder %v3297, 1
  %vm3317 = vcmp.lt.s32.totalorder %v3297, 2
  %vm3318 = vcmp.lt.s32.totalorder %v3297, 3
  %vm3319 = vcmp.lt.s32.totalorder %v3297, 4
  %v3320 = vsel %vm3316, %v3300, %v3303
  %v3321 = vsel %vm3319, %v3309, 2102212464
  %v3322 = vsel %vm3318, %v3306, %v3321
  %v3323 = vsel %vm3317, %v3320, %v3322
  %v3324 = vsel %vm3316, %v3303, %v3306
  %v3325 = vsel %vm3319, %v3312, 920167782
  %v3326 = vsel %vm3318, %v3309, %v3325
  %v3327 = vsel %vm3317, %v3324, %v3326
  %v3328 = vsel %vm3316, %v3306, %v3309
  %v3329 = vsel %vm3319, %v3315, 1326507024
  %v3330 = vsel %vm3318, %v3312, %v3329
  %v3331 = vsel %vm3317, %v3328, %v3330
  %v3332 = vshll.u32 %v3292, 8
  %v3333 = vmul.u32.u64.compose %v3332, %v3331
  %v3334 = vextract.low.u32 %v3333
  %v3335 = vextract.high.u32 %v3333
  %v3336 = vmul.u32.u64.compose %v3332, %v3327
  %v3337 = vextract.low.u32 %v3336
  %v3338 = vextract.high.u32 %v3336
  %v3339 = vmul.u32 %v3332, %v3323
  %v3340 = vadd.s32 %v3335, %v3337
  %vm3341 = vc.u32 %v3335, %v3337
  %v3342 = vadd.s32 %v3338, 1
  %v3343 = vsel %vm3341, %v3342, %v3338
  %v3344 = vadd.s32 %v3339, %v3343
  %v3345 = vadd.s32 %v3344, 536870912
  %v3346 = vshrl.u32 %v3345, 30
  %v3347 = vshll.u32 %v3346, 30
  %v3348 = vsub.s32 %v3344, %v3347
  %vm3349 = vcmp.lt.s32.totalorder %v3348, 0
  %v3350 = vsub.s32 0, %v3348
  %v3351 = vsel %vm3349, %v3350, %v3348
  %v3352 = vclz %v3351
  %v3353 = vsub.s32 %v3352, 2
  %vm3354 = vcmp.gt.s32.totalorder 0, %v3353
  %v3355 = vsel %vm3354, 0, %v3353
  %v3356 = vsub.s32 32, %v3355
  %v3357 = vshll.u32 %v3348, %v3355
  %v3358 = vshrl.u32 %v3340, %v3356
  %v3359 = vor.u32 %v3357, %v3358
  %v3360 = vsub.s32 4294967266, %v3355
  %v3361 = vadd.s32 %v3360, 127
  %v3362 = vshll.u32 %v3361, 23
  %v3363 = vor.u32 4788187, %v3362
  %v3364 = vand.u32 2147483647, %v3363
  %v3366 = vcvt.s32.f32 %v3359
  %v3367 = vmul.f32 %v3366, %v3364
  %v3368 = vxor.u32 %v3367, 2147483648
  %v3369 = vsel %vm3286, %v3368, %v3367
  %v3370 = vsub.s32 4, %v3346
  %v3371 = vsel %vm3286, %v3370, %v3346
  %v3372 = vsel %vm3285, %v677, %v3369
  %v3373 = vsel %vm3285, 0, %v3371
  %v3374 = vcosq.f32.pop %v3372
  %v3375 = vsinq.f32.pop %v3372
  %vm3376 = vweird.f32 %v677
  %v3377 = vadd.s32 %v3373, 3
  %v3378 = vand.u32 %v3377, 3
  %vm3379 = vcmp.lt.s32.totalorder %v3378, 2
  %vm3380 = vcmp.eq.s32.totalorder %v3378, 0
  %v3381 = vxor.u32 %v3375, 2147483648
  %v3382 = vsel %vm3380, %v3374, %v3381
  %vm3383 = vcmp.eq.s32.totalorder %v3378, 2
  %v3384 = vxor.u32 %v3374, 2147483648
  %v3385 = vsel %vm3383, %v3384, %v3375
  %v3386 = vsel %vm3379, %v3382, %v3385
  %v3387 = vsel %vm3376, nan, %v3386
  %v3388 = vand.u32 2147483647, %v678
  %vm3389 = vcmp.le.f32.partialorder %v3388, 0.7853982
  %vm3390 = vcmp.lt.s32.totalorder %v678, 0
  %v3391 = vand.u32 %v678, 2139095040
  %v3392 = vshrl.u32 %v3391, 23
  %v3393 = vsub.s32 %v3392, 127
  %v3394 = vand.u32 2147483647, %v678
  %v3395 = vand.u32 %v3394, 8388607
  %v3396 = vor.u32 %v3395, 8388608
  %v3397 = vsub.s32 0, %v3396
  %v3398 = vadd.s32 %v3393, 1
  %vm3399 = vcmp.gt.s32.totalorder %v3398, 0
  %v3400 = vsel %vm3399, %v3398, 0
  %v3401 = vshrl.u32 %v3400, 5
  %v3402 = vand.u32 %v3400, 31
  %v3403 = vsub.s32 32, %v3402
  %v3404 = vshrl.u32 683565275, %v3403
  %v3405 = vshll.u32 683565275, %v3402
  %v3406 = vshrl.u32 2475754826, %v3403
  %v3407 = vor.u32 %v3405, %v3406
  %v3408 = vshll.u32 2475754826, %v3402
  %v3409 = vshrl.u32 2131351028, %v3403
  %v3410 = vor.u32 %v3408, %v3409
  %v3411 = vshll.u32 2131351028, %v3402
  %v3412 = vshrl.u32 2102212464, %v3403
  %v3413 = vor.u32 %v3411, %v3412
  %v3414 = vshll.u32 2102212464, %v3402
  %v3415 = vshrl.u32 920167782, %v3403
  %v3416 = vor.u32 %v3414, %v3415
  %v3417 = vshll.u32 920167782, %v3402
  %v3418 = vshrl.u32 1326507024, %v3403
  %v3419 = vor.u32 %v3417, %v3418
  %vm3420 = vcmp.lt.s32.totalorder %v3401, 1
  %vm3421 = vcmp.lt.s32.totalorder %v3401, 2
  %vm3422 = vcmp.lt.s32.totalorder %v3401, 3
  %vm3423 = vcmp.lt.s32.totalorder %v3401, 4
  %v3424 = vsel %vm3420, %v3404, %v3407
  %v3425 = vsel %vm3423, %v3413, 2102212464
  %v3426 = vsel %vm3422, %v3410, %v3425
  %v3427 = vsel %vm3421, %v3424, %v3426
  %v3428 = vsel %vm3420, %v3407, %v3410
  %v3429 = vsel %vm3423, %v3416, 920167782
  %v3430 = vsel %vm3422, %v3413, %v3429
  %v3431 = vsel %vm3421, %v3428, %v3430
  %v3432 = vsel %vm3420, %v3410, %v3413
  %v3433 = vsel %vm3423, %v3419, 1326507024
  %v3434 = vsel %vm3422, %v3416, %v3433
  %v3435 = vsel %vm3421, %v3432, %v3434
  %v3436 = vshll.u32 %v3396, 8
  %v3437 = vmul.u32.u64.compose %v3436, %v3435
  %v3438 = vextract.low.u32 %v3437
  %v3439 = vextract.high.u32 %v3437
  %v3440 = vmul.u32.u64.compose %v3436, %v3431
  %v3441 = vextract.low.u32 %v3440
  %v3442 = vextract.high.u32 %v3440
  %v3443 = vmul.u32 %v3436, %v3427
  %v3444 = vadd.s32 %v3439, %v3441
  %vm3445 = vc.u32 %v3439, %v3441
  %v3446 = vadd.s32 %v3442, 1
  %v3447 = vsel %vm3445, %v3446, %v3442
  %v3448 = vadd.s32 %v3443, %v3447
  %v3449 = vadd.s32 %v3448, 536870912
  %v3450 = vshrl.u32 %v3449, 30
  %v3451 = vshll.u32 %v3450, 30
  %v3452 = vsub.s32 %v3448, %v3451
  %vm3453 = vcmp.lt.s32.totalorder %v3452, 0
  %v3454 = vsub.s32 0, %v3452
  %v3455 = vsel %vm3453, %v3454, %v3452
  %v3456 = vclz %v3455
  %v3457 = vsub.s32 %v3456, 2
  %vm3458 = vcmp.gt.s32.totalorder 0, %v3457
  %v3459 = vsel %vm3458, 0, %v3457
  %v3460 = vsub.s32 32, %v3459
  %v3461 = vshll.u32 %v3452, %v3459
  %v3462 = vshrl.u32 %v3444, %v3460
  %v3463 = vor.u32 %v3461, %v3462
  %v3464 = vsub.s32 4294967266, %v3459
  %v3465 = vadd.s32 %v3464, 127
  %v3466 = vshll.u32 %v3465, 23
  %v3467 = vor.u32 4788187, %v3466
  %v3468 = vand.u32 2147483647, %v3467
  %v3470 = vcvt.s32.f32 %v3463
  %v3471 = vmul.f32 %v3470, %v3468
  %v3472 = vxor.u32 %v3471, 2147483648
  %v3473 = vsel %vm3390, %v3472, %v3471
  %v3474 = vsub.s32 4, %v3450
  %v3475 = vsel %vm3390, %v3474, %v3450
  %v3476 = vsel %vm3389, %v678, %v3473
  %v3477 = vsel %vm3389, 0, %v3475
  %v3478 = vcosq.f32.pop %v3476
  %v3479 = vsinq.f32.pop %v3476
  %vm3480 = vweird.f32 %v678
  %v3481 = vadd.s32 %v3477, 3
  %v3482 = vand.u32 %v3481, 3
  %vm3483 = vcmp.lt.s32.totalorder %v3482, 2
  %vm3484 = vcmp.eq.s32.totalorder %v3482, 0
  %v3485 = vxor.u32 %v3479, 2147483648
  %v3486 = vsel %vm3484, %v3478, %v3485
  %vm3487 = vcmp.eq.s32.totalorder %v3482, 2
  %v3488 = vxor.u32 %v3478, 2147483648
  %v3489 = vsel %vm3487, %v3488, %v3479
  %v3490 = vsel %vm3483, %v3486, %v3489
  %v3491 = vsel %vm3480, nan, %v3490
  %v3492 = vand.u32 2147483647, %v679
  %vm3493 = vcmp.le.f32.partialorder %v3492, 0.7853982
  %vm3494 = vcmp.lt.s32.totalorder %v679, 0
  %v3495 = vand.u32 %v679, 2139095040
  %v3496 = vshrl.u32 %v3495, 23
  %v3497 = vsub.s32 %v3496, 127
  %v3498 = vand.u32 2147483647, %v679
  %v3499 = vand.u32 %v3498, 8388607
  %v3500 = vor.u32 %v3499, 8388608
  %v3501 = vsub.s32 0, %v3500
  %v3502 = vadd.s32 %v3497, 1
  %vm3503 = vcmp.gt.s32.totalorder %v3502, 0
  %v3504 = vsel %vm3503, %v3502, 0
  %v3505 = vshrl.u32 %v3504, 5
  %v3506 = vand.u32 %v3504, 31
  %v3507 = vsub.s32 32, %v3506
  %v3508 = vshrl.u32 683565275, %v3507
  %v3509 = vshll.u32 683565275, %v3506
  %v3510 = vshrl.u32 2475754826, %v3507
  %v3511 = vor.u32 %v3509, %v3510
  %v3512 = vshll.u32 2475754826, %v3506
  %v3513 = vshrl.u32 2131351028, %v3507
  %v3514 = vor.u32 %v3512, %v3513
  %v3515 = vshll.u32 2131351028, %v3506
  %v3516 = vshrl.u32 2102212464, %v3507
  %v3517 = vor.u32 %v3515, %v3516
  %v3518 = vshll.u32 2102212464, %v3506
  %v3519 = vshrl.u32 920167782, %v3507
  %v3520 = vor.u32 %v3518, %v3519
  %v3521 = vshll.u32 920167782, %v3506
  %v3522 = vshrl.u32 1326507024, %v3507
  %v3523 = vor.u32 %v3521, %v3522
  %vm3524 = vcmp.lt.s32.totalorder %v3505, 1
  %vm3525 = vcmp.lt.s32.totalorder %v3505, 2
  %vm3526 = vcmp.lt.s32.totalorder %v3505, 3
  %vm3527 = vcmp.lt.s32.totalorder %v3505, 4
  %v3528 = vsel %vm3524, %v3508, %v3511
  %v3529 = vsel %vm3527, %v3517, 2102212464
  %v3530 = vsel %vm3526, %v3514, %v3529
  %v3531 = vsel %vm3525, %v3528, %v3530
  %v3532 = vsel %vm3524, %v3511, %v3514
  %v3533 = vsel %vm3527, %v3520, 920167782
  %v3534 = vsel %vm3526, %v3517, %v3533
  %v3535 = vsel %vm3525, %v3532, %v3534
  %v3536 = vsel %vm3524, %v3514, %v3517
  %v3537 = vsel %vm3527, %v3523, 1326507024
  %v3538 = vsel %vm3526, %v3520, %v3537
  %v3539 = vsel %vm3525, %v3536, %v3538
  %v3540 = vshll.u32 %v3500, 8
  %v3541 = vmul.u32.u64.compose %v3540, %v3539
  %v3542 = vextract.low.u32 %v3541
  %v3543 = vextract.high.u32 %v3541
  %v3544 = vmul.u32.u64.compose %v3540, %v3535
  %v3545 = vextract.low.u32 %v3544
  %v3546 = vextract.high.u32 %v3544
  %v3547 = vmul.u32 %v3540, %v3531
  %v3548 = vadd.s32 %v3543, %v3545
  %vm3549 = vc.u32 %v3543, %v3545
  %v3550 = vadd.s32 %v3546, 1
  %v3551 = vsel %vm3549, %v3550, %v3546
  %v3552 = vadd.s32 %v3547, %v3551
  %v3553 = vadd.s32 %v3552, 536870912
  %v3554 = vshrl.u32 %v3553, 30
  %v3555 = vshll.u32 %v3554, 30
  %v3556 = vsub.s32 %v3552, %v3555
  %vm3557 = vcmp.lt.s32.totalorder %v3556, 0
  %v3558 = vsub.s32 0, %v3556
  %v3559 = vsel %vm3557, %v3558, %v3556
  %v3560 = vclz %v3559
  %v3561 = vsub.s32 %v3560, 2
  %vm3562 = vcmp.gt.s32.totalorder 0, %v3561
  %v3563 = vsel %vm3562, 0, %v3561
  %v3564 = vsub.s32 32, %v3563
  %v3565 = vshll.u32 %v3556, %v3563
  %v3566 = vshrl.u32 %v3548, %v3564
  %v3567 = vor.u32 %v3565, %v3566
  %v3568 = vsub.s32 4294967266, %v3563
  %v3569 = vadd.s32 %v3568, 127
  %v3570 = vshll.u32 %v3569, 23
  %v3571 = vor.u32 4788187, %v3570
  %v3572 = vand.u32 2147483647, %v3571
  %v3574 = vcvt.s32.f32 %v3567
  %v3575 = vmul.f32 %v3574, %v3572
  %v3576 = vxor.u32 %v3575, 2147483648
  %v3577 = vsel %vm3494, %v3576, %v3575
  %v3578 = vsub.s32 4, %v3554
  %v3579 = vsel %vm3494, %v3578, %v3554
  %v3580 = vsel %vm3493, %v679, %v3577
  %v3581 = vsel %vm3493, 0, %v3579
  %v3582 = vcosq.f32.pop %v3580
  %v3583 = vsinq.f32.pop %v3580
  %vm3584 = vweird.f32 %v679
  %v3585 = vadd.s32 %v3581, 3
  %v3586 = vand.u32 %v3585, 3
  %vm3587 = vcmp.lt.s32.totalorder %v3586, 2
  %vm3588 = vcmp.eq.s32.totalorder %v3586, 0
  %v3589 = vxor.u32 %v3583, 2147483648
  %v3590 = vsel %vm3588, %v3582, %v3589
  %vm3591 = vcmp.eq.s32.totalorder %v3586, 2
  %v3592 = vxor.u32 %v3582, 2147483648
  %v3593 = vsel %vm3591, %v3592, %v3583
  %v3594 = vsel %vm3587, %v3590, %v3593
  %v3595 = vsel %vm3584, nan, %v3594
  %v3596 = vand.u32 2147483647, %v680
  %vm3597 = vcmp.le.f32.partialorder %v3596, 0.7853982
  %vm3598 = vcmp.lt.s32.totalorder %v680, 0
  %v3599 = vand.u32 %v680, 2139095040
  %v3600 = vshrl.u32 %v3599, 23
  %v3601 = vsub.s32 %v3600, 127
  %v3602 = vand.u32 2147483647, %v680
  %v3603 = vand.u32 %v3602, 8388607
  %v3604 = vor.u32 %v3603, 8388608
  %v3605 = vsub.s32 0, %v3604
  %v3606 = vadd.s32 %v3601, 1
  %vm3607 = vcmp.gt.s32.totalorder %v3606, 0
  %v3608 = vsel %vm3607, %v3606, 0
  %v3609 = vshrl.u32 %v3608, 5
  %v3610 = vand.u32 %v3608, 31
  %v3611 = vsub.s32 32, %v3610
  %v3612 = vshrl.u32 683565275, %v3611
  %v3613 = vshll.u32 683565275, %v3610
  %v3614 = vshrl.u32 2475754826, %v3611
  %v3615 = vor.u32 %v3613, %v3614
  %v3616 = vshll.u32 2475754826, %v3610
  %v3617 = vshrl.u32 2131351028, %v3611
  %v3618 = vor.u32 %v3616, %v3617
  %v3619 = vshll.u32 2131351028, %v3610
  %v3620 = vshrl.u32 2102212464, %v3611
  %v3621 = vor.u32 %v3619, %v3620
  %v3622 = vshll.u32 2102212464, %v3610
  %v3623 = vshrl.u32 920167782, %v3611
  %v3624 = vor.u32 %v3622, %v3623
  %v3625 = vshll.u32 920167782, %v3610
  %v3626 = vshrl.u32 1326507024, %v3611
  %v3627 = vor.u32 %v3625, %v3626
  %vm3628 = vcmp.lt.s32.totalorder %v3609, 1
  %vm3629 = vcmp.lt.s32.totalorder %v3609, 2
  %vm3630 = vcmp.lt.s32.totalorder %v3609, 3
  %vm3631 = vcmp.lt.s32.totalorder %v3609, 4
  %v3632 = vsel %vm3628, %v3612, %v3615
  %v3633 = vsel %vm3631, %v3621, 2102212464
  %v3634 = vsel %vm3630, %v3618, %v3633
  %v3635 = vsel %vm3629, %v3632, %v3634
  %v3636 = vsel %vm3628, %v3615, %v3618
  %v3637 = vsel %vm3631, %v3624, 920167782
  %v3638 = vsel %vm3630, %v3621, %v3637
  %v3639 = vsel %vm3629, %v3636, %v3638
  %v3640 = vsel %vm3628, %v3618, %v3621
  %v3641 = vsel %vm3631, %v3627, 1326507024
  %v3642 = vsel %vm3630, %v3624, %v3641
  %v3643 = vsel %vm3629, %v3640, %v3642
  %v3644 = vshll.u32 %v3604, 8
  %v3645 = vmul.u32.u64.compose %v3644, %v3643
  %v3646 = vextract.low.u32 %v3645
  %v3647 = vextract.high.u32 %v3645
  %v3648 = vmul.u32.u64.compose %v3644, %v3639
  %v3649 = vextract.low.u32 %v3648
  %v3650 = vextract.high.u32 %v3648
  %v3651 = vmul.u32 %v3644, %v3635
  %v3652 = vadd.s32 %v3647, %v3649
  %vm3653 = vc.u32 %v3647, %v3649
  %v3654 = vadd.s32 %v3650, 1
  %v3655 = vsel %vm3653, %v3654, %v3650
  %v3656 = vadd.s32 %v3651, %v3655
  %v3657 = vadd.s32 %v3656, 536870912
  %v3658 = vshrl.u32 %v3657, 30
  %v3659 = vshll.u32 %v3658, 30
  %v3660 = vsub.s32 %v3656, %v3659
  %vm3661 = vcmp.lt.s32.totalorder %v3660, 0
  %v3662 = vsub.s32 0, %v3660
  %v3663 = vsel %vm3661, %v3662, %v3660
  %v3664 = vclz %v3663
  %v3665 = vsub.s32 %v3664, 2
  %vm3666 = vcmp.gt.s32.totalorder 0, %v3665
  %v3667 = vsel %vm3666, 0, %v3665
  %v3668 = vsub.s32 32, %v3667
  %v3669 = vshll.u32 %v3660, %v3667
  %v3670 = vshrl.u32 %v3652, %v3668
  %v3671 = vor.u32 %v3669, %v3670
  %v3672 = vsub.s32 4294967266, %v3667
  %v3673 = vadd.s32 %v3672, 127
  %v3674 = vshll.u32 %v3673, 23
  %v3675 = vor.u32 4788187, %v3674
  %v3676 = vand.u32 2147483647, %v3675
  %v3678 = vcvt.s32.f32 %v3671
  %v3679 = vmul.f32 %v3678, %v3676
  %v3680 = vxor.u32 %v3679, 2147483648
  %v3681 = vsel %vm3598, %v3680, %v3679
  %v3682 = vsub.s32 4, %v3658
  %v3683 = vsel %vm3598, %v3682, %v3658
  %v3684 = vsel %vm3597, %v680, %v3681
  %v3685 = vsel %vm3597, 0, %v3683
  %v3686 = vcosq.f32.pop %v3684
  %v3687 = vsinq.f32.pop %v3684
  %vm3688 = vweird.f32 %v680
  %v3689 = vadd.s32 %v3685, 3
  %v3690 = vand.u32 %v3689, 3
  %vm3691 = vcmp.lt.s32.totalorder %v3690, 2
  %vm3692 = vcmp.eq.s32.totalorder %v3690, 0
  %v3693 = vxor.u32 %v3687, 2147483648
  %v3694 = vsel %vm3692, %v3686, %v3693
  %vm3695 = vcmp.eq.s32.totalorder %v3690, 2
  %v3696 = vxor.u32 %v3686, 2147483648
  %v3697 = vsel %vm3695, %v3696, %v3687
  %v3698 = vsel %vm3691, %v3694, %v3697
  %v3699 = vsel %vm3688, nan, %v3698
  %v3700 = vand.u32 2147483647, %v681
  %vm3701 = vcmp.le.f32.partialorder %v3700, 0.7853982
  %vm3702 = vcmp.lt.s32.totalorder %v681, 0
  %v3703 = vand.u32 %v681, 2139095040
  %v3704 = vshrl.u32 %v3703, 23
  %v3705 = vsub.s32 %v3704, 127
  %v3706 = vand.u32 2147483647, %v681
  %v3707 = vand.u32 %v3706, 8388607
  %v3708 = vor.u32 %v3707, 8388608
  %v3709 = vsub.s32 0, %v3708
  %v3710 = vadd.s32 %v3705, 1
  %vm3711 = vcmp.gt.s32.totalorder %v3710, 0
  %v3712 = vsel %vm3711, %v3710, 0
  %v3713 = vshrl.u32 %v3712, 5
  %v3714 = vand.u32 %v3712, 31
  %v3715 = vsub.s32 32, %v3714
  %v3716 = vshrl.u32 683565275, %v3715
  %v3717 = vshll.u32 683565275, %v3714
  %v3718 = vshrl.u32 2475754826, %v3715
  %v3719 = vor.u32 %v3717, %v3718
  %v3720 = vshll.u32 2475754826, %v3714
  %v3721 = vshrl.u32 2131351028, %v3715
  %v3722 = vor.u32 %v3720, %v3721
  %v3723 = vshll.u32 2131351028, %v3714
  %v3724 = vshrl.u32 2102212464, %v3715
  %v3725 = vor.u32 %v3723, %v3724
  %v3726 = vshll.u32 2102212464, %v3714
  %v3727 = vshrl.u32 920167782, %v3715
  %v3728 = vor.u32 %v3726, %v3727
  %v3729 = vshll.u32 920167782, %v3714
  %v3730 = vshrl.u32 1326507024, %v3715
  %v3731 = vor.u32 %v3729, %v3730
  %vm3732 = vcmp.lt.s32.totalorder %v3713, 1
  %vm3733 = vcmp.lt.s32.totalorder %v3713, 2
  %vm3734 = vcmp.lt.s32.totalorder %v3713, 3
  %vm3735 = vcmp.lt.s32.totalorder %v3713, 4
  %v3736 = vsel %vm3732, %v3716, %v3719
  %v3737 = vsel %vm3735, %v3725, 2102212464
  %v3738 = vsel %vm3734, %v3722, %v3737
  %v3739 = vsel %vm3733, %v3736, %v3738
  %v3740 = vsel %vm3732, %v3719, %v3722
  %v3741 = vsel %vm3735, %v3728, 920167782
  %v3742 = vsel %vm3734, %v3725, %v3741
  %v3743 = vsel %vm3733, %v3740, %v3742
  %v3744 = vsel %vm3732, %v3722, %v3725
  %v3745 = vsel %vm3735, %v3731, 1326507024
  %v3746 = vsel %vm3734, %v3728, %v3745
  %v3747 = vsel %vm3733, %v3744, %v3746
  %v3748 = vshll.u32 %v3708, 8
  %v3749 = vmul.u32.u64.compose %v3748, %v3747
  %v3750 = vextract.low.u32 %v3749
  %v3751 = vextract.high.u32 %v3749
  %v3752 = vmul.u32.u64.compose %v3748, %v3743
  %v3753 = vextract.low.u32 %v3752
  %v3754 = vextract.high.u32 %v3752
  %v3755 = vmul.u32 %v3748, %v3739
  %v3756 = vadd.s32 %v3751, %v3753
  %vm3757 = vc.u32 %v3751, %v3753
  %v3758 = vadd.s32 %v3754, 1
  %v3759 = vsel %vm3757, %v3758, %v3754
  %v3760 = vadd.s32 %v3755, %v3759
  %v3761 = vadd.s32 %v3760, 536870912
  %v3762 = vshrl.u32 %v3761, 30
  %v3763 = vshll.u32 %v3762, 30
  %v3764 = vsub.s32 %v3760, %v3763
  %vm3765 = vcmp.lt.s32.totalorder %v3764, 0
  %v3766 = vsub.s32 0, %v3764
  %v3767 = vsel %vm3765, %v3766, %v3764
  %v3768 = vclz %v3767
  %v3769 = vsub.s32 %v3768, 2
  %vm3770 = vcmp.gt.s32.totalorder 0, %v3769
  %v3771 = vsel %vm3770, 0, %v3769
  %v3772 = vsub.s32 32, %v3771
  %v3773 = vshll.u32 %v3764, %v3771
  %v3774 = vshrl.u32 %v3756, %v3772
  %v3775 = vor.u32 %v3773, %v3774
  %v3776 = vsub.s32 4294967266, %v3771
  %v3777 = vadd.s32 %v3776, 127
  %v3778 = vshll.u32 %v3777, 23
  %v3779 = vor.u32 4788187, %v3778
  %v3780 = vand.u32 2147483647, %v3779
  %v3782 = vcvt.s32.f32 %v3775
  %v3783 = vmul.f32 %v3782, %v3780
  %v3784 = vxor.u32 %v3783, 2147483648
  %v3785 = vsel %vm3702, %v3784, %v3783
  %v3786 = vsub.s32 4, %v3762
  %v3787 = vsel %vm3702, %v3786, %v3762
  %v3788 = vsel %vm3701, %v681, %v3785
  %v3789 = vsel %vm3701, 0, %v3787
  %v3790 = vcosq.f32.pop %v3788
  %v3791 = vsinq.f32.pop %v3788
  %vm3792 = vweird.f32 %v681
  %v3793 = vadd.s32 %v3789, 3
  %v3794 = vand.u32 %v3793, 3
  %vm3795 = vcmp.lt.s32.totalorder %v3794, 2
  %vm3796 = vcmp.eq.s32.totalorder %v3794, 0
  %v3797 = vxor.u32 %v3791, 2147483648
  %v3798 = vsel %vm3796, %v3790, %v3797
  %vm3799 = vcmp.eq.s32.totalorder %v3794, 2
  %v3800 = vxor.u32 %v3790, 2147483648
  %v3801 = vsel %vm3799, %v3800, %v3791
  %v3802 = vsel %vm3795, %v3798, %v3801
  %v3803 = vsel %vm3792, nan, %v3802
  %v3804 = vand.u32 2147483647, %v682
  %vm3805 = vcmp.le.f32.partialorder %v3804, 0.7853982
  %vm3806 = vcmp.lt.s32.totalorder %v682, 0
  %v3807 = vand.u32 %v682, 2139095040
  %v3808 = vshrl.u32 %v3807, 23
  %v3809 = vsub.s32 %v3808, 127
  %v3810 = vand.u32 2147483647, %v682
  %v3811 = vand.u32 %v3810, 8388607
  %v3812 = vor.u32 %v3811, 8388608
  %v3813 = vsub.s32 0, %v3812
  %v3814 = vadd.s32 %v3809, 1
  %vm3815 = vcmp.gt.s32.totalorder %v3814, 0
  %v3816 = vsel %vm3815, %v3814, 0
  %v3817 = vshrl.u32 %v3816, 5
  %v3818 = vand.u32 %v3816, 31
  %v3819 = vsub.s32 32, %v3818
  %v3820 = vshrl.u32 683565275, %v3819
  %v3821 = vshll.u32 683565275, %v3818
  %v3822 = vshrl.u32 2475754826, %v3819
  %v3823 = vor.u32 %v3821, %v3822
  %v3824 = vshll.u32 2475754826, %v3818
  %v3825 = vshrl.u32 2131351028, %v3819
  %v3826 = vor.u32 %v3824, %v3825
  %v3827 = vshll.u32 2131351028, %v3818
  %v3828 = vshrl.u32 2102212464, %v3819
  %v3829 = vor.u32 %v3827, %v3828
  %v3830 = vshll.u32 2102212464, %v3818
  %v3831 = vshrl.u32 920167782, %v3819
  %v3832 = vor.u32 %v3830, %v3831
  %v3833 = vshll.u32 920167782, %v3818
  %v3834 = vshrl.u32 1326507024, %v3819
  %v3835 = vor.u32 %v3833, %v3834
  %vm3836 = vcmp.lt.s32.totalorder %v3817, 1
  %vm3837 = vcmp.lt.s32.totalorder %v3817, 2
  %vm3838 = vcmp.lt.s32.totalorder %v3817, 3
  %vm3839 = vcmp.lt.s32.totalorder %v3817, 4
  %v3840 = vsel %vm3836, %v3820, %v3823
  %v3841 = vsel %vm3839, %v3829, 2102212464
  %v3842 = vsel %vm3838, %v3826, %v3841
  %v3843 = vsel %vm3837, %v3840, %v3842
  %v3844 = vsel %vm3836, %v3823, %v3826
  %v3845 = vsel %vm3839, %v3832, 920167782
  %v3846 = vsel %vm3838, %v3829, %v3845
  %v3847 = vsel %vm3837, %v3844, %v3846
  %v3848 = vsel %vm3836, %v3826, %v3829
  %v3849 = vsel %vm3839, %v3835, 1326507024
  %v3850 = vsel %vm3838, %v3832, %v3849
  %v3851 = vsel %vm3837, %v3848, %v3850
  %v3852 = vshll.u32 %v3812, 8
  %v3853 = vmul.u32.u64.compose %v3852, %v3851
  %v3854 = vextract.low.u32 %v3853
  %v3855 = vextract.high.u32 %v3853
  %v3856 = vmul.u32.u64.compose %v3852, %v3847
  %v3857 = vextract.low.u32 %v3856
  %v3858 = vextract.high.u32 %v3856
  %v3859 = vmul.u32 %v3852, %v3843
  %v3860 = vadd.s32 %v3855, %v3857
  %vm3861 = vc.u32 %v3855, %v3857
  %v3862 = vadd.s32 %v3858, 1
  %v3863 = vsel %vm3861, %v3862, %v3858
  %v3864 = vadd.s32 %v3859, %v3863
  %v3865 = vadd.s32 %v3864, 536870912
  %v3866 = vshrl.u32 %v3865, 30
  %v3867 = vshll.u32 %v3866, 30
  %v3868 = vsub.s32 %v3864, %v3867
  %vm3869 = vcmp.lt.s32.totalorder %v3868, 0
  %v3870 = vsub.s32 0, %v3868
  %v3871 = vsel %vm3869, %v3870, %v3868
  %v3872 = vclz %v3871
  %v3873 = vsub.s32 %v3872, 2
  %vm3874 = vcmp.gt.s32.totalorder 0, %v3873
  %v3875 = vsel %vm3874, 0, %v3873
  %v3876 = vsub.s32 32, %v3875
  %v3877 = vshll.u32 %v3868, %v3875
  %v3878 = vshrl.u32 %v3860, %v3876
  %v3879 = vor.u32 %v3877, %v3878
  %v3880 = vsub.s32 4294967266, %v3875
  %v3881 = vadd.s32 %v3880, 127
  %v3882 = vshll.u32 %v3881, 23
  %v3883 = vor.u32 4788187, %v3882
  %v3884 = vand.u32 2147483647, %v3883
  %v3886 = vcvt.s32.f32 %v3879
  %v3887 = vmul.f32 %v3886, %v3884
  %v3888 = vxor.u32 %v3887, 2147483648
  %v3889 = vsel %vm3806, %v3888, %v3887
  %v3890 = vsub.s32 4, %v3866
  %v3891 = vsel %vm3806, %v3890, %v3866
  %v3892 = vsel %vm3805, %v682, %v3889
  %v3893 = vsel %vm3805, 0, %v3891
  %v3894 = vcosq.f32.pop %v3892
  %v3895 = vsinq.f32.pop %v3892
  %vm3896 = vweird.f32 %v682
  %v3897 = vadd.s32 %v3893, 3
  %v3898 = vand.u32 %v3897, 3
  %vm3899 = vcmp.lt.s32.totalorder %v3898, 2
  %vm3900 = vcmp.eq.s32.totalorder %v3898, 0
  %v3901 = vxor.u32 %v3895, 2147483648
  %v3902 = vsel %vm3900, %v3894, %v3901
  %vm3903 = vcmp.eq.s32.totalorder %v3898, 2
  %v3904 = vxor.u32 %v3894, 2147483648
  %v3905 = vsel %vm3903, %v3904, %v3895
  %v3906 = vsel %vm3899, %v3902, %v3905
  %v3907 = vsel %vm3896, nan, %v3906
  %v3908 = vand.u32 2147483647, %v683
  %vm3909 = vcmp.le.f32.partialorder %v3908, 0.7853982
  %vm3910 = vcmp.lt.s32.totalorder %v683, 0
  %v3911 = vand.u32 %v683, 2139095040
  %v3912 = vshrl.u32 %v3911, 23
  %v3913 = vsub.s32 %v3912, 127
  %v3914 = vand.u32 2147483647, %v683
  %v3915 = vand.u32 %v3914, 8388607
  %v3916 = vor.u32 %v3915, 8388608
  %v3917 = vsub.s32 0, %v3916
  %v3918 = vadd.s32 %v3913, 1
  %vm3919 = vcmp.gt.s32.totalorder %v3918, 0
  %v3920 = vsel %vm3919, %v3918, 0
  %v3921 = vshrl.u32 %v3920, 5
  %v3922 = vand.u32 %v3920, 31
  %v3923 = vsub.s32 32, %v3922
  %v3924 = vshrl.u32 683565275, %v3923
  %v3925 = vshll.u32 683565275, %v3922
  %v3926 = vshrl.u32 2475754826, %v3923
  %v3927 = vor.u32 %v3925, %v3926
  %v3928 = vshll.u32 2475754826, %v3922
  %v3929 = vshrl.u32 2131351028, %v3923
  %v3930 = vor.u32 %v3928, %v3929
  %v3931 = vshll.u32 2131351028, %v3922
  %v3932 = vshrl.u32 2102212464, %v3923
  %v3933 = vor.u32 %v3931, %v3932
  %v3934 = vshll.u32 2102212464, %v3922
  %v3935 = vshrl.u32 920167782, %v3923
  %v3936 = vor.u32 %v3934, %v3935
  %v3937 = vshll.u32 920167782, %v3922
  %v3938 = vshrl.u32 1326507024, %v3923
  %v3939 = vor.u32 %v3937, %v3938
  %vm3940 = vcmp.lt.s32.totalorder %v3921, 1
  %vm3941 = vcmp.lt.s32.totalorder %v3921, 2
  %vm3942 = vcmp.lt.s32.totalorder %v3921, 3
  %vm3943 = vcmp.lt.s32.totalorder %v3921, 4
  %v3944 = vsel %vm3940, %v3924, %v3927
  %v3945 = vsel %vm3943, %v3933, 2102212464
  %v3946 = vsel %vm3942, %v3930, %v3945
  %v3947 = vsel %vm3941, %v3944, %v3946
  %v3948 = vsel %vm3940, %v3927, %v3930
  %v3949 = vsel %vm3943, %v3936, 920167782
  %v3950 = vsel %vm3942, %v3933, %v3949
  %v3951 = vsel %vm3941, %v3948, %v3950
  %v3952 = vsel %vm3940, %v3930, %v3933
  %v3953 = vsel %vm3943, %v3939, 1326507024
  %v3954 = vsel %vm3942, %v3936, %v3953
  %v3955 = vsel %vm3941, %v3952, %v3954
  %v3956 = vshll.u32 %v3916, 8
  %v3957 = vmul.u32.u64.compose %v3956, %v3955
  %v3958 = vextract.low.u32 %v3957
  %v3959 = vextract.high.u32 %v3957
  %v3960 = vmul.u32.u64.compose %v3956, %v3951
  %v3961 = vextract.low.u32 %v3960
  %v3962 = vextract.high.u32 %v3960
  %v3963 = vmul.u32 %v3956, %v3947
  %v3964 = vadd.s32 %v3959, %v3961
  %vm3965 = vc.u32 %v3959, %v3961
  %v3966 = vadd.s32 %v3962, 1
  %v3967 = vsel %vm3965, %v3966, %v3962
  %v3968 = vadd.s32 %v3963, %v3967
  %v3969 = vadd.s32 %v3968, 536870912
  %v3970 = vshrl.u32 %v3969, 30
  %v3971 = vshll.u32 %v3970, 30
  %v3972 = vsub.s32 %v3968, %v3971
  %vm3973 = vcmp.lt.s32.totalorder %v3972, 0
  %v3974 = vsub.s32 0, %v3972
  %v3975 = vsel %vm3973, %v3974, %v3972
  %v3976 = vclz %v3975
  %v3977 = vsub.s32 %v3976, 2
  %vm3978 = vcmp.gt.s32.totalorder 0, %v3977
  %v3979 = vsel %vm3978, 0, %v3977
  %v3980 = vsub.s32 32, %v3979
  %v3981 = vshll.u32 %v3972, %v3979
  %v3982 = vshrl.u32 %v3964, %v3980
  %v3983 = vor.u32 %v3981, %v3982
  %v3984 = vsub.s32 4294967266, %v3979
  %v3985 = vadd.s32 %v3984, 127
  %v3986 = vshll.u32 %v3985, 23
  %v3987 = vor.u32 4788187, %v3986
  %v3988 = vand.u32 2147483647, %v3987
  %v3990 = vcvt.s32.f32 %v3983
  %v3991 = vmul.f32 %v3990, %v3988
  %v3992 = vxor.u32 %v3991, 2147483648
  %v3993 = vsel %vm3910, %v3992, %v3991
  %v3994 = vsub.s32 4, %v3970
  %v3995 = vsel %vm3910, %v3994, %v3970
  %v3996 = vsel %vm3909, %v683, %v3993
  %v3997 = vsel %vm3909, 0, %v3995
  %v3998 = vcosq.f32.pop %v3996
  %v3999 = vsinq.f32.pop %v3996
  %vm4000 = vweird.f32 %v683
  %v4001 = vadd.s32 %v3997, 3
  %v4002 = vand.u32 %v4001, 3
  %vm4003 = vcmp.lt.s32.totalorder %v4002, 2
  %vm4004 = vcmp.eq.s32.totalorder %v4002, 0
  %v4005 = vxor.u32 %v3999, 2147483648
  %v4006 = vsel %vm4004, %v3998, %v4005
  %vm4007 = vcmp.eq.s32.totalorder %v4002, 2
  %v4008 = vxor.u32 %v3998, 2147483648
  %v4009 = vsel %vm4007, %v4008, %v3999
  %v4010 = vsel %vm4003, %v4006, %v4009
  %v4011 = vsel %vm4000, nan, %v4010
  %v4012 = vpack.c.bf16 %v891, %v787
  %v4013 = vpack.c.bf16 %v1099, %v995
  %v4014 = vpack.c.bf16 %v1307, %v1203
  %v4015 = vpack.c.bf16 %v1515, %v1411
  %v4016 = vpack.c.bf16 %v1723, %v1619
  %v4017 = vpack.c.bf16 %v1931, %v1827
  %v4018 = vpack.c.bf16 %v2139, %v2035
  %v4019 = vpack.c.bf16 %v2347, %v2243
  %v4020 = vpack.c.bf16 %v2555, %v2451
  %v4021 = vpack.c.bf16 %v2763, %v2659
  %v4022 = vpack.c.bf16 %v2971, %v2867
  %v4023 = vpack.c.bf16 %v3179, %v3075
  %v4024 = vpack.c.bf16 %v3387, %v3283
  %v4025 = vpack.c.bf16 %v3595, %v3491
  %v4026 = vpack.c.bf16 %v3803, %v3699
  %v4027 = vpack.c.bf16 %v4011, %v3907
  %v4028 = vld [vmem:[%s5] sm:$0x3]
  %v4029 = vld [vmem:[%s5 + $0x2] sm:$0x3]
  %v4030 = vld [vmem:[%s5 + $0x4] sm:$0x3]
  %v4031 = vld [vmem:[%s5 + $0x6] sm:$0x3]
  %v4032 = vld [vmem:[%s5 + $0x8] sm:$0x3]
  %v4033 = vld [vmem:[%s5 + $0xa] sm:$0x3]
  %v4034 = vld [vmem:[%s5 + $0xc] sm:$0x3]
  %v4035 = vld [vmem:[%s5 + $0xe] sm:$0x3]
  %v4044 = vlaneseq
  %v4045 = vshrl.u32 %v4044, 7
  %v4046 = vsub.s32 0, %v4045
  %v4047 = vrot.slane %v4028, %v4046
  %v4048 = vlaneseq
  %v4049 = vshrl.u32 %v4048, 7
  %v4050 = vsub.s32 1, %v4049
  %v4051 = vrot.slane %v4028, %v4050
  %v4052 = vlaneseq
  %v4053 = vshrl.u32 %v4052, 7
  %v4054 = vsub.s32 0, %v4053
  %v4055 = vrot.slane %v4029, %v4054
  %v4056 = vlaneseq
  %v4057 = vshrl.u32 %v4056, 7
  %v4058 = vsub.s32 1, %v4057
  %v4059 = vrot.slane %v4029, %v4058
  %v4060 = vlaneseq
  %v4061 = vshrl.u32 %v4060, 7
  %v4062 = vsub.s32 0, %v4061
  %v4063 = vrot.slane %v4030, %v4062
  %v4064 = vlaneseq
  %v4065 = vshrl.u32 %v4064, 7
  %v4066 = vsub.s32 1, %v4065
  %v4067 = vrot.slane %v4030, %v4066
  %v4068 = vlaneseq
  %v4069 = vshrl.u32 %v4068, 7
  %v4070 = vsub.s32 0, %v4069
  %v4071 = vrot.slane %v4031, %v4070
  %v4072 = vlaneseq
  %v4073 = vshrl.u32 %v4072, 7
  %v4074 = vsub.s32 1, %v4073
  %v4075 = vrot.slane %v4031, %v4074
  %v4076 = vlaneseq
  %v4077 = vshrl.u32 %v4076, 7
  %v4078 = vsub.s32 0, %v4077
  %v4079 = vrot.slane %v4032, %v4078
  %v4080 = vlaneseq
  %v4081 = vshrl.u32 %v4080, 7
  %v4082 = vsub.s32 1, %v4081
  %v4083 = vrot.slane %v4032, %v4082
  %v4084 = vlaneseq
  %v4085 = vshrl.u32 %v4084, 7
  %v4086 = vsub.s32 0, %v4085
  %v4087 = vrot.slane %v4033, %v4086
  %v4088 = vlaneseq
  %v4089 = vshrl.u32 %v4088, 7
  %v4090 = vsub.s32 1, %v4089
  %v4091 = vrot.slane %v4033, %v4090
  %v4092 = vlaneseq
  %v4093 = vshrl.u32 %v4092, 7
  %v4094 = vsub.s32 0, %v4093
  %v4095 = vrot.slane %v4034, %v4094
  %v4096 = vlaneseq
  %v4097 = vshrl.u32 %v4096, 7
  %v4098 = vsub.s32 1, %v4097
  %v4099 = vrot.slane %v4034, %v4098
  %v4100 = vlaneseq
  %v4101 = vshrl.u32 %v4100, 7
  %v4102 = vsub.s32 0, %v4101
  %v4103 = vrot.slane %v4035, %v4102
  %v4104 = vlaneseq
  %v4105 = vshrl.u32 %v4104, 7
  %v4106 = vsub.s32 1, %v4105
  %v4107 = vrot.slane %v4035, %v4106
  %v4124 = vpack.c.bf16 %v4047, %v4047
  %v4125 = vpack.c.bf16 %v4051, %v4051
  %v4126 = vpack.c.bf16 %v4055, %v4055
  %v4127 = vpack.c.bf16 %v4059, %v4059
  %v4128 = vpack.c.bf16 %v4063, %v4063
  %v4129 = vpack.c.bf16 %v4067, %v4067
  %v4130 = vpack.c.bf16 %v4071, %v4071
  %v4131 = vpack.c.bf16 %v4075, %v4075
  %v4132 = vpack.c.bf16 %v4079, %v4079
  %v4133 = vpack.c.bf16 %v4083, %v4083
  %v4134 = vpack.c.bf16 %v4087, %v4087
  %v4135 = vpack.c.bf16 %v4091, %v4091
  %v4136 = vpack.c.bf16 %v4095, %v4095
  %v4137 = vpack.c.bf16 %v4099, %v4099
  %v4138 = vpack.c.bf16 %v4103, %v4103
  %v4139 = vpack.c.bf16 %v4107, %v4107
  %v4140 = vld [vmem:[%s2] sm:$0xff]
  %v4141 = vld [vmem:[%s2 + $0x8] sm:$0xff]
  %v4142 = vld [vmem:[%s2 + $0x10] sm:$0xff]
  %v4143 = vld [vmem:[%s2 + $0x18] sm:$0xff]
  %v4144 = vld [vmem:[%s2 + $0x20] sm:$0xff]
  %v4145 = vld [vmem:[%s2 + $0x28] sm:$0xff]
  %v4146 = vld [vmem:[%s2 + $0x30] sm:$0xff]
  %v4147 = vld [vmem:[%s2 + $0x38] sm:$0xff]
  %v4148 = vld [vmem:[%s2 + $0x40] sm:$0xff]
  %v4149 = vld [vmem:[%s2 + $0x48] sm:$0xff]
  %v4150 = vld [vmem:[%s2 + $0x50] sm:$0xff]
  %v4151 = vld [vmem:[%s2 + $0x58] sm:$0xff]
  %v4152 = vld [vmem:[%s2 + $0x60] sm:$0xff]
  %v4153 = vld [vmem:[%s2 + $0x68] sm:$0xff]
  %v4154 = vld [vmem:[%s2 + $0x70] sm:$0xff]
  %v4155 = vld [vmem:[%s2 + $0x78] sm:$0xff]
  %v4156 = vld [vmem:[%s2 + $0x80] sm:$0xff]
  %v4157 = vld [vmem:[%s2 + $0x88] sm:$0xff]
  %v4158 = vld [vmem:[%s2 + $0x90] sm:$0xff]
  %v4159 = vld [vmem:[%s2 + $0x98] sm:$0xff]
  %v4160 = vld [vmem:[%s2 + $0xa0] sm:$0xff]
  %v4161 = vld [vmem:[%s2 + $0xa8] sm:$0xff]
  %v4162 = vld [vmem:[%s2 + $0xb0] sm:$0xff]
  %v4163 = vld [vmem:[%s2 + $0xb8] sm:$0xff]
  %v4164 = vld [vmem:[%s2 + $0xc0] sm:$0xff]
  %v4165 = vld [vmem:[%s2 + $0xc8] sm:$0xff]
  %v4166 = vld [vmem:[%s2 + $0xd0] sm:$0xff]
  %v4167 = vld [vmem:[%s2 + $0xd8] sm:$0xff]
  %v4168 = vld [vmem:[%s2 + $0xe0] sm:$0xff]
  %v4169 = vld [vmem:[%s2 + $0xe8] sm:$0xff]
  %v4170 = vld [vmem:[%s2 + $0xf0] sm:$0xff]
  %v4171 = vld [vmem:[%s2 + $0xf8] sm:$0xff]
  %v4204 = vunpack.c.l.b16 %v4140
  %v4205 = vunpack.c.h.b16 %v4140
  %v4206 = vunpack.c.l.b16 %v4141
  %v4207 = vunpack.c.h.b16 %v4141
  %v4208 = vunpack.c.l.b16 %v4142
  %v4209 = vunpack.c.h.b16 %v4142
  %v4210 = vunpack.c.l.b16 %v4143
  %v4211 = vunpack.c.h.b16 %v4143
  %v4212 = vunpack.c.l.b16 %v4144
  %v4213 = vunpack.c.h.b16 %v4144
  %v4214 = vunpack.c.l.b16 %v4145
  %v4215 = vunpack.c.h.b16 %v4145
  %v4216 = vunpack.c.l.b16 %v4146
  %v4217 = vunpack.c.h.b16 %v4146
  %v4218 = vunpack.c.l.b16 %v4147
  %v4219 = vunpack.c.h.b16 %v4147
  %v4220 = vunpack.c.l.b16 %v4148
  %v4221 = vunpack.c.h.b16 %v4148
  %v4222 = vunpack.c.l.b16 %v4149
  %v4223 = vunpack.c.h.b16 %v4149
  %v4224 = vunpack.c.l.b16 %v4150
  %v4225 = vunpack.c.h.b16 %v4150
  %v4226 = vunpack.c.l.b16 %v4151
  %v4227 = vunpack.c.h.b16 %v4151
  %v4228 = vunpack.c.l.b16 %v4152
  %v4229 = vunpack.c.h.b16 %v4152
  %v4230 = vunpack.c.l.b16 %v4153
  %v4231 = vunpack.c.h.b16 %v4153
  %v4232 = vunpack.c.l.b16 %v4154
  %v4233 = vunpack.c.h.b16 %v4154
  %v4234 = vunpack.c.l.b16 %v4155
  %v4235 = vunpack.c.h.b16 %v4155
  %v4236 = vunpack.c.l.b16 %v4156
  %v4237 = vunpack.c.h.b16 %v4156
  %v4238 = vunpack.c.l.b16 %v4157
  %v4239 = vunpack.c.h.b16 %v4157
  %v4240 = vunpack.c.l.b16 %v4158
  %v4241 = vunpack.c.h.b16 %v4158
  %v4242 = vunpack.c.l.b16 %v4159
  %v4243 = vunpack.c.h.b16 %v4159
  %v4244 = vunpack.c.l.b16 %v4160
  %v4245 = vunpack.c.h.b16 %v4160
  %v4246 = vunpack.c.l.b16 %v4161
  %v4247 = vunpack.c.h.b16 %v4161
  %v4248 = vunpack.c.l.b16 %v4162
  %v4249 = vunpack.c.h.b16 %v4162
  %v4250 = vunpack.c.l.b16 %v4163
  %v4251 = vunpack.c.h.b16 %v4163
  %v4252 = vunpack.c.l.b16 %v4164
  %v4253 = vunpack.c.h.b16 %v4164
  %v4254 = vunpack.c.l.b16 %v4165
  %v4255 = vunpack.c.h.b16 %v4165
  %v4256 = vunpack.c.l.b16 %v4166
  %v4257 = vunpack.c.h.b16 %v4166
  %v4258 = vunpack.c.l.b16 %v4167
  %v4259 = vunpack.c.h.b16 %v4167
  %v4260 = vunpack.c.l.b16 %v4168
  %v4261 = vunpack.c.h.b16 %v4168
  %v4262 = vunpack.c.l.b16 %v4169
  %v4263 = vunpack.c.h.b16 %v4169
  %v4264 = vunpack.c.l.b16 %v4170
  %v4265 = vunpack.c.h.b16 %v4170
  %v4266 = vunpack.c.l.b16 %v4171
  %v4267 = vunpack.c.h.b16 %v4171
  %v4268 = vpack.c.b16 %v4208, %v4204
  %v4269 = vpack.c.b16 %v4209, %v4205
  %v4270 = vpack.c.b16 %v4210, %v4206
  %v4271 = vpack.c.b16 %v4211, %v4207
  %v4272 = vpack.c.b16 %v4216, %v4212
  %v4273 = vpack.c.b16 %v4217, %v4213
  %v4274 = vpack.c.b16 %v4218, %v4214
  %v4275 = vpack.c.b16 %v4219, %v4215
  %v4276 = vpack.c.b16 %v4224, %v4220
  %v4277 = vpack.c.b16 %v4225, %v4221
  %v4278 = vpack.c.b16 %v4226, %v4222
  %v4279 = vpack.c.b16 %v4227, %v4223
  %v4280 = vpack.c.b16 %v4232, %v4228
  %v4281 = vpack.c.b16 %v4233, %v4229
  %v4282 = vpack.c.b16 %v4234, %v4230
  %v4283 = vpack.c.b16 %v4235, %v4231
  %v4284 = vpack.c.b16 %v4240, %v4236
  %v4285 = vpack.c.b16 %v4241, %v4237
  %v4286 = vpack.c.b16 %v4242, %v4238
  %v4287 = vpack.c.b16 %v4243, %v4239
  %v4288 = vpack.c.b16 %v4248, %v4244
  %v4289 = vpack.c.b16 %v4249, %v4245
  %v4290 = vpack.c.b16 %v4250, %v4246
  %v4291 = vpack.c.b16 %v4251, %v4247
  %v4292 = vpack.c.b16 %v4256, %v4252
  %v4293 = vpack.c.b16 %v4257, %v4253
  %v4294 = vpack.c.b16 %v4258, %v4254
  %v4295 = vpack.c.b16 %v4259, %v4255
  %v4296 = vpack.c.b16 %v4264, %v4260
  %v4297 = vpack.c.b16 %v4265, %v4261
  %v4298 = vpack.c.b16 %v4266, %v4262
  %v4299 = vpack.c.b16 %v4267, %v4263
  %4332 = vmatprep.subr.bf16.mxu0 %v4297
  %4333 = vmatpush1.bf16.msra.mxu0 %v4296
  %4334 = vmatprep.subr.bf16.mxu0 %v4293
  %4335 = vmatpush1.bf16.msra.mxu0 %v4292
  %4336 = vmatprep.subr.bf16.mxu0 %v4289
  %4337 = vmatpush1.bf16.msra.mxu0 %v4288
  %4338 = vmatprep.subr.bf16.mxu0 %v4285
  %4339 = vmatpush1.bf16.msra.mxu0 %v4284
  %4340 = vmatprep.subr.bf16.mxu0 %v4281
  %4341 = vmatpush1.bf16.msra.mxu0 %v4280
  %4342 = vmatprep.subr.bf16.mxu0 %v4277
  %4343 = vmatpush1.bf16.msra.mxu0 %v4276
  %4344 = vmatprep.subr.bf16.mxu0 %v4273
  %4345 = vmatpush1.bf16.msra.mxu0 %v4272
  %4346 = vmatprep.subr.bf16.mxu0 %v4269
  %4347 = vmatpush1.bf16.msra.mxu0 %v4268
  %4348 = vmatprep.subr.bf16.mxu0 0
  %4349 = vmatpush2.bf16.msra.mxu0 0
  %4350 = vmatprep.subr.bf16.mxu0 0
  %4351 = vmatpush2.bf16.msra.mxu0 0
  %4352 = vmatprep.subr.bf16.mxu0 0
  %4353 = vmatpush2.bf16.msra.mxu0 0
  %4354 = vmatprep.subr.bf16.mxu0 0
  %4355 = vmatpush2.bf16.msra.mxu0 0
  %4356 = vmatprep.subr.bf16.mxu0 0
  %4357 = vmatpush2.bf16.msra.mxu0 0
  %4358 = vmatprep.subr.bf16.mxu0 0
  %4359 = vmatpush2.bf16.msra.mxu0 0
  %4360 = vmatprep.subr.bf16.mxu0 0
  %4361 = vmatpush2.bf16.msra.mxu0 0
  %4362 = vmatprep.subr.bf16.mxu0 0
  %4363 = vmatpush2.bf16.msra.mxu0 0
  %4364 = vmatprep.mubr.bf16.mxu0 0
  %4365 = vmatmul.mubr.bf16.gmra.mxu0 %v4012
  %v4366 = vpop.f32.mrf.mxu0
  %v4367 = vadd.f32 0.0, %v4366
  %v4368 = vpop.f32.mrf.mxu0
  %v4369 = vadd.f32 0.0, %v4368
  %v4370 = vpop.f32.mrf.mxu0
  %v4371 = vadd.f32 0.0, %v4370
  %v4372 = vpop.f32.mrf.mxu0
  %v4373 = vadd.f32 0.0, %v4372
  %4374 = vmatprep.mubr.bf16.mxu0 0
  %4375 = vmatmul.mubr.bf16.gmra.mxu0 %v4013
  %v4376 = vpop.f32.mrf.mxu0
  %v4377 = vadd.f32 0.0, %v4376
  %v4378 = vpop.f32.mrf.mxu0
  %v4379 = vadd.f32 0.0, %v4378
  %v4380 = vpop.f32.mrf.mxu0
  %v4381 = vadd.f32 0.0, %v4380
  %v4382 = vpop.f32.mrf.mxu0
  %v4383 = vadd.f32 0.0, %v4382
  %4384 = vmatprep.mubr.bf16.mxu0 0
  %4385 = vmatmul.mubr.bf16.gmra.mxu0 %v4014
  %v4386 = vpop.f32.mrf.mxu0
  %v4387 = vadd.f32 0.0, %v4386
  %v4388 = vpop.f32.mrf.mxu0
  %v4389 = vadd.f32 0.0, %v4388
  %v4390 = vpop.f32.mrf.mxu0
  %v4391 = vadd.f32 0.0, %v4390
  %v4392 = vpop.f32.mrf.mxu0
  %v4393 = vadd.f32 0.0, %v4392
  %4394 = vmatprep.mubr.bf16.mxu0 0
  %4395 = vmatmul.mubr.bf16.gmra.mxu0 %v4015
  %v4396 = vpop.f32.mrf.mxu0
  %v4397 = vadd.f32 0.0, %v4396
  %v4398 = vpop.f32.mrf.mxu0
  %v4399 = vadd.f32 0.0, %v4398
  %v4400 = vpop.f32.mrf.mxu0
  %v4401 = vadd.f32 0.0, %v4400
  %v4402 = vpop.f32.mrf.mxu0
  %v4403 = vadd.f32 0.0, %v4402
  %4404 = vmatprep.mubr.bf16.mxu0 0
  %4405 = vmatmul.mubr.bf16.gmra.mxu0 %v4016
  %v4406 = vpop.f32.mrf.mxu0
  %v4407 = vadd.f32 0.0, %v4406
  %v4408 = vpop.f32.mrf.mxu0
  %v4409 = vadd.f32 0.0, %v4408
  %v4410 = vpop.f32.mrf.mxu0
  %v4411 = vadd.f32 0.0, %v4410
  %v4412 = vpop.f32.mrf.mxu0
  %v4413 = vadd.f32 0.0, %v4412
  %4414 = vmatprep.mubr.bf16.mxu0 0
  %4415 = vmatmul.mubr.bf16.gmra.mxu0 %v4017
  %v4416 = vpop.f32.mrf.mxu0
  %v4417 = vadd.f32 0.0, %v4416
  %v4418 = vpop.f32.mrf.mxu0
  %v4419 = vadd.f32 0.0, %v4418
  %v4420 = vpop.f32.mrf.mxu0
  %v4421 = vadd.f32 0.0, %v4420
  %v4422 = vpop.f32.mrf.mxu0
  %v4423 = vadd.f32 0.0, %v4422
  %4424 = vmatprep.mubr.bf16.mxu0 0
  %4425 = vmatmul.mubr.bf16.gmra.mxu0 %v4018
  %v4426 = vpop.f32.mrf.mxu0
  %v4427 = vadd.f32 0.0, %v4426
  %v4428 = vpop.f32.mrf.mxu0
  %v4429 = vadd.f32 0.0, %v4428
  %v4430 = vpop.f32.mrf.mxu0
  %v4431 = vadd.f32 0.0, %v4430
  %v4432 = vpop.f32.mrf.mxu0
  %v4433 = vadd.f32 0.0, %v4432
  %4434 = vmatprep.mubr.bf16.mxu0 0
  %4435 = vmatmul.mubr.bf16.gmra.mxu0 %v4019
  %v4436 = vpop.f32.mrf.mxu0
  %v4437 = vadd.f32 0.0, %v4436
  %v4438 = vpop.f32.mrf.mxu0
  %v4439 = vadd.f32 0.0, %v4438
  %v4440 = vpop.f32.mrf.mxu0
  %v4441 = vadd.f32 0.0, %v4440
  %v4442 = vpop.f32.mrf.mxu0
  %v4443 = vadd.f32 0.0, %v4442
  %4444 = vmatprep.mubr.bf16.mxu0 0
  %4445 = vmatmul.mubr.bf16.gmra.mxu0 %v4020
  %v4446 = vpop.f32.mrf.mxu0
  %v4447 = vadd.f32 0.0, %v4446
  %v4448 = vpop.f32.mrf.mxu0
  %v4449 = vadd.f32 0.0, %v4448
  %v4450 = vpop.f32.mrf.mxu0
  %v4451 = vadd.f32 0.0, %v4450
  %v4452 = vpop.f32.mrf.mxu0
  %v4453 = vadd.f32 0.0, %v4452
  %4454 = vmatprep.mubr.bf16.mxu0 0
  %4455 = vmatmul.mubr.bf16.gmra.mxu0 %v4021
  %v4456 = vpop.f32.mrf.mxu0
  %v4457 = vadd.f32 0.0, %v4456
  %v4458 = vpop.f32.mrf.mxu0
  %v4459 = vadd.f32 0.0, %v4458
  %v4460 = vpop.f32.mrf.mxu0
  %v4461 = vadd.f32 0.0, %v4460
  %v4462 = vpop.f32.mrf.mxu0
  %v4463 = vadd.f32 0.0, %v4462
  %4464 = vmatprep.mubr.bf16.mxu0 0
  %4465 = vmatmul.mubr.bf16.gmra.mxu0 %v4022
  %v4466 = vpop.f32.mrf.mxu0
  %v4467 = vadd.f32 0.0, %v4466
  %v4468 = vpop.f32.mrf.mxu0
  %v4469 = vadd.f32 0.0, %v4468
  %v4470 = vpop.f32.mrf.mxu0
  %v4471 = vadd.f32 0.0, %v4470
  %v4472 = vpop.f32.mrf.mxu0
  %v4473 = vadd.f32 0.0, %v4472
  %4474 = vmatprep.mubr.bf16.mxu0 0
  %4475 = vmatmul.mubr.bf16.gmra.mxu0 %v4023
  %v4476 = vpop.f32.mrf.mxu0
  %v4477 = vadd.f32 0.0, %v4476
  %v4478 = vpop.f32.mrf.mxu0
  %v4479 = vadd.f32 0.0, %v4478
  %v4480 = vpop.f32.mrf.mxu0
  %v4481 = vadd.f32 0.0, %v4480
  %v4482 = vpop.f32.mrf.mxu0
  %v4483 = vadd.f32 0.0, %v4482
  %4484 = vmatprep.mubr.bf16.mxu0 0
  %4485 = vmatmul.mubr.bf16.gmra.mxu0 %v4024
  %v4486 = vpop.f32.mrf.mxu0
  %v4487 = vadd.f32 0.0, %v4486
  %v4488 = vpop.f32.mrf.mxu0
  %v4489 = vadd.f32 0.0, %v4488
  %v4490 = vpop.f32.mrf.mxu0
  %v4491 = vadd.f32 0.0, %v4490
  %v4492 = vpop.f32.mrf.mxu0
  %v4493 = vadd.f32 0.0, %v4492
  %4494 = vmatprep.mubr.bf16.mxu0 0
  %4495 = vmatmul.mubr.bf16.gmra.mxu0 %v4025
  %v4496 = vpop.f32.mrf.mxu0
  %v4497 = vadd.f32 0.0, %v4496
  %v4498 = vpop.f32.mrf.mxu0
  %v4499 = vadd.f32 0.0, %v4498
  %v4500 = vpop.f32.mrf.mxu0
  %v4501 = vadd.f32 0.0, %v4500
  %v4502 = vpop.f32.mrf.mxu0
  %v4503 = vadd.f32 0.0, %v4502
  %4504 = vmatprep.mubr.bf16.mxu0 0
  %4505 = vmatmul.mubr.bf16.gmra.mxu0 %v4026
  %v4506 = vpop.f32.mrf.mxu0
  %v4507 = vadd.f32 0.0, %v4506
  %v4508 = vpop.f32.mrf.mxu0
  %v4509 = vadd.f32 0.0, %v4508
  %v4510 = vpop.f32.mrf.mxu0
  %v4511 = vadd.f32 0.0, %v4510
  %v4512 = vpop.f32.mrf.mxu0
  %v4513 = vadd.f32 0.0, %v4512
  %4514 = vmatprep.mubr.bf16.mxu0 0
  %4515 = vmatmul.mubr.bf16.gmra.mxu0 %v4027
  %v4516 = vpop.f32.mrf.mxu0
  %v4517 = vadd.f32 0.0, %v4516
  %v4518 = vpop.f32.mrf.mxu0
  %v4519 = vadd.f32 0.0, %v4518
  %v4520 = vpop.f32.mrf.mxu0
  %v4521 = vadd.f32 0.0, %v4520
  %v4522 = vpop.f32.mrf.mxu0
  %v4523 = vadd.f32 0.0, %v4522
  %4524 = vdwg.mxu0
  %4525 = vmatprep.subr.bf16.mxu0 %v4299
  %4526 = vmatpush1.bf16.msra.mxu0 %v4298
  %4527 = vmatprep.subr.bf16.mxu0 %v4295
  %4528 = vmatpush1.bf16.msra.mxu0 %v4294
  %4529 = vmatprep.subr.bf16.mxu0 %v4291
  %4530 = vmatpush1.bf16.msra.mxu0 %v4290
  %4531 = vmatprep.subr.bf16.mxu0 %v4287
  %4532 = vmatpush1.bf16.msra.mxu0 %v4286
  %4533 = vmatprep.subr.bf16.mxu0 %v4283
  %4534 = vmatpush1.bf16.msra.mxu0 %v4282
  %4535 = vmatprep.subr.bf16.mxu0 %v4279
  %4536 = vmatpush1.bf16.msra.mxu0 %v4278
  %4537 = vmatprep.subr.bf16.mxu0 %v4275
  %4538 = vmatpush1.bf16.msra.mxu0 %v4274
  %4539 = vmatprep.subr.bf16.mxu0 %v4271
  %4540 = vmatpush1.bf16.msra.mxu0 %v4270
  %4541 = vmatprep.subr.bf16.mxu0 0
  %4542 = vmatpush2.bf16.msra.mxu0 0
  %4543 = vmatprep.subr.bf16.mxu0 0
  %4544 = vmatpush2.bf16.msra.mxu0 0
  %4545 = vmatprep.subr.bf16.mxu0 0
  %4546 = vmatpush2.bf16.msra.mxu0 0
  %4547 = vmatprep.subr.bf16.mxu0 0
  %4548 = vmatpush2.bf16.msra.mxu0 0
  %4549 = vmatprep.subr.bf16.mxu0 0
  %4550 = vmatpush2.bf16.msra.mxu0 0
  %4551 = vmatprep.subr.bf16.mxu0 0
  %4552 = vmatpush2.bf16.msra.mxu0 0
  %4553 = vmatprep.subr.bf16.mxu0 0
  %4554 = vmatpush2.bf16.msra.mxu0 0
  %4555 = vmatprep.subr.bf16.mxu0 0
  %4556 = vmatpush2.bf16.msra.mxu0 0
  %4557 = vmatprep.mubr.bf16.mxu0 0
  %4558 = vmatmul.mubr.bf16.gmra.mxu0 %v4012
  %v4559 = vpop.f32.mrf.mxu0
  %v4560 = vadd.f32 0.0, %v4559
  %v4561 = vpop.f32.mrf.mxu0
  %v4562 = vadd.f32 0.0, %v4561
  %v4563 = vpop.f32.mrf.mxu0
  %v4564 = vadd.f32 0.0, %v4563
  %v4565 = vpop.f32.mrf.mxu0
  %v4566 = vadd.f32 0.0, %v4565
  %4567 = vmatprep.mubr.bf16.mxu0 0
  %4568 = vmatmul.mubr.bf16.gmra.mxu0 %v4013
  %v4569 = vpop.f32.mrf.mxu0
  %v4570 = vadd.f32 0.0, %v4569
  %v4571 = vpop.f32.mrf.mxu0
  %v4572 = vadd.f32 0.0, %v4571
  %v4573 = vpop.f32.mrf.mxu0
  %v4574 = vadd.f32 0.0, %v4573
  %v4575 = vpop.f32.mrf.mxu0
  %v4576 = vadd.f32 0.0, %v4575
  %4577 = vmatprep.mubr.bf16.mxu0 0
  %4578 = vmatmul.mubr.bf16.gmra.mxu0 %v4014
  %v4579 = vpop.f32.mrf.mxu0
  %v4580 = vadd.f32 0.0, %v4579
  %v4581 = vpop.f32.mrf.mxu0
  %v4582 = vadd.f32 0.0, %v4581
  %v4583 = vpop.f32.mrf.mxu0
  %v4584 = vadd.f32 0.0, %v4583
  %v4585 = vpop.f32.mrf.mxu0
  %v4586 = vadd.f32 0.0, %v4585
  %4587 = vmatprep.mubr.bf16.mxu0 0
  %4588 = vmatmul.mubr.bf16.gmra.mxu0 %v4015
  %v4589 = vpop.f32.mrf.mxu0
  %v4590 = vadd.f32 0.0, %v4589
  %v4591 = vpop.f32.mrf.mxu0
  %v4592 = vadd.f32 0.0, %v4591
  %v4593 = vpop.f32.mrf.mxu0
  %v4594 = vadd.f32 0.0, %v4593
  %v4595 = vpop.f32.mrf.mxu0
  %v4596 = vadd.f32 0.0, %v4595
  %4597 = vmatprep.mubr.bf16.mxu0 0
  %4598 = vmatmul.mubr.bf16.gmra.mxu0 %v4016
  %v4599 = vpop.f32.mrf.mxu0
  %v4600 = vadd.f32 0.0, %v4599
  %v4601 = vpop.f32.mrf.mxu0
  %v4602 = vadd.f32 0.0, %v4601
  %v4603 = vpop.f32.mrf.mxu0
  %v4604 = vadd.f32 0.0, %v4603
  %v4605 = vpop.f32.mrf.mxu0
  %v4606 = vadd.f32 0.0, %v4605
  %4607 = vmatprep.mubr.bf16.mxu0 0
  %4608 = vmatmul.mubr.bf16.gmra.mxu0 %v4017
  %v4609 = vpop.f32.mrf.mxu0
  %v4610 = vadd.f32 0.0, %v4609
  %v4611 = vpop.f32.mrf.mxu0
  %v4612 = vadd.f32 0.0, %v4611
  %v4613 = vpop.f32.mrf.mxu0
  %v4614 = vadd.f32 0.0, %v4613
  %v4615 = vpop.f32.mrf.mxu0
  %v4616 = vadd.f32 0.0, %v4615
  %4617 = vmatprep.mubr.bf16.mxu0 0
  %4618 = vmatmul.mubr.bf16.gmra.mxu0 %v4018
  %v4619 = vpop.f32.mrf.mxu0
  %v4620 = vadd.f32 0.0, %v4619
  %v4621 = vpop.f32.mrf.mxu0
  %v4622 = vadd.f32 0.0, %v4621
  %v4623 = vpop.f32.mrf.mxu0
  %v4624 = vadd.f32 0.0, %v4623
  %v4625 = vpop.f32.mrf.mxu0
  %v4626 = vadd.f32 0.0, %v4625
  %4627 = vmatprep.mubr.bf16.mxu0 0
  %4628 = vmatmul.mubr.bf16.gmra.mxu0 %v4019
  %v4629 = vpop.f32.mrf.mxu0
  %v4630 = vadd.f32 0.0, %v4629
  %v4631 = vpop.f32.mrf.mxu0
  %v4632 = vadd.f32 0.0, %v4631
  %v4633 = vpop.f32.mrf.mxu0
  %v4634 = vadd.f32 0.0, %v4633
  %v4635 = vpop.f32.mrf.mxu0
  %v4636 = vadd.f32 0.0, %v4635
  %4637 = vmatprep.mubr.bf16.mxu0 0
  %4638 = vmatmul.mubr.bf16.gmra.mxu0 %v4020
  %v4639 = vpop.f32.mrf.mxu0
  %v4640 = vadd.f32 0.0, %v4639
  %v4641 = vpop.f32.mrf.mxu0
  %v4642 = vadd.f32 0.0, %v4641
  %v4643 = vpop.f32.mrf.mxu0
  %v4644 = vadd.f32 0.0, %v4643
  %v4645 = vpop.f32.mrf.mxu0
  %v4646 = vadd.f32 0.0, %v4645
  %4647 = vmatprep.mubr.bf16.mxu0 0
  %4648 = vmatmul.mubr.bf16.gmra.mxu0 %v4021
  %v4649 = vpop.f32.mrf.mxu0
  %v4650 = vadd.f32 0.0, %v4649
  %v4651 = vpop.f32.mrf.mxu0
  %v4652 = vadd.f32 0.0, %v4651
  %v4653 = vpop.f32.mrf.mxu0
  %v4654 = vadd.f32 0.0, %v4653
  %v4655 = vpop.f32.mrf.mxu0
  %v4656 = vadd.f32 0.0, %v4655
  %4657 = vmatprep.mubr.bf16.mxu0 0
  %4658 = vmatmul.mubr.bf16.gmra.mxu0 %v4022
  %v4659 = vpop.f32.mrf.mxu0
  %v4660 = vadd.f32 0.0, %v4659
  %v4661 = vpop.f32.mrf.mxu0
  %v4662 = vadd.f32 0.0, %v4661
  %v4663 = vpop.f32.mrf.mxu0
  %v4664 = vadd.f32 0.0, %v4663
  %v4665 = vpop.f32.mrf.mxu0
  %v4666 = vadd.f32 0.0, %v4665
  %4667 = vmatprep.mubr.bf16.mxu0 0
  %4668 = vmatmul.mubr.bf16.gmra.mxu0 %v4023
  %v4669 = vpop.f32.mrf.mxu0
  %v4670 = vadd.f32 0.0, %v4669
  %v4671 = vpop.f32.mrf.mxu0
  %v4672 = vadd.f32 0.0, %v4671
  %v4673 = vpop.f32.mrf.mxu0
  %v4674 = vadd.f32 0.0, %v4673
  %v4675 = vpop.f32.mrf.mxu0
  %v4676 = vadd.f32 0.0, %v4675
  %4677 = vmatprep.mubr.bf16.mxu0 0
  %4678 = vmatmul.mubr.bf16.gmra.mxu0 %v4024
  %v4679 = vpop.f32.mrf.mxu0
  %v4680 = vadd.f32 0.0, %v4679
  %v4681 = vpop.f32.mrf.mxu0
  %v4682 = vadd.f32 0.0, %v4681
  %v4683 = vpop.f32.mrf.mxu0
  %v4684 = vadd.f32 0.0, %v4683
  %v4685 = vpop.f32.mrf.mxu0
  %v4686 = vadd.f32 0.0, %v4685
  %4687 = vmatprep.mubr.bf16.mxu0 0
  %4688 = vmatmul.mubr.bf16.gmra.mxu0 %v4025
  %v4689 = vpop.f32.mrf.mxu0
  %v4690 = vadd.f32 0.0, %v4689
  %v4691 = vpop.f32.mrf.mxu0
  %v4692 = vadd.f32 0.0, %v4691
  %v4693 = vpop.f32.mrf.mxu0
  %v4694 = vadd.f32 0.0, %v4693
  %v4695 = vpop.f32.mrf.mxu0
  %v4696 = vadd.f32 0.0, %v4695
  %4697 = vmatprep.mubr.bf16.mxu0 0
  %4698 = vmatmul.mubr.bf16.gmra.mxu0 %v4026
  %v4699 = vpop.f32.mrf.mxu0
  %v4700 = vadd.f32 0.0, %v4699
  %v4701 = vpop.f32.mrf.mxu0
  %v4702 = vadd.f32 0.0, %v4701
  %v4703 = vpop.f32.mrf.mxu0
  %v4704 = vadd.f32 0.0, %v4703
  %v4705 = vpop.f32.mrf.mxu0
  %v4706 = vadd.f32 0.0, %v4705
  %4707 = vmatprep.mubr.bf16.mxu0 0
  %4708 = vmatmul.mubr.bf16.gmra.mxu0 %v4027
  %v4709 = vpop.f32.mrf.mxu0
  %v4710 = vadd.f32 0.0, %v4709
  %v4711 = vpop.f32.mrf.mxu0
  %v4712 = vadd.f32 0.0, %v4711
  %v4713 = vpop.f32.mrf.mxu0
  %v4714 = vadd.f32 0.0, %v4713
  %v4715 = vpop.f32.mrf.mxu0
  %v4716 = vadd.f32 0.0, %v4715
  %4717 = vdwg.mxu0
  %v4718 = vpack.c.bf16 %v4564, %v4560
  %v4719 = vpack.c.bf16 %v4566, %v4562
  %v4720 = vpack.c.bf16 %v4574, %v4570
  %v4721 = vpack.c.bf16 %v4576, %v4572
  %v4722 = vpack.c.bf16 %v4584, %v4580
  %v4723 = vpack.c.bf16 %v4586, %v4582
  %v4724 = vpack.c.bf16 %v4594, %v4590
  %v4725 = vpack.c.bf16 %v4596, %v4592
  %v4726 = vpack.c.bf16 %v4604, %v4600
  %v4727 = vpack.c.bf16 %v4606, %v4602
  %v4728 = vpack.c.bf16 %v4614, %v4610
  %v4729 = vpack.c.bf16 %v4616, %v4612
  %v4730 = vpack.c.bf16 %v4624, %v4620
  %v4731 = vpack.c.bf16 %v4626, %v4622
  %v4732 = vpack.c.bf16 %v4634, %v4630
  %v4733 = vpack.c.bf16 %v4636, %v4632
  %v4734 = vpack.c.bf16 %v4644, %v4640
  %v4735 = vpack.c.bf16 %v4646, %v4642
  %v4736 = vpack.c.bf16 %v4654, %v4650
  %v4737 = vpack.c.bf16 %v4656, %v4652
  %v4738 = vpack.c.bf16 %v4664, %v4660
  %v4739 = vpack.c.bf16 %v4666, %v4662
  %v4740 = vpack.c.bf16 %v4674, %v4670
  %v4741 = vpack.c.bf16 %v4676, %v4672
  %v4742 = vpack.c.bf16 %v4684, %v4680
  %v4743 = vpack.c.bf16 %v4686, %v4682
  %v4744 = vpack.c.bf16 %v4694, %v4690
  %v4745 = vpack.c.bf16 %v4696, %v4692
  %v4746 = vpack.c.bf16 %v4704, %v4700
  %v4747 = vpack.c.bf16 %v4706, %v4702
  %v4748 = vpack.c.bf16 %v4714, %v4710
  %v4749 = vpack.c.bf16 %v4716, %v4712
  %v4750 = vpack.c.bf16 %v4371, %v4367
  %v4751 = vpack.c.bf16 %v4373, %v4369
  %v4752 = vpack.c.bf16 %v4381, %v4377
  %v4753 = vpack.c.bf16 %v4383, %v4379
  %v4754 = vpack.c.bf16 %v4391, %v4387
  %v4755 = vpack.c.bf16 %v4393, %v4389
  %v4756 = vpack.c.bf16 %v4401, %v4397
  %v4757 = vpack.c.bf16 %v4403, %v4399
  %v4758 = vpack.c.bf16 %v4411, %v4407
  %v4759 = vpack.c.bf16 %v4413, %v4409
  %v4760 = vpack.c.bf16 %v4421, %v4417
  %v4761 = vpack.c.bf16 %v4423, %v4419
  %v4762 = vpack.c.bf16 %v4431, %v4427
  %v4763 = vpack.c.bf16 %v4433, %v4429
  %v4764 = vpack.c.bf16 %v4441, %v4437
  %v4765 = vpack.c.bf16 %v4443, %v4439
  %v4766 = vpack.c.bf16 %v4451, %v4447
  %v4767 = vpack.c.bf16 %v4453, %v4449
  %v4768 = vpack.c.bf16 %v4461, %v4457
  %v4769 = vpack.c.bf16 %v4463, %v4459
  %v4770 = vpack.c.bf16 %v4471, %v4467
  %v4771 = vpack.c.bf16 %v4473, %v4469
  %v4772 = vpack.c.bf16 %v4481, %v4477
  %v4773 = vpack.c.bf16 %v4483, %v4479
  %v4774 = vpack.c.bf16 %v4491, %v4487
  %v4775 = vpack.c.bf16 %v4493, %v4489
  %v4776 = vpack.c.bf16 %v4501, %v4497
  %v4777 = vpack.c.bf16 %v4503, %v4499
  %v4778 = vpack.c.bf16 %v4511, %v4507
  %v4779 = vpack.c.bf16 %v4513, %v4509
  %v4780 = vpack.c.bf16 %v4521, %v4517
  %v4781 = vpack.c.bf16 %v4523, %v4519
  %v4783 = vpack.i.b16 %v4124, %v4124
  %v4785 = vlaneseq
  %v4786 = vshrl.u32 %v4785, 7
  %v4787 = vsub.s32 0, %v4786
  %v4788 = vrot.slane %v4783, %v4787
  %v4790 = vpack.i.b16 %v4125, %v4125
  %v4792 = vlaneseq
  %v4793 = vshrl.u32 %v4792, 7
  %v4794 = vsub.s32 0, %v4793
  %v4795 = vrot.slane %v4790, %v4794
  %v4796 = vadd.bf16 %v4750, %v4788
  %v4797 = vadd.bf16 %v4751, %v4795
  %v4798 = vadd.bf16 %v4752, %v4788
  %v4799 = vadd.bf16 %v4753, %v4795
  %v4800 = vadd.bf16 %v4754, %v4788
  %v4801 = vadd.bf16 %v4755, %v4795
  %v4802 = vadd.bf16 %v4756, %v4788
  %v4803 = vadd.bf16 %v4757, %v4795
  %v4804 = vadd.bf16 %v4758, %v4788
  %v4805 = vadd.bf16 %v4759, %v4795
  %v4806 = vadd.bf16 %v4760, %v4788
  %v4807 = vadd.bf16 %v4761, %v4795
  %v4808 = vadd.bf16 %v4762, %v4788
  %v4809 = vadd.bf16 %v4763, %v4795
  %v4810 = vadd.bf16 %v4764, %v4788
  %v4811 = vadd.bf16 %v4765, %v4795
  %v4812 = vadd.bf16 %v4766, %v4788
  %v4813 = vadd.bf16 %v4767, %v4795
  %v4814 = vadd.bf16 %v4768, %v4788
  %v4815 = vadd.bf16 %v4769, %v4795
  %v4816 = vadd.bf16 %v4770, %v4788
  %v4817 = vadd.bf16 %v4771, %v4795
  %v4818 = vadd.bf16 %v4772, %v4788
  %v4819 = vadd.bf16 %v4773, %v4795
  %v4820 = vadd.bf16 %v4774, %v4788
  %v4821 = vadd.bf16 %v4775, %v4795
  %v4822 = vadd.bf16 %v4776, %v4788
  %v4823 = vadd.bf16 %v4777, %v4795
  %v4824 = vadd.bf16 %v4778, %v4788
  %v4825 = vadd.bf16 %v4779, %v4795
  %v4826 = vadd.bf16 %v4780, %v4788
  %v4827 = vadd.bf16 %v4781, %v4795
  %v4828 = vmax.bf16 %v4796, 0
  %v4829 = vmax.bf16 %v4797, 0
  %v4830 = vmax.bf16 %v4798, 0
  %v4831 = vmax.bf16 %v4799, 0
  %v4832 = vmax.bf16 %v4800, 0
  %v4833 = vmax.bf16 %v4801, 0
  %v4834 = vmax.bf16 %v4802, 0
  %v4835 = vmax.bf16 %v4803, 0
  %v4836 = vmax.bf16 %v4804, 0
  %v4837 = vmax.bf16 %v4805, 0
  %v4838 = vmax.bf16 %v4806, 0
  %v4839 = vmax.bf16 %v4807, 0
  %v4840 = vmax.bf16 %v4808, 0
  %v4841 = vmax.bf16 %v4809, 0
  %v4842 = vmax.bf16 %v4810, 0
  %v4843 = vmax.bf16 %v4811, 0
  %v4844 = vmax.bf16 %v4812, 0
  %v4845 = vmax.bf16 %v4813, 0
  %v4846 = vmax.bf16 %v4814, 0
  %v4847 = vmax.bf16 %v4815, 0
  %v4848 = vmax.bf16 %v4816, 0
  %v4849 = vmax.bf16 %v4817, 0
  %v4850 = vmax.bf16 %v4818, 0
  %v4851 = vmax.bf16 %v4819, 0
  %v4852 = vmax.bf16 %v4820, 0
  %v4853 = vmax.bf16 %v4821, 0
  %v4854 = vmax.bf16 %v4822, 0
  %v4855 = vmax.bf16 %v4823, 0
  %v4856 = vmax.bf16 %v4824, 0
  %v4857 = vmax.bf16 %v4825, 0
  %v4858 = vmax.bf16 %v4826, 0
  %v4859 = vmax.bf16 %v4827, 0
  %v4860 = vld [vmem:[%s3] sm:$0xff]
  %v4861 = vld [vmem:[%s3 + $0x8] sm:$0xff]
  %v4862 = vld [vmem:[%s3 + $0x10] sm:$0xff]
  %v4863 = vld [vmem:[%s3 + $0x18] sm:$0xff]
  %v4864 = vld [vmem:[%s3 + $0x20] sm:$0xff]
  %v4865 = vld [vmem:[%s3 + $0x28] sm:$0xff]
  %v4866 = vld [vmem:[%s3 + $0x30] sm:$0xff]
  %v4867 = vld [vmem:[%s3 + $0x38] sm:$0xff]
  %v4868 = vld [vmem:[%s3 + $0x40] sm:$0xff]
  %v4869 = vld [vmem:[%s3 + $0x48] sm:$0xff]
  %v4870 = vld [vmem:[%s3 + $0x50] sm:$0xff]
  %v4871 = vld [vmem:[%s3 + $0x58] sm:$0xff]
  %v4872 = vld [vmem:[%s3 + $0x60] sm:$0xff]
  %v4873 = vld [vmem:[%s3 + $0x68] sm:$0xff]
  %v4874 = vld [vmem:[%s3 + $0x70] sm:$0xff]
  %v4875 = vld [vmem:[%s3 + $0x78] sm:$0xff]
  %v4876 = vld [vmem:[%s3 + $0x80] sm:$0xff]
  %v4877 = vld [vmem:[%s3 + $0x88] sm:$0xff]
  %v4878 = vld [vmem:[%s3 + $0x90] sm:$0xff]
  %v4879 = vld [vmem:[%s3 + $0x98] sm:$0xff]
  %v4880 = vld [vmem:[%s3 + $0xa0] sm:$0xff]
  %v4881 = vld [vmem:[%s3 + $0xa8] sm:$0xff]
  %v4882 = vld [vmem:[%s3 + $0xb0] sm:$0xff]
  %v4883 = vld [vmem:[%s3 + $0xb8] sm:$0xff]
  %v4884 = vld [vmem:[%s3 + $0xc0] sm:$0xff]
  %v4885 = vld [vmem:[%s3 + $0xc8] sm:$0xff]
  %v4886 = vld [vmem:[%s3 + $0xd0] sm:$0xff]
  %v4887 = vld [vmem:[%s3 + $0xd8] sm:$0xff]
  %v4888 = vld [vmem:[%s3 + $0xe0] sm:$0xff]
  %v4889 = vld [vmem:[%s3 + $0xe8] sm:$0xff]
  %v4890 = vld [vmem:[%s3 + $0xf0] sm:$0xff]
  %v4891 = vld [vmem:[%s3 + $0xf8] sm:$0xff]
  %v4924 = vunpack.c.l.b16 %v4860
  %v4925 = vunpack.c.h.b16 %v4860
  %v4926 = vunpack.c.l.b16 %v4861
  %v4927 = vunpack.c.h.b16 %v4861
  %v4928 = vunpack.c.l.b16 %v4862
  %v4929 = vunpack.c.h.b16 %v4862
  %v4930 = vunpack.c.l.b16 %v4863
  %v4931 = vunpack.c.h.b16 %v4863
  %v4932 = vunpack.c.l.b16 %v4864
  %v4933 = vunpack.c.h.b16 %v4864
  %v4934 = vunpack.c.l.b16 %v4865
  %v4935 = vunpack.c.h.b16 %v4865
  %v4936 = vunpack.c.l.b16 %v4866
  %v4937 = vunpack.c.h.b16 %v4866
  %v4938 = vunpack.c.l.b16 %v4867
  %v4939 = vunpack.c.h.b16 %v4867
  %v4940 = vunpack.c.l.b16 %v4868
  %v4941 = vunpack.c.h.b16 %v4868
  %v4942 = vunpack.c.l.b16 %v4869
  %v4943 = vunpack.c.h.b16 %v4869
  %v4944 = vunpack.c.l.b16 %v4870
  %v4945 = vunpack.c.h.b16 %v4870
  %v4946 = vunpack.c.l.b16 %v4871
  %v4947 = vunpack.c.h.b16 %v4871
  %v4948 = vunpack.c.l.b16 %v4872
  %v4949 = vunpack.c.h.b16 %v4872
  %v4950 = vunpack.c.l.b16 %v4873
  %v4951 = vunpack.c.h.b16 %v4873
  %v4952 = vunpack.c.l.b16 %v4874
  %v4953 = vunpack.c.h.b16 %v4874
  %v4954 = vunpack.c.l.b16 %v4875
  %v4955 = vunpack.c.h.b16 %v4875
  %v4956 = vunpack.c.l.b16 %v4876
  %v4957 = vunpack.c.h.b16 %v4876
  %v4958 = vunpack.c.l.b16 %v4877
  %v4959 = vunpack.c.h.b16 %v4877
  %v4960 = vunpack.c.l.b16 %v4878
  %v4961 = vunpack.c.h.b16 %v4878
  %v4962 = vunpack.c.l.b16 %v4879
  %v4963 = vunpack.c.h.b16 %v4879
  %v4964 = vunpack.c.l.b16 %v4880
  %v4965 = vunpack.c.h.b16 %v4880
  %v4966 = vunpack.c.l.b16 %v4881
  %v4967 = vunpack.c.h.b16 %v4881
  %v4968 = vunpack.c.l.b16 %v4882
  %v4969 = vunpack.c.h.b16 %v4882
  %v4970 = vunpack.c.l.b16 %v4883
  %v4971 = vunpack.c.h.b16 %v4883
  %v4972 = vunpack.c.l.b16 %v4884
  %v4973 = vunpack.c.h.b16 %v4884
  %v4974 = vunpack.c.l.b16 %v4885
  %v4975 = vunpack.c.h.b16 %v4885
  %v4976 = vunpack.c.l.b16 %v4886
  %v4977 = vunpack.c.h.b16 %v4886
  %v4978 = vunpack.c.l.b16 %v4887
  %v4979 = vunpack.c.h.b16 %v4887
  %v4980 = vunpack.c.l.b16 %v4888
  %v4981 = vunpack.c.h.b16 %v4888
  %v4982 = vunpack.c.l.b16 %v4889
  %v4983 = vunpack.c.h.b16 %v4889
  %v4984 = vunpack.c.l.b16 %v4890
  %v4985 = vunpack.c.h.b16 %v4890
  %v4986 = vunpack.c.l.b16 %v4891
  %v4987 = vunpack.c.h.b16 %v4891
  %v4988 = vpack.c.b16 %v4926, %v4924
  %v4989 = vpack.c.b16 %v4927, %v4925
  %v4990 = vpack.c.b16 %v4930, %v4928
  %v4991 = vpack.c.b16 %v4931, %v4929
  %v4992 = vpack.c.b16 %v4934, %v4932
  %v4993 = vpack.c.b16 %v4935, %v4933
  %v4994 = vpack.c.b16 %v4938, %v4936
  %v4995 = vpack.c.b16 %v4939, %v4937
  %v4996 = vpack.c.b16 %v4942, %v4940
  %v4997 = vpack.c.b16 %v4943, %v4941
  %v4998 = vpack.c.b16 %v4946, %v4944
  %v4999 = vpack.c.b16 %v4947, %v4945
  %v5000 = vpack.c.b16 %v4950, %v4948
  %v5001 = vpack.c.b16 %v4951, %v4949
  %v5002 = vpack.c.b16 %v4954, %v4952
  %v5003 = vpack.c.b16 %v4955, %v4953
  %v5004 = vpack.c.b16 %v4958, %v4956
  %v5005 = vpack.c.b16 %v4959, %v4957
  %v5006 = vpack.c.b16 %v4962, %v4960
  %v5007 = vpack.c.b16 %v4963, %v4961
  %v5008 = vpack.c.b16 %v4966, %v4964
  %v5009 = vpack.c.b16 %v4967, %v4965
  %v5010 = vpack.c.b16 %v4970, %v4968
  %v5011 = vpack.c.b16 %v4971, %v4969
  %v5012 = vpack.c.b16 %v4974, %v4972
  %v5013 = vpack.c.b16 %v4975, %v4973
  %v5014 = vpack.c.b16 %v4978, %v4976
  %v5015 = vpack.c.b16 %v4979, %v4977
  %v5016 = vpack.c.b16 %v4982, %v4980
  %v5017 = vpack.c.b16 %v4983, %v4981
  %v5018 = vpack.c.b16 %v4986, %v4984
  %v5019 = vpack.c.b16 %v4987, %v4985
  %5052 = vmatprep.subr.bf16.mxu0 %v5003
  %5053 = vmatpush1.bf16.msra.mxu0 %v5002
  %5054 = vmatprep.subr.bf16.mxu0 %v5001
  %5055 = vmatpush1.bf16.msra.mxu0 %v5000
  %5056 = vmatprep.subr.bf16.mxu0 %v4999
  %5057 = vmatpush1.bf16.msra.mxu0 %v4998
  %5058 = vmatprep.subr.bf16.mxu0 %v4997
  %5059 = vmatpush1.bf16.msra.mxu0 %v4996
  %5060 = vmatprep.subr.bf16.mxu0 %v4995
  %5061 = vmatpush1.bf16.msra.mxu0 %v4994
  %5062 = vmatprep.subr.bf16.mxu0 %v4993
  %5063 = vmatpush1.bf16.msra.mxu0 %v4992
  %5064 = vmatprep.subr.bf16.mxu0 %v4991
  %5065 = vmatpush1.bf16.msra.mxu0 %v4990
  %5066 = vmatprep.subr.bf16.mxu0 %v4989
  %5067 = vmatpush1.bf16.msra.mxu0 %v4988
  %5068 = vmatprep.subr.bf16.mxu0 %v5019
  %5069 = vmatpush2.bf16.msra.mxu0 %v5018
  %5070 = vmatprep.subr.bf16.mxu0 %v5017
  %5071 = vmatpush2.bf16.msra.mxu0 %v5016
  %5072 = vmatprep.subr.bf16.mxu0 %v5015
  %5073 = vmatpush2.bf16.msra.mxu0 %v5014
  %5074 = vmatprep.subr.bf16.mxu0 %v5013
  %5075 = vmatpush2.bf16.msra.mxu0 %v5012
  %5076 = vmatprep.subr.bf16.mxu0 %v5011
  %5077 = vmatpush2.bf16.msra.mxu0 %v5010
  %5078 = vmatprep.subr.bf16.mxu0 %v5009
  %5079 = vmatpush2.bf16.msra.mxu0 %v5008
  %5080 = vmatprep.subr.bf16.mxu0 %v5007
  %5081 = vmatpush2.bf16.msra.mxu0 %v5006
  %5082 = vmatprep.subr.bf16.mxu0 %v5005
  %5083 = vmatpush2.bf16.msra.mxu0 %v5004
  %5084 = vmatprep.mubr.bf16.mxu0 %v4829
  %5085 = vmatmul.mubr.bf16.gmra.mxu0 %v4828
  %v5086 = vpop.f32.mrf.mxu0
  %v5087 = vadd.f32 0.0, %v5086
  %v5088 = vpop.f32.mrf.mxu0
  %v5089 = vadd.f32 0.0, %v5088
  %v5090 = vpop.f32.mrf.mxu0
  %v5091 = vadd.f32 0.0, %v5090
  %v5092 = vpop.f32.mrf.mxu0
  %v5093 = vadd.f32 0.0, %v5092
  %5094 = vmatprep.mubr.bf16.mxu0 %v4831
  %5095 = vmatmul.mubr.bf16.gmra.mxu0 %v4830
  %v5096 = vpop.f32.mrf.mxu0
  %v5097 = vadd.f32 0.0, %v5096
  %v5098 = vpop.f32.mrf.mxu0
  %v5099 = vadd.f32 0.0, %v5098
  %v5100 = vpop.f32.mrf.mxu0
  %v5101 = vadd.f32 0.0, %v5100
  %v5102 = vpop.f32.mrf.mxu0
  %v5103 = vadd.f32 0.0, %v5102
  %5104 = vmatprep.mubr.bf16.mxu0 %v4833
  %5105 = vmatmul.mubr.bf16.gmra.mxu0 %v4832
  %v5106 = vpop.f32.mrf.mxu0
  %v5107 = vadd.f32 0.0, %v5106
  %v5108 = vpop.f32.mrf.mxu0
  %v5109 = vadd.f32 0.0, %v5108
  %v5110 = vpop.f32.mrf.mxu0
  %v5111 = vadd.f32 0.0, %v5110
  %v5112 = vpop.f32.mrf.mxu0
  %v5113 = vadd.f32 0.0, %v5112
  %5114 = vmatprep.mubr.bf16.mxu0 %v4835
  %5115 = vmatmul.mubr.bf16.gmra.mxu0 %v4834
  %v5116 = vpop.f32.mrf.mxu0
  %v5117 = vadd.f32 0.0, %v5116
  %v5118 = vpop.f32.mrf.mxu0
  %v5119 = vadd.f32 0.0, %v5118
  %v5120 = vpop.f32.mrf.mxu0
  %v5121 = vadd.f32 0.0, %v5120
  %v5122 = vpop.f32.mrf.mxu0
  %v5123 = vadd.f32 0.0, %v5122
  %5124 = vmatprep.mubr.bf16.mxu0 %v4837
  %5125 = vmatmul.mubr.bf16.gmra.mxu0 %v4836
  %v5126 = vpop.f32.mrf.mxu0
  %v5127 = vadd.f32 0.0, %v5126
  %v5128 = vpop.f32.mrf.mxu0
  %v5129 = vadd.f32 0.0, %v5128
  %v5130 = vpop.f32.mrf.mxu0
  %v5131 = vadd.f32 0.0, %v5130
  %v5132 = vpop.f32.mrf.mxu0
  %v5133 = vadd.f32 0.0, %v5132
  %5134 = vmatprep.mubr.bf16.mxu0 %v4839
  %5135 = vmatmul.mubr.bf16.gmra.mxu0 %v4838
  %v5136 = vpop.f32.mrf.mxu0
  %v5137 = vadd.f32 0.0, %v5136
  %v5138 = vpop.f32.mrf.mxu0
  %v5139 = vadd.f32 0.0, %v5138
  %v5140 = vpop.f32.mrf.mxu0
  %v5141 = vadd.f32 0.0, %v5140
  %v5142 = vpop.f32.mrf.mxu0
  %v5143 = vadd.f32 0.0, %v5142
  %5144 = vmatprep.mubr.bf16.mxu0 %v4841
  %5145 = vmatmul.mubr.bf16.gmra.mxu0 %v4840
  %v5146 = vpop.f32.mrf.mxu0
  %v5147 = vadd.f32 0.0, %v5146
  %v5148 = vpop.f32.mrf.mxu0
  %v5149 = vadd.f32 0.0, %v5148
  %v5150 = vpop.f32.mrf.mxu0
  %v5151 = vadd.f32 0.0, %v5150
  %v5152 = vpop.f32.mrf.mxu0
  %v5153 = vadd.f32 0.0, %v5152
  %5154 = vmatprep.mubr.bf16.mxu0 %v4843
  %5155 = vmatmul.mubr.bf16.gmra.mxu0 %v4842
  %v5156 = vpop.f32.mrf.mxu0
  %v5157 = vadd.f32 0.0, %v5156
  %v5158 = vpop.f32.mrf.mxu0
  %v5159 = vadd.f32 0.0, %v5158
  %v5160 = vpop.f32.mrf.mxu0
  %v5161 = vadd.f32 0.0, %v5160
  %v5162 = vpop.f32.mrf.mxu0
  %v5163 = vadd.f32 0.0, %v5162
  %5164 = vmatprep.mubr.bf16.mxu0 %v4845
  %5165 = vmatmul.mubr.bf16.gmra.mxu0 %v4844
  %v5166 = vpop.f32.mrf.mxu0
  %v5167 = vadd.f32 0.0, %v5166
  %v5168 = vpop.f32.mrf.mxu0
  %v5169 = vadd.f32 0.0, %v5168
  %v5170 = vpop.f32.mrf.mxu0
  %v5171 = vadd.f32 0.0, %v5170
  %v5172 = vpop.f32.mrf.mxu0
  %v5173 = vadd.f32 0.0, %v5172
  %5174 = vmatprep.mubr.bf16.mxu0 %v4847
  %5175 = vmatmul.mubr.bf16.gmra.mxu0 %v4846
  %v5176 = vpop.f32.mrf.mxu0
  %v5177 = vadd.f32 0.0, %v5176
  %v5178 = vpop.f32.mrf.mxu0
  %v5179 = vadd.f32 0.0, %v5178
  %v5180 = vpop.f32.mrf.mxu0
  %v5181 = vadd.f32 0.0, %v5180
  %v5182 = vpop.f32.mrf.mxu0
  %v5183 = vadd.f32 0.0, %v5182
  %5184 = vmatprep.mubr.bf16.mxu0 %v4849
  %5185 = vmatmul.mubr.bf16.gmra.mxu0 %v4848
  %v5186 = vpop.f32.mrf.mxu0
  %v5187 = vadd.f32 0.0, %v5186
  %v5188 = vpop.f32.mrf.mxu0
  %v5189 = vadd.f32 0.0, %v5188
  %v5190 = vpop.f32.mrf.mxu0
  %v5191 = vadd.f32 0.0, %v5190
  %v5192 = vpop.f32.mrf.mxu0
  %v5193 = vadd.f32 0.0, %v5192
  %5194 = vmatprep.mubr.bf16.mxu0 %v4851
  %5195 = vmatmul.mubr.bf16.gmra.mxu0 %v4850
  %v5196 = vpop.f32.mrf.mxu0
  %v5197 = vadd.f32 0.0, %v5196
  %v5198 = vpop.f32.mrf.mxu0
  %v5199 = vadd.f32 0.0, %v5198
  %v5200 = vpop.f32.mrf.mxu0
  %v5201 = vadd.f32 0.0, %v5200
  %v5202 = vpop.f32.mrf.mxu0
  %v5203 = vadd.f32 0.0, %v5202
  %5204 = vmatprep.mubr.bf16.mxu0 %v4853
  %5205 = vmatmul.mubr.bf16.gmra.mxu0 %v4852
  %v5206 = vpop.f32.mrf.mxu0
  %v5207 = vadd.f32 0.0, %v5206
  %v5208 = vpop.f32.mrf.mxu0
  %v5209 = vadd.f32 0.0, %v5208
  %v5210 = vpop.f32.mrf.mxu0
  %v5211 = vadd.f32 0.0, %v5210
  %v5212 = vpop.f32.mrf.mxu0
  %v5213 = vadd.f32 0.0, %v5212
  %5214 = vmatprep.mubr.bf16.mxu0 %v4855
  %5215 = vmatmul.mubr.bf16.gmra.mxu0 %v4854
  %v5216 = vpop.f32.mrf.mxu0
  %v5217 = vadd.f32 0.0, %v5216
  %v5218 = vpop.f32.mrf.mxu0
  %v5219 = vadd.f32 0.0, %v5218
  %v5220 = vpop.f32.mrf.mxu0
  %v5221 = vadd.f32 0.0, %v5220
  %v5222 = vpop.f32.mrf.mxu0
  %v5223 = vadd.f32 0.0, %v5222
  %5224 = vmatprep.mubr.bf16.mxu0 %v4857
  %5225 = vmatmul.mubr.bf16.gmra.mxu0 %v4856
  %v5226 = vpop.f32.mrf.mxu0
  %v5227 = vadd.f32 0.0, %v5226
  %v5228 = vpop.f32.mrf.mxu0
  %v5229 = vadd.f32 0.0, %v5228
  %v5230 = vpop.f32.mrf.mxu0
  %v5231 = vadd.f32 0.0, %v5230
  %v5232 = vpop.f32.mrf.mxu0
  %v5233 = vadd.f32 0.0, %v5232
  %5234 = vmatprep.mubr.bf16.mxu0 %v4859
  %5235 = vmatmul.mubr.bf16.gmra.mxu0 %v4858
  %v5236 = vpop.f32.mrf.mxu0
  %v5237 = vadd.f32 0.0, %v5236
  %v5238 = vpop.f32.mrf.mxu0
  %v5239 = vadd.f32 0.0, %v5238
  %v5240 = vpop.f32.mrf.mxu0
  %v5241 = vadd.f32 0.0, %v5240
  %v5242 = vpop.f32.mrf.mxu0
  %v5243 = vadd.f32 0.0, %v5242
  %5244 = vdwg.mxu0
  %v5245 = vpack.c.bf16 %v5091, %v5087
  %v5246 = vpack.c.bf16 %v5093, %v5089
  %v5247 = vpack.c.bf16 %v5101, %v5097
  %v5248 = vpack.c.bf16 %v5103, %v5099
  %v5249 = vpack.c.bf16 %v5111, %v5107
  %v5250 = vpack.c.bf16 %v5113, %v5109
  %v5251 = vpack.c.bf16 %v5121, %v5117
  %v5252 = vpack.c.bf16 %v5123, %v5119
  %v5253 = vpack.c.bf16 %v5131, %v5127
  %v5254 = vpack.c.bf16 %v5133, %v5129
  %v5255 = vpack.c.bf16 %v5141, %v5137
  %v5256 = vpack.c.bf16 %v5143, %v5139
  %v5257 = vpack.c.bf16 %v5151, %v5147
  %v5258 = vpack.c.bf16 %v5153, %v5149
  %v5259 = vpack.c.bf16 %v5161, %v5157
  %v5260 = vpack.c.bf16 %v5163, %v5159
  %v5261 = vpack.c.bf16 %v5171, %v5167
  %v5262 = vpack.c.bf16 %v5173, %v5169
  %v5263 = vpack.c.bf16 %v5181, %v5177
  %v5264 = vpack.c.bf16 %v5183, %v5179
  %v5265 = vpack.c.bf16 %v5191, %v5187
  %v5266 = vpack.c.bf16 %v5193, %v5189
  %v5267 = vpack.c.bf16 %v5201, %v5197
  %v5268 = vpack.c.bf16 %v5203, %v5199
  %v5269 = vpack.c.bf16 %v5211, %v5207
  %v5270 = vpack.c.bf16 %v5213, %v5209
  %v5271 = vpack.c.bf16 %v5221, %v5217
  %v5272 = vpack.c.bf16 %v5223, %v5219
  %v5273 = vpack.c.bf16 %v5231, %v5227
  %v5274 = vpack.c.bf16 %v5233, %v5229
  %v5275 = vpack.c.bf16 %v5241, %v5237
  %v5276 = vpack.c.bf16 %v5243, %v5239
  %v5278 = vpack.i.b16 %v4126, %v4126
  %v5280 = vlaneseq
  %v5281 = vshrl.u32 %v5280, 7
  %v5282 = vsub.s32 0, %v5281
  %v5283 = vrot.slane %v5278, %v5282
  %v5285 = vpack.i.b16 %v4127, %v4127
  %v5287 = vlaneseq
  %v5288 = vshrl.u32 %v5287, 7
  %v5289 = vsub.s32 0, %v5288
  %v5290 = vrot.slane %v5285, %v5289
  %v5291 = vadd.bf16 %v5245, %v5283
  %v5292 = vadd.bf16 %v5246, %v5290
  %v5293 = vadd.bf16 %v5247, %v5283
  %v5294 = vadd.bf16 %v5248, %v5290
  %v5295 = vadd.bf16 %v5249, %v5283
  %v5296 = vadd.bf16 %v5250, %v5290
  %v5297 = vadd.bf16 %v5251, %v5283
  %v5298 = vadd.bf16 %v5252, %v5290
  %v5299 = vadd.bf16 %v5253, %v5283
  %v5300 = vadd.bf16 %v5254, %v5290
  %v5301 = vadd.bf16 %v5255, %v5283
  %v5302 = vadd.bf16 %v5256, %v5290
  %v5303 = vadd.bf16 %v5257, %v5283
  %v5304 = vadd.bf16 %v5258, %v5290
  %v5305 = vadd.bf16 %v5259, %v5283
  %v5306 = vadd.bf16 %v5260, %v5290
  %v5307 = vadd.bf16 %v5261, %v5283
  %v5308 = vadd.bf16 %v5262, %v5290
  %v5309 = vadd.bf16 %v5263, %v5283
  %v5310 = vadd.bf16 %v5264, %v5290
  %v5311 = vadd.bf16 %v5265, %v5283
  %v5312 = vadd.bf16 %v5266, %v5290
  %v5313 = vadd.bf16 %v5267, %v5283
  %v5314 = vadd.bf16 %v5268, %v5290
  %v5315 = vadd.bf16 %v5269, %v5283
  %v5316 = vadd.bf16 %v5270, %v5290
  %v5317 = vadd.bf16 %v5271, %v5283
  %v5318 = vadd.bf16 %v5272, %v5290
  %v5319 = vadd.bf16 %v5273, %v5283
  %v5320 = vadd.bf16 %v5274, %v5290
  %v5321 = vadd.bf16 %v5275, %v5283
  %v5322 = vadd.bf16 %v5276, %v5290
  %v5323 = vmax.bf16 %v5291, 0
  %v5324 = vmax.bf16 %v5292, 0
  %v5325 = vmax.bf16 %v5293, 0
  %v5326 = vmax.bf16 %v5294, 0
  %v5327 = vmax.bf16 %v5295, 0
  %v5328 = vmax.bf16 %v5296, 0
  %v5329 = vmax.bf16 %v5297, 0
  %v5330 = vmax.bf16 %v5298, 0
  %v5331 = vmax.bf16 %v5299, 0
  %v5332 = vmax.bf16 %v5300, 0
  %v5333 = vmax.bf16 %v5301, 0
  %v5334 = vmax.bf16 %v5302, 0
  %v5335 = vmax.bf16 %v5303, 0
  %v5336 = vmax.bf16 %v5304, 0
  %v5337 = vmax.bf16 %v5305, 0
  %v5338 = vmax.bf16 %v5306, 0
  %v5339 = vmax.bf16 %v5307, 0
  %v5340 = vmax.bf16 %v5308, 0
  %v5341 = vmax.bf16 %v5309, 0
  %v5342 = vmax.bf16 %v5310, 0
  %v5343 = vmax.bf16 %v5311, 0
  %v5344 = vmax.bf16 %v5312, 0
  %v5345 = vmax.bf16 %v5313, 0
  %v5346 = vmax.bf16 %v5314, 0
  %v5347 = vmax.bf16 %v5315, 0
  %v5348 = vmax.bf16 %v5316, 0
  %v5349 = vmax.bf16 %v5317, 0
  %v5350 = vmax.bf16 %v5318, 0
  %v5351 = vmax.bf16 %v5319, 0
  %v5352 = vmax.bf16 %v5320, 0
  %v5353 = vmax.bf16 %v5321, 0
  %v5354 = vmax.bf16 %v5322, 0
  %s5355 = scalar_lea.vmem %s3, 256
  %v5356 = vld [vmem:[%s5355] sm:$0xff]
  %v5357 = vld [vmem:[%s5355 + $0x8] sm:$0xff]
  %v5358 = vld [vmem:[%s5355 + $0x10] sm:$0xff]
  %v5359 = vld [vmem:[%s5355 + $0x18] sm:$0xff]
  %v5360 = vld [vmem:[%s5355 + $0x20] sm:$0xff]
  %v5361 = vld [vmem:[%s5355 + $0x28] sm:$0xff]
  %v5362 = vld [vmem:[%s5355 + $0x30] sm:$0xff]
  %v5363 = vld [vmem:[%s5355 + $0x38] sm:$0xff]
  %v5364 = vld [vmem:[%s5355 + $0x40] sm:$0xff]
  %v5365 = vld [vmem:[%s5355 + $0x48] sm:$0xff]
  %v5366 = vld [vmem:[%s5355 + $0x50] sm:$0xff]
  %v5367 = vld [vmem:[%s5355 + $0x58] sm:$0xff]
  %v5368 = vld [vmem:[%s5355 + $0x60] sm:$0xff]
  %v5369 = vld [vmem:[%s5355 + $0x68] sm:$0xff]
  %v5370 = vld [vmem:[%s5355 + $0x70] sm:$0xff]
  %v5371 = vld [vmem:[%s5355 + $0x78] sm:$0xff]
  %v5372 = vld [vmem:[%s5355 + $0x80] sm:$0xff]
  %v5373 = vld [vmem:[%s5355 + $0x88] sm:$0xff]
  %v5374 = vld [vmem:[%s5355 + $0x90] sm:$0xff]
  %v5375 = vld [vmem:[%s5355 + $0x98] sm:$0xff]
  %v5376 = vld [vmem:[%s5355 + $0xa0] sm:$0xff]
  %v5377 = vld [vmem:[%s5355 + $0xa8] sm:$0xff]
  %v5378 = vld [vmem:[%s5355 + $0xb0] sm:$0xff]
  %v5379 = vld [vmem:[%s5355 + $0xb8] sm:$0xff]
  %v5380 = vld [vmem:[%s5355 + $0xc0] sm:$0xff]
  %v5381 = vld [vmem:[%s5355 + $0xc8] sm:$0xff]
  %v5382 = vld [vmem:[%s5355 + $0xd0] sm:$0xff]
  %v5383 = vld [vmem:[%s5355 + $0xd8] sm:$0xff]
  %v5384 = vld [vmem:[%s5355 + $0xe0] sm:$0xff]
  %v5385 = vld [vmem:[%s5355 + $0xe8] sm:$0xff]
  %v5386 = vld [vmem:[%s5355 + $0xf0] sm:$0xff]
  %v5387 = vld [vmem:[%s5355 + $0xf8] sm:$0xff]
  %v5420 = vunpack.c.l.b16 %v5356
  %v5421 = vunpack.c.h.b16 %v5356
  %v5422 = vunpack.c.l.b16 %v5357
  %v5423 = vunpack.c.h.b16 %v5357
  %v5424 = vunpack.c.l.b16 %v5358
  %v5425 = vunpack.c.h.b16 %v5358
  %v5426 = vunpack.c.l.b16 %v5359
  %v5427 = vunpack.c.h.b16 %v5359
  %v5428 = vunpack.c.l.b16 %v5360
  %v5429 = vunpack.c.h.b16 %v5360
  %v5430 = vunpack.c.l.b16 %v5361
  %v5431 = vunpack.c.h.b16 %v5361
  %v5432 = vunpack.c.l.b16 %v5362
  %v5433 = vunpack.c.h.b16 %v5362
  %v5434 = vunpack.c.l.b16 %v5363
  %v5435 = vunpack.c.h.b16 %v5363
  %v5436 = vunpack.c.l.b16 %v5364
  %v5437 = vunpack.c.h.b16 %v5364
  %v5438 = vunpack.c.l.b16 %v5365
  %v5439 = vunpack.c.h.b16 %v5365
  %v5440 = vunpack.c.l.b16 %v5366
  %v5441 = vunpack.c.h.b16 %v5366
  %v5442 = vunpack.c.l.b16 %v5367
  %v5443 = vunpack.c.h.b16 %v5367
  %v5444 = vunpack.c.l.b16 %v5368
  %v5445 = vunpack.c.h.b16 %v5368
  %v5446 = vunpack.c.l.b16 %v5369
  %v5447 = vunpack.c.h.b16 %v5369
  %v5448 = vunpack.c.l.b16 %v5370
  %v5449 = vunpack.c.h.b16 %v5370
  %v5450 = vunpack.c.l.b16 %v5371
  %v5451 = vunpack.c.h.b16 %v5371
  %v5452 = vunpack.c.l.b16 %v5372
  %v5453 = vunpack.c.h.b16 %v5372
  %v5454 = vunpack.c.l.b16 %v5373
  %v5455 = vunpack.c.h.b16 %v5373
  %v5456 = vunpack.c.l.b16 %v5374
  %v5457 = vunpack.c.h.b16 %v5374
  %v5458 = vunpack.c.l.b16 %v5375
  %v5459 = vunpack.c.h.b16 %v5375
  %v5460 = vunpack.c.l.b16 %v5376
  %v5461 = vunpack.c.h.b16 %v5376
  %v5462 = vunpack.c.l.b16 %v5377
  %v5463 = vunpack.c.h.b16 %v5377
  %v5464 = vunpack.c.l.b16 %v5378
  %v5465 = vunpack.c.h.b16 %v5378
  %v5466 = vunpack.c.l.b16 %v5379
  %v5467 = vunpack.c.h.b16 %v5379
  %v5468 = vunpack.c.l.b16 %v5380
  %v5469 = vunpack.c.h.b16 %v5380
  %v5470 = vunpack.c.l.b16 %v5381
  %v5471 = vunpack.c.h.b16 %v5381
  %v5472 = vunpack.c.l.b16 %v5382
  %v5473 = vunpack.c.h.b16 %v5382
  %v5474 = vunpack.c.l.b16 %v5383
  %v5475 = vunpack.c.h.b16 %v5383
  %v5476 = vunpack.c.l.b16 %v5384
  %v5477 = vunpack.c.h.b16 %v5384
  %v5478 = vunpack.c.l.b16 %v5385
  %v5479 = vunpack.c.h.b16 %v5385
  %v5480 = vunpack.c.l.b16 %v5386
  %v5481 = vunpack.c.h.b16 %v5386
  %v5482 = vunpack.c.l.b16 %v5387
  %v5483 = vunpack.c.h.b16 %v5387
  %v5484 = vpack.c.b16 %v5422, %v5420
  %v5485 = vpack.c.b16 %v5423, %v5421
  %v5486 = vpack.c.b16 %v5426, %v5424
  %v5487 = vpack.c.b16 %v5427, %v5425
  %v5488 = vpack.c.b16 %v5430, %v5428
  %v5489 = vpack.c.b16 %v5431, %v5429
  %v5490 = vpack.c.b16 %v5434, %v5432
  %v5491 = vpack.c.b16 %v5435, %v5433
  %v5492 = vpack.c.b16 %v5438, %v5436
  %v5493 = vpack.c.b16 %v5439, %v5437
  %v5494 = vpack.c.b16 %v5442, %v5440
  %v5495 = vpack.c.b16 %v5443, %v5441
  %v5496 = vpack.c.b16 %v5446, %v5444
  %v5497 = vpack.c.b16 %v5447, %v5445
  %v5498 = vpack.c.b16 %v5450, %v5448
  %v5499 = vpack.c.b16 %v5451, %v5449
  %v5500 = vpack.c.b16 %v5454, %v5452
  %v5501 = vpack.c.b16 %v5455, %v5453
  %v5502 = vpack.c.b16 %v5458, %v5456
  %v5503 = vpack.c.b16 %v5459, %v5457
  %v5504 = vpack.c.b16 %v5462, %v5460
  %v5505 = vpack.c.b16 %v5463, %v5461
  %v5506 = vpack.c.b16 %v5466, %v5464
  %v5507 = vpack.c.b16 %v5467, %v5465
  %v5508 = vpack.c.b16 %v5470, %v5468
  %v5509 = vpack.c.b16 %v5471, %v5469
  %v5510 = vpack.c.b16 %v5474, %v5472
  %v5511 = vpack.c.b16 %v5475, %v5473
  %v5512 = vpack.c.b16 %v5478, %v5476
  %v5513 = vpack.c.b16 %v5479, %v5477
  %v5514 = vpack.c.b16 %v5482, %v5480
  %v5515 = vpack.c.b16 %v5483, %v5481
  %5548 = vmatprep.subr.bf16.mxu0 %v5499
  %5549 = vmatpush1.bf16.msra.mxu0 %v5498
  %5550 = vmatprep.subr.bf16.mxu0 %v5497
  %5551 = vmatpush1.bf16.msra.mxu0 %v5496
  %5552 = vmatprep.subr.bf16.mxu0 %v5495
  %5553 = vmatpush1.bf16.msra.mxu0 %v5494
  %5554 = vmatprep.subr.bf16.mxu0 %v5493
  %5555 = vmatpush1.bf16.msra.mxu0 %v5492
  %5556 = vmatprep.subr.bf16.mxu0 %v5491
  %5557 = vmatpush1.bf16.msra.mxu0 %v5490
  %5558 = vmatprep.subr.bf16.mxu0 %v5489
  %5559 = vmatpush1.bf16.msra.mxu0 %v5488
  %5560 = vmatprep.subr.bf16.mxu0 %v5487
  %5561 = vmatpush1.bf16.msra.mxu0 %v5486
  %5562 = vmatprep.subr.bf16.mxu0 %v5485
  %5563 = vmatpush1.bf16.msra.mxu0 %v5484
  %5564 = vmatprep.subr.bf16.mxu0 %v5515
  %5565 = vmatpush2.bf16.msra.mxu0 %v5514
  %5566 = vmatprep.subr.bf16.mxu0 %v5513
  %5567 = vmatpush2.bf16.msra.mxu0 %v5512
  %5568 = vmatprep.subr.bf16.mxu0 %v5511
  %5569 = vmatpush2.bf16.msra.mxu0 %v5510
  %5570 = vmatprep.subr.bf16.mxu0 %v5509
  %5571 = vmatpush2.bf16.msra.mxu0 %v5508
  %5572 = vmatprep.subr.bf16.mxu0 %v5507
  %5573 = vmatpush2.bf16.msra.mxu0 %v5506
  %5574 = vmatprep.subr.bf16.mxu0 %v5505
  %5575 = vmatpush2.bf16.msra.mxu0 %v5504
  %5576 = vmatprep.subr.bf16.mxu0 %v5503
  %5577 = vmatpush2.bf16.msra.mxu0 %v5502
  %5578 = vmatprep.subr.bf16.mxu0 %v5501
  %5579 = vmatpush2.bf16.msra.mxu0 %v5500
  %5580 = vmatprep.mubr.bf16.mxu0 %v5324
  %5581 = vmatmul.mubr.bf16.gmra.mxu0 %v5323
  %v5582 = vpop.f32.mrf.mxu0
  %v5583 = vadd.f32 0.0, %v5582
  %v5584 = vpop.f32.mrf.mxu0
  %v5585 = vadd.f32 0.0, %v5584
  %v5586 = vpop.f32.mrf.mxu0
  %v5587 = vadd.f32 0.0, %v5586
  %v5588 = vpop.f32.mrf.mxu0
  %v5589 = vadd.f32 0.0, %v5588
  %5590 = vmatprep.mubr.bf16.mxu0 %v5326
  %5591 = vmatmul.mubr.bf16.gmra.mxu0 %v5325
  %v5592 = vpop.f32.mrf.mxu0
  %v5593 = vadd.f32 0.0, %v5592
  %v5594 = vpop.f32.mrf.mxu0
  %v5595 = vadd.f32 0.0, %v5594
  %v5596 = vpop.f32.mrf.mxu0
  %v5597 = vadd.f32 0.0, %v5596
  %v5598 = vpop.f32.mrf.mxu0
  %v5599 = vadd.f32 0.0, %v5598
  %5600 = vmatprep.mubr.bf16.mxu0 %v5328
  %5601 = vmatmul.mubr.bf16.gmra.mxu0 %v5327
  %v5602 = vpop.f32.mrf.mxu0
  %v5603 = vadd.f32 0.0, %v5602
  %v5604 = vpop.f32.mrf.mxu0
  %v5605 = vadd.f32 0.0, %v5604
  %v5606 = vpop.f32.mrf.mxu0
  %v5607 = vadd.f32 0.0, %v5606
  %v5608 = vpop.f32.mrf.mxu0
  %v5609 = vadd.f32 0.0, %v5608
  %5610 = vmatprep.mubr.bf16.mxu0 %v5330
  %5611 = vmatmul.mubr.bf16.gmra.mxu0 %v5329
  %v5612 = vpop.f32.mrf.mxu0
  %v5613 = vadd.f32 0.0, %v5612
  %v5614 = vpop.f32.mrf.mxu0
  %v5615 = vadd.f32 0.0, %v5614
  %v5616 = vpop.f32.mrf.mxu0
  %v5617 = vadd.f32 0.0, %v5616
  %v5618 = vpop.f32.mrf.mxu0
  %v5619 = vadd.f32 0.0, %v5618
  %5620 = vmatprep.mubr.bf16.mxu0 %v5332
  %5621 = vmatmul.mubr.bf16.gmra.mxu0 %v5331
  %v5622 = vpop.f32.mrf.mxu0
  %v5623 = vadd.f32 0.0, %v5622
  %v5624 = vpop.f32.mrf.mxu0
  %v5625 = vadd.f32 0.0, %v5624
  %v5626 = vpop.f32.mrf.mxu0
  %v5627 = vadd.f32 0.0, %v5626
  %v5628 = vpop.f32.mrf.mxu0
  %v5629 = vadd.f32 0.0, %v5628
  %5630 = vmatprep.mubr.bf16.mxu0 %v5334
  %5631 = vmatmul.mubr.bf16.gmra.mxu0 %v5333
  %v5632 = vpop.f32.mrf.mxu0
  %v5633 = vadd.f32 0.0, %v5632
  %v5634 = vpop.f32.mrf.mxu0
  %v5635 = vadd.f32 0.0, %v5634
  %v5636 = vpop.f32.mrf.mxu0
  %v5637 = vadd.f32 0.0, %v5636
  %v5638 = vpop.f32.mrf.mxu0
  %v5639 = vadd.f32 0.0, %v5638
  %5640 = vmatprep.mubr.bf16.mxu0 %v5336
  %5641 = vmatmul.mubr.bf16.gmra.mxu0 %v5335
  %v5642 = vpop.f32.mrf.mxu0
  %v5643 = vadd.f32 0.0, %v5642
  %v5644 = vpop.f32.mrf.mxu0
  %v5645 = vadd.f32 0.0, %v5644
  %v5646 = vpop.f32.mrf.mxu0
  %v5647 = vadd.f32 0.0, %v5646
  %v5648 = vpop.f32.mrf.mxu0
  %v5649 = vadd.f32 0.0, %v5648
  %5650 = vmatprep.mubr.bf16.mxu0 %v5338
  %5651 = vmatmul.mubr.bf16.gmra.mxu0 %v5337
  %v5652 = vpop.f32.mrf.mxu0
  %v5653 = vadd.f32 0.0, %v5652
  %v5654 = vpop.f32.mrf.mxu0
  %v5655 = vadd.f32 0.0, %v5654
  %v5656 = vpop.f32.mrf.mxu0
  %v5657 = vadd.f32 0.0, %v5656
  %v5658 = vpop.f32.mrf.mxu0
  %v5659 = vadd.f32 0.0, %v5658
  %5660 = vmatprep.mubr.bf16.mxu0 %v5340
  %5661 = vmatmul.mubr.bf16.gmra.mxu0 %v5339
  %v5662 = vpop.f32.mrf.mxu0
  %v5663 = vadd.f32 0.0, %v5662
  %v5664 = vpop.f32.mrf.mxu0
  %v5665 = vadd.f32 0.0, %v5664
  %v5666 = vpop.f32.mrf.mxu0
  %v5667 = vadd.f32 0.0, %v5666
  %v5668 = vpop.f32.mrf.mxu0
  %v5669 = vadd.f32 0.0, %v5668
  %5670 = vmatprep.mubr.bf16.mxu0 %v5342
  %5671 = vmatmul.mubr.bf16.gmra.mxu0 %v5341
  %v5672 = vpop.f32.mrf.mxu0
  %v5673 = vadd.f32 0.0, %v5672
  %v5674 = vpop.f32.mrf.mxu0
  %v5675 = vadd.f32 0.0, %v5674
  %v5676 = vpop.f32.mrf.mxu0
  %v5677 = vadd.f32 0.0, %v5676
  %v5678 = vpop.f32.mrf.mxu0
  %v5679 = vadd.f32 0.0, %v5678
  %5680 = vmatprep.mubr.bf16.mxu0 %v5344
  %5681 = vmatmul.mubr.bf16.gmra.mxu0 %v5343
  %v5682 = vpop.f32.mrf.mxu0
  %v5683 = vadd.f32 0.0, %v5682
  %v5684 = vpop.f32.mrf.mxu0
  %v5685 = vadd.f32 0.0, %v5684
  %v5686 = vpop.f32.mrf.mxu0
  %v5687 = vadd.f32 0.0, %v5686
  %v5688 = vpop.f32.mrf.mxu0
  %v5689 = vadd.f32 0.0, %v5688
  %5690 = vmatprep.mubr.bf16.mxu0 %v5346
  %5691 = vmatmul.mubr.bf16.gmra.mxu0 %v5345
  %v5692 = vpop.f32.mrf.mxu0
  %v5693 = vadd.f32 0.0, %v5692
  %v5694 = vpop.f32.mrf.mxu0
  %v5695 = vadd.f32 0.0, %v5694
  %v5696 = vpop.f32.mrf.mxu0
  %v5697 = vadd.f32 0.0, %v5696
  %v5698 = vpop.f32.mrf.mxu0
  %v5699 = vadd.f32 0.0, %v5698
  %5700 = vmatprep.mubr.bf16.mxu0 %v5348
  %5701 = vmatmul.mubr.bf16.gmra.mxu0 %v5347
  %v5702 = vpop.f32.mrf.mxu0
  %v5703 = vadd.f32 0.0, %v5702
  %v5704 = vpop.f32.mrf.mxu0
  %v5705 = vadd.f32 0.0, %v5704
  %v5706 = vpop.f32.mrf.mxu0
  %v5707 = vadd.f32 0.0, %v5706
  %v5708 = vpop.f32.mrf.mxu0
  %v5709 = vadd.f32 0.0, %v5708
  %5710 = vmatprep.mubr.bf16.mxu0 %v5350
  %5711 = vmatmul.mubr.bf16.gmra.mxu0 %v5349
  %v5712 = vpop.f32.mrf.mxu0
  %v5713 = vadd.f32 0.0, %v5712
  %v5714 = vpop.f32.mrf.mxu0
  %v5715 = vadd.f32 0.0, %v5714
  %v5716 = vpop.f32.mrf.mxu0
  %v5717 = vadd.f32 0.0, %v5716
  %v5718 = vpop.f32.mrf.mxu0
  %v5719 = vadd.f32 0.0, %v5718
  %5720 = vmatprep.mubr.bf16.mxu0 %v5352
  %5721 = vmatmul.mubr.bf16.gmra.mxu0 %v5351
  %v5722 = vpop.f32.mrf.mxu0
  %v5723 = vadd.f32 0.0, %v5722
  %v5724 = vpop.f32.mrf.mxu0
  %v5725 = vadd.f32 0.0, %v5724
  %v5726 = vpop.f32.mrf.mxu0
  %v5727 = vadd.f32 0.0, %v5726
  %v5728 = vpop.f32.mrf.mxu0
  %v5729 = vadd.f32 0.0, %v5728
  %5730 = vmatprep.mubr.bf16.mxu0 %v5354
  %5731 = vmatmul.mubr.bf16.gmra.mxu0 %v5353
  %v5732 = vpop.f32.mrf.mxu0
  %v5733 = vadd.f32 0.0, %v5732
  %v5734 = vpop.f32.mrf.mxu0
  %v5735 = vadd.f32 0.0, %v5734
  %v5736 = vpop.f32.mrf.mxu0
  %v5737 = vadd.f32 0.0, %v5736
  %v5738 = vpop.f32.mrf.mxu0
  %v5739 = vadd.f32 0.0, %v5738
  %5740 = vdwg.mxu0
  %v5741 = vpack.c.bf16 %v5587, %v5583
  %v5742 = vpack.c.bf16 %v5589, %v5585
  %v5743 = vpack.c.bf16 %v5597, %v5593
  %v5744 = vpack.c.bf16 %v5599, %v5595
  %v5745 = vpack.c.bf16 %v5607, %v5603
  %v5746 = vpack.c.bf16 %v5609, %v5605
  %v5747 = vpack.c.bf16 %v5617, %v5613
  %v5748 = vpack.c.bf16 %v5619, %v5615
  %v5749 = vpack.c.bf16 %v5627, %v5623
  %v5750 = vpack.c.bf16 %v5629, %v5625
  %v5751 = vpack.c.bf16 %v5637, %v5633
  %v5752 = vpack.c.bf16 %v5639, %v5635
  %v5753 = vpack.c.bf16 %v5647, %v5643
  %v5754 = vpack.c.bf16 %v5649, %v5645
  %v5755 = vpack.c.bf16 %v5657, %v5653
  %v5756 = vpack.c.bf16 %v5659, %v5655
  %v5757 = vpack.c.bf16 %v5667, %v5663
  %v5758 = vpack.c.bf16 %v5669, %v5665
  %v5759 = vpack.c.bf16 %v5677, %v5673
  %v5760 = vpack.c.bf16 %v5679, %v5675
  %v5761 = vpack.c.bf16 %v5687, %v5683
  %v5762 = vpack.c.bf16 %v5689, %v5685
  %v5763 = vpack.c.bf16 %v5697, %v5693
  %v5764 = vpack.c.bf16 %v5699, %v5695
  %v5765 = vpack.c.bf16 %v5707, %v5703
  %v5766 = vpack.c.bf16 %v5709, %v5705
  %v5767 = vpack.c.bf16 %v5717, %v5713
  %v5768 = vpack.c.bf16 %v5719, %v5715
  %v5769 = vpack.c.bf16 %v5727, %v5723
  %v5770 = vpack.c.bf16 %v5729, %v5725
  %v5771 = vpack.c.bf16 %v5737, %v5733
  %v5772 = vpack.c.bf16 %v5739, %v5735
  %v5774 = vpack.i.b16 %v4128, %v4128
  %v5776 = vlaneseq
  %v5777 = vshrl.u32 %v5776, 7
  %v5778 = vsub.s32 0, %v5777
  %v5779 = vrot.slane %v5774, %v5778
  %v5781 = vpack.i.b16 %v4129, %v4129
  %v5783 = vlaneseq
  %v5784 = vshrl.u32 %v5783, 7
  %v5785 = vsub.s32 0, %v5784
  %v5786 = vrot.slane %v5781, %v5785
  %v5787 = vadd.bf16 %v5741, %v5779
  %v5788 = vadd.bf16 %v5742, %v5786
  %v5789 = vadd.bf16 %v5743, %v5779
  %v5790 = vadd.bf16 %v5744, %v5786
  %v5791 = vadd.bf16 %v5745, %v5779
  %v5792 = vadd.bf16 %v5746, %v5786
  %v5793 = vadd.bf16 %v5747, %v5779
  %v5794 = vadd.bf16 %v5748, %v5786
  %v5795 = vadd.bf16 %v5749, %v5779
  %v5796 = vadd.bf16 %v5750, %v5786
  %v5797 = vadd.bf16 %v5751, %v5779
  %v5798 = vadd.bf16 %v5752, %v5786
  %v5799 = vadd.bf16 %v5753, %v5779
  %v5800 = vadd.bf16 %v5754, %v5786
  %v5801 = vadd.bf16 %v5755, %v5779
  %v5802 = vadd.bf16 %v5756, %v5786
  %v5803 = vadd.bf16 %v5757, %v5779
  %v5804 = vadd.bf16 %v5758, %v5786
  %v5805 = vadd.bf16 %v5759, %v5779
  %v5806 = vadd.bf16 %v5760, %v5786
  %v5807 = vadd.bf16 %v5761, %v5779
  %v5808 = vadd.bf16 %v5762, %v5786
  %v5809 = vadd.bf16 %v5763, %v5779
  %v5810 = vadd.bf16 %v5764, %v5786
  %v5811 = vadd.bf16 %v5765, %v5779
  %v5812 = vadd.bf16 %v5766, %v5786
  %v5813 = vadd.bf16 %v5767, %v5779
  %v5814 = vadd.bf16 %v5768, %v5786
  %v5815 = vadd.bf16 %v5769, %v5779
  %v5816 = vadd.bf16 %v5770, %v5786
  %v5817 = vadd.bf16 %v5771, %v5779
  %v5818 = vadd.bf16 %v5772, %v5786
  %v5819 = vmax.bf16 %v5787, 0
  %v5820 = vmax.bf16 %v5788, 0
  %v5821 = vmax.bf16 %v5789, 0
  %v5822 = vmax.bf16 %v5790, 0
  %v5823 = vmax.bf16 %v5791, 0
  %v5824 = vmax.bf16 %v5792, 0
  %v5825 = vmax.bf16 %v5793, 0
  %v5826 = vmax.bf16 %v5794, 0
  %v5827 = vmax.bf16 %v5795, 0
  %v5828 = vmax.bf16 %v5796, 0
  %v5829 = vmax.bf16 %v5797, 0
  %v5830 = vmax.bf16 %v5798, 0
  %v5831 = vmax.bf16 %v5799, 0
  %v5832 = vmax.bf16 %v5800, 0
  %v5833 = vmax.bf16 %v5801, 0
  %v5834 = vmax.bf16 %v5802, 0
  %v5835 = vmax.bf16 %v5803, 0
  %v5836 = vmax.bf16 %v5804, 0
  %v5837 = vmax.bf16 %v5805, 0
  %v5838 = vmax.bf16 %v5806, 0
  %v5839 = vmax.bf16 %v5807, 0
  %v5840 = vmax.bf16 %v5808, 0
  %v5841 = vmax.bf16 %v5809, 0
  %v5842 = vmax.bf16 %v5810, 0
  %v5843 = vmax.bf16 %v5811, 0
  %v5844 = vmax.bf16 %v5812, 0
  %v5845 = vmax.bf16 %v5813, 0
  %v5846 = vmax.bf16 %v5814, 0
  %v5847 = vmax.bf16 %v5815, 0
  %v5848 = vmax.bf16 %v5816, 0
  %v5849 = vmax.bf16 %v5817, 0
  %v5850 = vmax.bf16 %v5818, 0
  %s5851 = scalar_lea.vmem %s3, 512
  %v5852 = vld [vmem:[%s5851] sm:$0xff]
  %v5853 = vld [vmem:[%s5851 + $0x8] sm:$0xff]
  %v5854 = vld [vmem:[%s5851 + $0x10] sm:$0xff]
  %v5855 = vld [vmem:[%s5851 + $0x18] sm:$0xff]
  %v5856 = vld [vmem:[%s5851 + $0x20] sm:$0xff]
  %v5857 = vld [vmem:[%s5851 + $0x28] sm:$0xff]
  %v5858 = vld [vmem:[%s5851 + $0x30] sm:$0xff]
  %v5859 = vld [vmem:[%s5851 + $0x38] sm:$0xff]
  %v5860 = vld [vmem:[%s5851 + $0x40] sm:$0xff]
  %v5861 = vld [vmem:[%s5851 + $0x48] sm:$0xff]
  %v5862 = vld [vmem:[%s5851 + $0x50] sm:$0xff]
  %v5863 = vld [vmem:[%s5851 + $0x58] sm:$0xff]
  %v5864 = vld [vmem:[%s5851 + $0x60] sm:$0xff]
  %v5865 = vld [vmem:[%s5851 + $0x68] sm:$0xff]
  %v5866 = vld [vmem:[%s5851 + $0x70] sm:$0xff]
  %v5867 = vld [vmem:[%s5851 + $0x78] sm:$0xff]
  %v5868 = vld [vmem:[%s5851 + $0x80] sm:$0xff]
  %v5869 = vld [vmem:[%s5851 + $0x88] sm:$0xff]
  %v5870 = vld [vmem:[%s5851 + $0x90] sm:$0xff]
  %v5871 = vld [vmem:[%s5851 + $0x98] sm:$0xff]
  %v5872 = vld [vmem:[%s5851 + $0xa0] sm:$0xff]
  %v5873 = vld [vmem:[%s5851 + $0xa8] sm:$0xff]
  %v5874 = vld [vmem:[%s5851 + $0xb0] sm:$0xff]
  %v5875 = vld [vmem:[%s5851 + $0xb8] sm:$0xff]
  %v5876 = vld [vmem:[%s5851 + $0xc0] sm:$0xff]
  %v5877 = vld [vmem:[%s5851 + $0xc8] sm:$0xff]
  %v5878 = vld [vmem:[%s5851 + $0xd0] sm:$0xff]
  %v5879 = vld [vmem:[%s5851 + $0xd8] sm:$0xff]
  %v5880 = vld [vmem:[%s5851 + $0xe0] sm:$0xff]
  %v5881 = vld [vmem:[%s5851 + $0xe8] sm:$0xff]
  %v5882 = vld [vmem:[%s5851 + $0xf0] sm:$0xff]
  %v5883 = vld [vmem:[%s5851 + $0xf8] sm:$0xff]
  %v5916 = vunpack.c.l.b16 %v5852
  %v5917 = vunpack.c.h.b16 %v5852
  %v5918 = vunpack.c.l.b16 %v5853
  %v5919 = vunpack.c.h.b16 %v5853
  %v5920 = vunpack.c.l.b16 %v5854
  %v5921 = vunpack.c.h.b16 %v5854
  %v5922 = vunpack.c.l.b16 %v5855
  %v5923 = vunpack.c.h.b16 %v5855
  %v5924 = vunpack.c.l.b16 %v5856
  %v5925 = vunpack.c.h.b16 %v5856
  %v5926 = vunpack.c.l.b16 %v5857
  %v5927 = vunpack.c.h.b16 %v5857
  %v5928 = vunpack.c.l.b16 %v5858
  %v5929 = vunpack.c.h.b16 %v5858
  %v5930 = vunpack.c.l.b16 %v5859
  %v5931 = vunpack.c.h.b16 %v5859
  %v5932 = vunpack.c.l.b16 %v5860
  %v5933 = vunpack.c.h.b16 %v5860
  %v5934 = vunpack.c.l.b16 %v5861
  %v5935 = vunpack.c.h.b16 %v5861
  %v5936 = vunpack.c.l.b16 %v5862
  %v5937 = vunpack.c.h.b16 %v5862
  %v5938 = vunpack.c.l.b16 %v5863
  %v5939 = vunpack.c.h.b16 %v5863
  %v5940 = vunpack.c.l.b16 %v5864
  %v5941 = vunpack.c.h.b16 %v5864
  %v5942 = vunpack.c.l.b16 %v5865
  %v5943 = vunpack.c.h.b16 %v5865
  %v5944 = vunpack.c.l.b16 %v5866
  %v5945 = vunpack.c.h.b16 %v5866
  %v5946 = vunpack.c.l.b16 %v5867
  %v5947 = vunpack.c.h.b16 %v5867
  %v5948 = vunpack.c.l.b16 %v5868
  %v5949 = vunpack.c.h.b16 %v5868
  %v5950 = vunpack.c.l.b16 %v5869
  %v5951 = vunpack.c.h.b16 %v5869
  %v5952 = vunpack.c.l.b16 %v5870
  %v5953 = vunpack.c.h.b16 %v5870
  %v5954 = vunpack.c.l.b16 %v5871
  %v5955 = vunpack.c.h.b16 %v5871
  %v5956 = vunpack.c.l.b16 %v5872
  %v5957 = vunpack.c.h.b16 %v5872
  %v5958 = vunpack.c.l.b16 %v5873
  %v5959 = vunpack.c.h.b16 %v5873
  %v5960 = vunpack.c.l.b16 %v5874
  %v5961 = vunpack.c.h.b16 %v5874
  %v5962 = vunpack.c.l.b16 %v5875
  %v5963 = vunpack.c.h.b16 %v5875
  %v5964 = vunpack.c.l.b16 %v5876
  %v5965 = vunpack.c.h.b16 %v5876
  %v5966 = vunpack.c.l.b16 %v5877
  %v5967 = vunpack.c.h.b16 %v5877
  %v5968 = vunpack.c.l.b16 %v5878
  %v5969 = vunpack.c.h.b16 %v5878
  %v5970 = vunpack.c.l.b16 %v5879
  %v5971 = vunpack.c.h.b16 %v5879
  %v5972 = vunpack.c.l.b16 %v5880
  %v5973 = vunpack.c.h.b16 %v5880
  %v5974 = vunpack.c.l.b16 %v5881
  %v5975 = vunpack.c.h.b16 %v5881
  %v5976 = vunpack.c.l.b16 %v5882
  %v5977 = vunpack.c.h.b16 %v5882
  %v5978 = vunpack.c.l.b16 %v5883
  %v5979 = vunpack.c.h.b16 %v5883
  %v5980 = vpack.c.b16 %v5918, %v5916
  %v5981 = vpack.c.b16 %v5919, %v5917
  %v5982 = vpack.c.b16 %v5922, %v5920
  %v5983 = vpack.c.b16 %v5923, %v5921
  %v5984 = vpack.c.b16 %v5926, %v5924
  %v5985 = vpack.c.b16 %v5927, %v5925
  %v5986 = vpack.c.b16 %v5930, %v5928
  %v5987 = vpack.c.b16 %v5931, %v5929
  %v5988 = vpack.c.b16 %v5934, %v5932
  %v5989 = vpack.c.b16 %v5935, %v5933
  %v5990 = vpack.c.b16 %v5938, %v5936
  %v5991 = vpack.c.b16 %v5939, %v5937
  %v5992 = vpack.c.b16 %v5942, %v5940
  %v5993 = vpack.c.b16 %v5943, %v5941
  %v5994 = vpack.c.b16 %v5946, %v5944
  %v5995 = vpack.c.b16 %v5947, %v5945
  %v5996 = vpack.c.b16 %v5950, %v5948
  %v5997 = vpack.c.b16 %v5951, %v5949
  %v5998 = vpack.c.b16 %v5954, %v5952
  %v5999 = vpack.c.b16 %v5955, %v5953
  %v6000 = vpack.c.b16 %v5958, %v5956
  %v6001 = vpack.c.b16 %v5959, %v5957
  %v6002 = vpack.c.b16 %v5962, %v5960
  %v6003 = vpack.c.b16 %v5963, %v5961
  %v6004 = vpack.c.b16 %v5966, %v5964
  %v6005 = vpack.c.b16 %v5967, %v5965
  %v6006 = vpack.c.b16 %v5970, %v5968
  %v6007 = vpack.c.b16 %v5971, %v5969
  %v6008 = vpack.c.b16 %v5974, %v5972
  %v6009 = vpack.c.b16 %v5975, %v5973
  %v6010 = vpack.c.b16 %v5978, %v5976
  %v6011 = vpack.c.b16 %v5979, %v5977
  %6044 = vmatprep.subr.bf16.mxu0 %v5995
  %6045 = vmatpush1.bf16.msra.mxu0 %v5994
  %6046 = vmatprep.subr.bf16.mxu0 %v5993
  %6047 = vmatpush1.bf16.msra.mxu0 %v5992
  %6048 = vmatprep.subr.bf16.mxu0 %v5991
  %6049 = vmatpush1.bf16.msra.mxu0 %v5990
  %6050 = vmatprep.subr.bf16.mxu0 %v5989
  %6051 = vmatpush1.bf16.msra.mxu0 %v5988
  %6052 = vmatprep.subr.bf16.mxu0 %v5987
  %6053 = vmatpush1.bf16.msra.mxu0 %v5986
  %6054 = vmatprep.subr.bf16.mxu0 %v5985
  %6055 = vmatpush1.bf16.msra.mxu0 %v5984
  %6056 = vmatprep.subr.bf16.mxu0 %v5983
  %6057 = vmatpush1.bf16.msra.mxu0 %v5982
  %6058 = vmatprep.subr.bf16.mxu0 %v5981
  %6059 = vmatpush1.bf16.msra.mxu0 %v5980
  %6060 = vmatprep.subr.bf16.mxu0 %v6011
  %6061 = vmatpush2.bf16.msra.mxu0 %v6010
  %6062 = vmatprep.subr.bf16.mxu0 %v6009
  %6063 = vmatpush2.bf16.msra.mxu0 %v6008
  %6064 = vmatprep.subr.bf16.mxu0 %v6007
  %6065 = vmatpush2.bf16.msra.mxu0 %v6006
  %6066 = vmatprep.subr.bf16.mxu0 %v6005
  %6067 = vmatpush2.bf16.msra.mxu0 %v6004
  %6068 = vmatprep.subr.bf16.mxu0 %v6003
  %6069 = vmatpush2.bf16.msra.mxu0 %v6002
  %6070 = vmatprep.subr.bf16.mxu0 %v6001
  %6071 = vmatpush2.bf16.msra.mxu0 %v6000
  %6072 = vmatprep.subr.bf16.mxu0 %v5999
  %6073 = vmatpush2.bf16.msra.mxu0 %v5998
  %6074 = vmatprep.subr.bf16.mxu0 %v5997
  %6075 = vmatpush2.bf16.msra.mxu0 %v5996
  %6076 = vmatprep.mubr.bf16.mxu0 %v5820
  %6077 = vmatmul.mubr.bf16.gmra.mxu0 %v5819
  %v6078 = vpop.f32.mrf.mxu0
  %v6079 = vadd.f32 0.0, %v6078
  %v6080 = vpop.f32.mrf.mxu0
  %v6081 = vadd.f32 0.0, %v6080
  %v6082 = vpop.f32.mrf.mxu0
  %v6083 = vadd.f32 0.0, %v6082
  %v6084 = vpop.f32.mrf.mxu0
  %v6085 = vadd.f32 0.0, %v6084
  %6086 = vmatprep.mubr.bf16.mxu0 %v5822
  %6087 = vmatmul.mubr.bf16.gmra.mxu0 %v5821
  %v6088 = vpop.f32.mrf.mxu0
  %v6089 = vadd.f32 0.0, %v6088
  %v6090 = vpop.f32.mrf.mxu0
  %v6091 = vadd.f32 0.0, %v6090
  %v6092 = vpop.f32.mrf.mxu0
  %v6093 = vadd.f32 0.0, %v6092
  %v6094 = vpop.f32.mrf.mxu0
  %v6095 = vadd.f32 0.0, %v6094
  %6096 = vmatprep.mubr.bf16.mxu0 %v5824
  %6097 = vmatmul.mubr.bf16.gmra.mxu0 %v5823
  %v6098 = vpop.f32.mrf.mxu0
  %v6099 = vadd.f32 0.0, %v6098
  %v6100 = vpop.f32.mrf.mxu0
  %v6101 = vadd.f32 0.0, %v6100
  %v6102 = vpop.f32.mrf.mxu0
  %v6103 = vadd.f32 0.0, %v6102
  %v6104 = vpop.f32.mrf.mxu0
  %v6105 = vadd.f32 0.0, %v6104
  %6106 = vmatprep.mubr.bf16.mxu0 %v5826
  %6107 = vmatmul.mubr.bf16.gmra.mxu0 %v5825
  %v6108 = vpop.f32.mrf.mxu0
  %v6109 = vadd.f32 0.0, %v6108
  %v6110 = vpop.f32.mrf.mxu0
  %v6111 = vadd.f32 0.0, %v6110
  %v6112 = vpop.f32.mrf.mxu0
  %v6113 = vadd.f32 0.0, %v6112
  %v6114 = vpop.f32.mrf.mxu0
  %v6115 = vadd.f32 0.0, %v6114
  %6116 = vmatprep.mubr.bf16.mxu0 %v5828
  %6117 = vmatmul.mubr.bf16.gmra.mxu0 %v5827
  %v6118 = vpop.f32.mrf.mxu0
  %v6119 = vadd.f32 0.0, %v6118
  %v6120 = vpop.f32.mrf.mxu0
  %v6121 = vadd.f32 0.0, %v6120
  %v6122 = vpop.f32.mrf.mxu0
  %v6123 = vadd.f32 0.0, %v6122
  %v6124 = vpop.f32.mrf.mxu0
  %v6125 = vadd.f32 0.0, %v6124
  %6126 = vmatprep.mubr.bf16.mxu0 %v5830
  %6127 = vmatmul.mubr.bf16.gmra.mxu0 %v5829
  %v6128 = vpop.f32.mrf.mxu0
  %v6129 = vadd.f32 0.0, %v6128
  %v6130 = vpop.f32.mrf.mxu0
  %v6131 = vadd.f32 0.0, %v6130
  %v6132 = vpop.f32.mrf.mxu0
  %v6133 = vadd.f32 0.0, %v6132
  %v6134 = vpop.f32.mrf.mxu0
  %v6135 = vadd.f32 0.0, %v6134
  %6136 = vmatprep.mubr.bf16.mxu0 %v5832
  %6137 = vmatmul.mubr.bf16.gmra.mxu0 %v5831
  %v6138 = vpop.f32.mrf.mxu0
  %v6139 = vadd.f32 0.0, %v6138
  %v6140 = vpop.f32.mrf.mxu0
  %v6141 = vadd.f32 0.0, %v6140
  %v6142 = vpop.f32.mrf.mxu0
  %v6143 = vadd.f32 0.0, %v6142
  %v6144 = vpop.f32.mrf.mxu0
  %v6145 = vadd.f32 0.0, %v6144
  %6146 = vmatprep.mubr.bf16.mxu0 %v5834
  %6147 = vmatmul.mubr.bf16.gmra.mxu0 %v5833
  %v6148 = vpop.f32.mrf.mxu0
  %v6149 = vadd.f32 0.0, %v6148
  %v6150 = vpop.f32.mrf.mxu0
  %v6151 = vadd.f32 0.0, %v6150
  %v6152 = vpop.f32.mrf.mxu0
  %v6153 = vadd.f32 0.0, %v6152
  %v6154 = vpop.f32.mrf.mxu0
  %v6155 = vadd.f32 0.0, %v6154
  %6156 = vmatprep.mubr.bf16.mxu0 %v5836
  %6157 = vmatmul.mubr.bf16.gmra.mxu0 %v5835
  %v6158 = vpop.f32.mrf.mxu0
  %v6159 = vadd.f32 0.0, %v6158
  %v6160 = vpop.f32.mrf.mxu0
  %v6161 = vadd.f32 0.0, %v6160
  %v6162 = vpop.f32.mrf.mxu0
  %v6163 = vadd.f32 0.0, %v6162
  %v6164 = vpop.f32.mrf.mxu0
  %v6165 = vadd.f32 0.0, %v6164
  %6166 = vmatprep.mubr.bf16.mxu0 %v5838
  %6167 = vmatmul.mubr.bf16.gmra.mxu0 %v5837
  %v6168 = vpop.f32.mrf.mxu0
  %v6169 = vadd.f32 0.0, %v6168
  %v6170 = vpop.f32.mrf.mxu0
  %v6171 = vadd.f32 0.0, %v6170
  %v6172 = vpop.f32.mrf.mxu0
  %v6173 = vadd.f32 0.0, %v6172
  %v6174 = vpop.f32.mrf.mxu0
  %v6175 = vadd.f32 0.0, %v6174
  %6176 = vmatprep.mubr.bf16.mxu0 %v5840
  %6177 = vmatmul.mubr.bf16.gmra.mxu0 %v5839
  %v6178 = vpop.f32.mrf.mxu0
  %v6179 = vadd.f32 0.0, %v6178
  %v6180 = vpop.f32.mrf.mxu0
  %v6181 = vadd.f32 0.0, %v6180
  %v6182 = vpop.f32.mrf.mxu0
  %v6183 = vadd.f32 0.0, %v6182
  %v6184 = vpop.f32.mrf.mxu0
  %v6185 = vadd.f32 0.0, %v6184
  %6186 = vmatprep.mubr.bf16.mxu0 %v5842
  %6187 = vmatmul.mubr.bf16.gmra.mxu0 %v5841
  %v6188 = vpop.f32.mrf.mxu0
  %v6189 = vadd.f32 0.0, %v6188
  %v6190 = vpop.f32.mrf.mxu0
  %v6191 = vadd.f32 0.0, %v6190
  %v6192 = vpop.f32.mrf.mxu0
  %v6193 = vadd.f32 0.0, %v6192
  %v6194 = vpop.f32.mrf.mxu0
  %v6195 = vadd.f32 0.0, %v6194
  %6196 = vmatprep.mubr.bf16.mxu0 %v5844
  %6197 = vmatmul.mubr.bf16.gmra.mxu0 %v5843
  %v6198 = vpop.f32.mrf.mxu0
  %v6199 = vadd.f32 0.0, %v6198
  %v6200 = vpop.f32.mrf.mxu0
  %v6201 = vadd.f32 0.0, %v6200
  %v6202 = vpop.f32.mrf.mxu0
  %v6203 = vadd.f32 0.0, %v6202
  %v6204 = vpop.f32.mrf.mxu0
  %v6205 = vadd.f32 0.0, %v6204
  %6206 = vmatprep.mubr.bf16.mxu0 %v5846
  %6207 = vmatmul.mubr.bf16.gmra.mxu0 %v5845
  %v6208 = vpop.f32.mrf.mxu0
  %v6209 = vadd.f32 0.0, %v6208
  %v6210 = vpop.f32.mrf.mxu0
  %v6211 = vadd.f32 0.0, %v6210
  %v6212 = vpop.f32.mrf.mxu0
  %v6213 = vadd.f32 0.0, %v6212
  %v6214 = vpop.f32.mrf.mxu0
  %v6215 = vadd.f32 0.0, %v6214
  %6216 = vmatprep.mubr.bf16.mxu0 %v5848
  %6217 = vmatmul.mubr.bf16.gmra.mxu0 %v5847
  %v6218 = vpop.f32.mrf.mxu0
  %v6219 = vadd.f32 0.0, %v6218
  %v6220 = vpop.f32.mrf.mxu0
  %v6221 = vadd.f32 0.0, %v6220
  %v6222 = vpop.f32.mrf.mxu0
  %v6223 = vadd.f32 0.0, %v6222
  %v6224 = vpop.f32.mrf.mxu0
  %v6225 = vadd.f32 0.0, %v6224
  %6226 = vmatprep.mubr.bf16.mxu0 %v5850
  %6227 = vmatmul.mubr.bf16.gmra.mxu0 %v5849
  %v6228 = vpop.f32.mrf.mxu0
  %v6229 = vadd.f32 0.0, %v6228
  %v6230 = vpop.f32.mrf.mxu0
  %v6231 = vadd.f32 0.0, %v6230
  %v6232 = vpop.f32.mrf.mxu0
  %v6233 = vadd.f32 0.0, %v6232
  %v6234 = vpop.f32.mrf.mxu0
  %v6235 = vadd.f32 0.0, %v6234
  %6236 = vdwg.mxu0
  %v6237 = vpack.c.bf16 %v6083, %v6079
  %v6238 = vpack.c.bf16 %v6085, %v6081
  %v6239 = vpack.c.bf16 %v6093, %v6089
  %v6240 = vpack.c.bf16 %v6095, %v6091
  %v6241 = vpack.c.bf16 %v6103, %v6099
  %v6242 = vpack.c.bf16 %v6105, %v6101
  %v6243 = vpack.c.bf16 %v6113, %v6109
  %v6244 = vpack.c.bf16 %v6115, %v6111
  %v6245 = vpack.c.bf16 %v6123, %v6119
  %v6246 = vpack.c.bf16 %v6125, %v6121
  %v6247 = vpack.c.bf16 %v6133, %v6129
  %v6248 = vpack.c.bf16 %v6135, %v6131
  %v6249 = vpack.c.bf16 %v6143, %v6139
  %v6250 = vpack.c.bf16 %v6145, %v6141
  %v6251 = vpack.c.bf16 %v6153, %v6149
  %v6252 = vpack.c.bf16 %v6155, %v6151
  %v6253 = vpack.c.bf16 %v6163, %v6159
  %v6254 = vpack.c.bf16 %v6165, %v6161
  %v6255 = vpack.c.bf16 %v6173, %v6169
  %v6256 = vpack.c.bf16 %v6175, %v6171
  %v6257 = vpack.c.bf16 %v6183, %v6179
  %v6258 = vpack.c.bf16 %v6185, %v6181
  %v6259 = vpack.c.bf16 %v6193, %v6189
  %v6260 = vpack.c.bf16 %v6195, %v6191
  %v6261 = vpack.c.bf16 %v6203, %v6199
  %v6262 = vpack.c.bf16 %v6205, %v6201
  %v6263 = vpack.c.bf16 %v6213, %v6209
  %v6264 = vpack.c.bf16 %v6215, %v6211
  %v6265 = vpack.c.bf16 %v6223, %v6219
  %v6266 = vpack.c.bf16 %v6225, %v6221
  %v6267 = vpack.c.bf16 %v6233, %v6229
  %v6268 = vpack.c.bf16 %v6235, %v6231
  %v6270 = vpack.i.b16 %v4130, %v4130
  %v6272 = vlaneseq
  %v6273 = vshrl.u32 %v6272, 7
  %v6274 = vsub.s32 0, %v6273
  %v6275 = vrot.slane %v6270, %v6274
  %v6277 = vpack.i.b16 %v4131, %v4131
  %v6279 = vlaneseq
  %v6280 = vshrl.u32 %v6279, 7
  %v6281 = vsub.s32 0, %v6280
  %v6282 = vrot.slane %v6277, %v6281
  %v6283 = vadd.bf16 %v6237, %v6275
  %v6284 = vadd.bf16 %v6238, %v6282
  %v6285 = vadd.bf16 %v6239, %v6275
  %v6286 = vadd.bf16 %v6240, %v6282
  %v6287 = vadd.bf16 %v6241, %v6275
  %v6288 = vadd.bf16 %v6242, %v6282
  %v6289 = vadd.bf16 %v6243, %v6275
  %v6290 = vadd.bf16 %v6244, %v6282
  %v6291 = vadd.bf16 %v6245, %v6275
  %v6292 = vadd.bf16 %v6246, %v6282
  %v6293 = vadd.bf16 %v6247, %v6275
  %v6294 = vadd.bf16 %v6248, %v6282
  %v6295 = vadd.bf16 %v6249, %v6275
  %v6296 = vadd.bf16 %v6250, %v6282
  %v6297 = vadd.bf16 %v6251, %v6275
  %v6298 = vadd.bf16 %v6252, %v6282
  %v6299 = vadd.bf16 %v6253, %v6275
  %v6300 = vadd.bf16 %v6254, %v6282
  %v6301 = vadd.bf16 %v6255, %v6275
  %v6302 = vadd.bf16 %v6256, %v6282
  %v6303 = vadd.bf16 %v6257, %v6275
  %v6304 = vadd.bf16 %v6258, %v6282
  %v6305 = vadd.bf16 %v6259, %v6275
  %v6306 = vadd.bf16 %v6260, %v6282
  %v6307 = vadd.bf16 %v6261, %v6275
  %v6308 = vadd.bf16 %v6262, %v6282
  %v6309 = vadd.bf16 %v6263, %v6275
  %v6310 = vadd.bf16 %v6264, %v6282
  %v6311 = vadd.bf16 %v6265, %v6275
  %v6312 = vadd.bf16 %v6266, %v6282
  %v6313 = vadd.bf16 %v6267, %v6275
  %v6314 = vadd.bf16 %v6268, %v6282
  %v6315 = vmax.bf16 %v6283, 0
  %v6316 = vmax.bf16 %v6284, 0
  %v6317 = vmax.bf16 %v6285, 0
  %v6318 = vmax.bf16 %v6286, 0
  %v6319 = vmax.bf16 %v6287, 0
  %v6320 = vmax.bf16 %v6288, 0
  %v6321 = vmax.bf16 %v6289, 0
  %v6322 = vmax.bf16 %v6290, 0
  %v6323 = vmax.bf16 %v6291, 0
  %v6324 = vmax.bf16 %v6292, 0
  %v6325 = vmax.bf16 %v6293, 0
  %v6326 = vmax.bf16 %v6294, 0
  %v6327 = vmax.bf16 %v6295, 0
  %v6328 = vmax.bf16 %v6296, 0
  %v6329 = vmax.bf16 %v6297, 0
  %v6330 = vmax.bf16 %v6298, 0
  %v6331 = vmax.bf16 %v6299, 0
  %v6332 = vmax.bf16 %v6300, 0
  %v6333 = vmax.bf16 %v6301, 0
  %v6334 = vmax.bf16 %v6302, 0
  %v6335 = vmax.bf16 %v6303, 0
  %v6336 = vmax.bf16 %v6304, 0
  %v6337 = vmax.bf16 %v6305, 0
  %v6338 = vmax.bf16 %v6306, 0
  %v6339 = vmax.bf16 %v6307, 0
  %v6340 = vmax.bf16 %v6308, 0
  %v6341 = vmax.bf16 %v6309, 0
  %v6342 = vmax.bf16 %v6310, 0
  %v6343 = vmax.bf16 %v6311, 0
  %v6344 = vmax.bf16 %v6312, 0
  %v6345 = vmax.bf16 %v6313, 0
  %v6346 = vmax.bf16 %v6314, 0
  %s6347 = scalar_lea.vmem %s3, 768
  %v6348 = vld [vmem:[%s6347] sm:$0xff]
  %v6349 = vld [vmem:[%s6347 + $0x8] sm:$0xff]
  %v6350 = vld [vmem:[%s6347 + $0x10] sm:$0xff]
  %v6351 = vld [vmem:[%s6347 + $0x18] sm:$0xff]
  %v6352 = vld [vmem:[%s6347 + $0x20] sm:$0xff]
  %v6353 = vld [vmem:[%s6347 + $0x28] sm:$0xff]
  %v6354 = vld [vmem:[%s6347 + $0x30] sm:$0xff]
  %v6355 = vld [vmem:[%s6347 + $0x38] sm:$0xff]
  %v6356 = vld [vmem:[%s6347 + $0x40] sm:$0xff]
  %v6357 = vld [vmem:[%s6347 + $0x48] sm:$0xff]
  %v6358 = vld [vmem:[%s6347 + $0x50] sm:$0xff]
  %v6359 = vld [vmem:[%s6347 + $0x58] sm:$0xff]
  %v6360 = vld [vmem:[%s6347 + $0x60] sm:$0xff]
  %v6361 = vld [vmem:[%s6347 + $0x68] sm:$0xff]
  %v6362 = vld [vmem:[%s6347 + $0x70] sm:$0xff]
  %v6363 = vld [vmem:[%s6347 + $0x78] sm:$0xff]
  %v6364 = vld [vmem:[%s6347 + $0x80] sm:$0xff]
  %v6365 = vld [vmem:[%s6347 + $0x88] sm:$0xff]
  %v6366 = vld [vmem:[%s6347 + $0x90] sm:$0xff]
  %v6367 = vld [vmem:[%s6347 + $0x98] sm:$0xff]
  %v6368 = vld [vmem:[%s6347 + $0xa0] sm:$0xff]
  %v6369 = vld [vmem:[%s6347 + $0xa8] sm:$0xff]
  %v6370 = vld [vmem:[%s6347 + $0xb0] sm:$0xff]
  %v6371 = vld [vmem:[%s6347 + $0xb8] sm:$0xff]
  %v6372 = vld [vmem:[%s6347 + $0xc0] sm:$0xff]
  %v6373 = vld [vmem:[%s6347 + $0xc8] sm:$0xff]
  %v6374 = vld [vmem:[%s6347 + $0xd0] sm:$0xff]
  %v6375 = vld [vmem:[%s6347 + $0xd8] sm:$0xff]
  %v6376 = vld [vmem:[%s6347 + $0xe0] sm:$0xff]
  %v6377 = vld [vmem:[%s6347 + $0xe8] sm:$0xff]
  %v6378 = vld [vmem:[%s6347 + $0xf0] sm:$0xff]
  %v6379 = vld [vmem:[%s6347 + $0xf8] sm:$0xff]
  %v6412 = vunpack.c.l.b16 %v6348
  %v6413 = vunpack.c.h.b16 %v6348
  %v6414 = vunpack.c.l.b16 %v6349
  %v6415 = vunpack.c.h.b16 %v6349
  %v6416 = vunpack.c.l.b16 %v6350
  %v6417 = vunpack.c.h.b16 %v6350
  %v6418 = vunpack.c.l.b16 %v6351
  %v6419 = vunpack.c.h.b16 %v6351
  %v6420 = vunpack.c.l.b16 %v6352
  %v6421 = vunpack.c.h.b16 %v6352
  %v6422 = vunpack.c.l.b16 %v6353
  %v6423 = vunpack.c.h.b16 %v6353
  %v6424 = vunpack.c.l.b16 %v6354
  %v6425 = vunpack.c.h.b16 %v6354
  %v6426 = vunpack.c.l.b16 %v6355
  %v6427 = vunpack.c.h.b16 %v6355
  %v6428 = vunpack.c.l.b16 %v6356
  %v6429 = vunpack.c.h.b16 %v6356
  %v6430 = vunpack.c.l.b16 %v6357
  %v6431 = vunpack.c.h.b16 %v6357
  %v6432 = vunpack.c.l.b16 %v6358
  %v6433 = vunpack.c.h.b16 %v6358
  %v6434 = vunpack.c.l.b16 %v6359
  %v6435 = vunpack.c.h.b16 %v6359
  %v6436 = vunpack.c.l.b16 %v6360
  %v6437 = vunpack.c.h.b16 %v6360
  %v6438 = vunpack.c.l.b16 %v6361
  %v6439 = vunpack.c.h.b16 %v6361
  %v6440 = vunpack.c.l.b16 %v6362
  %v6441 = vunpack.c.h.b16 %v6362
  %v6442 = vunpack.c.l.b16 %v6363
  %v6443 = vunpack.c.h.b16 %v6363
  %v6444 = vunpack.c.l.b16 %v6364
  %v6445 = vunpack.c.h.b16 %v6364
  %v6446 = vunpack.c.l.b16 %v6365
  %v6447 = vunpack.c.h.b16 %v6365
  %v6448 = vunpack.c.l.b16 %v6366
  %v6449 = vunpack.c.h.b16 %v6366
  %v6450 = vunpack.c.l.b16 %v6367
  %v6451 = vunpack.c.h.b16 %v6367
  %v6452 = vunpack.c.l.b16 %v6368
  %v6453 = vunpack.c.h.b16 %v6368
  %v6454 = vunpack.c.l.b16 %v6369
  %v6455 = vunpack.c.h.b16 %v6369
  %v6456 = vunpack.c.l.b16 %v6370
  %v6457 = vunpack.c.h.b16 %v6370
  %v6458 = vunpack.c.l.b16 %v6371
  %v6459 = vunpack.c.h.b16 %v6371
  %v6460 = vunpack.c.l.b16 %v6372
  %v6461 = vunpack.c.h.b16 %v6372
  %v6462 = vunpack.c.l.b16 %v6373
  %v6463 = vunpack.c.h.b16 %v6373
  %v6464 = vunpack.c.l.b16 %v6374
  %v6465 = vunpack.c.h.b16 %v6374
  %v6466 = vunpack.c.l.b16 %v6375
  %v6467 = vunpack.c.h.b16 %v6375
  %v6468 = vunpack.c.l.b16 %v6376
  %v6469 = vunpack.c.h.b16 %v6376
  %v6470 = vunpack.c.l.b16 %v6377
  %v6471 = vunpack.c.h.b16 %v6377
  %v6472 = vunpack.c.l.b16 %v6378
  %v6473 = vunpack.c.h.b16 %v6378
  %v6474 = vunpack.c.l.b16 %v6379
  %v6475 = vunpack.c.h.b16 %v6379
  %v6476 = vpack.c.b16 %v6414, %v6412
  %v6477 = vpack.c.b16 %v6415, %v6413
  %v6478 = vpack.c.b16 %v6418, %v6416
  %v6479 = vpack.c.b16 %v6419, %v6417
  %v6480 = vpack.c.b16 %v6422, %v6420
  %v6481 = vpack.c.b16 %v6423, %v6421
  %v6482 = vpack.c.b16 %v6426, %v6424
  %v6483 = vpack.c.b16 %v6427, %v6425
  %v6484 = vpack.c.b16 %v6430, %v6428
  %v6485 = vpack.c.b16 %v6431, %v6429
  %v6486 = vpack.c.b16 %v6434, %v6432
  %v6487 = vpack.c.b16 %v6435, %v6433
  %v6488 = vpack.c.b16 %v6438, %v6436
  %v6489 = vpack.c.b16 %v6439, %v6437
  %v6490 = vpack.c.b16 %v6442, %v6440
  %v6491 = vpack.c.b16 %v6443, %v6441
  %v6492 = vpack.c.b16 %v6446, %v6444
  %v6493 = vpack.c.b16 %v6447, %v6445
  %v6494 = vpack.c.b16 %v6450, %v6448
  %v6495 = vpack.c.b16 %v6451, %v6449
  %v6496 = vpack.c.b16 %v6454, %v6452
  %v6497 = vpack.c.b16 %v6455, %v6453
  %v6498 = vpack.c.b16 %v6458, %v6456
  %v6499 = vpack.c.b16 %v6459, %v6457
  %v6500 = vpack.c.b16 %v6462, %v6460
  %v6501 = vpack.c.b16 %v6463, %v6461
  %v6502 = vpack.c.b16 %v6466, %v6464
  %v6503 = vpack.c.b16 %v6467, %v6465
  %v6504 = vpack.c.b16 %v6470, %v6468
  %v6505 = vpack.c.b16 %v6471, %v6469
  %v6506 = vpack.c.b16 %v6474, %v6472
  %v6507 = vpack.c.b16 %v6475, %v6473
  %6540 = vmatprep.subr.bf16.mxu0 %v6491
  %6541 = vmatpush1.bf16.msra.mxu0 %v6490
  %6542 = vmatprep.subr.bf16.mxu0 %v6489
  %6543 = vmatpush1.bf16.msra.mxu0 %v6488
  %6544 = vmatprep.subr.bf16.mxu0 %v6487
  %6545 = vmatpush1.bf16.msra.mxu0 %v6486
  %6546 = vmatprep.subr.bf16.mxu0 %v6485
  %6547 = vmatpush1.bf16.msra.mxu0 %v6484
  %6548 = vmatprep.subr.bf16.mxu0 %v6483
  %6549 = vmatpush1.bf16.msra.mxu0 %v6482
  %6550 = vmatprep.subr.bf16.mxu0 %v6481
  %6551 = vmatpush1.bf16.msra.mxu0 %v6480
  %6552 = vmatprep.subr.bf16.mxu0 %v6479
  %6553 = vmatpush1.bf16.msra.mxu0 %v6478
  %6554 = vmatprep.subr.bf16.mxu0 %v6477
  %6555 = vmatpush1.bf16.msra.mxu0 %v6476
  %6556 = vmatprep.subr.bf16.mxu0 %v6507
  %6557 = vmatpush2.bf16.msra.mxu0 %v6506
  %6558 = vmatprep.subr.bf16.mxu0 %v6505
  %6559 = vmatpush2.bf16.msra.mxu0 %v6504
  %6560 = vmatprep.subr.bf16.mxu0 %v6503
  %6561 = vmatpush2.bf16.msra.mxu0 %v6502
  %6562 = vmatprep.subr.bf16.mxu0 %v6501
  %6563 = vmatpush2.bf16.msra.mxu0 %v6500
  %6564 = vmatprep.subr.bf16.mxu0 %v6499
  %6565 = vmatpush2.bf16.msra.mxu0 %v6498
  %6566 = vmatprep.subr.bf16.mxu0 %v6497
  %6567 = vmatpush2.bf16.msra.mxu0 %v6496
  %6568 = vmatprep.subr.bf16.mxu0 %v6495
  %6569 = vmatpush2.bf16.msra.mxu0 %v6494
  %6570 = vmatprep.subr.bf16.mxu0 %v6493
  %6571 = vmatpush2.bf16.msra.mxu0 %v6492
  %6572 = vmatprep.mubr.bf16.mxu0 %v6316
  %6573 = vmatmul.mubr.bf16.gmra.mxu0 %v6315
  %v6574 = vpop.f32.mrf.mxu0
  %v6575 = vadd.f32 0.0, %v6574
  %v6576 = vpop.f32.mrf.mxu0
  %v6577 = vadd.f32 0.0, %v6576
  %v6578 = vpop.f32.mrf.mxu0
  %v6579 = vadd.f32 0.0, %v6578
  %v6580 = vpop.f32.mrf.mxu0
  %v6581 = vadd.f32 0.0, %v6580
  %6582 = vmatprep.mubr.bf16.mxu0 %v6318
  %6583 = vmatmul.mubr.bf16.gmra.mxu0 %v6317
  %v6584 = vpop.f32.mrf.mxu0
  %v6585 = vadd.f32 0.0, %v6584
  %v6586 = vpop.f32.mrf.mxu0
  %v6587 = vadd.f32 0.0, %v6586
  %v6588 = vpop.f32.mrf.mxu0
  %v6589 = vadd.f32 0.0, %v6588
  %v6590 = vpop.f32.mrf.mxu0
  %v6591 = vadd.f32 0.0, %v6590
  %6592 = vmatprep.mubr.bf16.mxu0 %v6320
  %6593 = vmatmul.mubr.bf16.gmra.mxu0 %v6319
  %v6594 = vpop.f32.mrf.mxu0
  %v6595 = vadd.f32 0.0, %v6594
  %v6596 = vpop.f32.mrf.mxu0
  %v6597 = vadd.f32 0.0, %v6596
  %v6598 = vpop.f32.mrf.mxu0
  %v6599 = vadd.f32 0.0, %v6598
  %v6600 = vpop.f32.mrf.mxu0
  %v6601 = vadd.f32 0.0, %v6600
  %6602 = vmatprep.mubr.bf16.mxu0 %v6322
  %6603 = vmatmul.mubr.bf16.gmra.mxu0 %v6321
  %v6604 = vpop.f32.mrf.mxu0
  %v6605 = vadd.f32 0.0, %v6604
  %v6606 = vpop.f32.mrf.mxu0
  %v6607 = vadd.f32 0.0, %v6606
  %v6608 = vpop.f32.mrf.mxu0
  %v6609 = vadd.f32 0.0, %v6608
  %v6610 = vpop.f32.mrf.mxu0
  %v6611 = vadd.f32 0.0, %v6610
  %6612 = vmatprep.mubr.bf16.mxu0 %v6324
  %6613 = vmatmul.mubr.bf16.gmra.mxu0 %v6323
  %v6614 = vpop.f32.mrf.mxu0
  %v6615 = vadd.f32 0.0, %v6614
  %v6616 = vpop.f32.mrf.mxu0
  %v6617 = vadd.f32 0.0, %v6616
  %v6618 = vpop.f32.mrf.mxu0
  %v6619 = vadd.f32 0.0, %v6618
  %v6620 = vpop.f32.mrf.mxu0
  %v6621 = vadd.f32 0.0, %v6620
  %6622 = vmatprep.mubr.bf16.mxu0 %v6326
  %6623 = vmatmul.mubr.bf16.gmra.mxu0 %v6325
  %v6624 = vpop.f32.mrf.mxu0
  %v6625 = vadd.f32 0.0, %v6624
  %v6626 = vpop.f32.mrf.mxu0
  %v6627 = vadd.f32 0.0, %v6626
  %v6628 = vpop.f32.mrf.mxu0
  %v6629 = vadd.f32 0.0, %v6628
  %v6630 = vpop.f32.mrf.mxu0
  %v6631 = vadd.f32 0.0, %v6630
  %6632 = vmatprep.mubr.bf16.mxu0 %v6328
  %6633 = vmatmul.mubr.bf16.gmra.mxu0 %v6327
  %v6634 = vpop.f32.mrf.mxu0
  %v6635 = vadd.f32 0.0, %v6634
  %v6636 = vpop.f32.mrf.mxu0
  %v6637 = vadd.f32 0.0, %v6636
  %v6638 = vpop.f32.mrf.mxu0
  %v6639 = vadd.f32 0.0, %v6638
  %v6640 = vpop.f32.mrf.mxu0
  %v6641 = vadd.f32 0.0, %v6640
  %6642 = vmatprep.mubr.bf16.mxu0 %v6330
  %6643 = vmatmul.mubr.bf16.gmra.mxu0 %v6329
  %v6644 = vpop.f32.mrf.mxu0
  %v6645 = vadd.f32 0.0, %v6644
  %v6646 = vpop.f32.mrf.mxu0
  %v6647 = vadd.f32 0.0, %v6646
  %v6648 = vpop.f32.mrf.mxu0
  %v6649 = vadd.f32 0.0, %v6648
  %v6650 = vpop.f32.mrf.mxu0
  %v6651 = vadd.f32 0.0, %v6650
  %6652 = vmatprep.mubr.bf16.mxu0 %v6332
  %6653 = vmatmul.mubr.bf16.gmra.mxu0 %v6331
  %v6654 = vpop.f32.mrf.mxu0
  %v6655 = vadd.f32 0.0, %v6654
  %v6656 = vpop.f32.mrf.mxu0
  %v6657 = vadd.f32 0.0, %v6656
  %v6658 = vpop.f32.mrf.mxu0
  %v6659 = vadd.f32 0.0, %v6658
  %v6660 = vpop.f32.mrf.mxu0
  %v6661 = vadd.f32 0.0, %v6660
  %6662 = vmatprep.mubr.bf16.mxu0 %v6334
  %6663 = vmatmul.mubr.bf16.gmra.mxu0 %v6333
  %v6664 = vpop.f32.mrf.mxu0
  %v6665 = vadd.f32 0.0, %v6664
  %v6666 = vpop.f32.mrf.mxu0
  %v6667 = vadd.f32 0.0, %v6666
  %v6668 = vpop.f32.mrf.mxu0
  %v6669 = vadd.f32 0.0, %v6668
  %v6670 = vpop.f32.mrf.mxu0
  %v6671 = vadd.f32 0.0, %v6670
  %6672 = vmatprep.mubr.bf16.mxu0 %v6336
  %6673 = vmatmul.mubr.bf16.gmra.mxu0 %v6335
  %v6674 = vpop.f32.mrf.mxu0
  %v6675 = vadd.f32 0.0, %v6674
  %v6676 = vpop.f32.mrf.mxu0
  %v6677 = vadd.f32 0.0, %v6676
  %v6678 = vpop.f32.mrf.mxu0
  %v6679 = vadd.f32 0.0, %v6678
  %v6680 = vpop.f32.mrf.mxu0
  %v6681 = vadd.f32 0.0, %v6680
  %6682 = vmatprep.mubr.bf16.mxu0 %v6338
  %6683 = vmatmul.mubr.bf16.gmra.mxu0 %v6337
  %v6684 = vpop.f32.mrf.mxu0
  %v6685 = vadd.f32 0.0, %v6684
  %v6686 = vpop.f32.mrf.mxu0
  %v6687 = vadd.f32 0.0, %v6686
  %v6688 = vpop.f32.mrf.mxu0
  %v6689 = vadd.f32 0.0, %v6688
  %v6690 = vpop.f32.mrf.mxu0
  %v6691 = vadd.f32 0.0, %v6690
  %6692 = vmatprep.mubr.bf16.mxu0 %v6340
  %6693 = vmatmul.mubr.bf16.gmra.mxu0 %v6339
  %v6694 = vpop.f32.mrf.mxu0
  %v6695 = vadd.f32 0.0, %v6694
  %v6696 = vpop.f32.mrf.mxu0
  %v6697 = vadd.f32 0.0, %v6696
  %v6698 = vpop.f32.mrf.mxu0
  %v6699 = vadd.f32 0.0, %v6698
  %v6700 = vpop.f32.mrf.mxu0
  %v6701 = vadd.f32 0.0, %v6700
  %6702 = vmatprep.mubr.bf16.mxu0 %v6342
  %6703 = vmatmul.mubr.bf16.gmra.mxu0 %v6341
  %v6704 = vpop.f32.mrf.mxu0
  %v6705 = vadd.f32 0.0, %v6704
  %v6706 = vpop.f32.mrf.mxu0
  %v6707 = vadd.f32 0.0, %v6706
  %v6708 = vpop.f32.mrf.mxu0
  %v6709 = vadd.f32 0.0, %v6708
  %v6710 = vpop.f32.mrf.mxu0
  %v6711 = vadd.f32 0.0, %v6710
  %6712 = vmatprep.mubr.bf16.mxu0 %v6344
  %6713 = vmatmul.mubr.bf16.gmra.mxu0 %v6343
  %v6714 = vpop.f32.mrf.mxu0
  %v6715 = vadd.f32 0.0, %v6714
  %v6716 = vpop.f32.mrf.mxu0
  %v6717 = vadd.f32 0.0, %v6716
  %v6718 = vpop.f32.mrf.mxu0
  %v6719 = vadd.f32 0.0, %v6718
  %v6720 = vpop.f32.mrf.mxu0
  %v6721 = vadd.f32 0.0, %v6720
  %6722 = vmatprep.mubr.bf16.mxu0 %v6346
  %6723 = vmatmul.mubr.bf16.gmra.mxu0 %v6345
  %v6724 = vpop.f32.mrf.mxu0
  %v6725 = vadd.f32 0.0, %v6724
  %v6726 = vpop.f32.mrf.mxu0
  %v6727 = vadd.f32 0.0, %v6726
  %v6728 = vpop.f32.mrf.mxu0
  %v6729 = vadd.f32 0.0, %v6728
  %v6730 = vpop.f32.mrf.mxu0
  %v6731 = vadd.f32 0.0, %v6730
  %6732 = vdwg.mxu0
  %v6733 = vpack.c.bf16 %v6579, %v6575
  %v6734 = vpack.c.bf16 %v6581, %v6577
  %v6735 = vpack.c.bf16 %v6589, %v6585
  %v6736 = vpack.c.bf16 %v6591, %v6587
  %v6737 = vpack.c.bf16 %v6599, %v6595
  %v6738 = vpack.c.bf16 %v6601, %v6597
  %v6739 = vpack.c.bf16 %v6609, %v6605
  %v6740 = vpack.c.bf16 %v6611, %v6607
  %v6741 = vpack.c.bf16 %v6619, %v6615
  %v6742 = vpack.c.bf16 %v6621, %v6617
  %v6743 = vpack.c.bf16 %v6629, %v6625
  %v6744 = vpack.c.bf16 %v6631, %v6627
  %v6745 = vpack.c.bf16 %v6639, %v6635
  %v6746 = vpack.c.bf16 %v6641, %v6637
  %v6747 = vpack.c.bf16 %v6649, %v6645
  %v6748 = vpack.c.bf16 %v6651, %v6647
  %v6749 = vpack.c.bf16 %v6659, %v6655
  %v6750 = vpack.c.bf16 %v6661, %v6657
  %v6751 = vpack.c.bf16 %v6669, %v6665
  %v6752 = vpack.c.bf16 %v6671, %v6667
  %v6753 = vpack.c.bf16 %v6679, %v6675
  %v6754 = vpack.c.bf16 %v6681, %v6677
  %v6755 = vpack.c.bf16 %v6689, %v6685
  %v6756 = vpack.c.bf16 %v6691, %v6687
  %v6757 = vpack.c.bf16 %v6699, %v6695
  %v6758 = vpack.c.bf16 %v6701, %v6697
  %v6759 = vpack.c.bf16 %v6709, %v6705
  %v6760 = vpack.c.bf16 %v6711, %v6707
  %v6761 = vpack.c.bf16 %v6719, %v6715
  %v6762 = vpack.c.bf16 %v6721, %v6717
  %v6763 = vpack.c.bf16 %v6729, %v6725
  %v6764 = vpack.c.bf16 %v6731, %v6727
  %v6765 = vadd.bf16 %v6733, %v4718
  %v6766 = vadd.bf16 %v6734, %v4719
  %v6767 = vadd.bf16 %v6735, %v4720
  %v6768 = vadd.bf16 %v6736, %v4721
  %v6769 = vadd.bf16 %v6737, %v4722
  %v6770 = vadd.bf16 %v6738, %v4723
  %v6771 = vadd.bf16 %v6739, %v4724
  %v6772 = vadd.bf16 %v6740, %v4725
  %v6773 = vadd.bf16 %v6741, %v4726
  %v6774 = vadd.bf16 %v6742, %v4727
  %v6775 = vadd.bf16 %v6743, %v4728
  %v6776 = vadd.bf16 %v6744, %v4729
  %v6777 = vadd.bf16 %v6745, %v4730
  %v6778 = vadd.bf16 %v6746, %v4731
  %v6779 = vadd.bf16 %v6747, %v4732
  %v6780 = vadd.bf16 %v6748, %v4733
  %v6781 = vadd.bf16 %v6749, %v4734
  %v6782 = vadd.bf16 %v6750, %v4735
  %v6783 = vadd.bf16 %v6751, %v4736
  %v6784 = vadd.bf16 %v6752, %v4737
  %v6785 = vadd.bf16 %v6753, %v4738
  %v6786 = vadd.bf16 %v6754, %v4739
  %v6787 = vadd.bf16 %v6755, %v4740
  %v6788 = vadd.bf16 %v6756, %v4741
  %v6789 = vadd.bf16 %v6757, %v4742
  %v6790 = vadd.bf16 %v6758, %v4743
  %v6791 = vadd.bf16 %v6759, %v4744
  %v6792 = vadd.bf16 %v6760, %v4745
  %v6793 = vadd.bf16 %v6761, %v4746
  %v6794 = vadd.bf16 %v6762, %v4747
  %v6795 = vadd.bf16 %v6763, %v4748
  %v6796 = vadd.bf16 %v6764, %v4749
  %v6798 = vpack.i.b16 %v4132, %v4132
  %v6800 = vlaneseq
  %v6801 = vshrl.u32 %v6800, 7
  %v6802 = vsub.s32 0, %v6801
  %v6803 = vrot.slane %v6798, %v6802
  %v6805 = vpack.i.b16 %v4133, %v4133
  %v6807 = vlaneseq
  %v6808 = vshrl.u32 %v6807, 7
  %v6809 = vsub.s32 0, %v6808
  %v6810 = vrot.slane %v6805, %v6809
  %v6811 = vadd.bf16 %v6765, %v6803
  %v6812 = vadd.bf16 %v6766, %v6810
  %v6813 = vadd.bf16 %v6767, %v6803
  %v6814 = vadd.bf16 %v6768, %v6810
  %v6815 = vadd.bf16 %v6769, %v6803
  %v6816 = vadd.bf16 %v6770, %v6810
  %v6817 = vadd.bf16 %v6771, %v6803
  %v6818 = vadd.bf16 %v6772, %v6810
  %v6819 = vadd.bf16 %v6773, %v6803
  %v6820 = vadd.bf16 %v6774, %v6810
  %v6821 = vadd.bf16 %v6775, %v6803
  %v6822 = vadd.bf16 %v6776, %v6810
  %v6823 = vadd.bf16 %v6777, %v6803
  %v6824 = vadd.bf16 %v6778, %v6810
  %v6825 = vadd.bf16 %v6779, %v6803
  %v6826 = vadd.bf16 %v6780, %v6810
  %v6827 = vadd.bf16 %v6781, %v6803
  %v6828 = vadd.bf16 %v6782, %v6810
  %v6829 = vadd.bf16 %v6783, %v6803
  %v6830 = vadd.bf16 %v6784, %v6810
  %v6831 = vadd.bf16 %v6785, %v6803
  %v6832 = vadd.bf16 %v6786, %v6810
  %v6833 = vadd.bf16 %v6787, %v6803
  %v6834 = vadd.bf16 %v6788, %v6810
  %v6835 = vadd.bf16 %v6789, %v6803
  %v6836 = vadd.bf16 %v6790, %v6810
  %v6837 = vadd.bf16 %v6791, %v6803
  %v6838 = vadd.bf16 %v6792, %v6810
  %v6839 = vadd.bf16 %v6793, %v6803
  %v6840 = vadd.bf16 %v6794, %v6810
  %v6841 = vadd.bf16 %v6795, %v6803
  %v6842 = vadd.bf16 %v6796, %v6810
  %v6843 = vmax.bf16 %v6811, 0
  %v6844 = vmax.bf16 %v6812, 0
  %v6845 = vmax.bf16 %v6813, 0
  %v6846 = vmax.bf16 %v6814, 0
  %v6847 = vmax.bf16 %v6815, 0
  %v6848 = vmax.bf16 %v6816, 0
  %v6849 = vmax.bf16 %v6817, 0
  %v6850 = vmax.bf16 %v6818, 0
  %v6851 = vmax.bf16 %v6819, 0
  %v6852 = vmax.bf16 %v6820, 0
  %v6853 = vmax.bf16 %v6821, 0
  %v6854 = vmax.bf16 %v6822, 0
  %v6855 = vmax.bf16 %v6823, 0
  %v6856 = vmax.bf16 %v6824, 0
  %v6857 = vmax.bf16 %v6825, 0
  %v6858 = vmax.bf16 %v6826, 0
  %v6859 = vmax.bf16 %v6827, 0
  %v6860 = vmax.bf16 %v6828, 0
  %v6861 = vmax.bf16 %v6829, 0
  %v6862 = vmax.bf16 %v6830, 0
  %v6863 = vmax.bf16 %v6831, 0
  %v6864 = vmax.bf16 %v6832, 0
  %v6865 = vmax.bf16 %v6833, 0
  %v6866 = vmax.bf16 %v6834, 0
  %v6867 = vmax.bf16 %v6835, 0
  %v6868 = vmax.bf16 %v6836, 0
  %v6869 = vmax.bf16 %v6837, 0
  %v6870 = vmax.bf16 %v6838, 0
  %v6871 = vmax.bf16 %v6839, 0
  %v6872 = vmax.bf16 %v6840, 0
  %v6873 = vmax.bf16 %v6841, 0
  %v6874 = vmax.bf16 %v6842, 0
  %s6875 = scalar_lea.vmem %s3, 1024
  %v6876 = vld [vmem:[%s6875] sm:$0xff]
  %v6877 = vld [vmem:[%s6875 + $0x8] sm:$0xff]
  %v6878 = vld [vmem:[%s6875 + $0x10] sm:$0xff]
  %v6879 = vld [vmem:[%s6875 + $0x18] sm:$0xff]
  %v6880 = vld [vmem:[%s6875 + $0x20] sm:$0xff]
  %v6881 = vld [vmem:[%s6875 + $0x28] sm:$0xff]
  %v6882 = vld [vmem:[%s6875 + $0x30] sm:$0xff]
  %v6883 = vld [vmem:[%s6875 + $0x38] sm:$0xff]
  %v6884 = vld [vmem:[%s6875 + $0x40] sm:$0xff]
  %v6885 = vld [vmem:[%s6875 + $0x48] sm:$0xff]
  %v6886 = vld [vmem:[%s6875 + $0x50] sm:$0xff]
  %v6887 = vld [vmem:[%s6875 + $0x58] sm:$0xff]
  %v6888 = vld [vmem:[%s6875 + $0x60] sm:$0xff]
  %v6889 = vld [vmem:[%s6875 + $0x68] sm:$0xff]
  %v6890 = vld [vmem:[%s6875 + $0x70] sm:$0xff]
  %v6891 = vld [vmem:[%s6875 + $0x78] sm:$0xff]
  %v6892 = vld [vmem:[%s6875 + $0x80] sm:$0xff]
  %v6893 = vld [vmem:[%s6875 + $0x88] sm:$0xff]
  %v6894 = vld [vmem:[%s6875 + $0x90] sm:$0xff]
  %v6895 = vld [vmem:[%s6875 + $0x98] sm:$0xff]
  %v6896 = vld [vmem:[%s6875 + $0xa0] sm:$0xff]
  %v6897 = vld [vmem:[%s6875 + $0xa8] sm:$0xff]
  %v6898 = vld [vmem:[%s6875 + $0xb0] sm:$0xff]
  %v6899 = vld [vmem:[%s6875 + $0xb8] sm:$0xff]
  %v6900 = vld [vmem:[%s6875 + $0xc0] sm:$0xff]
  %v6901 = vld [vmem:[%s6875 + $0xc8] sm:$0xff]
  %v6902 = vld [vmem:[%s6875 + $0xd0] sm:$0xff]
  %v6903 = vld [vmem:[%s6875 + $0xd8] sm:$0xff]
  %v6904 = vld [vmem:[%s6875 + $0xe0] sm:$0xff]
  %v6905 = vld [vmem:[%s6875 + $0xe8] sm:$0xff]
  %v6906 = vld [vmem:[%s6875 + $0xf0] sm:$0xff]
  %v6907 = vld [vmem:[%s6875 + $0xf8] sm:$0xff]
  %v6940 = vunpack.c.l.b16 %v6876
  %v6941 = vunpack.c.h.b16 %v6876
  %v6942 = vunpack.c.l.b16 %v6877
  %v6943 = vunpack.c.h.b16 %v6877
  %v6944 = vunpack.c.l.b16 %v6878
  %v6945 = vunpack.c.h.b16 %v6878
  %v6946 = vunpack.c.l.b16 %v6879
  %v6947 = vunpack.c.h.b16 %v6879
  %v6948 = vunpack.c.l.b16 %v6880
  %v6949 = vunpack.c.h.b16 %v6880
  %v6950 = vunpack.c.l.b16 %v6881
  %v6951 = vunpack.c.h.b16 %v6881
  %v6952 = vunpack.c.l.b16 %v6882
  %v6953 = vunpack.c.h.b16 %v6882
  %v6954 = vunpack.c.l.b16 %v6883
  %v6955 = vunpack.c.h.b16 %v6883
  %v6956 = vunpack.c.l.b16 %v6884
  %v6957 = vunpack.c.h.b16 %v6884
  %v6958 = vunpack.c.l.b16 %v6885
  %v6959 = vunpack.c.h.b16 %v6885
  %v6960 = vunpack.c.l.b16 %v6886
  %v6961 = vunpack.c.h.b16 %v6886
  %v6962 = vunpack.c.l.b16 %v6887
  %v6963 = vunpack.c.h.b16 %v6887
  %v6964 = vunpack.c.l.b16 %v6888
  %v6965 = vunpack.c.h.b16 %v6888
  %v6966 = vunpack.c.l.b16 %v6889
  %v6967 = vunpack.c.h.b16 %v6889
  %v6968 = vunpack.c.l.b16 %v6890
  %v6969 = vunpack.c.h.b16 %v6890
  %v6970 = vunpack.c.l.b16 %v6891
  %v6971 = vunpack.c.h.b16 %v6891
  %v6972 = vunpack.c.l.b16 %v6892
  %v6973 = vunpack.c.h.b16 %v6892
  %v6974 = vunpack.c.l.b16 %v6893
  %v6975 = vunpack.c.h.b16 %v6893
  %v6976 = vunpack.c.l.b16 %v6894
  %v6977 = vunpack.c.h.b16 %v6894
  %v6978 = vunpack.c.l.b16 %v6895
  %v6979 = vunpack.c.h.b16 %v6895
  %v6980 = vunpack.c.l.b16 %v6896
  %v6981 = vunpack.c.h.b16 %v6896
  %v6982 = vunpack.c.l.b16 %v6897
  %v6983 = vunpack.c.h.b16 %v6897
  %v6984 = vunpack.c.l.b16 %v6898
  %v6985 = vunpack.c.h.b16 %v6898
  %v6986 = vunpack.c.l.b16 %v6899
  %v6987 = vunpack.c.h.b16 %v6899
  %v6988 = vunpack.c.l.b16 %v6900
  %v6989 = vunpack.c.h.b16 %v6900
  %v6990 = vunpack.c.l.b16 %v6901
  %v6991 = vunpack.c.h.b16 %v6901
  %v6992 = vunpack.c.l.b16 %v6902
  %v6993 = vunpack.c.h.b16 %v6902
  %v6994 = vunpack.c.l.b16 %v6903
  %v6995 = vunpack.c.h.b16 %v6903
  %v6996 = vunpack.c.l.b16 %v6904
  %v6997 = vunpack.c.h.b16 %v6904
  %v6998 = vunpack.c.l.b16 %v6905
  %v6999 = vunpack.c.h.b16 %v6905
  %v7000 = vunpack.c.l.b16 %v6906
  %v7001 = vunpack.c.h.b16 %v6906
  %v7002 = vunpack.c.l.b16 %v6907
  %v7003 = vunpack.c.h.b16 %v6907
  %v7004 = vpack.c.b16 %v6942, %v6940
  %v7005 = vpack.c.b16 %v6943, %v6941
  %v7006 = vpack.c.b16 %v6946, %v6944
  %v7007 = vpack.c.b16 %v6947, %v6945
  %v7008 = vpack.c.b16 %v6950, %v6948
  %v7009 = vpack.c.b16 %v6951, %v6949
  %v7010 = vpack.c.b16 %v6954, %v6952
  %v7011 = vpack.c.b16 %v6955, %v6953
  %v7012 = vpack.c.b16 %v6958, %v6956
  %v7013 = vpack.c.b16 %v6959, %v6957
  %v7014 = vpack.c.b16 %v6962, %v6960
  %v7015 = vpack.c.b16 %v6963, %v6961
  %v7016 = vpack.c.b16 %v6966, %v6964
  %v7017 = vpack.c.b16 %v6967, %v6965
  %v7018 = vpack.c.b16 %v6970, %v6968
  %v7019 = vpack.c.b16 %v6971, %v6969
  %v7020 = vpack.c.b16 %v6974, %v6972
  %v7021 = vpack.c.b16 %v6975, %v6973
  %v7022 = vpack.c.b16 %v6978, %v6976
  %v7023 = vpack.c.b16 %v6979, %v6977
  %v7024 = vpack.c.b16 %v6982, %v6980
  %v7025 = vpack.c.b16 %v6983, %v6981
  %v7026 = vpack.c.b16 %v6986, %v6984
  %v7027 = vpack.c.b16 %v6987, %v6985
  %v7028 = vpack.c.b16 %v6990, %v6988
  %v7029 = vpack.c.b16 %v6991, %v6989
  %v7030 = vpack.c.b16 %v6994, %v6992
  %v7031 = vpack.c.b16 %v6995, %v6993
  %v7032 = vpack.c.b16 %v6998, %v6996
  %v7033 = vpack.c.b16 %v6999, %v6997
  %v7034 = vpack.c.b16 %v7002, %v7000
  %v7035 = vpack.c.b16 %v7003, %v7001
  %7068 = vmatprep.subr.bf16.mxu0 %v7019
  %7069 = vmatpush1.bf16.msra.mxu0 %v7018
  %7070 = vmatprep.subr.bf16.mxu0 %v7017
  %7071 = vmatpush1.bf16.msra.mxu0 %v7016
  %7072 = vmatprep.subr.bf16.mxu0 %v7015
  %7073 = vmatpush1.bf16.msra.mxu0 %v7014
  %7074 = vmatprep.subr.bf16.mxu0 %v7013
  %7075 = vmatpush1.bf16.msra.mxu0 %v7012
  %7076 = vmatprep.subr.bf16.mxu0 %v7011
  %7077 = vmatpush1.bf16.msra.mxu0 %v7010
  %7078 = vmatprep.subr.bf16.mxu0 %v7009
  %7079 = vmatpush1.bf16.msra.mxu0 %v7008
  %7080 = vmatprep.subr.bf16.mxu0 %v7007
  %7081 = vmatpush1.bf16.msra.mxu0 %v7006
  %7082 = vmatprep.subr.bf16.mxu0 %v7005
  %7083 = vmatpush1.bf16.msra.mxu0 %v7004
  %7084 = vmatprep.subr.bf16.mxu0 %v7035
  %7085 = vmatpush2.bf16.msra.mxu0 %v7034
  %7086 = vmatprep.subr.bf16.mxu0 %v7033
  %7087 = vmatpush2.bf16.msra.mxu0 %v7032
  %7088 = vmatprep.subr.bf16.mxu0 %v7031
  %7089 = vmatpush2.bf16.msra.mxu0 %v7030
  %7090 = vmatprep.subr.bf16.mxu0 %v7029
  %7091 = vmatpush2.bf16.msra.mxu0 %v7028
  %7092 = vmatprep.subr.bf16.mxu0 %v7027
  %7093 = vmatpush2.bf16.msra.mxu0 %v7026
  %7094 = vmatprep.subr.bf16.mxu0 %v7025
  %7095 = vmatpush2.bf16.msra.mxu0 %v7024
  %7096 = vmatprep.subr.bf16.mxu0 %v7023
  %7097 = vmatpush2.bf16.msra.mxu0 %v7022
  %7098 = vmatprep.subr.bf16.mxu0 %v7021
  %7099 = vmatpush2.bf16.msra.mxu0 %v7020
  %7100 = vmatprep.mubr.bf16.mxu0 %v6844
  %7101 = vmatmul.mubr.bf16.gmra.mxu0 %v6843
  %v7102 = vpop.f32.mrf.mxu0
  %v7103 = vadd.f32 0.0, %v7102
  %v7104 = vpop.f32.mrf.mxu0
  %v7105 = vadd.f32 0.0, %v7104
  %v7106 = vpop.f32.mrf.mxu0
  %v7107 = vadd.f32 0.0, %v7106
  %v7108 = vpop.f32.mrf.mxu0
  %v7109 = vadd.f32 0.0, %v7108
  %7110 = vmatprep.mubr.bf16.mxu0 %v6846
  %7111 = vmatmul.mubr.bf16.gmra.mxu0 %v6845
  %v7112 = vpop.f32.mrf.mxu0
  %v7113 = vadd.f32 0.0, %v7112
  %v7114 = vpop.f32.mrf.mxu0
  %v7115 = vadd.f32 0.0, %v7114
  %v7116 = vpop.f32.mrf.mxu0
  %v7117 = vadd.f32 0.0, %v7116
  %v7118 = vpop.f32.mrf.mxu0
  %v7119 = vadd.f32 0.0, %v7118
  %7120 = vmatprep.mubr.bf16.mxu0 %v6848
  %7121 = vmatmul.mubr.bf16.gmra.mxu0 %v6847
  %v7122 = vpop.f32.mrf.mxu0
  %v7123 = vadd.f32 0.0, %v7122
  %v7124 = vpop.f32.mrf.mxu0
  %v7125 = vadd.f32 0.0, %v7124
  %v7126 = vpop.f32.mrf.mxu0
  %v7127 = vadd.f32 0.0, %v7126
  %v7128 = vpop.f32.mrf.mxu0
  %v7129 = vadd.f32 0.0, %v7128
  %7130 = vmatprep.mubr.bf16.mxu0 %v6850
  %7131 = vmatmul.mubr.bf16.gmra.mxu0 %v6849
  %v7132 = vpop.f32.mrf.mxu0
  %v7133 = vadd.f32 0.0, %v7132
  %v7134 = vpop.f32.mrf.mxu0
  %v7135 = vadd.f32 0.0, %v7134
  %v7136 = vpop.f32.mrf.mxu0
  %v7137 = vadd.f32 0.0, %v7136
  %v7138 = vpop.f32.mrf.mxu0
  %v7139 = vadd.f32 0.0, %v7138
  %7140 = vmatprep.mubr.bf16.mxu0 %v6852
  %7141 = vmatmul.mubr.bf16.gmra.mxu0 %v6851
  %v7142 = vpop.f32.mrf.mxu0
  %v7143 = vadd.f32 0.0, %v7142
  %v7144 = vpop.f32.mrf.mxu0
  %v7145 = vadd.f32 0.0, %v7144
  %v7146 = vpop.f32.mrf.mxu0
  %v7147 = vadd.f32 0.0, %v7146
  %v7148 = vpop.f32.mrf.mxu0
  %v7149 = vadd.f32 0.0, %v7148
  %7150 = vmatprep.mubr.bf16.mxu0 %v6854
  %7151 = vmatmul.mubr.bf16.gmra.mxu0 %v6853
  %v7152 = vpop.f32.mrf.mxu0
  %v7153 = vadd.f32 0.0, %v7152
  %v7154 = vpop.f32.mrf.mxu0
  %v7155 = vadd.f32 0.0, %v7154
  %v7156 = vpop.f32.mrf.mxu0
  %v7157 = vadd.f32 0.0, %v7156
  %v7158 = vpop.f32.mrf.mxu0
  %v7159 = vadd.f32 0.0, %v7158
  %7160 = vmatprep.mubr.bf16.mxu0 %v6856
  %7161 = vmatmul.mubr.bf16.gmra.mxu0 %v6855
  %v7162 = vpop.f32.mrf.mxu0
  %v7163 = vadd.f32 0.0, %v7162
  %v7164 = vpop.f32.mrf.mxu0
  %v7165 = vadd.f32 0.0, %v7164
  %v7166 = vpop.f32.mrf.mxu0
  %v7167 = vadd.f32 0.0, %v7166
  %v7168 = vpop.f32.mrf.mxu0
  %v7169 = vadd.f32 0.0, %v7168
  %7170 = vmatprep.mubr.bf16.mxu0 %v6858
  %7171 = vmatmul.mubr.bf16.gmra.mxu0 %v6857
  %v7172 = vpop.f32.mrf.mxu0
  %v7173 = vadd.f32 0.0, %v7172
  %v7174 = vpop.f32.mrf.mxu0
  %v7175 = vadd.f32 0.0, %v7174
  %v7176 = vpop.f32.mrf.mxu0
  %v7177 = vadd.f32 0.0, %v7176
  %v7178 = vpop.f32.mrf.mxu0
  %v7179 = vadd.f32 0.0, %v7178
  %7180 = vmatprep.mubr.bf16.mxu0 %v6860
  %7181 = vmatmul.mubr.bf16.gmra.mxu0 %v6859
  %v7182 = vpop.f32.mrf.mxu0
  %v7183 = vadd.f32 0.0, %v7182
  %v7184 = vpop.f32.mrf.mxu0
  %v7185 = vadd.f32 0.0, %v7184
  %v7186 = vpop.f32.mrf.mxu0
  %v7187 = vadd.f32 0.0, %v7186
  %v7188 = vpop.f32.mrf.mxu0
  %v7189 = vadd.f32 0.0, %v7188
  %7190 = vmatprep.mubr.bf16.mxu0 %v6862
  %7191 = vmatmul.mubr.bf16.gmra.mxu0 %v6861
  %v7192 = vpop.f32.mrf.mxu0
  %v7193 = vadd.f32 0.0, %v7192
  %v7194 = vpop.f32.mrf.mxu0
  %v7195 = vadd.f32 0.0, %v7194
  %v7196 = vpop.f32.mrf.mxu0
  %v7197 = vadd.f32 0.0, %v7196
  %v7198 = vpop.f32.mrf.mxu0
  %v7199 = vadd.f32 0.0, %v7198
  %7200 = vmatprep.mubr.bf16.mxu0 %v6864
  %7201 = vmatmul.mubr.bf16.gmra.mxu0 %v6863
  %v7202 = vpop.f32.mrf.mxu0
  %v7203 = vadd.f32 0.0, %v7202
  %v7204 = vpop.f32.mrf.mxu0
  %v7205 = vadd.f32 0.0, %v7204
  %v7206 = vpop.f32.mrf.mxu0
  %v7207 = vadd.f32 0.0, %v7206
  %v7208 = vpop.f32.mrf.mxu0
  %v7209 = vadd.f32 0.0, %v7208
  %7210 = vmatprep.mubr.bf16.mxu0 %v6866
  %7211 = vmatmul.mubr.bf16.gmra.mxu0 %v6865
  %v7212 = vpop.f32.mrf.mxu0
  %v7213 = vadd.f32 0.0, %v7212
  %v7214 = vpop.f32.mrf.mxu0
  %v7215 = vadd.f32 0.0, %v7214
  %v7216 = vpop.f32.mrf.mxu0
  %v7217 = vadd.f32 0.0, %v7216
  %v7218 = vpop.f32.mrf.mxu0
  %v7219 = vadd.f32 0.0, %v7218
  %7220 = vmatprep.mubr.bf16.mxu0 %v6868
  %7221 = vmatmul.mubr.bf16.gmra.mxu0 %v6867
  %v7222 = vpop.f32.mrf.mxu0
  %v7223 = vadd.f32 0.0, %v7222
  %v7224 = vpop.f32.mrf.mxu0
  %v7225 = vadd.f32 0.0, %v7224
  %v7226 = vpop.f32.mrf.mxu0
  %v7227 = vadd.f32 0.0, %v7226
  %v7228 = vpop.f32.mrf.mxu0
  %v7229 = vadd.f32 0.0, %v7228
  %7230 = vmatprep.mubr.bf16.mxu0 %v6870
  %7231 = vmatmul.mubr.bf16.gmra.mxu0 %v6869
  %v7232 = vpop.f32.mrf.mxu0
  %v7233 = vadd.f32 0.0, %v7232
  %v7234 = vpop.f32.mrf.mxu0
  %v7235 = vadd.f32 0.0, %v7234
  %v7236 = vpop.f32.mrf.mxu0
  %v7237 = vadd.f32 0.0, %v7236
  %v7238 = vpop.f32.mrf.mxu0
  %v7239 = vadd.f32 0.0, %v7238
  %7240 = vmatprep.mubr.bf16.mxu0 %v6872
  %7241 = vmatmul.mubr.bf16.gmra.mxu0 %v6871
  %v7242 = vpop.f32.mrf.mxu0
  %v7243 = vadd.f32 0.0, %v7242
  %v7244 = vpop.f32.mrf.mxu0
  %v7245 = vadd.f32 0.0, %v7244
  %v7246 = vpop.f32.mrf.mxu0
  %v7247 = vadd.f32 0.0, %v7246
  %v7248 = vpop.f32.mrf.mxu0
  %v7249 = vadd.f32 0.0, %v7248
  %7250 = vmatprep.mubr.bf16.mxu0 %v6874
  %7251 = vmatmul.mubr.bf16.gmra.mxu0 %v6873
  %v7252 = vpop.f32.mrf.mxu0
  %v7253 = vadd.f32 0.0, %v7252
  %v7254 = vpop.f32.mrf.mxu0
  %v7255 = vadd.f32 0.0, %v7254
  %v7256 = vpop.f32.mrf.mxu0
  %v7257 = vadd.f32 0.0, %v7256
  %v7258 = vpop.f32.mrf.mxu0
  %v7259 = vadd.f32 0.0, %v7258
  %7260 = vdwg.mxu0
  %v7261 = vpack.c.bf16 %v7107, %v7103
  %v7262 = vpack.c.bf16 %v7109, %v7105
  %v7263 = vpack.c.bf16 %v7117, %v7113
  %v7264 = vpack.c.bf16 %v7119, %v7115
  %v7265 = vpack.c.bf16 %v7127, %v7123
  %v7266 = vpack.c.bf16 %v7129, %v7125
  %v7267 = vpack.c.bf16 %v7137, %v7133
  %v7268 = vpack.c.bf16 %v7139, %v7135
  %v7269 = vpack.c.bf16 %v7147, %v7143
  %v7270 = vpack.c.bf16 %v7149, %v7145
  %v7271 = vpack.c.bf16 %v7157, %v7153
  %v7272 = vpack.c.bf16 %v7159, %v7155
  %v7273 = vpack.c.bf16 %v7167, %v7163
  %v7274 = vpack.c.bf16 %v7169, %v7165
  %v7275 = vpack.c.bf16 %v7177, %v7173
  %v7276 = vpack.c.bf16 %v7179, %v7175
  %v7277 = vpack.c.bf16 %v7187, %v7183
  %v7278 = vpack.c.bf16 %v7189, %v7185
  %v7279 = vpack.c.bf16 %v7197, %v7193
  %v7280 = vpack.c.bf16 %v7199, %v7195
  %v7281 = vpack.c.bf16 %v7207, %v7203
  %v7282 = vpack.c.bf16 %v7209, %v7205
  %v7283 = vpack.c.bf16 %v7217, %v7213
  %v7284 = vpack.c.bf16 %v7219, %v7215
  %v7285 = vpack.c.bf16 %v7227, %v7223
  %v7286 = vpack.c.bf16 %v7229, %v7225
  %v7287 = vpack.c.bf16 %v7237, %v7233
  %v7288 = vpack.c.bf16 %v7239, %v7235
  %v7289 = vpack.c.bf16 %v7247, %v7243
  %v7290 = vpack.c.bf16 %v7249, %v7245
  %v7291 = vpack.c.bf16 %v7257, %v7253
  %v7292 = vpack.c.bf16 %v7259, %v7255
  %v7294 = vpack.i.b16 %v4134, %v4134
  %v7296 = vlaneseq
  %v7297 = vshrl.u32 %v7296, 7
  %v7298 = vsub.s32 0, %v7297
  %v7299 = vrot.slane %v7294, %v7298
  %v7301 = vpack.i.b16 %v4135, %v4135
  %v7303 = vlaneseq
  %v7304 = vshrl.u32 %v7303, 7
  %v7305 = vsub.s32 0, %v7304
  %v7306 = vrot.slane %v7301, %v7305
  %v7307 = vadd.bf16 %v7261, %v7299
  %v7308 = vadd.bf16 %v7262, %v7306
  %v7309 = vadd.bf16 %v7263, %v7299
  %v7310 = vadd.bf16 %v7264, %v7306
  %v7311 = vadd.bf16 %v7265, %v7299
  %v7312 = vadd.bf16 %v7266, %v7306
  %v7313 = vadd.bf16 %v7267, %v7299
  %v7314 = vadd.bf16 %v7268, %v7306
  %v7315 = vadd.bf16 %v7269, %v7299
  %v7316 = vadd.bf16 %v7270, %v7306
  %v7317 = vadd.bf16 %v7271, %v7299
  %v7318 = vadd.bf16 %v7272, %v7306
  %v7319 = vadd.bf16 %v7273, %v7299
  %v7320 = vadd.bf16 %v7274, %v7306
  %v7321 = vadd.bf16 %v7275, %v7299
  %v7322 = vadd.bf16 %v7276, %v7306
  %v7323 = vadd.bf16 %v7277, %v7299
  %v7324 = vadd.bf16 %v7278, %v7306
  %v7325 = vadd.bf16 %v7279, %v7299
  %v7326 = vadd.bf16 %v7280, %v7306
  %v7327 = vadd.bf16 %v7281, %v7299
  %v7328 = vadd.bf16 %v7282, %v7306
  %v7329 = vadd.bf16 %v7283, %v7299
  %v7330 = vadd.bf16 %v7284, %v7306
  %v7331 = vadd.bf16 %v7285, %v7299
  %v7332 = vadd.bf16 %v7286, %v7306
  %v7333 = vadd.bf16 %v7287, %v7299
  %v7334 = vadd.bf16 %v7288, %v7306
  %v7335 = vadd.bf16 %v7289, %v7299
  %v7336 = vadd.bf16 %v7290, %v7306
  %v7337 = vadd.bf16 %v7291, %v7299
  %v7338 = vadd.bf16 %v7292, %v7306
  %v7339 = vmax.bf16 %v7307, 0
  %v7340 = vmax.bf16 %v7308, 0
  %v7341 = vmax.bf16 %v7309, 0
  %v7342 = vmax.bf16 %v7310, 0
  %v7343 = vmax.bf16 %v7311, 0
  %v7344 = vmax.bf16 %v7312, 0
  %v7345 = vmax.bf16 %v7313, 0
  %v7346 = vmax.bf16 %v7314, 0
  %v7347 = vmax.bf16 %v7315, 0
  %v7348 = vmax.bf16 %v7316, 0
  %v7349 = vmax.bf16 %v7317, 0
  %v7350 = vmax.bf16 %v7318, 0
  %v7351 = vmax.bf16 %v7319, 0
  %v7352 = vmax.bf16 %v7320, 0
  %v7353 = vmax.bf16 %v7321, 0
  %v7354 = vmax.bf16 %v7322, 0
  %v7355 = vmax.bf16 %v7323, 0
  %v7356 = vmax.bf16 %v7324, 0
  %v7357 = vmax.bf16 %v7325, 0
  %v7358 = vmax.bf16 %v7326, 0
  %v7359 = vmax.bf16 %v7327, 0
  %v7360 = vmax.bf16 %v7328, 0
  %v7361 = vmax.bf16 %v7329, 0
  %v7362 = vmax.bf16 %v7330, 0
  %v7363 = vmax.bf16 %v7331, 0
  %v7364 = vmax.bf16 %v7332, 0
  %v7365 = vmax.bf16 %v7333, 0
  %v7366 = vmax.bf16 %v7334, 0
  %v7367 = vmax.bf16 %v7335, 0
  %v7368 = vmax.bf16 %v7336, 0
  %v7369 = vmax.bf16 %v7337, 0
  %v7370 = vmax.bf16 %v7338, 0
  %s7371 = scalar_lea.vmem %s3, 1280
  %v7372 = vld [vmem:[%s7371] sm:$0xff]
  %v7373 = vld [vmem:[%s7371 + $0x8] sm:$0xff]
  %v7374 = vld [vmem:[%s7371 + $0x10] sm:$0xff]
  %v7375 = vld [vmem:[%s7371 + $0x18] sm:$0xff]
  %v7376 = vld [vmem:[%s7371 + $0x20] sm:$0xff]
  %v7377 = vld [vmem:[%s7371 + $0x28] sm:$0xff]
  %v7378 = vld [vmem:[%s7371 + $0x30] sm:$0xff]
  %v7379 = vld [vmem:[%s7371 + $0x38] sm:$0xff]
  %v7380 = vld [vmem:[%s7371 + $0x40] sm:$0xff]
  %v7381 = vld [vmem:[%s7371 + $0x48] sm:$0xff]
  %v7382 = vld [vmem:[%s7371 + $0x50] sm:$0xff]
  %v7383 = vld [vmem:[%s7371 + $0x58] sm:$0xff]
  %v7384 = vld [vmem:[%s7371 + $0x60] sm:$0xff]
  %v7385 = vld [vmem:[%s7371 + $0x68] sm:$0xff]
  %v7386 = vld [vmem:[%s7371 + $0x70] sm:$0xff]
  %v7387 = vld [vmem:[%s7371 + $0x78] sm:$0xff]
  %v7388 = vld [vmem:[%s7371 + $0x80] sm:$0xff]
  %v7389 = vld [vmem:[%s7371 + $0x88] sm:$0xff]
  %v7390 = vld [vmem:[%s7371 + $0x90] sm:$0xff]
  %v7391 = vld [vmem:[%s7371 + $0x98] sm:$0xff]
  %v7392 = vld [vmem:[%s7371 + $0xa0] sm:$0xff]
  %v7393 = vld [vmem:[%s7371 + $0xa8] sm:$0xff]
  %v7394 = vld [vmem:[%s7371 + $0xb0] sm:$0xff]
  %v7395 = vld [vmem:[%s7371 + $0xb8] sm:$0xff]
  %v7396 = vld [vmem:[%s7371 + $0xc0] sm:$0xff]
  %v7397 = vld [vmem:[%s7371 + $0xc8] sm:$0xff]
  %v7398 = vld [vmem:[%s7371 + $0xd0] sm:$0xff]
  %v7399 = vld [vmem:[%s7371 + $0xd8] sm:$0xff]
  %v7400 = vld [vmem:[%s7371 + $0xe0] sm:$0xff]
  %v7401 = vld [vmem:[%s7371 + $0xe8] sm:$0xff]
  %v7402 = vld [vmem:[%s7371 + $0xf0] sm:$0xff]
  %v7403 = vld [vmem:[%s7371 + $0xf8] sm:$0xff]
  %v7436 = vunpack.c.l.b16 %v7372
  %v7437 = vunpack.c.h.b16 %v7372
  %v7438 = vunpack.c.l.b16 %v7373
  %v7439 = vunpack.c.h.b16 %v7373
  %v7440 = vunpack.c.l.b16 %v7374
  %v7441 = vunpack.c.h.b16 %v7374
  %v7442 = vunpack.c.l.b16 %v7375
  %v7443 = vunpack.c.h.b16 %v7375
  %v7444 = vunpack.c.l.b16 %v7376
  %v7445 = vunpack.c.h.b16 %v7376
  %v7446 = vunpack.c.l.b16 %v7377
  %v7447 = vunpack.c.h.b16 %v7377
  %v7448 = vunpack.c.l.b16 %v7378
  %v7449 = vunpack.c.h.b16 %v7378
  %v7450 = vunpack.c.l.b16 %v7379
  %v7451 = vunpack.c.h.b16 %v7379
  %v7452 = vunpack.c.l.b16 %v7380
  %v7453 = vunpack.c.h.b16 %v7380
  %v7454 = vunpack.c.l.b16 %v7381
  %v7455 = vunpack.c.h.b16 %v7381
  %v7456 = vunpack.c.l.b16 %v7382
  %v7457 = vunpack.c.h.b16 %v7382
  %v7458 = vunpack.c.l.b16 %v7383
  %v7459 = vunpack.c.h.b16 %v7383
  %v7460 = vunpack.c.l.b16 %v7384
  %v7461 = vunpack.c.h.b16 %v7384
  %v7462 = vunpack.c.l.b16 %v7385
  %v7463 = vunpack.c.h.b16 %v7385
  %v7464 = vunpack.c.l.b16 %v7386
  %v7465 = vunpack.c.h.b16 %v7386
  %v7466 = vunpack.c.l.b16 %v7387
  %v7467 = vunpack.c.h.b16 %v7387
  %v7468 = vunpack.c.l.b16 %v7388
  %v7469 = vunpack.c.h.b16 %v7388
  %v7470 = vunpack.c.l.b16 %v7389
  %v7471 = vunpack.c.h.b16 %v7389
  %v7472 = vunpack.c.l.b16 %v7390
  %v7473 = vunpack.c.h.b16 %v7390
  %v7474 = vunpack.c.l.b16 %v7391
  %v7475 = vunpack.c.h.b16 %v7391
  %v7476 = vunpack.c.l.b16 %v7392
  %v7477 = vunpack.c.h.b16 %v7392
  %v7478 = vunpack.c.l.b16 %v7393
  %v7479 = vunpack.c.h.b16 %v7393
  %v7480 = vunpack.c.l.b16 %v7394
  %v7481 = vunpack.c.h.b16 %v7394
  %v7482 = vunpack.c.l.b16 %v7395
  %v7483 = vunpack.c.h.b16 %v7395
  %v7484 = vunpack.c.l.b16 %v7396
  %v7485 = vunpack.c.h.b16 %v7396
  %v7486 = vunpack.c.l.b16 %v7397
  %v7487 = vunpack.c.h.b16 %v7397
  %v7488 = vunpack.c.l.b16 %v7398
  %v7489 = vunpack.c.h.b16 %v7398
  %v7490 = vunpack.c.l.b16 %v7399
  %v7491 = vunpack.c.h.b16 %v7399
  %v7492 = vunpack.c.l.b16 %v7400
  %v7493 = vunpack.c.h.b16 %v7400
  %v7494 = vunpack.c.l.b16 %v7401
  %v7495 = vunpack.c.h.b16 %v7401
  %v7496 = vunpack.c.l.b16 %v7402
  %v7497 = vunpack.c.h.b16 %v7402
  %v7498 = vunpack.c.l.b16 %v7403
  %v7499 = vunpack.c.h.b16 %v7403
  %v7500 = vpack.c.b16 %v7438, %v7436
  %v7501 = vpack.c.b16 %v7439, %v7437
  %v7502 = vpack.c.b16 %v7442, %v7440
  %v7503 = vpack.c.b16 %v7443, %v7441
  %v7504 = vpack.c.b16 %v7446, %v7444
  %v7505 = vpack.c.b16 %v7447, %v7445
  %v7506 = vpack.c.b16 %v7450, %v7448
  %v7507 = vpack.c.b16 %v7451, %v7449
  %v7508 = vpack.c.b16 %v7454, %v7452
  %v7509 = vpack.c.b16 %v7455, %v7453
  %v7510 = vpack.c.b16 %v7458, %v7456
  %v7511 = vpack.c.b16 %v7459, %v7457
  %v7512 = vpack.c.b16 %v7462, %v7460
  %v7513 = vpack.c.b16 %v7463, %v7461
  %v7514 = vpack.c.b16 %v7466, %v7464
  %v7515 = vpack.c.b16 %v7467, %v7465
  %v7516 = vpack.c.b16 %v7470, %v7468
  %v7517 = vpack.c.b16 %v7471, %v7469
  %v7518 = vpack.c.b16 %v7474, %v7472
  %v7519 = vpack.c.b16 %v7475, %v7473
  %v7520 = vpack.c.b16 %v7478, %v7476
  %v7521 = vpack.c.b16 %v7479, %v7477
  %v7522 = vpack.c.b16 %v7482, %v7480
  %v7523 = vpack.c.b16 %v7483, %v7481
  %v7524 = vpack.c.b16 %v7486, %v7484
  %v7525 = vpack.c.b16 %v7487, %v7485
  %v7526 = vpack.c.b16 %v7490, %v7488
  %v7527 = vpack.c.b16 %v7491, %v7489
  %v7528 = vpack.c.b16 %v7494, %v7492
  %v7529 = vpack.c.b16 %v7495, %v7493
  %v7530 = vpack.c.b16 %v7498, %v7496
  %v7531 = vpack.c.b16 %v7499, %v7497
  %7564 = vmatprep.subr.bf16.mxu0 %v7515
  %7565 = vmatpush1.bf16.msra.mxu0 %v7514
  %7566 = vmatprep.subr.bf16.mxu0 %v7513
  %7567 = vmatpush1.bf16.msra.mxu0 %v7512
  %7568 = vmatprep.subr.bf16.mxu0 %v7511
  %7569 = vmatpush1.bf16.msra.mxu0 %v7510
  %7570 = vmatprep.subr.bf16.mxu0 %v7509
  %7571 = vmatpush1.bf16.msra.mxu0 %v7508
  %7572 = vmatprep.subr.bf16.mxu0 %v7507
  %7573 = vmatpush1.bf16.msra.mxu0 %v7506
  %7574 = vmatprep.subr.bf16.mxu0 %v7505
  %7575 = vmatpush1.bf16.msra.mxu0 %v7504
  %7576 = vmatprep.subr.bf16.mxu0 %v7503
  %7577 = vmatpush1.bf16.msra.mxu0 %v7502
  %7578 = vmatprep.subr.bf16.mxu0 %v7501
  %7579 = vmatpush1.bf16.msra.mxu0 %v7500
  %7580 = vmatprep.subr.bf16.mxu0 %v7531
  %7581 = vmatpush2.bf16.msra.mxu0 %v7530
  %7582 = vmatprep.subr.bf16.mxu0 %v7529
  %7583 = vmatpush2.bf16.msra.mxu0 %v7528
  %7584 = vmatprep.subr.bf16.mxu0 %v7527
  %7585 = vmatpush2.bf16.msra.mxu0 %v7526
  %7586 = vmatprep.subr.bf16.mxu0 %v7525
  %7587 = vmatpush2.bf16.msra.mxu0 %v7524
  %7588 = vmatprep.subr.bf16.mxu0 %v7523
  %7589 = vmatpush2.bf16.msra.mxu0 %v7522
  %7590 = vmatprep.subr.bf16.mxu0 %v7521
  %7591 = vmatpush2.bf16.msra.mxu0 %v7520
  %7592 = vmatprep.subr.bf16.mxu0 %v7519
  %7593 = vmatpush2.bf16.msra.mxu0 %v7518
  %7594 = vmatprep.subr.bf16.mxu0 %v7517
  %7595 = vmatpush2.bf16.msra.mxu0 %v7516
  %7596 = vmatprep.mubr.bf16.mxu0 %v7340
  %7597 = vmatmul.mubr.bf16.gmra.mxu0 %v7339
  %v7598 = vpop.f32.mrf.mxu0
  %v7599 = vadd.f32 0.0, %v7598
  %v7600 = vpop.f32.mrf.mxu0
  %v7601 = vadd.f32 0.0, %v7600
  %v7602 = vpop.f32.mrf.mxu0
  %v7603 = vadd.f32 0.0, %v7602
  %v7604 = vpop.f32.mrf.mxu0
  %v7605 = vadd.f32 0.0, %v7604
  %7606 = vmatprep.mubr.bf16.mxu0 %v7342
  %7607 = vmatmul.mubr.bf16.gmra.mxu0 %v7341
  %v7608 = vpop.f32.mrf.mxu0
  %v7609 = vadd.f32 0.0, %v7608
  %v7610 = vpop.f32.mrf.mxu0
  %v7611 = vadd.f32 0.0, %v7610
  %v7612 = vpop.f32.mrf.mxu0
  %v7613 = vadd.f32 0.0, %v7612
  %v7614 = vpop.f32.mrf.mxu0
  %v7615 = vadd.f32 0.0, %v7614
  %7616 = vmatprep.mubr.bf16.mxu0 %v7344
  %7617 = vmatmul.mubr.bf16.gmra.mxu0 %v7343
  %v7618 = vpop.f32.mrf.mxu0
  %v7619 = vadd.f32 0.0, %v7618
  %v7620 = vpop.f32.mrf.mxu0
  %v7621 = vadd.f32 0.0, %v7620
  %v7622 = vpop.f32.mrf.mxu0
  %v7623 = vadd.f32 0.0, %v7622
  %v7624 = vpop.f32.mrf.mxu0
  %v7625 = vadd.f32 0.0, %v7624
  %7626 = vmatprep.mubr.bf16.mxu0 %v7346
  %7627 = vmatmul.mubr.bf16.gmra.mxu0 %v7345
  %v7628 = vpop.f32.mrf.mxu0
  %v7629 = vadd.f32 0.0, %v7628
  %v7630 = vpop.f32.mrf.mxu0
  %v7631 = vadd.f32 0.0, %v7630
  %v7632 = vpop.f32.mrf.mxu0
  %v7633 = vadd.f32 0.0, %v7632
  %v7634 = vpop.f32.mrf.mxu0
  %v7635 = vadd.f32 0.0, %v7634
  %7636 = vmatprep.mubr.bf16.mxu0 %v7348
  %7637 = vmatmul.mubr.bf16.gmra.mxu0 %v7347
  %v7638 = vpop.f32.mrf.mxu0
  %v7639 = vadd.f32 0.0, %v7638
  %v7640 = vpop.f32.mrf.mxu0
  %v7641 = vadd.f32 0.0, %v7640
  %v7642 = vpop.f32.mrf.mxu0
  %v7643 = vadd.f32 0.0, %v7642
  %v7644 = vpop.f32.mrf.mxu0
  %v7645 = vadd.f32 0.0, %v7644
  %7646 = vmatprep.mubr.bf16.mxu0 %v7350
  %7647 = vmatmul.mubr.bf16.gmra.mxu0 %v7349
  %v7648 = vpop.f32.mrf.mxu0
  %v7649 = vadd.f32 0.0, %v7648
  %v7650 = vpop.f32.mrf.mxu0
  %v7651 = vadd.f32 0.0, %v7650
  %v7652 = vpop.f32.mrf.mxu0
  %v7653 = vadd.f32 0.0, %v7652
  %v7654 = vpop.f32.mrf.mxu0
  %v7655 = vadd.f32 0.0, %v7654
  %7656 = vmatprep.mubr.bf16.mxu0 %v7352
  %7657 = vmatmul.mubr.bf16.gmra.mxu0 %v7351
  %v7658 = vpop.f32.mrf.mxu0
  %v7659 = vadd.f32 0.0, %v7658
  %v7660 = vpop.f32.mrf.mxu0
  %v7661 = vadd.f32 0.0, %v7660
  %v7662 = vpop.f32.mrf.mxu0
  %v7663 = vadd.f32 0.0, %v7662
  %v7664 = vpop.f32.mrf.mxu0
  %v7665 = vadd.f32 0.0, %v7664
  %7666 = vmatprep.mubr.bf16.mxu0 %v7354
  %7667 = vmatmul.mubr.bf16.gmra.mxu0 %v7353
  %v7668 = vpop.f32.mrf.mxu0
  %v7669 = vadd.f32 0.0, %v7668
  %v7670 = vpop.f32.mrf.mxu0
  %v7671 = vadd.f32 0.0, %v7670
  %v7672 = vpop.f32.mrf.mxu0
  %v7673 = vadd.f32 0.0, %v7672
  %v7674 = vpop.f32.mrf.mxu0
  %v7675 = vadd.f32 0.0, %v7674
  %7676 = vmatprep.mubr.bf16.mxu0 %v7356
  %7677 = vmatmul.mubr.bf16.gmra.mxu0 %v7355
  %v7678 = vpop.f32.mrf.mxu0
  %v7679 = vadd.f32 0.0, %v7678
  %v7680 = vpop.f32.mrf.mxu0
  %v7681 = vadd.f32 0.0, %v7680
  %v7682 = vpop.f32.mrf.mxu0
  %v7683 = vadd.f32 0.0, %v7682
  %v7684 = vpop.f32.mrf.mxu0
  %v7685 = vadd.f32 0.0, %v7684
  %7686 = vmatprep.mubr.bf16.mxu0 %v7358
  %7687 = vmatmul.mubr.bf16.gmra.mxu0 %v7357
  %v7688 = vpop.f32.mrf.mxu0
  %v7689 = vadd.f32 0.0, %v7688
  %v7690 = vpop.f32.mrf.mxu0
  %v7691 = vadd.f32 0.0, %v7690
  %v7692 = vpop.f32.mrf.mxu0
  %v7693 = vadd.f32 0.0, %v7692
  %v7694 = vpop.f32.mrf.mxu0
  %v7695 = vadd.f32 0.0, %v7694
  %7696 = vmatprep.mubr.bf16.mxu0 %v7360
  %7697 = vmatmul.mubr.bf16.gmra.mxu0 %v7359
  %v7698 = vpop.f32.mrf.mxu0
  %v7699 = vadd.f32 0.0, %v7698
  %v7700 = vpop.f32.mrf.mxu0
  %v7701 = vadd.f32 0.0, %v7700
  %v7702 = vpop.f32.mrf.mxu0
  %v7703 = vadd.f32 0.0, %v7702
  %v7704 = vpop.f32.mrf.mxu0
  %v7705 = vadd.f32 0.0, %v7704
  %7706 = vmatprep.mubr.bf16.mxu0 %v7362
  %7707 = vmatmul.mubr.bf16.gmra.mxu0 %v7361
  %v7708 = vpop.f32.mrf.mxu0
  %v7709 = vadd.f32 0.0, %v7708
  %v7710 = vpop.f32.mrf.mxu0
  %v7711 = vadd.f32 0.0, %v7710
  %v7712 = vpop.f32.mrf.mxu0
  %v7713 = vadd.f32 0.0, %v7712
  %v7714 = vpop.f32.mrf.mxu0
  %v7715 = vadd.f32 0.0, %v7714
  %7716 = vmatprep.mubr.bf16.mxu0 %v7364
  %7717 = vmatmul.mubr.bf16.gmra.mxu0 %v7363
  %v7718 = vpop.f32.mrf.mxu0
  %v7719 = vadd.f32 0.0, %v7718
  %v7720 = vpop.f32.mrf.mxu0
  %v7721 = vadd.f32 0.0, %v7720
  %v7722 = vpop.f32.mrf.mxu0
  %v7723 = vadd.f32 0.0, %v7722
  %v7724 = vpop.f32.mrf.mxu0
  %v7725 = vadd.f32 0.0, %v7724
  %7726 = vmatprep.mubr.bf16.mxu0 %v7366
  %7727 = vmatmul.mubr.bf16.gmra.mxu0 %v7365
  %v7728 = vpop.f32.mrf.mxu0
  %v7729 = vadd.f32 0.0, %v7728
  %v7730 = vpop.f32.mrf.mxu0
  %v7731 = vadd.f32 0.0, %v7730
  %v7732 = vpop.f32.mrf.mxu0
  %v7733 = vadd.f32 0.0, %v7732
  %v7734 = vpop.f32.mrf.mxu0
  %v7735 = vadd.f32 0.0, %v7734
  %7736 = vmatprep.mubr.bf16.mxu0 %v7368
  %7737 = vmatmul.mubr.bf16.gmra.mxu0 %v7367
  %v7738 = vpop.f32.mrf.mxu0
  %v7739 = vadd.f32 0.0, %v7738
  %v7740 = vpop.f32.mrf.mxu0
  %v7741 = vadd.f32 0.0, %v7740
  %v7742 = vpop.f32.mrf.mxu0
  %v7743 = vadd.f32 0.0, %v7742
  %v7744 = vpop.f32.mrf.mxu0
  %v7745 = vadd.f32 0.0, %v7744
  %7746 = vmatprep.mubr.bf16.mxu0 %v7370
  %7747 = vmatmul.mubr.bf16.gmra.mxu0 %v7369
  %v7748 = vpop.f32.mrf.mxu0
  %v7749 = vadd.f32 0.0, %v7748
  %v7750 = vpop.f32.mrf.mxu0
  %v7751 = vadd.f32 0.0, %v7750
  %v7752 = vpop.f32.mrf.mxu0
  %v7753 = vadd.f32 0.0, %v7752
  %v7754 = vpop.f32.mrf.mxu0
  %v7755 = vadd.f32 0.0, %v7754
  %7756 = vdwg.mxu0
  %v7757 = vpack.c.bf16 %v7603, %v7599
  %v7758 = vpack.c.bf16 %v7605, %v7601
  %v7759 = vpack.c.bf16 %v7613, %v7609
  %v7760 = vpack.c.bf16 %v7615, %v7611
  %v7761 = vpack.c.bf16 %v7623, %v7619
  %v7762 = vpack.c.bf16 %v7625, %v7621
  %v7763 = vpack.c.bf16 %v7633, %v7629
  %v7764 = vpack.c.bf16 %v7635, %v7631
  %v7765 = vpack.c.bf16 %v7643, %v7639
  %v7766 = vpack.c.bf16 %v7645, %v7641
  %v7767 = vpack.c.bf16 %v7653, %v7649
  %v7768 = vpack.c.bf16 %v7655, %v7651
  %v7769 = vpack.c.bf16 %v7663, %v7659
  %v7770 = vpack.c.bf16 %v7665, %v7661
  %v7771 = vpack.c.bf16 %v7673, %v7669
  %v7772 = vpack.c.bf16 %v7675, %v7671
  %v7773 = vpack.c.bf16 %v7683, %v7679
  %v7774 = vpack.c.bf16 %v7685, %v7681
  %v7775 = vpack.c.bf16 %v7693, %v7689
  %v7776 = vpack.c.bf16 %v7695, %v7691
  %v7777 = vpack.c.bf16 %v7703, %v7699
  %v7778 = vpack.c.bf16 %v7705, %v7701
  %v7779 = vpack.c.bf16 %v7713, %v7709
  %v7780 = vpack.c.bf16 %v7715, %v7711
  %v7781 = vpack.c.bf16 %v7723, %v7719
  %v7782 = vpack.c.bf16 %v7725, %v7721
  %v7783 = vpack.c.bf16 %v7733, %v7729
  %v7784 = vpack.c.bf16 %v7735, %v7731
  %v7785 = vpack.c.bf16 %v7743, %v7739
  %v7786 = vpack.c.bf16 %v7745, %v7741
  %v7787 = vpack.c.bf16 %v7753, %v7749
  %v7788 = vpack.c.bf16 %v7755, %v7751
  %v7790 = vpack.i.b16 %v4136, %v4136
  %v7792 = vlaneseq
  %v7793 = vshrl.u32 %v7792, 7
  %v7794 = vsub.s32 0, %v7793
  %v7795 = vrot.slane %v7790, %v7794
  %v7797 = vpack.i.b16 %v4137, %v4137
  %v7799 = vlaneseq
  %v7800 = vshrl.u32 %v7799, 7
  %v7801 = vsub.s32 0, %v7800
  %v7802 = vrot.slane %v7797, %v7801
  %v7803 = vadd.bf16 %v7757, %v7795
  %v7804 = vadd.bf16 %v7758, %v7802
  %v7805 = vadd.bf16 %v7759, %v7795
  %v7806 = vadd.bf16 %v7760, %v7802
  %v7807 = vadd.bf16 %v7761, %v7795
  %v7808 = vadd.bf16 %v7762, %v7802
  %v7809 = vadd.bf16 %v7763, %v7795
  %v7810 = vadd.bf16 %v7764, %v7802
  %v7811 = vadd.bf16 %v7765, %v7795
  %v7812 = vadd.bf16 %v7766, %v7802
  %v7813 = vadd.bf16 %v7767, %v7795
  %v7814 = vadd.bf16 %v7768, %v7802
  %v7815 = vadd.bf16 %v7769, %v7795
  %v7816 = vadd.bf16 %v7770, %v7802
  %v7817 = vadd.bf16 %v7771, %v7795
  %v7818 = vadd.bf16 %v7772, %v7802
  %v7819 = vadd.bf16 %v7773, %v7795
  %v7820 = vadd.bf16 %v7774, %v7802
  %v7821 = vadd.bf16 %v7775, %v7795
  %v7822 = vadd.bf16 %v7776, %v7802
  %v7823 = vadd.bf16 %v7777, %v7795
  %v7824 = vadd.bf16 %v7778, %v7802
  %v7825 = vadd.bf16 %v7779, %v7795
  %v7826 = vadd.bf16 %v7780, %v7802
  %v7827 = vadd.bf16 %v7781, %v7795
  %v7828 = vadd.bf16 %v7782, %v7802
  %v7829 = vadd.bf16 %v7783, %v7795
  %v7830 = vadd.bf16 %v7784, %v7802
  %v7831 = vadd.bf16 %v7785, %v7795
  %v7832 = vadd.bf16 %v7786, %v7802
  %v7833 = vadd.bf16 %v7787, %v7795
  %v7834 = vadd.bf16 %v7788, %v7802
  %v7835 = vmax.bf16 %v7803, 0
  %v7836 = vmax.bf16 %v7804, 0
  %v7837 = vmax.bf16 %v7805, 0
  %v7838 = vmax.bf16 %v7806, 0
  %v7839 = vmax.bf16 %v7807, 0
  %v7840 = vmax.bf16 %v7808, 0
  %v7841 = vmax.bf16 %v7809, 0
  %v7842 = vmax.bf16 %v7810, 0
  %v7843 = vmax.bf16 %v7811, 0
  %v7844 = vmax.bf16 %v7812, 0
  %v7845 = vmax.bf16 %v7813, 0
  %v7846 = vmax.bf16 %v7814, 0
  %v7847 = vmax.bf16 %v7815, 0
  %v7848 = vmax.bf16 %v7816, 0
  %v7849 = vmax.bf16 %v7817, 0
  %v7850 = vmax.bf16 %v7818, 0
  %v7851 = vmax.bf16 %v7819, 0
  %v7852 = vmax.bf16 %v7820, 0
  %v7853 = vmax.bf16 %v7821, 0
  %v7854 = vmax.bf16 %v7822, 0
  %v7855 = vmax.bf16 %v7823, 0
  %v7856 = vmax.bf16 %v7824, 0
  %v7857 = vmax.bf16 %v7825, 0
  %v7858 = vmax.bf16 %v7826, 0
  %v7859 = vmax.bf16 %v7827, 0
  %v7860 = vmax.bf16 %v7828, 0
  %v7861 = vmax.bf16 %v7829, 0
  %v7862 = vmax.bf16 %v7830, 0
  %v7863 = vmax.bf16 %v7831, 0
  %v7864 = vmax.bf16 %v7832, 0
  %v7865 = vmax.bf16 %v7833, 0
  %v7866 = vmax.bf16 %v7834, 0
  %s7867 = scalar_lea.vmem %s3, 1536
  %v7868 = vld [vmem:[%s7867] sm:$0xff]
  %v7869 = vld [vmem:[%s7867 + $0x8] sm:$0xff]
  %v7870 = vld [vmem:[%s7867 + $0x10] sm:$0xff]
  %v7871 = vld [vmem:[%s7867 + $0x18] sm:$0xff]
  %v7872 = vld [vmem:[%s7867 + $0x20] sm:$0xff]
  %v7873 = vld [vmem:[%s7867 + $0x28] sm:$0xff]
  %v7874 = vld [vmem:[%s7867 + $0x30] sm:$0xff]
  %v7875 = vld [vmem:[%s7867 + $0x38] sm:$0xff]
  %v7876 = vld [vmem:[%s7867 + $0x40] sm:$0xff]
  %v7877 = vld [vmem:[%s7867 + $0x48] sm:$0xff]
  %v7878 = vld [vmem:[%s7867 + $0x50] sm:$0xff]
  %v7879 = vld [vmem:[%s7867 + $0x58] sm:$0xff]
  %v7880 = vld [vmem:[%s7867 + $0x60] sm:$0xff]
  %v7881 = vld [vmem:[%s7867 + $0x68] sm:$0xff]
  %v7882 = vld [vmem:[%s7867 + $0x70] sm:$0xff]
  %v7883 = vld [vmem:[%s7867 + $0x78] sm:$0xff]
  %v7884 = vld [vmem:[%s7867 + $0x80] sm:$0xff]
  %v7885 = vld [vmem:[%s7867 + $0x88] sm:$0xff]
  %v7886 = vld [vmem:[%s7867 + $0x90] sm:$0xff]
  %v7887 = vld [vmem:[%s7867 + $0x98] sm:$0xff]
  %v7888 = vld [vmem:[%s7867 + $0xa0] sm:$0xff]
  %v7889 = vld [vmem:[%s7867 + $0xa8] sm:$0xff]
  %v7890 = vld [vmem:[%s7867 + $0xb0] sm:$0xff]
  %v7891 = vld [vmem:[%s7867 + $0xb8] sm:$0xff]
  %v7892 = vld [vmem:[%s7867 + $0xc0] sm:$0xff]
  %v7893 = vld [vmem:[%s7867 + $0xc8] sm:$0xff]
  %v7894 = vld [vmem:[%s7867 + $0xd0] sm:$0xff]
  %v7895 = vld [vmem:[%s7867 + $0xd8] sm:$0xff]
  %v7896 = vld [vmem:[%s7867 + $0xe0] sm:$0xff]
  %v7897 = vld [vmem:[%s7867 + $0xe8] sm:$0xff]
  %v7898 = vld [vmem:[%s7867 + $0xf0] sm:$0xff]
  %v7899 = vld [vmem:[%s7867 + $0xf8] sm:$0xff]
  %v7932 = vunpack.c.l.b16 %v7868
  %v7933 = vunpack.c.h.b16 %v7868
  %v7934 = vunpack.c.l.b16 %v7869
  %v7935 = vunpack.c.h.b16 %v7869
  %v7936 = vunpack.c.l.b16 %v7870
  %v7937 = vunpack.c.h.b16 %v7870
  %v7938 = vunpack.c.l.b16 %v7871
  %v7939 = vunpack.c.h.b16 %v7871
  %v7940 = vunpack.c.l.b16 %v7872
  %v7941 = vunpack.c.h.b16 %v7872
  %v7942 = vunpack.c.l.b16 %v7873
  %v7943 = vunpack.c.h.b16 %v7873
  %v7944 = vunpack.c.l.b16 %v7874
  %v7945 = vunpack.c.h.b16 %v7874
  %v7946 = vunpack.c.l.b16 %v7875
  %v7947 = vunpack.c.h.b16 %v7875
  %v7948 = vunpack.c.l.b16 %v7876
  %v7949 = vunpack.c.h.b16 %v7876
  %v7950 = vunpack.c.l.b16 %v7877
  %v7951 = vunpack.c.h.b16 %v7877
  %v7952 = vunpack.c.l.b16 %v7878
  %v7953 = vunpack.c.h.b16 %v7878
  %v7954 = vunpack.c.l.b16 %v7879
  %v7955 = vunpack.c.h.b16 %v7879
  %v7956 = vunpack.c.l.b16 %v7880
  %v7957 = vunpack.c.h.b16 %v7880
  %v7958 = vunpack.c.l.b16 %v7881
  %v7959 = vunpack.c.h.b16 %v7881
  %v7960 = vunpack.c.l.b16 %v7882
  %v7961 = vunpack.c.h.b16 %v7882
  %v7962 = vunpack.c.l.b16 %v7883
  %v7963 = vunpack.c.h.b16 %v7883
  %v7964 = vunpack.c.l.b16 %v7884
  %v7965 = vunpack.c.h.b16 %v7884
  %v7966 = vunpack.c.l.b16 %v7885
  %v7967 = vunpack.c.h.b16 %v7885
  %v7968 = vunpack.c.l.b16 %v7886
  %v7969 = vunpack.c.h.b16 %v7886
  %v7970 = vunpack.c.l.b16 %v7887
  %v7971 = vunpack.c.h.b16 %v7887
  %v7972 = vunpack.c.l.b16 %v7888
  %v7973 = vunpack.c.h.b16 %v7888
  %v7974 = vunpack.c.l.b16 %v7889
  %v7975 = vunpack.c.h.b16 %v7889
  %v7976 = vunpack.c.l.b16 %v7890
  %v7977 = vunpack.c.h.b16 %v7890
  %v7978 = vunpack.c.l.b16 %v7891
  %v7979 = vunpack.c.h.b16 %v7891
  %v7980 = vunpack.c.l.b16 %v7892
  %v7981 = vunpack.c.h.b16 %v7892
  %v7982 = vunpack.c.l.b16 %v7893
  %v7983 = vunpack.c.h.b16 %v7893
  %v7984 = vunpack.c.l.b16 %v7894
  %v7985 = vunpack.c.h.b16 %v7894
  %v7986 = vunpack.c.l.b16 %v7895
  %v7987 = vunpack.c.h.b16 %v7895
  %v7988 = vunpack.c.l.b16 %v7896
  %v7989 = vunpack.c.h.b16 %v7896
  %v7990 = vunpack.c.l.b16 %v7897
  %v7991 = vunpack.c.h.b16 %v7897
  %v7992 = vunpack.c.l.b16 %v7898
  %v7993 = vunpack.c.h.b16 %v7898
  %v7994 = vunpack.c.l.b16 %v7899
  %v7995 = vunpack.c.h.b16 %v7899
  %v7996 = vpack.c.b16 %v7934, %v7932
  %v7997 = vpack.c.b16 %v7935, %v7933
  %v7998 = vpack.c.b16 %v7938, %v7936
  %v7999 = vpack.c.b16 %v7939, %v7937
  %v8000 = vpack.c.b16 %v7942, %v7940
  %v8001 = vpack.c.b16 %v7943, %v7941
  %v8002 = vpack.c.b16 %v7946, %v7944
  %v8003 = vpack.c.b16 %v7947, %v7945
  %v8004 = vpack.c.b16 %v7950, %v7948
  %v8005 = vpack.c.b16 %v7951, %v7949
  %v8006 = vpack.c.b16 %v7954, %v7952
  %v8007 = vpack.c.b16 %v7955, %v7953
  %v8008 = vpack.c.b16 %v7958, %v7956
  %v8009 = vpack.c.b16 %v7959, %v7957
  %v8010 = vpack.c.b16 %v7962, %v7960
  %v8011 = vpack.c.b16 %v7963, %v7961
  %v8012 = vpack.c.b16 %v7966, %v7964
  %v8013 = vpack.c.b16 %v7967, %v7965
  %v8014 = vpack.c.b16 %v7970, %v7968
  %v8015 = vpack.c.b16 %v7971, %v7969
  %v8016 = vpack.c.b16 %v7974, %v7972
  %v8017 = vpack.c.b16 %v7975, %v7973
  %v8018 = vpack.c.b16 %v7978, %v7976
  %v8019 = vpack.c.b16 %v7979, %v7977
  %v8020 = vpack.c.b16 %v7982, %v7980
  %v8021 = vpack.c.b16 %v7983, %v7981
  %v8022 = vpack.c.b16 %v7986, %v7984
  %v8023 = vpack.c.b16 %v7987, %v7985
  %v8024 = vpack.c.b16 %v7990, %v7988
  %v8025 = vpack.c.b16 %v7991, %v7989
  %v8026 = vpack.c.b16 %v7994, %v7992
  %v8027 = vpack.c.b16 %v7995, %v7993
  %8060 = vmatprep.subr.bf16.mxu0 %v8011
  %8061 = vmatpush1.bf16.msra.mxu0 %v8010
  %8062 = vmatprep.subr.bf16.mxu0 %v8009
  %8063 = vmatpush1.bf16.msra.mxu0 %v8008
  %8064 = vmatprep.subr.bf16.mxu0 %v8007
  %8065 = vmatpush1.bf16.msra.mxu0 %v8006
  %8066 = vmatprep.subr.bf16.mxu0 %v8005
  %8067 = vmatpush1.bf16.msra.mxu0 %v8004
  %8068 = vmatprep.subr.bf16.mxu0 %v8003
  %8069 = vmatpush1.bf16.msra.mxu0 %v8002
  %8070 = vmatprep.subr.bf16.mxu0 %v8001
  %8071 = vmatpush1.bf16.msra.mxu0 %v8000
  %8072 = vmatprep.subr.bf16.mxu0 %v7999
  %8073 = vmatpush1.bf16.msra.mxu0 %v7998
  %8074 = vmatprep.subr.bf16.mxu0 %v7997
  %8075 = vmatpush1.bf16.msra.mxu0 %v7996
  %8076 = vmatprep.subr.bf16.mxu0 %v8027
  %8077 = vmatpush2.bf16.msra.mxu0 %v8026
  %8078 = vmatprep.subr.bf16.mxu0 %v8025
  %8079 = vmatpush2.bf16.msra.mxu0 %v8024
  %8080 = vmatprep.subr.bf16.mxu0 %v8023
  %8081 = vmatpush2.bf16.msra.mxu0 %v8022
  %8082 = vmatprep.subr.bf16.mxu0 %v8021
  %8083 = vmatpush2.bf16.msra.mxu0 %v8020
  %8084 = vmatprep.subr.bf16.mxu0 %v8019
  %8085 = vmatpush2.bf16.msra.mxu0 %v8018
  %8086 = vmatprep.subr.bf16.mxu0 %v8017
  %8087 = vmatpush2.bf16.msra.mxu0 %v8016
  %8088 = vmatprep.subr.bf16.mxu0 %v8015
  %8089 = vmatpush2.bf16.msra.mxu0 %v8014
  %8090 = vmatprep.subr.bf16.mxu0 %v8013
  %8091 = vmatpush2.bf16.msra.mxu0 %v8012
  %8092 = vmatprep.mubr.bf16.mxu0 %v7836
  %8093 = vmatmul.mubr.bf16.gmra.mxu0 %v7835
  %v8094 = vpop.f32.mrf.mxu0
  %v8095 = vadd.f32 0.0, %v8094
  %v8096 = vpop.f32.mrf.mxu0
  %v8097 = vadd.f32 0.0, %v8096
  %v8098 = vpop.f32.mrf.mxu0
  %v8099 = vadd.f32 0.0, %v8098
  %v8100 = vpop.f32.mrf.mxu0
  %v8101 = vadd.f32 0.0, %v8100
  %8102 = vmatprep.mubr.bf16.mxu0 %v7838
  %8103 = vmatmul.mubr.bf16.gmra.mxu0 %v7837
  %v8104 = vpop.f32.mrf.mxu0
  %v8105 = vadd.f32 0.0, %v8104
  %v8106 = vpop.f32.mrf.mxu0
  %v8107 = vadd.f32 0.0, %v8106
  %v8108 = vpop.f32.mrf.mxu0
  %v8109 = vadd.f32 0.0, %v8108
  %v8110 = vpop.f32.mrf.mxu0
  %v8111 = vadd.f32 0.0, %v8110
  %8112 = vmatprep.mubr.bf16.mxu0 %v7840
  %8113 = vmatmul.mubr.bf16.gmra.mxu0 %v7839
  %v8114 = vpop.f32.mrf.mxu0
  %v8115 = vadd.f32 0.0, %v8114
  %v8116 = vpop.f32.mrf.mxu0
  %v8117 = vadd.f32 0.0, %v8116
  %v8118 = vpop.f32.mrf.mxu0
  %v8119 = vadd.f32 0.0, %v8118
  %v8120 = vpop.f32.mrf.mxu0
  %v8121 = vadd.f32 0.0, %v8120
  %8122 = vmatprep.mubr.bf16.mxu0 %v7842
  %8123 = vmatmul.mubr.bf16.gmra.mxu0 %v7841
  %v8124 = vpop.f32.mrf.mxu0
  %v8125 = vadd.f32 0.0, %v8124
  %v8126 = vpop.f32.mrf.mxu0
  %v8127 = vadd.f32 0.0, %v8126
  %v8128 = vpop.f32.mrf.mxu0
  %v8129 = vadd.f32 0.0, %v8128
  %v8130 = vpop.f32.mrf.mxu0
  %v8131 = vadd.f32 0.0, %v8130
  %8132 = vmatprep.mubr.bf16.mxu0 %v7844
  %8133 = vmatmul.mubr.bf16.gmra.mxu0 %v7843
  %v8134 = vpop.f32.mrf.mxu0
  %v8135 = vadd.f32 0.0, %v8134
  %v8136 = vpop.f32.mrf.mxu0
  %v8137 = vadd.f32 0.0, %v8136
  %v8138 = vpop.f32.mrf.mxu0
  %v8139 = vadd.f32 0.0, %v8138
  %v8140 = vpop.f32.mrf.mxu0
  %v8141 = vadd.f32 0.0, %v8140
  %8142 = vmatprep.mubr.bf16.mxu0 %v7846
  %8143 = vmatmul.mubr.bf16.gmra.mxu0 %v7845
  %v8144 = vpop.f32.mrf.mxu0
  %v8145 = vadd.f32 0.0, %v8144
  %v8146 = vpop.f32.mrf.mxu0
  %v8147 = vadd.f32 0.0, %v8146
  %v8148 = vpop.f32.mrf.mxu0
  %v8149 = vadd.f32 0.0, %v8148
  %v8150 = vpop.f32.mrf.mxu0
  %v8151 = vadd.f32 0.0, %v8150
  %8152 = vmatprep.mubr.bf16.mxu0 %v7848
  %8153 = vmatmul.mubr.bf16.gmra.mxu0 %v7847
  %v8154 = vpop.f32.mrf.mxu0
  %v8155 = vadd.f32 0.0, %v8154
  %v8156 = vpop.f32.mrf.mxu0
  %v8157 = vadd.f32 0.0, %v8156
  %v8158 = vpop.f32.mrf.mxu0
  %v8159 = vadd.f32 0.0, %v8158
  %v8160 = vpop.f32.mrf.mxu0
  %v8161 = vadd.f32 0.0, %v8160
  %8162 = vmatprep.mubr.bf16.mxu0 %v7850
  %8163 = vmatmul.mubr.bf16.gmra.mxu0 %v7849
  %v8164 = vpop.f32.mrf.mxu0
  %v8165 = vadd.f32 0.0, %v8164
  %v8166 = vpop.f32.mrf.mxu0
  %v8167 = vadd.f32 0.0, %v8166
  %v8168 = vpop.f32.mrf.mxu0
  %v8169 = vadd.f32 0.0, %v8168
  %v8170 = vpop.f32.mrf.mxu0
  %v8171 = vadd.f32 0.0, %v8170
  %8172 = vmatprep.mubr.bf16.mxu0 %v7852
  %8173 = vmatmul.mubr.bf16.gmra.mxu0 %v7851
  %v8174 = vpop.f32.mrf.mxu0
  %v8175 = vadd.f32 0.0, %v8174
  %v8176 = vpop.f32.mrf.mxu0
  %v8177 = vadd.f32 0.0, %v8176
  %v8178 = vpop.f32.mrf.mxu0
  %v8179 = vadd.f32 0.0, %v8178
  %v8180 = vpop.f32.mrf.mxu0
  %v8181 = vadd.f32 0.0, %v8180
  %8182 = vmatprep.mubr.bf16.mxu0 %v7854
  %8183 = vmatmul.mubr.bf16.gmra.mxu0 %v7853
  %v8184 = vpop.f32.mrf.mxu0
  %v8185 = vadd.f32 0.0, %v8184
  %v8186 = vpop.f32.mrf.mxu0
  %v8187 = vadd.f32 0.0, %v8186
  %v8188 = vpop.f32.mrf.mxu0
  %v8189 = vadd.f32 0.0, %v8188
  %v8190 = vpop.f32.mrf.mxu0
  %v8191 = vadd.f32 0.0, %v8190
  %8192 = vmatprep.mubr.bf16.mxu0 %v7856
  %8193 = vmatmul.mubr.bf16.gmra.mxu0 %v7855
  %v8194 = vpop.f32.mrf.mxu0
  %v8195 = vadd.f32 0.0, %v8194
  %v8196 = vpop.f32.mrf.mxu0
  %v8197 = vadd.f32 0.0, %v8196
  %v8198 = vpop.f32.mrf.mxu0
  %v8199 = vadd.f32 0.0, %v8198
  %v8200 = vpop.f32.mrf.mxu0
  %v8201 = vadd.f32 0.0, %v8200
  %8202 = vmatprep.mubr.bf16.mxu0 %v7858
  %8203 = vmatmul.mubr.bf16.gmra.mxu0 %v7857
  %v8204 = vpop.f32.mrf.mxu0
  %v8205 = vadd.f32 0.0, %v8204
  %v8206 = vpop.f32.mrf.mxu0
  %v8207 = vadd.f32 0.0, %v8206
  %v8208 = vpop.f32.mrf.mxu0
  %v8209 = vadd.f32 0.0, %v8208
  %v8210 = vpop.f32.mrf.mxu0
  %v8211 = vadd.f32 0.0, %v8210
  %8212 = vmatprep.mubr.bf16.mxu0 %v7860
  %8213 = vmatmul.mubr.bf16.gmra.mxu0 %v7859
  %v8214 = vpop.f32.mrf.mxu0
  %v8215 = vadd.f32 0.0, %v8214
  %v8216 = vpop.f32.mrf.mxu0
  %v8217 = vadd.f32 0.0, %v8216
  %v8218 = vpop.f32.mrf.mxu0
  %v8219 = vadd.f32 0.0, %v8218
  %v8220 = vpop.f32.mrf.mxu0
  %v8221 = vadd.f32 0.0, %v8220
  %8222 = vmatprep.mubr.bf16.mxu0 %v7862
  %8223 = vmatmul.mubr.bf16.gmra.mxu0 %v7861
  %v8224 = vpop.f32.mrf.mxu0
  %v8225 = vadd.f32 0.0, %v8224
  %v8226 = vpop.f32.mrf.mxu0
  %v8227 = vadd.f32 0.0, %v8226
  %v8228 = vpop.f32.mrf.mxu0
  %v8229 = vadd.f32 0.0, %v8228
  %v8230 = vpop.f32.mrf.mxu0
  %v8231 = vadd.f32 0.0, %v8230
  %8232 = vmatprep.mubr.bf16.mxu0 %v7864
  %8233 = vmatmul.mubr.bf16.gmra.mxu0 %v7863
  %v8234 = vpop.f32.mrf.mxu0
  %v8235 = vadd.f32 0.0, %v8234
  %v8236 = vpop.f32.mrf.mxu0
  %v8237 = vadd.f32 0.0, %v8236
  %v8238 = vpop.f32.mrf.mxu0
  %v8239 = vadd.f32 0.0, %v8238
  %v8240 = vpop.f32.mrf.mxu0
  %v8241 = vadd.f32 0.0, %v8240
  %8242 = vmatprep.mubr.bf16.mxu0 %v7866
  %8243 = vmatmul.mubr.bf16.gmra.mxu0 %v7865
  %v8244 = vpop.f32.mrf.mxu0
  %v8245 = vadd.f32 0.0, %v8244
  %v8246 = vpop.f32.mrf.mxu0
  %v8247 = vadd.f32 0.0, %v8246
  %v8248 = vpop.f32.mrf.mxu0
  %v8249 = vadd.f32 0.0, %v8248
  %v8250 = vpop.f32.mrf.mxu0
  %v8251 = vadd.f32 0.0, %v8250
  %8252 = vdwg.mxu0
  %v8253 = vpack.c.bf16 %v8099, %v8095
  %v8254 = vpack.c.bf16 %v8101, %v8097
  %v8255 = vpack.c.bf16 %v8109, %v8105
  %v8256 = vpack.c.bf16 %v8111, %v8107
  %v8257 = vpack.c.bf16 %v8119, %v8115
  %v8258 = vpack.c.bf16 %v8121, %v8117
  %v8259 = vpack.c.bf16 %v8129, %v8125
  %v8260 = vpack.c.bf16 %v8131, %v8127
  %v8261 = vpack.c.bf16 %v8139, %v8135
  %v8262 = vpack.c.bf16 %v8141, %v8137
  %v8263 = vpack.c.bf16 %v8149, %v8145
  %v8264 = vpack.c.bf16 %v8151, %v8147
  %v8265 = vpack.c.bf16 %v8159, %v8155
  %v8266 = vpack.c.bf16 %v8161, %v8157
  %v8267 = vpack.c.bf16 %v8169, %v8165
  %v8268 = vpack.c.bf16 %v8171, %v8167
  %v8269 = vpack.c.bf16 %v8179, %v8175
  %v8270 = vpack.c.bf16 %v8181, %v8177
  %v8271 = vpack.c.bf16 %v8189, %v8185
  %v8272 = vpack.c.bf16 %v8191, %v8187
  %v8273 = vpack.c.bf16 %v8199, %v8195
  %v8274 = vpack.c.bf16 %v8201, %v8197
  %v8275 = vpack.c.bf16 %v8209, %v8205
  %v8276 = vpack.c.bf16 %v8211, %v8207
  %v8277 = vpack.c.bf16 %v8219, %v8215
  %v8278 = vpack.c.bf16 %v8221, %v8217
  %v8279 = vpack.c.bf16 %v8229, %v8225
  %v8280 = vpack.c.bf16 %v8231, %v8227
  %v8281 = vpack.c.bf16 %v8239, %v8235
  %v8282 = vpack.c.bf16 %v8241, %v8237
  %v8283 = vpack.c.bf16 %v8249, %v8245
  %v8284 = vpack.c.bf16 %v8251, %v8247
  %v8286 = vpack.i.b16 %v4138, %v4138
  %v8288 = vlaneseq
  %v8289 = vshrl.u32 %v8288, 7
  %v8290 = vsub.s32 0, %v8289
  %v8291 = vrot.slane %v8286, %v8290
  %v8293 = vpack.i.b16 %v4139, %v4139
  %v8295 = vlaneseq
  %v8296 = vshrl.u32 %v8295, 7
  %v8297 = vsub.s32 0, %v8296
  %v8298 = vrot.slane %v8293, %v8297
  %v8299 = vadd.bf16 %v8253, %v8291
  %v8300 = vadd.bf16 %v8254, %v8298
  %v8301 = vadd.bf16 %v8255, %v8291
  %v8302 = vadd.bf16 %v8256, %v8298
  %v8303 = vadd.bf16 %v8257, %v8291
  %v8304 = vadd.bf16 %v8258, %v8298
  %v8305 = vadd.bf16 %v8259, %v8291
  %v8306 = vadd.bf16 %v8260, %v8298
  %v8307 = vadd.bf16 %v8261, %v8291
  %v8308 = vadd.bf16 %v8262, %v8298
  %v8309 = vadd.bf16 %v8263, %v8291
  %v8310 = vadd.bf16 %v8264, %v8298
  %v8311 = vadd.bf16 %v8265, %v8291
  %v8312 = vadd.bf16 %v8266, %v8298
  %v8313 = vadd.bf16 %v8267, %v8291
  %v8314 = vadd.bf16 %v8268, %v8298
  %v8315 = vadd.bf16 %v8269, %v8291
  %v8316 = vadd.bf16 %v8270, %v8298
  %v8317 = vadd.bf16 %v8271, %v8291
  %v8318 = vadd.bf16 %v8272, %v8298
  %v8319 = vadd.bf16 %v8273, %v8291
  %v8320 = vadd.bf16 %v8274, %v8298
  %v8321 = vadd.bf16 %v8275, %v8291
  %v8322 = vadd.bf16 %v8276, %v8298
  %v8323 = vadd.bf16 %v8277, %v8291
  %v8324 = vadd.bf16 %v8278, %v8298
  %v8325 = vadd.bf16 %v8279, %v8291
  %v8326 = vadd.bf16 %v8280, %v8298
  %v8327 = vadd.bf16 %v8281, %v8291
  %v8328 = vadd.bf16 %v8282, %v8298
  %v8329 = vadd.bf16 %v8283, %v8291
  %v8330 = vadd.bf16 %v8284, %v8298
  %v8331 = vmax.bf16 %v8299, 0
  %v8332 = vmax.bf16 %v8300, 0
  %v8333 = vmax.bf16 %v8301, 0
  %v8334 = vmax.bf16 %v8302, 0
  %v8335 = vmax.bf16 %v8303, 0
  %v8336 = vmax.bf16 %v8304, 0
  %v8337 = vmax.bf16 %v8305, 0
  %v8338 = vmax.bf16 %v8306, 0
  %v8339 = vmax.bf16 %v8307, 0
  %v8340 = vmax.bf16 %v8308, 0
  %v8341 = vmax.bf16 %v8309, 0
  %v8342 = vmax.bf16 %v8310, 0
  %v8343 = vmax.bf16 %v8311, 0
  %v8344 = vmax.bf16 %v8312, 0
  %v8345 = vmax.bf16 %v8313, 0
  %v8346 = vmax.bf16 %v8314, 0
  %v8347 = vmax.bf16 %v8315, 0
  %v8348 = vmax.bf16 %v8316, 0
  %v8349 = vmax.bf16 %v8317, 0
  %v8350 = vmax.bf16 %v8318, 0
  %v8351 = vmax.bf16 %v8319, 0
  %v8352 = vmax.bf16 %v8320, 0
  %v8353 = vmax.bf16 %v8321, 0
  %v8354 = vmax.bf16 %v8322, 0
  %v8355 = vmax.bf16 %v8323, 0
  %v8356 = vmax.bf16 %v8324, 0
  %v8357 = vmax.bf16 %v8325, 0
  %v8358 = vmax.bf16 %v8326, 0
  %v8359 = vmax.bf16 %v8327, 0
  %v8360 = vmax.bf16 %v8328, 0
  %v8361 = vmax.bf16 %v8329, 0
  %v8362 = vmax.bf16 %v8330, 0
  %v8363 = vld [vmem:[%s4] sm:$0xf]
  %v8364 = vld [vmem:[%s4 + $0x4] sm:$0xf]
  %v8365 = vld [vmem:[%s4 + $0x8] sm:$0xf]
  %v8366 = vld [vmem:[%s4 + $0xc] sm:$0xf]
  %v8367 = vld [vmem:[%s4 + $0x10] sm:$0xf]
  %v8368 = vld [vmem:[%s4 + $0x14] sm:$0xf]
  %v8369 = vld [vmem:[%s4 + $0x18] sm:$0xf]
  %v8370 = vld [vmem:[%s4 + $0x1c] sm:$0xf]
  %v8371 = vld [vmem:[%s4 + $0x20] sm:$0xf]
  %v8372 = vld [vmem:[%s4 + $0x24] sm:$0xf]
  %v8373 = vld [vmem:[%s4 + $0x28] sm:$0xf]
  %v8374 = vld [vmem:[%s4 + $0x2c] sm:$0xf]
  %v8375 = vld [vmem:[%s4 + $0x30] sm:$0xf]
  %v8376 = vld [vmem:[%s4 + $0x34] sm:$0xf]
  %v8377 = vld [vmem:[%s4 + $0x38] sm:$0xf]
  %v8378 = vld [vmem:[%s4 + $0x3c] sm:$0xf]
  %v8379 = vld [vmem:[%s4 + $0x40] sm:$0xf]
  %v8380 = vld [vmem:[%s4 + $0x44] sm:$0xf]
  %v8381 = vld [vmem:[%s4 + $0x48] sm:$0xf]
  %v8382 = vld [vmem:[%s4 + $0x4c] sm:$0xf]
  %v8383 = vld [vmem:[%s4 + $0x50] sm:$0xf]
  %v8384 = vld [vmem:[%s4 + $0x54] sm:$0xf]
  %v8385 = vld [vmem:[%s4 + $0x58] sm:$0xf]
  %v8386 = vld [vmem:[%s4 + $0x5c] sm:$0xf]
  %v8387 = vld [vmem:[%s4 + $0x60] sm:$0xf]
  %v8388 = vld [vmem:[%s4 + $0x64] sm:$0xf]
  %v8389 = vld [vmem:[%s4 + $0x68] sm:$0xf]
  %v8390 = vld [vmem:[%s4 + $0x6c] sm:$0xf]
  %v8391 = vld [vmem:[%s4 + $0x70] sm:$0xf]
  %v8392 = vld [vmem:[%s4 + $0x74] sm:$0xf]
  %v8393 = vld [vmem:[%s4 + $0x78] sm:$0xf]
  %v8394 = vld [vmem:[%s4 + $0x7c] sm:$0xf]
  %v8395 = vld [vmem:[%s6] sm:$0x1]
  %v8397 = vlaneseq
  %v8398 = vshrl.u32 %v8397, 7
  %v8399 = vsub.s32 0, %v8398
  %v8400 = vrot.slane %v8395, %v8399
  %v8434 = vunpack.c.l.b16 %v8363
  %v8435 = vunpack.c.l.b16 %v8364
  %v8436 = vunpack.c.l.b16 %v8365
  %v8437 = vunpack.c.l.b16 %v8366
  %v8438 = vunpack.c.l.b16 %v8367
  %v8439 = vunpack.c.l.b16 %v8368
  %v8440 = vunpack.c.l.b16 %v8369
  %v8441 = vunpack.c.l.b16 %v8370
  %v8442 = vunpack.c.l.b16 %v8371
  %v8443 = vunpack.c.l.b16 %v8372
  %v8444 = vunpack.c.l.b16 %v8373
  %v8445 = vunpack.c.l.b16 %v8374
  %v8446 = vunpack.c.l.b16 %v8375
  %v8447 = vunpack.c.l.b16 %v8376
  %v8448 = vunpack.c.l.b16 %v8377
  %v8449 = vunpack.c.l.b16 %v8378
  %v8450 = vunpack.c.l.b16 %v8379
  %v8451 = vunpack.c.l.b16 %v8380
  %v8452 = vunpack.c.l.b16 %v8381
  %v8453 = vunpack.c.l.b16 %v8382
  %v8454 = vunpack.c.l.b16 %v8383
  %v8455 = vunpack.c.l.b16 %v8384
  %v8456 = vunpack.c.l.b16 %v8385
  %v8457 = vunpack.c.l.b16 %v8386
  %v8458 = vunpack.c.l.b16 %v8387
  %v8459 = vunpack.c.l.b16 %v8388
  %v8460 = vunpack.c.l.b16 %v8389
  %v8461 = vunpack.c.l.b16 %v8390
  %v8462 = vunpack.c.l.b16 %v8391
  %v8463 = vunpack.c.l.b16 %v8392
  %v8464 = vunpack.c.l.b16 %v8393
  %v8465 = vunpack.c.l.b16 %v8394
  %v8466 = vpack.c.b16 %v8435, %v8434
  %v8467 = vpack.c.b16 %v8437, %v8436
  %v8468 = vpack.c.b16 %v8439, %v8438
  %v8469 = vpack.c.b16 %v8441, %v8440
  %v8470 = vpack.c.b16 %v8443, %v8442
  %v8471 = vpack.c.b16 %v8445, %v8444
  %v8472 = vpack.c.b16 %v8447, %v8446
  %v8473 = vpack.c.b16 %v8449, %v8448
  %v8474 = vpack.c.b16 %v8451, %v8450
  %v8475 = vpack.c.b16 %v8453, %v8452
  %v8476 = vpack.c.b16 %v8455, %v8454
  %v8477 = vpack.c.b16 %v8457, %v8456
  %v8478 = vpack.c.b16 %v8459, %v8458
  %v8479 = vpack.c.b16 %v8461, %v8460
  %v8480 = vpack.c.b16 %v8463, %v8462
  %v8481 = vpack.c.b16 %v8465, %v8464
  %8498 = vmatprep.subr.bf16.mxu0 0
  %8499 = vmatpush1.bf16.msra.mxu0 %v8473
  %8500 = vmatprep.subr.bf16.mxu0 0
  %8501 = vmatpush1.bf16.msra.mxu0 %v8472
  %8502 = vmatprep.subr.bf16.mxu0 0
  %8503 = vmatpush1.bf16.msra.mxu0 %v8471
  %8504 = vmatprep.subr.bf16.mxu0 0
  %8505 = vmatpush1.bf16.msra.mxu0 %v8470
  %8506 = vmatprep.subr.bf16.mxu0 0
  %8507 = vmatpush1.bf16.msra.mxu0 %v8469
  %8508 = vmatprep.subr.bf16.mxu0 0
  %8509 = vmatpush1.bf16.msra.mxu0 %v8468
  %8510 = vmatprep.subr.bf16.mxu0 0
  %8511 = vmatpush1.bf16.msra.mxu0 %v8467
  %8512 = vmatprep.subr.bf16.mxu0 0
  %8513 = vmatpush1.bf16.msra.mxu0 %v8466
  %8514 = vmatprep.subr.bf16.mxu0 0
  %8515 = vmatpush2.bf16.msra.mxu0 %v8481
  %8516 = vmatprep.subr.bf16.mxu0 0
  %8517 = vmatpush2.bf16.msra.mxu0 %v8480
  %8518 = vmatprep.subr.bf16.mxu0 0
  %8519 = vmatpush2.bf16.msra.mxu0 %v8479
  %8520 = vmatprep.subr.bf16.mxu0 0
  %8521 = vmatpush2.bf16.msra.mxu0 %v8478
  %8522 = vmatprep.subr.bf16.mxu0 0
  %8523 = vmatpush2.bf16.msra.mxu0 %v8477
  %8524 = vmatprep.subr.bf16.mxu0 0
  %8525 = vmatpush2.bf16.msra.mxu0 %v8476
  %8526 = vmatprep.subr.bf16.mxu0 0
  %8527 = vmatpush2.bf16.msra.mxu0 %v8475
  %8528 = vmatprep.subr.bf16.mxu0 0
  %8529 = vmatpush2.bf16.msra.mxu0 %v8474
  %8530 = vmatprep.mubr.bf16.mxu0 %v8332
  %8531 = vmatmul.mubr.bf16.gmra.mxu0 %v8331
  %v8532 = vpop.f32.mrf.mxu0
  %v8533 = vadd.f32 %v8400, %v8532
  %v8534 = vpop.f32.mrf.mxu0
  %v8535 = vpop.f32.mrf.mxu0
  %v8536 = vadd.f32 %v8400, %v8535
  %v8537 = vpop.f32.mrf.mxu0
  %8538 = vmatprep.mubr.bf16.mxu0 %v8334
  %8539 = vmatmul.mubr.bf16.gmra.mxu0 %v8333
  %v8540 = vpop.f32.mrf.mxu0
  %v8541 = vadd.f32 %v8400, %v8540
  %v8542 = vpop.f32.mrf.mxu0
  %v8543 = vpop.f32.mrf.mxu0
  %v8544 = vadd.f32 %v8400, %v8543
  %v8545 = vpop.f32.mrf.mxu0
  %8546 = vmatprep.mubr.bf16.mxu0 %v8336
  %8547 = vmatmul.mubr.bf16.gmra.mxu0 %v8335
  %v8548 = vpop.f32.mrf.mxu0
  %v8549 = vadd.f32 %v8400, %v8548
  %v8550 = vpop.f32.mrf.mxu0
  %v8551 = vpop.f32.mrf.mxu0
  %v8552 = vadd.f32 %v8400, %v8551
  %v8553 = vpop.f32.mrf.mxu0
  %8554 = vmatprep.mubr.bf16.mxu0 %v8338
  %8555 = vmatmul.mubr.bf16.gmra.mxu0 %v8337
  %v8556 = vpop.f32.mrf.mxu0
  %v8557 = vadd.f32 %v8400, %v8556
  %v8558 = vpop.f32.mrf.mxu0
  %v8559 = vpop.f32.mrf.mxu0
  %v8560 = vadd.f32 %v8400, %v8559
  %v8561 = vpop.f32.mrf.mxu0
  %8562 = vmatprep.mubr.bf16.mxu0 %v8340
  %8563 = vmatmul.mubr.bf16.gmra.mxu0 %v8339
  %v8564 = vpop.f32.mrf.mxu0
  %v8565 = vadd.f32 %v8400, %v8564
  %v8566 = vpop.f32.mrf.mxu0
  %v8567 = vpop.f32.mrf.mxu0
  %v8568 = vadd.f32 %v8400, %v8567
  %v8569 = vpop.f32.mrf.mxu0
  %8570 = vmatprep.mubr.bf16.mxu0 %v8342
  %8571 = vmatmul.mubr.bf16.gmra.mxu0 %v8341
  %v8572 = vpop.f32.mrf.mxu0
  %v8573 = vadd.f32 %v8400, %v8572
  %v8574 = vpop.f32.mrf.mxu0
  %v8575 = vpop.f32.mrf.mxu0
  %v8576 = vadd.f32 %v8400, %v8575
  %v8577 = vpop.f32.mrf.mxu0
  %8578 = vmatprep.mubr.bf16.mxu0 %v8344
  %8579 = vmatmul.mubr.bf16.gmra.mxu0 %v8343
  %v8580 = vpop.f32.mrf.mxu0
  %v8581 = vadd.f32 %v8400, %v8580
  %v8582 = vpop.f32.mrf.mxu0
  %v8583 = vpop.f32.mrf.mxu0
  %v8584 = vadd.f32 %v8400, %v8583
  %v8585 = vpop.f32.mrf.mxu0
  %8586 = vmatprep.mubr.bf16.mxu0 %v8346
  %8587 = vmatmul.mubr.bf16.gmra.mxu0 %v8345
  %v8588 = vpop.f32.mrf.mxu0
  %v8589 = vadd.f32 %v8400, %v8588
  %v8590 = vpop.f32.mrf.mxu0
  %v8591 = vpop.f32.mrf.mxu0
  %v8592 = vadd.f32 %v8400, %v8591
  %v8593 = vpop.f32.mrf.mxu0
  %8594 = vmatprep.mubr.bf16.mxu0 %v8348
  %8595 = vmatmul.mubr.bf16.gmra.mxu0 %v8347
  %v8596 = vpop.f32.mrf.mxu0
  %v8597 = vadd.f32 %v8400, %v8596
  %v8598 = vpop.f32.mrf.mxu0
  %v8599 = vpop.f32.mrf.mxu0
  %v8600 = vadd.f32 %v8400, %v8599
  %v8601 = vpop.f32.mrf.mxu0
  %8602 = vmatprep.mubr.bf16.mxu0 %v8350
  %8603 = vmatmul.mubr.bf16.gmra.mxu0 %v8349
  %v8604 = vpop.f32.mrf.mxu0
  %v8605 = vadd.f32 %v8400, %v8604
  %v8606 = vpop.f32.mrf.mxu0
  %v8607 = vpop.f32.mrf.mxu0
  %v8608 = vadd.f32 %v8400, %v8607
  %v8609 = vpop.f32.mrf.mxu0
  %8610 = vmatprep.mubr.bf16.mxu0 %v8352
  %8611 = vmatmul.mubr.bf16.gmra.mxu0 %v8351
  %v8612 = vpop.f32.mrf.mxu0
  %v8613 = vadd.f32 %v8400, %v8612
  %v8614 = vpop.f32.mrf.mxu0
  %v8615 = vpop.f32.mrf.mxu0
  %v8616 = vadd.f32 %v8400, %v8615
  %v8617 = vpop.f32.mrf.mxu0
  %8618 = vmatprep.mubr.bf16.mxu0 %v8354
  %8619 = vmatmul.mubr.bf16.gmra.mxu0 %v8353
  %v8620 = vpop.f32.mrf.mxu0
  %v8621 = vadd.f32 %v8400, %v8620
  %v8622 = vpop.f32.mrf.mxu0
  %v8623 = vpop.f32.mrf.mxu0
  %v8624 = vadd.f32 %v8400, %v8623
  %v8625 = vpop.f32.mrf.mxu0
  %8626 = vmatprep.mubr.bf16.mxu0 %v8356
  %8627 = vmatmul.mubr.bf16.gmra.mxu0 %v8355
  %v8628 = vpop.f32.mrf.mxu0
  %v8629 = vadd.f32 %v8400, %v8628
  %v8630 = vpop.f32.mrf.mxu0
  %v8631 = vpop.f32.mrf.mxu0
  %v8632 = vadd.f32 %v8400, %v8631
  %v8633 = vpop.f32.mrf.mxu0
  %8634 = vmatprep.mubr.bf16.mxu0 %v8358
  %8635 = vmatmul.mubr.bf16.gmra.mxu0 %v8357
  %v8636 = vpop.f32.mrf.mxu0
  %v8637 = vadd.f32 %v8400, %v8636
  %v8638 = vpop.f32.mrf.mxu0
  %v8639 = vpop.f32.mrf.mxu0
  %v8640 = vadd.f32 %v8400, %v8639
  %v8641 = vpop.f32.mrf.mxu0
  %8642 = vmatprep.mubr.bf16.mxu0 %v8360
  %8643 = vmatmul.mubr.bf16.gmra.mxu0 %v8359
  %v8644 = vpop.f32.mrf.mxu0
  %v8645 = vadd.f32 %v8400, %v8644
  %v8646 = vpop.f32.mrf.mxu0
  %v8647 = vpop.f32.mrf.mxu0
  %v8648 = vadd.f32 %v8400, %v8647
  %v8649 = vpop.f32.mrf.mxu0
  %8650 = vmatprep.mubr.bf16.mxu0 %v8362
  %8651 = vmatmul.mubr.bf16.gmra.mxu0 %v8361
  %v8652 = vpop.f32.mrf.mxu0
  %v8653 = vadd.f32 %v8400, %v8652
  %v8654 = vpop.f32.mrf.mxu0
  %v8655 = vpop.f32.mrf.mxu0
  %v8656 = vadd.f32 %v8400, %v8655
  %v8657 = vpop.f32.mrf.mxu0
  %8658 = vdwg.mxu0
  %v8659 = vlaneseq
  %v8660 = vand.u32 %v8659, 127
  %v8661 = vand.u32 2147483647, %v8533
  %v8662 = vand.u32 2147483647, %v8536
  %v8663 = vand.u32 2147483647, %v8541
  %v8664 = vand.u32 2147483647, %v8544
  %v8665 = vand.u32 2147483647, %v8549
  %v8666 = vand.u32 2147483647, %v8552
  %v8667 = vand.u32 2147483647, %v8557
  %v8668 = vand.u32 2147483647, %v8560
  %v8669 = vand.u32 2147483647, %v8565
  %v8670 = vand.u32 2147483647, %v8568
  %v8671 = vand.u32 2147483647, %v8573
  %v8672 = vand.u32 2147483647, %v8576
  %v8673 = vand.u32 2147483647, %v8581
  %v8674 = vand.u32 2147483647, %v8584
  %v8675 = vand.u32 2147483647, %v8589
  %v8676 = vand.u32 2147483647, %v8592
  %v8677 = vand.u32 2147483647, %v8597
  %v8678 = vand.u32 2147483647, %v8600
  %v8679 = vand.u32 2147483647, %v8605
  %v8680 = vand.u32 2147483647, %v8608
  %v8681 = vand.u32 2147483647, %v8613
  %v8682 = vand.u32 2147483647, %v8616
  %v8683 = vand.u32 2147483647, %v8621
  %v8684 = vand.u32 2147483647, %v8624
  %v8685 = vand.u32 2147483647, %v8629
  %v8686 = vand.u32 2147483647, %v8632
  %v8687 = vand.u32 2147483647, %v8637
  %v8688 = vand.u32 2147483647, %v8640
  %v8689 = vand.u32 2147483647, %v8645
  %v8690 = vand.u32 2147483647, %v8648
  %v8691 = vand.u32 2147483647, %v8653
  %v8692 = vand.u32 2147483647, %v8656
  %v8693 = vsub.f32 0.0, %v8661
  %v8694 = vsub.f32 0.0, %v8662
  %v8695 = vsub.f32 0.0, %v8663
  %v8696 = vsub.f32 0.0, %v8664
  %v8697 = vsub.f32 0.0, %v8665
  %v8698 = vsub.f32 0.0, %v8666
  %v8699 = vsub.f32 0.0, %v8667
  %v8700 = vsub.f32 0.0, %v8668
  %v8701 = vsub.f32 0.0, %v8669
  %v8702 = vsub.f32 0.0, %v8670
  %v8703 = vsub.f32 0.0, %v8671
  %v8704 = vsub.f32 0.0, %v8672
  %v8705 = vsub.f32 0.0, %v8673
  %v8706 = vsub.f32 0.0, %v8674
  %v8707 = vsub.f32 0.0, %v8675
  %v8708 = vsub.f32 0.0, %v8676
  %v8709 = vsub.f32 0.0, %v8677
  %v8710 = vsub.f32 0.0, %v8678
  %v8711 = vsub.f32 0.0, %v8679
  %v8712 = vsub.f32 0.0, %v8680
  %v8713 = vsub.f32 0.0, %v8681
  %v8714 = vsub.f32 0.0, %v8682
  %v8715 = vsub.f32 0.0, %v8683
  %v8716 = vsub.f32 0.0, %v8684
  %v8717 = vsub.f32 0.0, %v8685
  %v8718 = vsub.f32 0.0, %v8686
  %v8719 = vsub.f32 0.0, %v8687
  %v8720 = vsub.f32 0.0, %v8688
  %v8721 = vsub.f32 0.0, %v8689
  %v8722 = vsub.f32 0.0, %v8690
  %v8723 = vsub.f32 0.0, %v8691
  %v8724 = vsub.f32 0.0, %v8692
  %v8725 = vmul.f32 %v8693, 1.442695
  %v8726 = vpow.pop %v8725
  %v8727 = vmul.f32 %v8694, 1.442695
  %v8728 = vpow.pop %v8727
  %v8729 = vmul.f32 %v8695, 1.442695
  %v8730 = vpow.pop %v8729
  %v8731 = vmul.f32 %v8696, 1.442695
  %v8732 = vpow.pop %v8731
  %v8733 = vmul.f32 %v8697, 1.442695
  %v8734 = vpow.pop %v8733
  %v8735 = vmul.f32 %v8698, 1.442695
  %v8736 = vpow.pop %v8735
  %v8737 = vmul.f32 %v8699, 1.442695
  %v8738 = vpow.pop %v8737
  %v8739 = vmul.f32 %v8700, 1.442695
  %v8740 = vpow.pop %v8739
  %v8741 = vmul.f32 %v8701, 1.442695
  %v8742 = vpow.pop %v8741
  %v8743 = vmul.f32 %v8702, 1.442695
  %v8744 = vpow.pop %v8743
  %v8745 = vmul.f32 %v8703, 1.442695
  %v8746 = vpow.pop %v8745
  %v8747 = vmul.f32 %v8704, 1.442695
  %v8748 = vpow.pop %v8747
  %v8749 = vmul.f32 %v8705, 1.442695
  %v8750 = vpow.pop %v8749
  %v8751 = vmul.f32 %v8706, 1.442695
  %v8752 = vpow.pop %v8751
  %v8753 = vmul.f32 %v8707, 1.442695
  %v8754 = vpow.pop %v8753
  %v8755 = vmul.f32 %v8708, 1.442695
  %v8756 = vpow.pop %v8755
  %v8757 = vmul.f32 %v8709, 1.442695
  %v8758 = vpow.pop %v8757
  %v8759 = vmul.f32 %v8710, 1.442695
  %v8760 = vpow.pop %v8759
  %v8761 = vmul.f32 %v8711, 1.442695
  %v8762 = vpow.pop %v8761
  %v8763 = vmul.f32 %v8712, 1.442695
  %v8764 = vpow.pop %v8763
  %v8765 = vmul.f32 %v8713, 1.442695
  %v8766 = vpow.pop %v8765
  %v8767 = vmul.f32 %v8714, 1.442695
  %v8768 = vpow.pop %v8767
  %v8769 = vmul.f32 %v8715, 1.442695
  %v8770 = vpow.pop %v8769
  %v8771 = vmul.f32 %v8716, 1.442695
  %v8772 = vpow.pop %v8771
  %v8773 = vmul.f32 %v8717, 1.442695
  %v8774 = vpow.pop %v8773
  %v8775 = vmul.f32 %v8718, 1.442695
  %v8776 = vpow.pop %v8775
  %v8777 = vmul.f32 %v8719, 1.442695
  %v8778 = vpow.pop %v8777
  %v8779 = vmul.f32 %v8720, 1.442695
  %v8780 = vpow.pop %v8779
  %v8781 = vmul.f32 %v8721, 1.442695
  %v8782 = vpow.pop %v8781
  %v8783 = vmul.f32 %v8722, 1.442695
  %v8784 = vpow.pop %v8783
  %v8785 = vmul.f32 %v8723, 1.442695
  %v8786 = vpow.pop %v8785
  %v8787 = vmul.f32 %v8724, 1.442695
  %v8788 = vpow.pop %v8787
  %v8789 = vadd.f32 %v8726, 1.0
  %v8790 = vadd.f32 %v8728, 1.0
  %v8791 = vadd.f32 %v8730, 1.0
  %v8792 = vadd.f32 %v8732, 1.0
  %v8793 = vadd.f32 %v8734, 1.0
  %v8794 = vadd.f32 %v8736, 1.0
  %v8795 = vadd.f32 %v8738, 1.0
  %v8796 = vadd.f32 %v8740, 1.0
  %v8797 = vadd.f32 %v8742, 1.0
  %v8798 = vadd.f32 %v8744, 1.0
  %v8799 = vadd.f32 %v8746, 1.0
  %v8800 = vadd.f32 %v8748, 1.0
  %v8801 = vadd.f32 %v8750, 1.0
  %v8802 = vadd.f32 %v8752, 1.0
  %v8803 = vadd.f32 %v8754, 1.0
  %v8804 = vadd.f32 %v8756, 1.0
  %v8805 = vadd.f32 %v8758, 1.0
  %v8806 = vadd.f32 %v8760, 1.0
  %v8807 = vadd.f32 %v8762, 1.0
  %v8808 = vadd.f32 %v8764, 1.0
  %v8809 = vadd.f32 %v8766, 1.0
  %v8810 = vadd.f32 %v8768, 1.0
  %v8811 = vadd.f32 %v8770, 1.0
  %v8812 = vadd.f32 %v8772, 1.0
  %v8813 = vadd.f32 %v8774, 1.0
  %v8814 = vadd.f32 %v8776, 1.0
  %v8815 = vadd.f32 %v8778, 1.0
  %v8816 = vadd.f32 %v8780, 1.0
  %v8817 = vadd.f32 %v8782, 1.0
  %v8818 = vadd.f32 %v8784, 1.0
  %v8819 = vadd.f32 %v8786, 1.0
  %v8820 = vadd.f32 %v8788, 1.0
  %v8821 = vrcp.pop %v8789
  %v8822 = vrcp.pop %v8790
  %v8823 = vrcp.pop %v8791
  %v8824 = vrcp.pop %v8792
  %v8825 = vrcp.pop %v8793
  %v8826 = vrcp.pop %v8794
  %v8827 = vrcp.pop %v8795
  %v8828 = vrcp.pop %v8796
  %v8829 = vrcp.pop %v8797
  %v8830 = vrcp.pop %v8798
  %v8831 = vrcp.pop %v8799
  %v8832 = vrcp.pop %v8800
  %v8833 = vrcp.pop %v8801
  %v8834 = vrcp.pop %v8802
  %v8835 = vrcp.pop %v8803
  %v8836 = vrcp.pop %v8804
  %v8837 = vrcp.pop %v8805
  %v8838 = vrcp.pop %v8806
  %v8839 = vrcp.pop %v8807
  %v8840 = vrcp.pop %v8808
  %v8841 = vrcp.pop %v8809
  %v8842 = vrcp.pop %v8810
  %v8843 = vrcp.pop %v8811
  %v8844 = vrcp.pop %v8812
  %v8845 = vrcp.pop %v8813
  %v8846 = vrcp.pop %v8814
  %v8847 = vrcp.pop %v8815
  %v8848 = vrcp.pop %v8816
  %v8849 = vrcp.pop %v8817
  %v8850 = vrcp.pop %v8818
  %v8851 = vrcp.pop %v8819
  %v8852 = vrcp.pop %v8820
  %vm8853 = vcmp.ge.f32.partialorder %v8533, 0.0
  %vm8854 = vcmp.ge.f32.partialorder %v8536, 0.0
  %vm8855 = vcmp.ge.f32.partialorder %v8541, 0.0
  %vm8856 = vcmp.ge.f32.partialorder %v8544, 0.0
  %vm8857 = vcmp.ge.f32.partialorder %v8549, 0.0
  %vm8858 = vcmp.ge.f32.partialorder %v8552, 0.0
  %vm8859 = vcmp.ge.f32.partialorder %v8557, 0.0
  %vm8860 = vcmp.ge.f32.partialorder %v8560, 0.0
  %vm8861 = vcmp.ge.f32.partialorder %v8565, 0.0
  %vm8862 = vcmp.ge.f32.partialorder %v8568, 0.0
  %vm8863 = vcmp.ge.f32.partialorder %v8573, 0.0
  %vm8864 = vcmp.ge.f32.partialorder %v8576, 0.0
  %vm8865 = vcmp.ge.f32.partialorder %v8581, 0.0
  %vm8866 = vcmp.ge.f32.partialorder %v8584, 0.0
  %vm8867 = vcmp.ge.f32.partialorder %v8589, 0.0
  %vm8868 = vcmp.ge.f32.partialorder %v8592, 0.0
  %vm8869 = vcmp.ge.f32.partialorder %v8597, 0.0
  %vm8870 = vcmp.ge.f32.partialorder %v8600, 0.0
  %vm8871 = vcmp.ge.f32.partialorder %v8605, 0.0
  %vm8872 = vcmp.ge.f32.partialorder %v8608, 0.0
  %vm8873 = vcmp.ge.f32.partialorder %v8613, 0.0
  %vm8874 = vcmp.ge.f32.partialorder %v8616, 0.0
  %vm8875 = vcmp.ge.f32.partialorder %v8621, 0.0
  %vm8876 = vcmp.ge.f32.partialorder %v8624, 0.0
  %vm8877 = vcmp.ge.f32.partialorder %v8629, 0.0
  %vm8878 = vcmp.ge.f32.partialorder %v8632, 0.0
  %vm8879 = vcmp.ge.f32.partialorder %v8637, 0.0
  %vm8880 = vcmp.ge.f32.partialorder %v8640, 0.0
  %vm8881 = vcmp.ge.f32.partialorder %v8645, 0.0
  %vm8882 = vcmp.ge.f32.partialorder %v8648, 0.0
  %vm8883 = vcmp.ge.f32.partialorder %v8653, 0.0
  %vm8884 = vcmp.ge.f32.partialorder %v8656, 0.0
  %v8885 = vmul.f32 %v8726, %v8821
  %v8886 = vmul.f32 %v8728, %v8822
  %v8887 = vmul.f32 %v8730, %v8823
  %v8888 = vmul.f32 %v8732, %v8824
  %v8889 = vmul.f32 %v8734, %v8825
  %v8890 = vmul.f32 %v8736, %v8826
  %v8891 = vmul.f32 %v8738, %v8827
  %v8892 = vmul.f32 %v8740, %v8828
  %v8893 = vmul.f32 %v8742, %v8829
  %v8894 = vmul.f32 %v8744, %v8830
  %v8895 = vmul.f32 %v8746, %v8831
  %v8896 = vmul.f32 %v8748, %v8832
  %v8897 = vmul.f32 %v8750, %v8833
  %v8898 = vmul.f32 %v8752, %v8834
  %v8899 = vmul.f32 %v8754, %v8835
  %v8900 = vmul.f32 %v8756, %v8836
  %v8901 = vmul.f32 %v8758, %v8837
  %v8902 = vmul.f32 %v8760, %v8838
  %v8903 = vmul.f32 %v8762, %v8839
  %v8904 = vmul.f32 %v8764, %v8840
  %v8905 = vmul.f32 %v8766, %v8841
  %v8906 = vmul.f32 %v8768, %v8842
  %v8907 = vmul.f32 %v8770, %v8843
  %v8908 = vmul.f32 %v8772, %v8844
  %v8909 = vmul.f32 %v8774, %v8845
  %v8910 = vmul.f32 %v8776, %v8846
  %v8911 = vmul.f32 %v8778, %v8847
  %v8912 = vmul.f32 %v8780, %v8848
  %v8913 = vmul.f32 %v8782, %v8849
  %v8914 = vmul.f32 %v8784, %v8850
  %v8915 = vmul.f32 %v8786, %v8851
  %v8916 = vmul.f32 %v8788, %v8852
  %v8917 = vsel %vm8853, %v8821, %v8885
  %v8918 = vsel %vm8854, %v8822, %v8886
  %v8919 = vsel %vm8855, %v8823, %v8887
  %v8920 = vsel %vm8856, %v8824, %v8888
  %v8921 = vsel %vm8857, %v8825, %v8889
  %v8922 = vsel %vm8858, %v8826, %v8890
  %v8923 = vsel %vm8859, %v8827, %v8891
  %v8924 = vsel %vm8860, %v8828, %v8892
  %v8925 = vsel %vm8861, %v8829, %v8893
  %v8926 = vsel %vm8862, %v8830, %v8894
  %v8927 = vsel %vm8863, %v8831, %v8895
  %v8928 = vsel %vm8864, %v8832, %v8896
  %v8929 = vsel %vm8865, %v8833, %v8897
  %v8930 = vsel %vm8866, %v8834, %v8898
  %v8931 = vsel %vm8867, %v8835, %v8899
  %v8932 = vsel %vm8868, %v8836, %v8900
  %v8933 = vsel %vm8869, %v8837, %v8901
  %v8934 = vsel %vm8870, %v8838, %v8902
  %v8935 = vsel %vm8871, %v8839, %v8903
  %v8936 = vsel %vm8872, %v8840, %v8904
  %v8937 = vsel %vm8873, %v8841, %v8905
  %v8938 = vsel %vm8874, %v8842, %v8906
  %v8939 = vsel %vm8875, %v8843, %v8907
  %v8940 = vsel %vm8876, %v8844, %v8908
  %v8941 = vsel %vm8877, %v8845, %v8909
  %v8942 = vsel %vm8878, %v8846, %v8910
  %v8943 = vsel %vm8879, %v8847, %v8911
  %v8944 = vsel %vm8880, %v8848, %v8912
  %v8945 = vsel %vm8881, %v8849, %v8913
  %v8946 = vsel %vm8882, %v8850, %v8914
  %v8947 = vsel %vm8883, %v8851, %v8915
  %v8948 = vsel %vm8884, %v8852, %v8916
  %v8949 = vmax.f32 %v8533, 0.0
  %v8950 = vmax.f32 %v8536, 0.0
  %v8951 = vmax.f32 %v8541, 0.0
  %v8952 = vmax.f32 %v8544, 0.0
  %v8953 = vmax.f32 %v8549, 0.0
  %v8954 = vmax.f32 %v8552, 0.0
  %v8955 = vmax.f32 %v8557, 0.0
  %v8956 = vmax.f32 %v8560, 0.0
  %v8957 = vmax.f32 %v8565, 0.0
  %v8958 = vmax.f32 %v8568, 0.0
  %v8959 = vmax.f32 %v8573, 0.0
  %v8960 = vmax.f32 %v8576, 0.0
  %v8961 = vmax.f32 %v8581, 0.0
  %v8962 = vmax.f32 %v8584, 0.0
  %v8963 = vmax.f32 %v8589, 0.0
  %v8964 = vmax.f32 %v8592, 0.0
  %v8965 = vmax.f32 %v8597, 0.0
  %v8966 = vmax.f32 %v8600, 0.0
  %v8967 = vmax.f32 %v8605, 0.0
  %v8968 = vmax.f32 %v8608, 0.0
  %v8969 = vmax.f32 %v8613, 0.0
  %v8970 = vmax.f32 %v8616, 0.0
  %v8971 = vmax.f32 %v8621, 0.0
  %v8972 = vmax.f32 %v8624, 0.0
  %v8973 = vmax.f32 %v8629, 0.0
  %v8974 = vmax.f32 %v8632, 0.0
  %v8975 = vmax.f32 %v8637, 0.0
  %v8976 = vmax.f32 %v8640, 0.0
  %v8977 = vmax.f32 %v8645, 0.0
  %v8978 = vmax.f32 %v8648, 0.0
  %v8979 = vmax.f32 %v8653, 0.0
  %v8980 = vmax.f32 %v8656, 0.0
  %v8981 = vlog2.pop %v8789
  %v8982 = vmul.f32 %v8981, 0.6931472
  %v8983 = vlog2.pop %v8790
  %v8984 = vmul.f32 %v8983, 0.6931472
  %v8985 = vlog2.pop %v8791
  %v8986 = vmul.f32 %v8985, 0.6931472
  %v8987 = vlog2.pop %v8792
  %v8988 = vmul.f32 %v8987, 0.6931472
  %v8989 = vlog2.pop %v8793
  %v8990 = vmul.f32 %v8989, 0.6931472
  %v8991 = vlog2.pop %v8794
  %v8992 = vmul.f32 %v8991, 0.6931472
  %v8993 = vlog2.pop %v8795
  %v8994 = vmul.f32 %v8993, 0.6931472
  %v8995 = vlog2.pop %v8796
  %v8996 = vmul.f32 %v8995, 0.6931472
  %v8997 = vlog2.pop %v8797
  %v8998 = vmul.f32 %v8997, 0.6931472
  %v8999 = vlog2.pop %v8798
  %v9000 = vmul.f32 %v8999, 0.6931472
  %v9001 = vlog2.pop %v8799
  %v9002 = vmul.f32 %v9001, 0.6931472
  %v9003 = vlog2.pop %v8800
  %v9004 = vmul.f32 %v9003, 0.6931472
  %v9005 = vlog2.pop %v8801
  %v9006 = vmul.f32 %v9005, 0.6931472
  %v9007 = vlog2.pop %v8802
  %v9008 = vmul.f32 %v9007, 0.6931472
  %v9009 = vlog2.pop %v8803
  %v9010 = vmul.f32 %v9009, 0.6931472
  %v9011 = vlog2.pop %v8804
  %v9012 = vmul.f32 %v9011, 0.6931472
  %v9013 = vlog2.pop %v8805
  %v9014 = vmul.f32 %v9013, 0.6931472
  %v9015 = vlog2.pop %v8806
  %v9016 = vmul.f32 %v9015, 0.6931472
  %v9017 = vlog2.pop %v8807
  %v9018 = vmul.f32 %v9017, 0.6931472
  %v9019 = vlog2.pop %v8808
  %v9020 = vmul.f32 %v9019, 0.6931472
  %v9021 = vlog2.pop %v8809
  %v9022 = vmul.f32 %v9021, 0.6931472
  %v9023 = vlog2.pop %v8810
  %v9024 = vmul.f32 %v9023, 0.6931472
  %v9025 = vlog2.pop %v8811
  %v9026 = vmul.f32 %v9025, 0.6931472
  %v9027 = vlog2.pop %v8812
  %v9028 = vmul.f32 %v9027, 0.6931472
  %v9029 = vlog2.pop %v8813
  %v9030 = vmul.f32 %v9029, 0.6931472
  %v9031 = vlog2.pop %v8814
  %v9032 = vmul.f32 %v9031, 0.6931472
  %v9033 = vlog2.pop %v8815
  %v9034 = vmul.f32 %v9033, 0.6931472
  %v9035 = vlog2.pop %v8816
  %v9036 = vmul.f32 %v9035, 0.6931472
  %v9037 = vlog2.pop %v8817
  %v9038 = vmul.f32 %v9037, 0.6931472
  %v9039 = vlog2.pop %v8818
  %v9040 = vmul.f32 %v9039, 0.6931472
  %v9041 = vlog2.pop %v8819
  %v9042 = vmul.f32 %v9041, 0.6931472
  %v9043 = vlog2.pop %v8820
  %v9044 = vmul.f32 %v9043, 0.6931472
  %v9045 = vadd.f32 %v8949, %v8982
  %v9046 = vadd.f32 %v8950, %v8984
  %v9047 = vadd.f32 %v8951, %v8986
  %v9048 = vadd.f32 %v8952, %v8988
  %v9049 = vadd.f32 %v8953, %v8990
  %v9050 = vadd.f32 %v8954, %v8992
  %v9051 = vadd.f32 %v8955, %v8994
  %v9052 = vadd.f32 %v8956, %v8996
  %v9053 = vadd.f32 %v8957, %v8998
  %v9054 = vadd.f32 %v8958, %v9000
  %v9055 = vadd.f32 %v8959, %v9002
  %v9056 = vadd.f32 %v8960, %v9004
  %v9057 = vadd.f32 %v8961, %v9006
  %v9058 = vadd.f32 %v8962, %v9008
  %v9059 = vadd.f32 %v8963, %v9010
  %v9060 = vadd.f32 %v8964, %v9012
  %v9061 = vadd.f32 %v8965, %v9014
  %v9062 = vadd.f32 %v8966, %v9016
  %v9063 = vadd.f32 %v8967, %v9018
  %v9064 = vadd.f32 %v8968, %v9020
  %v9065 = vadd.f32 %v8969, %v9022
  %v9066 = vadd.f32 %v8970, %v9024
  %v9067 = vadd.f32 %v8971, %v9026
  %v9068 = vadd.f32 %v8972, %v9028
  %v9069 = vadd.f32 %v8973, %v9030
  %v9070 = vadd.f32 %v8974, %v9032
  %v9071 = vadd.f32 %v8975, %v9034
  %v9072 = vadd.f32 %v8976, %v9036
  %v9073 = vadd.f32 %v8977, %v9038
  %v9074 = vadd.f32 %v8978, %v9040
  %v9075 = vadd.f32 %v8979, %v9042
  %v9076 = vadd.f32 %v8980, %v9044
  %vm9077 = vcmp.lt.s32.totalorder %v8660, 3
  %vm9078 = vcmp.eq.s32.totalorder %v8660, 3
  %v9079 = vsel %vm9078, 1, 0
  %vm9080 = vcmp.eq.s32.totalorder %v9079, 1
  %v9081 = vsel %vm9080, %v9045, 0.0
  %v9082 = vsel %vm9080, %v9046, 0.0
  %v9083 = vsel %vm9080, %v9047, 0.0
  %v9084 = vsel %vm9080, %v9048, 0.0
  %v9085 = vsel %vm9080, %v9049, 0.0
  %v9086 = vsel %vm9080, %v9050, 0.0
  %v9087 = vsel %vm9080, %v9051, 0.0
  %v9088 = vsel %vm9080, %v9052, 0.0
  %v9089 = vsel %vm9080, %v9053, 0.0
  %v9090 = vsel %vm9080, %v9054, 0.0
  %v9091 = vsel %vm9080, %v9055, 0.0
  %v9092 = vsel %vm9080, %v9056, 0.0
  %v9093 = vsel %vm9080, %v9057, 0.0
  %v9094 = vsel %vm9080, %v9058, 0.0
  %v9095 = vsel %vm9080, %v9059, 0.0
  %v9096 = vsel %vm9080, %v9060, 0.0
  %v9097 = vsel %vm9080, %v9061, 0.0
  %v9098 = vsel %vm9080, %v9062, 0.0
  %v9099 = vsel %vm9080, %v9063, 0.0
  %v9100 = vsel %vm9080, %v9064, 0.0
  %v9101 = vsel %vm9080, %v9065, 0.0
  %v9102 = vsel %vm9080, %v9066, 0.0
  %v9103 = vsel %vm9080, %v9067, 0.0
  %v9104 = vsel %vm9080, %v9068, 0.0
  %v9105 = vsel %vm9080, %v9069, 0.0
  %v9106 = vsel %vm9080, %v9070, 0.0
  %v9107 = vsel %vm9080, %v9071, 0.0
  %v9108 = vsel %vm9080, %v9072, 0.0
  %v9109 = vsel %vm9080, %v9073, 0.0
  %v9110 = vsel %vm9080, %v9074, 0.0
  %v9111 = vsel %vm9080, %v9075, 0.0
  %v9112 = vsel %vm9080, %v9076, 0.0
  %v9113 = vsel %vm9077, 1, 0
  %vm9114 = vcmp.eq.s32.totalorder %v9113, 1
  %v9115 = vsel %vm9114, %v8917, %v9081
  %v9116 = vsel %vm9114, %v8918, %v9082
  %v9117 = vsel %vm9114, %v8919, %v9083
  %v9118 = vsel %vm9114, %v8920, %v9084
  %v9119 = vsel %vm9114, %v8921, %v9085
  %v9120 = vsel %vm9114, %v8922, %v9086
  %v9121 = vsel %vm9114, %v8923, %v9087
  %v9122 = vsel %vm9114, %v8924, %v9088
  %v9123 = vsel %vm9114, %v8925, %v9089
  %v9124 = vsel %vm9114, %v8926, %v9090
  %v9125 = vsel %vm9114, %v8927, %v9091
  %v9126 = vsel %vm9114, %v8928, %v9092
  %v9127 = vsel %vm9114, %v8929, %v9093
  %v9128 = vsel %vm9114, %v8930, %v9094
  %v9129 = vsel %vm9114, %v8931, %v9095
  %v9130 = vsel %vm9114, %v8932, %v9096
  %v9131 = vsel %vm9114, %v8933, %v9097
  %v9132 = vsel %vm9114, %v8934, %v9098
  %v9133 = vsel %vm9114, %v8935, %v9099
  %v9134 = vsel %vm9114, %v8936, %v9100
  %v9135 = vsel %vm9114, %v8937, %v9101
  %v9136 = vsel %vm9114, %v8938, %v9102
  %v9137 = vsel %vm9114, %v8939, %v9103
  %v9138 = vsel %vm9114, %v8940, %v9104
  %v9139 = vsel %vm9114, %v8941, %v9105
  %v9140 = vsel %vm9114, %v8942, %v9106
  %v9141 = vsel %vm9114, %v8943, %v9107
  %v9142 = vsel %vm9114, %v8944, %v9108
  %v9143 = vsel %vm9114, %v8945, %v9109
  %v9144 = vsel %vm9114, %v8946, %v9110
  %v9145 = vsel %vm9114, %v8947, %v9111
  %v9146 = vsel %vm9114, %v8948, %v9112
  %vm9147 = vcmask 64512
  %9148 = vst.msk [vmem:[%s7] sm:$0xff] %vm9147, %v9115
  %9149 = vst.msk [vmem:[%s7 + $0x8] sm:$0xff] %vm9147, %v9116
  %9150 = vst.msk [vmem:[%s7 + $0x10] sm:$0xff] %vm9147, %v9117
  %9151 = vst.msk [vmem:[%s7 + $0x18] sm:$0xff] %vm9147, %v9118
  %9152 = vst.msk [vmem:[%s7 + $0x20] sm:$0xff] %vm9147, %v9119
  %9153 = vst.msk [vmem:[%s7 + $0x28] sm:$0xff] %vm9147, %v9120
  %9154 = vst.msk [vmem:[%s7 + $0x30] sm:$0xff] %vm9147, %v9121
  %9155 = vst.msk [vmem:[%s7 + $0x38] sm:$0xff] %vm9147, %v9122
  %9156 = vst.msk [vmem:[%s7 + $0x40] sm:$0xff] %vm9147, %v9123
  %9157 = vst.msk [vmem:[%s7 + $0x48] sm:$0xff] %vm9147, %v9124
  %9158 = vst.msk [vmem:[%s7 + $0x50] sm:$0xff] %vm9147, %v9125
  %9159 = vst.msk [vmem:[%s7 + $0x58] sm:$0xff] %vm9147, %v9126
  %9160 = vst.msk [vmem:[%s7 + $0x60] sm:$0xff] %vm9147, %v9127
  %9161 = vst.msk [vmem:[%s7 + $0x68] sm:$0xff] %vm9147, %v9128
  %9162 = vst.msk [vmem:[%s7 + $0x70] sm:$0xff] %vm9147, %v9129
  %9163 = vst.msk [vmem:[%s7 + $0x78] sm:$0xff] %vm9147, %v9130
  %9164 = vst.msk [vmem:[%s7 + $0x80] sm:$0xff] %vm9147, %v9131
  %9165 = vst.msk [vmem:[%s7 + $0x88] sm:$0xff] %vm9147, %v9132
  %9166 = vst.msk [vmem:[%s7 + $0x90] sm:$0xff] %vm9147, %v9133
  %9167 = vst.msk [vmem:[%s7 + $0x98] sm:$0xff] %vm9147, %v9134
  %9168 = vst.msk [vmem:[%s7 + $0xa0] sm:$0xff] %vm9147, %v9135
  %9169 = vst.msk [vmem:[%s7 + $0xa8] sm:$0xff] %vm9147, %v9136
  %9170 = vst.msk [vmem:[%s7 + $0xb0] sm:$0xff] %vm9147, %v9137
  %9171 = vst.msk [vmem:[%s7 + $0xb8] sm:$0xff] %vm9147, %v9138
  %9172 = vst.msk [vmem:[%s7 + $0xc0] sm:$0xff] %vm9147, %v9139
  %9173 = vst.msk [vmem:[%s7 + $0xc8] sm:$0xff] %vm9147, %v9140
  %9174 = vst.msk [vmem:[%s7 + $0xd0] sm:$0xff] %vm9147, %v9141
  %9175 = vst.msk [vmem:[%s7 + $0xd8] sm:$0xff] %vm9147, %v9142
  %9176 = vst.msk [vmem:[%s7 + $0xe0] sm:$0xff] %vm9147, %v9143
  %9177 = vst.msk [vmem:[%s7 + $0xe8] sm:$0xff] %vm9147, %v9144
  %9178 = vst.msk [vmem:[%s7 + $0xf0] sm:$0xff] %vm9147, %v9145
  %9179 = vst.msk [vmem:[%s7 + $0xf8] sm:$0xff] %vm9147, %v9146
  // Predicated region
  $region30: #{nerf_forward.1} parent=0 // pred_check
    _
  $region31: #{nerf_forward.1} parent=0 // pred_check_branch
    %9181 = sbr.rel (0) target = $region33
  $region32: #{nerf_forward.1} parent=0 // pred_region
    _
  $region33: #{nerf_forward.1} parent=0 // pred_fallthru
    _
  // Predicated region
  $region34: #{nerf_forward.1} parent=0 // pred_check
    _
  $region35: #{nerf_forward.1} parent=0 // pred_check_branch
    %9183 = sbr.rel (0) target = $region37
  $region36: #{nerf_forward.1} parent=0 // pred_region
    _
  $region37: #{nerf_forward.1} parent=0 // pred_fallthru
    _

</llo_original>
